<compile_context>
chip_gen: v7x
topology: tpu7x:2x2x1
jax: 0.10.0
libtpu: 0.0.40
codegen_flags: <defaults>
</compile_context>

<pallas_src>
import jax
import jax.numpy as jnp
from jax.experimental import pallas as pl
from jax.experimental.pallas import tpu as pltpu


_LANE = 128  # pad the style-output minor dim to a full lane for an unmasked store


# ===========================================================================
# In-kernel building blocks
# ===========================================================================
def _conv2d_block(act, pad_ref, w_ref, b_ref, dims, mxu_dtype):
    """ReflectionPad2d(1) + 3x3 conv (stride 1|2) + bias + ReLU for ONE sample.

    act:     (h, w, cin) value
    pad_ref: (h+2, w+2, cin) VMEM scratch (mxu_dtype)
    w_ref:   (3, 3, cin, cout) ref (mxu_dtype)
    b_ref:   (1, cout) ref (float32)
    returns: (ho, wo, cout) float32 value
    """
    h, w, cin, cout, stride, ho, wo = dims
    act = act.astype(mxu_dtype)

    # --- ReflectionPad2d(1) written into the VMEM scratch ------------------
    # NOTE: the last two stores read back pad rows 2 / h-1 which were written
    # by the earlier stores.  Sequential Ref semantics make this correct for
    # the corners — do not reorder these statements.
    pad_ref[pl.ds(1, h), pl.ds(1, w), :] = act
    pad_ref[pl.ds(1, h), pl.ds(0, 1), :] = act[:, 1:2, :]
    pad_ref[pl.ds(1, h), pl.ds(w + 1, 1), :] = act[:, w - 2:w - 1, :]
    pad_ref[pl.ds(0, 1), :, :] = pad_ref[pl.ds(2, 1), :, :]
    pad_ref[pl.ds(h + 1, 1), :, :] = pad_ref[pl.ds(h - 1, 1), :, :]

    w_all = w_ref[...]                                  # (3, 3, cin, cout), one load
    acc = jnp.zeros((ho * wo, cout), jnp.float32)       # f32 accumulator (value)

    if stride == 1:
        # 9 contiguous tap loads, each feeding one small MXU matmul.
        for kh in range(3):
            for kw in range(3):
                tap = pad_ref[pl.ds(kh, ho), pl.ds(kw, wo), :]        # (ho, wo, cin)
                acc += jnp.dot(tap.reshape(ho * wo, cin), w_all[kh, kw],
                               preferred_element_type=jnp.float32)
    else:  # stride == 2: even/odd space-to-batch so every tap is a contiguous slice
        hp, wp = h + 2, w + 2
        padv = pad_ref[...]                                           # one full load
        s2b = padv.reshape(hp // 2, 2, wp // 2, 2, cin)
        slabs = [[s2b[:, pr, :, pc, :] for pc in (0, 1)] for pr in (0, 1)]
        for kh in range(3):
            for kw in range(3):
                slab = slabs[kh % 2][kw % 2]                          # (hp//2, wp//2, cin)
                tap = slab[kh // 2:kh // 2 + ho, kw // 2:kw // 2 + wo, :]
                acc += jnp.dot(tap.reshape(ho * wo, cin), w_all[kh, kw],
                               preferred_element_type=jnp.float32)

    out = jnp.maximum(acc + b_ref[...], 0.0)            # bias + ReLU, f32 epilogue
    return out.reshape(ho, wo, cout)


def _make_style_encoder_kernel(layer_dims, mxu_dtype):
    """layer_dims: tuple of (h, w, cin, cout, stride, ho, wo) per Conv2dBlock."""
    n_layers = len(layer_dims)

    def kernel(*refs):
        x_ref = refs[0]
        conv_refs = refs[1:1 + 2 * n_layers]            # w0, b0, w1, b1, ...
        wh_ref = refs[1 + 2 * n_layers]
        bh_ref = refs[2 + 2 * n_layers]
        o_ref = refs[3 + 2 * n_layers]

        act = x_ref[0]                                  # (H, W, Cin), mxu_dtype
        for li, dims in enumerate(layer_dims):
            h, w, cin = dims[0], dims[1], dims[2]
            w_ref = conv_refs[2 * li]
            b_ref = conv_refs[2 * li + 1]

            def layer_body(pad_ref, _act=act, _w=w_ref, _b=b_ref, _d=dims):
                return _conv2d_block(_act, pad_ref, _w, _b, _d, mxu_dtype)

            # Sequential run_scoped regions reuse the same VMEM offset, so the
            # padded-activation footprint is max(layer), not sum(layers).
            act = pl.run_scoped(layer_body,
                                pltpu.VMEM((h + 2, w + 2, cin), mxu_dtype))

        # Head: AdaptiveAvgPool2d(1) + 1x1 conv == global mean, then (1,C)@(C,S).
        c_last = act.shape[-1]
        pooled = jnp.mean(act.reshape(-1, c_last), axis=0, keepdims=True)   # (1, C) f32
        y = jnp.dot(pooled.astype(mxu_dtype), wh_ref[...],
                    preferred_element_type=jnp.float32) + bh_ref[...]        # (1, 128)
        o_ref[0] = y.astype(o_ref.dtype)                # lane-dense (128-wide) store

    return kernel


# ===========================================================================
# Wrapper
# ===========================================================================
def style_encoder_forward(x_nchw, conv_params, head_params, *, mxu_dtype=jnp.bfloat16):
    """Fused forward pass; returns (N, style_dim, 1, 1) like the PyTorch module."""
    x = jnp.transpose(x_nchw, (0, 2, 3, 1)).astype(mxu_dtype)       # NCHW -> NHWC
    n, h, w, _ = x.shape

    layer_dims = []
    flat_params = []
    ch, cw = h, w
    for (wk, bk, stride) in conv_params:
        _, _, cin, cout = wk.shape
        ho = (ch + 2 - 3) // stride + 1
        wo = (cw + 2 - 3) // stride + 1
        if stride == 2 and ((ch + 2) % 2 or (cw + 2) % 2):
            # TODO(synk): odd spatial dims at a stride-2 layer would need a
            # strided-tap path; standard StyleEncoder inputs are even.
            raise NotImplementedError("stride-2 layer requires even padded dims")
        layer_dims.append((ch, cw, cin, cout, stride, ho, wo))
        flat_params += [wk.astype(mxu_dtype), bk.astype(jnp.float32)]
        ch, cw = ho, wo

    wh, bh = head_params
    c_last, style_dim = wh.shape
    # Zero-pad the head weight/bias/output minor dim to 128 lanes (unmasked store).
    wh_p = jnp.zeros((c_last, _LANE), mxu_dtype).at[:, :style_dim].set(wh.astype(mxu_dtype))
    bh_p = jnp.zeros((1, _LANE), jnp.float32).at[:, :style_dim].set(bh.astype(jnp.float32))

    # ---- trace-time VMEM-fit gate -----------------------------------------
    itm = jnp.dtype(mxu_dtype).itemsize
    pad_bytes = max((hh + 2) * (ww + 2) * cin * itm
                    for (hh, ww, cin, _, _, _, _) in layer_dims)
    blk_bytes = (h * w * layer_dims[0][2] * itm
                 + sum(int(wk.size) * itm + int(bk.size) * 4 for (wk, bk, _) in conv_params)
                 + int(wh_p.size) * itm + int(bh_p.size) * 4 + _LANE * 4)
    try:
        vmem_cap = int(pltpu.get_tpu_info().vmem_capacity_bytes)
    except Exception:                                    # not queryable: assume 64 MiB (v7x)
        vmem_cap = 64 * 1024 * 1024
    est = 2 * blk_bytes + pad_bytes + (1 << 20)          # 2x for BlockSpec double-buffering
    if est > 0.8 * vmem_cap:
        # TODO(synk): spatially tiled (row-band + halo) per-layer path for
        # realistic image sizes; not needed at the toy sizes exercised here.
        raise NotImplementedError(f"fused StyleEncoder kernel needs ~{est} bytes of VMEM")

    flops = sum(2 * n * ho * wo * 9 * cin * cout
                for (_, _, cin, cout, _, ho, wo) in layer_dims) + 2 * n * c_last * _LANE
    bytes_accessed = (int(x.size) * itm
                      + sum(int(p.size) * jnp.dtype(p.dtype).itemsize for p in flat_params)
                      + int(wh_p.size) * itm + int(bh_p.size) * 4 + n * _LANE * 4)

    in_specs = [pl.BlockSpec((1, h, w, layer_dims[0][2]), lambda i: (i, 0, 0, 0))]
    for (_, _, cin, cout, _, _, _) in layer_dims:
        in_specs.append(pl.BlockSpec((3, 3, cin, cout), lambda i: (0, 0, 0, 0)))
        in_specs.append(pl.BlockSpec((1, cout), lambda i: (0, 0)))
    in_specs.append(pl.BlockSpec((c_last, _LANE), lambda i: (0, 0)))
    in_specs.append(pl.BlockSpec((1, _LANE), lambda i: (0, 0)))

    kernel = _make_style_encoder_kernel(tuple(layer_dims), mxu_dtype)

    out = pl.pallas_call(
        kernel,
        out_shape=jax.ShapeDtypeStruct((n, 1, _LANE), jnp.float32),
        grid=(n,),
        in_specs=in_specs,
        out_specs=pl.BlockSpec((1, 1, _LANE), lambda i: (i, 0, 0)),
        compiler_params=pltpu.CompilerParams(
            dimension_semantics=("parallel",),          # batch grid -> both TCs on v7x
            vmem_limit_bytes=int(min(64 * 2**20, vmem_cap // 2))),
        cost_estimate=pl.CostEstimate(flops=flops, transcendentals=0,
                                      bytes_accessed=bytes_accessed),
    )(x, *flat_params, wh_p, bh_p)

    return out[:, 0, :style_dim].reshape(n, style_dim, 1, 1)


# ===========================================================================
# Params, pure-JAX reference, driver
# ===========================================================================
def init_style_encoder_params(key, n_downsample, input_dim, dim, style_dim):
    """Mirrors StyleEncoder.__init__ (conv weights kept in HWIO layout)."""
    cfg = [(input_dim, dim, 2), (dim, dim, 1)]
    d = dim
    for _ in range(2):
        cfg.append((d, 2 * d, 2))
        d *= 2
    for _ in range(n_downsample - 2):
        cfg.append((d, d, 2))

    conv_params = []
    for (cin, cout, s) in cfg:
        key, k1, k2 = jax.random.split(key, 3)
        wk = jax.random.normal(k1, (3, 3, cin, cout), jnp.float32) / jnp.sqrt(9.0 * cin)
        bk = jax.random.normal(k2, (1, cout), jnp.float32) * 0.01
        conv_params.append((wk, bk, s))

    key, k1, k2 = jax.random.split(key, 3)
    wh = jax.random.normal(k1, (d, style_dim), jnp.float32) / jnp.sqrt(float(d))
    bh = jax.random.normal(k2, (1, style_dim), jnp.float32) * 0.01
    return conv_params, (wh, bh), d


def _reference_forward(x_nchw, conv_params, head_params):
    """Pure-JAX (XLA, f32) reference matching the PyTorch StyleEncoder semantics."""
    x = jnp.transpose(x_nchw, (0, 2, 3, 1))
    for (wk, bk, s) in conv_params:
        xp = jnp.pad(x, ((0, 0), (1, 1), (1, 1), (0, 0)), mode="reflect")
        x = jax.lax.conv_general_dilated(
            xp, wk, window_strides=(s, s), padding="VALID",
            dimension_numbers=("NHWC", "HWIO", "NHWC"),
            precision=jax.lax.Precision.HIGHEST)
        x = jnp.maximum(x + bk.reshape(1, 1, 1, -1), 0.0)
    wh, bh = head_params
    pooled = jnp.mean(x, axis=(1, 2))
    y = jnp.dot(pooled, wh, precision=jax.lax.Precision.HIGHEST) + bh
    return y.reshape(y.shape[0], -1, 1, 1)


if __name__ == "__main__":
    key = jax.random.PRNGKey(0)
    kx, kp = jax.random.split(key)

    # small shapes: batch=2, input_dim=4, H=W=16, dim=8, style_dim=8, n_downsample=2
    N, C, H, W = 2, 4, 16, 16
    DIM, STYLE_DIM, N_DOWNSAMPLE = 8, 8, 2
    x = jax.random.normal(kx, (N, C, H, W), jnp.float32)
    conv_params, head_params, out_dim = init_style_encoder_params(
        kp, n_downsample=N_DOWNSAMPLE, input_dim=C, dim=DIM, style_dim=STYLE_DIM)

    # bf16 MXU operands (f32 accumulation) on all TPU generations.
    mxu_dtype = jnp.bfloat16
    fwd = jax.jit(lambda xx: style_encoder_forward(xx, conv_params, head_params,
                                                   mxu_dtype=mxu_dtype))
    out = jax.block_until_ready(fwd(x))

    assert out.shape == (N, STYLE_DIM, 1, 1), out.shape
    assert out.dtype == jnp.float32, out.dtype

    ref = jax.block_until_ready(_reference_forward(x, conv_params, head_params))
    err = float(jnp.max(jnp.abs(out - ref)))
    # Tight bound for f32 operands; loose bound only for bf16 operands/activations.
    tol = 1e-4 if mxu_dtype == jnp.float32 else 8e-2
    assert err < tol, f"Pallas kernel mismatch vs XLA reference: max |err| = {err}"

    print("KERNEL_OK")
</pallas_src>

<mosaic_0001>
module attributes {stable_mosaic.version = 11 : i64} {
  func.func @kernel(%arg0: i32, %arg1: memref<1x16x16x4xbf16, #tpu.memory_space<vmem>>, %arg2: memref<3x3x4x8xbf16, #tpu.memory_space<vmem>>, %arg3: memref<1x8xf32, #tpu.memory_space<vmem>>, %arg4: memref<3x3x8x8xbf16, #tpu.memory_space<vmem>>, %arg5: memref<1x8xf32, #tpu.memory_space<vmem>>, %arg6: memref<3x3x8x16xbf16, #tpu.memory_space<vmem>>, %arg7: memref<1x16xf32, #tpu.memory_space<vmem>>, %arg8: memref<3x3x16x32xbf16, #tpu.memory_space<vmem>>, %arg9: memref<1x32xf32, #tpu.memory_space<vmem>>, %arg10: memref<32x128xbf16, #tpu.memory_space<vmem>>, %arg11: memref<1x128xf32, #tpu.memory_space<vmem>>, %arg12: memref<1x1x128xf32, #tpu.memory_space<vmem>>) attributes {dimension_semantics = [#tpu.dimension_semantics<parallel>], iteration_bounds = array<i64: 2>, scalar_prefetch = 0 : i64, scratch_operands = 0 : i64, tpu.core_type = #tpu.core_type<tc>, window_params = [{transform_indices = @transform_0, window_bounds = array<i64: 1, 16, 16, 4>}, {pipeline_mode = #tpu.pipeline_mode<synchronous>, transform_indices = @transform_1, window_bounds = array<i64: 3, 3, 4, 8>}, {pipeline_mode = #tpu.pipeline_mode<synchronous>, transform_indices = @transform_2, window_bounds = array<i64: 1, 8>}, {pipeline_mode = #tpu.pipeline_mode<synchronous>, transform_indices = @transform_3, window_bounds = array<i64: 3, 3, 8, 8>}, {pipeline_mode = #tpu.pipeline_mode<synchronous>, transform_indices = @transform_4, window_bounds = array<i64: 1, 8>}, {pipeline_mode = #tpu.pipeline_mode<synchronous>, transform_indices = @transform_5, window_bounds = array<i64: 3, 3, 8, 16>}, {pipeline_mode = #tpu.pipeline_mode<synchronous>, transform_indices = @transform_6, window_bounds = array<i64: 1, 16>}, {pipeline_mode = #tpu.pipeline_mode<synchronous>, transform_indices = @transform_7, window_bounds = array<i64: 3, 3, 16, 32>}, {pipeline_mode = #tpu.pipeline_mode<synchronous>, transform_indices = @transform_8, window_bounds = array<i64: 1, 32>}, {pipeline_mode = #tpu.pipeline_mode<synchronous>, transform_indices = @transform_9, window_bounds = array<i64: 32, 128>}, {pipeline_mode = #tpu.pipeline_mode<synchronous>, transform_indices = @transform_10, window_bounds = array<i64: 1, 128>}, {transform_indices = @transform_11, window_bounds = array<i64: 1, 1, 128>}]} {
    %c0 = arith.constant 0 : index
    %c0_0 = arith.constant 0 : index
    %c0_1 = arith.constant 0 : index
    %c0_2 = arith.constant 0 : index
    %0 = vector.load %arg1[%c0, %c0_0, %c0_1, %c0_2] : memref<1x16x16x4xbf16, #tpu.memory_space<vmem>>, vector<1x16x16x4xbf16>
    %1 = vector.shape_cast %0 : vector<1x16x16x4xbf16> to vector<16x16x4xbf16>
    %2 = "tpu.region"() ({
      %alloca = memref.alloca() : memref<18x18x4xbf16, #tpu.memory_space<vmem>>
      %c1 = arith.constant 1 : index
      %c1_12 = arith.constant 1 : index
      %c0_13 = arith.constant 0 : index
      %19 = vector.load %alloca[%c1, %c1_12, %c0_13] : memref<18x18x4xbf16, #tpu.memory_space<vmem>>, vector<16x16x4xbf16>
      tpu.vector_store %alloca[%c1, %c1_12, %c0_13], %1 {strides = array<i32>} : memref<18x18x4xbf16, #tpu.memory_space<vmem>>, vector<16x16x4xbf16>,
      %20 = vector.extract_strided_slice %1 {offsets = [0, 1, 0], sizes = [16, 1, 4], strides = [1, 1, 1]} : vector<16x16x4xbf16> to vector<16x1x4xbf16>
      %c1_14 = arith.constant 1 : index
      %c0_15 = arith.constant 0 : index
      %c0_16 = arith.constant 0 : index
      %21 = vector.load %alloca[%c1_14, %c0_15, %c0_16] : memref<18x18x4xbf16, #tpu.memory_space<vmem>>, vector<16x1x4xbf16>
      tpu.vector_store %alloca[%c1_14, %c0_15, %c0_16], %20 {strides = array<i32>} : memref<18x18x4xbf16, #tpu.memory_space<vmem>>, vector<16x1x4xbf16>,
      %22 = vector.extract_strided_slice %1 {offsets = [0, 14, 0], sizes = [16, 1, 4], strides = [1, 1, 1]} : vector<16x16x4xbf16> to vector<16x1x4xbf16>
      %c1_17 = arith.constant 1 : index
      %c17 = arith.constant 17 : index
      %c0_18 = arith.constant 0 : index
      %23 = vector.load %alloca[%c1_17, %c17, %c0_18] : memref<18x18x4xbf16, #tpu.memory_space<vmem>>, vector<16x1x4xbf16>
      tpu.vector_store %alloca[%c1_17, %c17, %c0_18], %22 {strides = array<i32>} : memref<18x18x4xbf16, #tpu.memory_space<vmem>>, vector<16x1x4xbf16>,
      %c2 = arith.constant 2 : index
      %c0_19 = arith.constant 0 : index
      %c0_20 = arith.constant 0 : index
      %24 = vector.load %alloca[%c2, %c0_19, %c0_20] : memref<18x18x4xbf16, #tpu.memory_space<vmem>>, vector<1x18x4xbf16>
      %c0_21 = arith.constant 0 : index
      %c0_22 = arith.constant 0 : index
      %c0_23 = arith.constant 0 : index
      %25 = vector.load %alloca[%c0_21, %c0_22, %c0_23] : memref<18x18x4xbf16, #tpu.memory_space<vmem>>, vector<1x18x4xbf16>
      tpu.vector_store %alloca[%c0_21, %c0_22, %c0_23], %24 {strides = array<i32>} : memref<18x18x4xbf16, #tpu.memory_space<vmem>>, vector<1x18x4xbf16>,
      %c15 = arith.constant 15 : index
      %c0_24 = arith.constant 0 : index
      %c0_25 = arith.constant 0 : index
      %26 = vector.load %alloca[%c15, %c0_24, %c0_25] : memref<18x18x4xbf16, #tpu.memory_space<vmem>>, vector<1x18x4xbf16>
      %c17_26 = arith.constant 17 : index
      %c0_27 = arith.constant 0 : index
      %c0_28 = arith.constant 0 : index
      %27 = vector.load %alloca[%c17_26, %c0_27, %c0_28] : memref<18x18x4xbf16, #tpu.memory_space<vmem>>, vector<1x18x4xbf16>
      tpu.vector_store %alloca[%c17_26, %c0_27, %c0_28], %26 {strides = array<i32>} : memref<18x18x4xbf16, #tpu.memory_space<vmem>>, vector<1x18x4xbf16>,
      %c0_29 = arith.constant 0 : index
      %c0_30 = arith.constant 0 : index
      %c0_31 = arith.constant 0 : index
      %c0_32 = arith.constant 0 : index
      %28 = vector.load %arg2[%c0_29, %c0_30, %c0_31, %c0_32] : memref<3x3x4x8xbf16, #tpu.memory_space<vmem>>, vector<3x3x4x8xbf16>
      %cst_33 = arith.constant 0.000000e+00 : f32
      %29 = vector.broadcast %cst_33 : f32 to vector<64x8xf32>
      %c0_34 = arith.constant 0 : index
      %c0_35 = arith.constant 0 : index
      %c0_36 = arith.constant 0 : index
      %30 = vector.load %alloca[%c0_34, %c0_35, %c0_36] : memref<18x18x4xbf16, #tpu.memory_space<vmem>>, vector<18x18x4xbf16>
      %31 = vector.shape_cast %30 : vector<18x18x4xbf16> to vector<9x2x9x2x4xbf16>
      %32 = vector.extract_strided_slice %31 {offsets = [0, 0, 0, 0, 0], sizes = [9, 1, 9, 1, 4], strides = [1, 1, 1, 1, 1]} : vector<9x2x9x2x4xbf16> to vector<9x1x9x1x4xbf16>
      %33 = vector.shape_cast %32 : vector<9x1x9x1x4xbf16> to vector<9x9x4xbf16>
      %34 = vector.extract_strided_slice %31 {offsets = [0, 0, 0, 1, 0], sizes = [9, 1, 9, 1, 4], strides = [1, 1, 1, 1, 1]} : vector<9x2x9x2x4xbf16> to vector<9x1x9x1x4xbf16>
      %35 = vector.shape_cast %34 : vector<9x1x9x1x4xbf16> to vector<9x9x4xbf16>
      %36 = vector.extract_strided_slice %31 {offsets = [0, 1, 0, 0, 0], sizes = [9, 1, 9, 1, 4], strides = [1, 1, 1, 1, 1]} : vector<9x2x9x2x4xbf16> to vector<9x1x9x1x4xbf16>
      %37 = vector.shape_cast %36 : vector<9x1x9x1x4xbf16> to vector<9x9x4xbf16>
      %38 = vector.extract_strided_slice %31 {offsets = [0, 1, 0, 1, 0], sizes = [9, 1, 9, 1, 4], strides = [1, 1, 1, 1, 1]} : vector<9x2x9x2x4xbf16> to vector<9x1x9x1x4xbf16>
      %39 = vector.shape_cast %38 : vector<9x1x9x1x4xbf16> to vector<9x9x4xbf16>
      %40 = vector.extract_strided_slice %33 {offsets = [0, 0, 0], sizes = [8, 8, 4], strides = [1, 1, 1]} : vector<9x9x4xbf16> to vector<8x8x4xbf16>
      %41 = vector.shape_cast %40 : vector<8x8x4xbf16> to vector<64x4xbf16>
      %42 = vector.extract_strided_slice %28 {offsets = [0, 0, 0, 0], sizes = [1, 1, 4, 8], strides = [1, 1, 1, 1]} : vector<3x3x4x8xbf16> to vector<1x1x4x8xbf16>
      %43 = vector.shape_cast %42 : vector<1x1x4x8xbf16> to vector<4x8xbf16>
      %cst_37 = arith.constant dense<0.000000e+00> : vector<64x8xf32>
      %44 = tpu.matmul %41, %43, %cst_37 {dimension_numbers = #tpu.dot_dimension_numbers<[1], [0], [0], [1], [0, 0, 1, 1], [], []>} : vector<64x4xbf16>, vector<4x8xbf16>, vector<64x8xf32> -> vector<64x8xf32>
      %45 = arith.addf %29, %44 : vector<64x8xf32>
      %46 = vector.extract_strided_slice %35 {offsets = [0, 0, 0], sizes = [8, 8, 4], strides = [1, 1, 1]} : vector<9x9x4xbf16> to vector<8x8x4xbf16>
      %47 = vector.shape_cast %46 : vector<8x8x4xbf16> to vector<64x4xbf16>
      %48 = vector.extract_strided_slice %28 {offsets = [0, 1, 0, 0], sizes = [1, 1, 4, 8], strides = [1, 1, 1, 1]} : vector<3x3x4x8xbf16> to vector<1x1x4x8xbf16>
      %49 = vector.shape_cast %48 : vector<1x1x4x8xbf16> to vector<4x8xbf16>
      %cst_38 = arith.constant dense<0.000000e+00> : vector<64x8xf32>
      %50 = tpu.matmul %47, %49, %cst_38 {dimension_numbers = #tpu.dot_dimension_numbers<[1], [0], [0], [1], [0, 0, 1, 1], [], []>} : vector<64x4xbf16>, vector<4x8xbf16>, vector<64x8xf32> -> vector<64x8xf32>
      %51 = arith.addf %45, %50 : vector<64x8xf32>
      %52 = vector.extract_strided_slice %33 {offsets = [0, 1, 0], sizes = [8, 8, 4], strides = [1, 1, 1]} : vector<9x9x4xbf16> to vector<8x8x4xbf16>
      %53 = vector.shape_cast %52 : vector<8x8x4xbf16> to vector<64x4xbf16>
      %54 = vector.extract_strided_slice %28 {offsets = [0, 2, 0, 0], sizes = [1, 1, 4, 8], strides = [1, 1, 1, 1]} : vector<3x3x4x8xbf16> to vector<1x1x4x8xbf16>
      %55 = vector.shape_cast %54 : vector<1x1x4x8xbf16> to vector<4x8xbf16>
      %cst_39 = arith.constant dense<0.000000e+00> : vector<64x8xf32>
      %56 = tpu.matmul %53, %55, %cst_39 {dimension_numbers = #tpu.dot_dimension_numbers<[1], [0], [0], [1], [0, 0, 1, 1], [], []>} : vector<64x4xbf16>, vector<4x8xbf16>, vector<64x8xf32> -> vector<64x8xf32>
      %57 = arith.addf %51, %56 : vector<64x8xf32>
      %58 = vector.extract_strided_slice %37 {offsets = [0, 0, 0], sizes = [8, 8, 4], strides = [1, 1, 1]} : vector<9x9x4xbf16> to vector<8x8x4xbf16>
      %59 = vector.shape_cast %58 : vector<8x8x4xbf16> to vector<64x4xbf16>
      %60 = vector.extract_strided_slice %28 {offsets = [1, 0, 0, 0], sizes = [1, 1, 4, 8], strides = [1, 1, 1, 1]} : vector<3x3x4x8xbf16> to vector<1x1x4x8xbf16>
      %61 = vector.shape_cast %60 : vector<1x1x4x8xbf16> to vector<4x8xbf16>
      %cst_40 = arith.constant dense<0.000000e+00> : vector<64x8xf32>
      %62 = tpu.matmul %59, %61, %cst_40 {dimension_numbers = #tpu.dot_dimension_numbers<[1], [0], [0], [1], [0, 0, 1, 1], [], []>} : vector<64x4xbf16>, vector<4x8xbf16>, vector<64x8xf32> -> vector<64x8xf32>
      %63 = arith.addf %57, %62 : vector<64x8xf32>
      %64 = vector.extract_strided_slice %39 {offsets = [0, 0, 0], sizes = [8, 8, 4], strides = [1, 1, 1]} : vector<9x9x4xbf16> to vector<8x8x4xbf16>
      %65 = vector.shape_cast %64 : vector<8x8x4xbf16> to vector<64x4xbf16>
      %66 = vector.extract_strided_slice %28 {offsets = [1, 1, 0, 0], sizes = [1, 1, 4, 8], strides = [1, 1, 1, 1]} : vector<3x3x4x8xbf16> to vector<1x1x4x8xbf16>
      %67 = vector.shape_cast %66 : vector<1x1x4x8xbf16> to vector<4x8xbf16>
      %cst_41 = arith.constant dense<0.000000e+00> : vector<64x8xf32>
      %68 = tpu.matmul %65, %67, %cst_41 {dimension_numbers = #tpu.dot_dimension_numbers<[1], [0], [0], [1], [0, 0, 1, 1], [], []>} : vector<64x4xbf16>, vector<4x8xbf16>, vector<64x8xf32> -> vector<64x8xf32>
      %69 = arith.addf %63, %68 : vector<64x8xf32>
      %70 = vector.extract_strided_slice %37 {offsets = [0, 1, 0], sizes = [8, 8, 4], strides = [1, 1, 1]} : vector<9x9x4xbf16> to vector<8x8x4xbf16>
      %71 = vector.shape_cast %70 : vector<8x8x4xbf16> to vector<64x4xbf16>
      %72 = vector.extract_strided_slice %28 {offsets = [1, 2, 0, 0], sizes = [1, 1, 4, 8], strides = [1, 1, 1, 1]} : vector<3x3x4x8xbf16> to vector<1x1x4x8xbf16>
      %73 = vector.shape_cast %72 : vector<1x1x4x8xbf16> to vector<4x8xbf16>
      %cst_42 = arith.constant dense<0.000000e+00> : vector<64x8xf32>
      %74 = tpu.matmul %71, %73, %cst_42 {dimension_numbers = #tpu.dot_dimension_numbers<[1], [0], [0], [1], [0, 0, 1, 1], [], []>} : vector<64x4xbf16>, vector<4x8xbf16>, vector<64x8xf32> -> vector<64x8xf32>
      %75 = arith.addf %69, %74 : vector<64x8xf32>
      %76 = vector.extract_strided_slice %33 {offsets = [1, 0, 0], sizes = [8, 8, 4], strides = [1, 1, 1]} : vector<9x9x4xbf16> to vector<8x8x4xbf16>
      %77 = vector.shape_cast %76 : vector<8x8x4xbf16> to vector<64x4xbf16>
      %78 = vector.extract_strided_slice %28 {offsets = [2, 0, 0, 0], sizes = [1, 1, 4, 8], strides = [1, 1, 1, 1]} : vector<3x3x4x8xbf16> to vector<1x1x4x8xbf16>
      %79 = vector.shape_cast %78 : vector<1x1x4x8xbf16> to vector<4x8xbf16>
      %cst_43 = arith.constant dense<0.000000e+00> : vector<64x8xf32>
      %80 = tpu.matmul %77, %79, %cst_43 {dimension_numbers = #tpu.dot_dimension_numbers<[1], [0], [0], [1], [0, 0, 1, 1], [], []>} : vector<64x4xbf16>, vector<4x8xbf16>, vector<64x8xf32> -> vector<64x8xf32>
      %81 = arith.addf %75, %80 : vector<64x8xf32>
      %82 = vector.extract_strided_slice %35 {offsets = [1, 0, 0], sizes = [8, 8, 4], strides = [1, 1, 1]} : vector<9x9x4xbf16> to vector<8x8x4xbf16>
      %83 = vector.shape_cast %82 : vector<8x8x4xbf16> to vector<64x4xbf16>
      %84 = vector.extract_strided_slice %28 {offsets = [2, 1, 0, 0], sizes = [1, 1, 4, 8], strides = [1, 1, 1, 1]} : vector<3x3x4x8xbf16> to vector<1x1x4x8xbf16>
      %85 = vector.shape_cast %84 : vector<1x1x4x8xbf16> to vector<4x8xbf16>
      %cst_44 = arith.constant dense<0.000000e+00> : vector<64x8xf32>
      %86 = tpu.matmul %83, %85, %cst_44 {dimension_numbers = #tpu.dot_dimension_numbers<[1], [0], [0], [1], [0, 0, 1, 1], [], []>} : vector<64x4xbf16>, vector<4x8xbf16>, vector<64x8xf32> -> vector<64x8xf32>
      %87 = arith.addf %81, %86 : vector<64x8xf32>
      %88 = vector.extract_strided_slice %33 {offsets = [1, 1, 0], sizes = [8, 8, 4], strides = [1, 1, 1]} : vector<9x9x4xbf16> to vector<8x8x4xbf16>
      %89 = vector.shape_cast %88 : vector<8x8x4xbf16> to vector<64x4xbf16>
      %90 = vector.extract_strided_slice %28 {offsets = [2, 2, 0, 0], sizes = [1, 1, 4, 8], strides = [1, 1, 1, 1]} : vector<3x3x4x8xbf16> to vector<1x1x4x8xbf16>
      %91 = vector.shape_cast %90 : vector<1x1x4x8xbf16> to vector<4x8xbf16>
      %cst_45 = arith.constant dense<0.000000e+00> : vector<64x8xf32>
      %92 = tpu.matmul %89, %91, %cst_45 {dimension_numbers = #tpu.dot_dimension_numbers<[1], [0], [0], [1], [0, 0, 1, 1], [], []>} : vector<64x4xbf16>, vector<4x8xbf16>, vector<64x8xf32> -> vector<64x8xf32>
      %93 = arith.addf %87, %92 : vector<64x8xf32>
      %c0_46 = arith.constant 0 : index
      %c0_47 = arith.constant 0 : index
      %94 = vector.load %arg3[%c0_46, %c0_47] : memref<1x8xf32, #tpu.memory_space<vmem>>, vector<1x8xf32>
      %95 = vector.broadcast %94 : vector<1x8xf32> to vector<64x8xf32>
      %96 = arith.addf %93, %95 : vector<64x8xf32>
      %cst_48 = arith.constant 0.000000e+00 : f32
      %97 = vector.broadcast %cst_48 : f32 to vector<64x8xf32>
      %98 = arith.maximumf %96, %97 : vector<64x8xf32>
      %99 = vector.shape_cast %98 : vector<64x8xf32> to vector<8x8x8xf32>
      tpu.yield %99 : vector<8x8x8xf32>
    }) : () -> vector<8x8x8xf32>
    %3 = "tpu.region"() ({
      %alloca = memref.alloca() : memref<10x10x8xbf16, #tpu.memory_space<vmem>>
      %19 = arith.truncf %2 : vector<8x8x8xf32> to vector<8x8x8xbf16>
      %c1 = arith.constant 1 : index
      %c1_12 = arith.constant 1 : index
      %c0_13 = arith.constant 0 : index
      %20 = vector.load %alloca[%c1, %c1_12, %c0_13] : memref<10x10x8xbf16, #tpu.memory_space<vmem>>, vector<8x8x8xbf16>
      tpu.vector_store %alloca[%c1, %c1_12, %c0_13], %19 {strides = array<i32>} : memref<10x10x8xbf16, #tpu.memory_space<vmem>>, vector<8x8x8xbf16>,
      %21 = vector.extract_strided_slice %19 {offsets = [0, 1, 0], sizes = [8, 1, 8], strides = [1, 1, 1]} : vector<8x8x8xbf16> to vector<8x1x8xbf16>
      %c1_14 = arith.constant 1 : index
      %c0_15 = arith.constant 0 : index
      %c0_16 = arith.constant 0 : index
      %22 = vector.load %alloca[%c1_14, %c0_15, %c0_16] : memref<10x10x8xbf16, #tpu.memory_space<vmem>>, vector<8x1x8xbf16>
      tpu.vector_store %alloca[%c1_14, %c0_15, %c0_16], %21 {strides = array<i32>} : memref<10x10x8xbf16, #tpu.memory_space<vmem>>, vector<8x1x8xbf16>,
      %23 = vector.extract_strided_slice %19 {offsets = [0, 6, 0], sizes = [8, 1, 8], strides = [1, 1, 1]} : vector<8x8x8xbf16> to vector<8x1x8xbf16>
      %c1_17 = arith.constant 1 : index
      %c9 = arith.constant 9 : index
      %c0_18 = arith.constant 0 : index
      %24 = vector.load %alloca[%c1_17, %c9, %c0_18] : memref<10x10x8xbf16, #tpu.memory_space<vmem>>, vector<8x1x8xbf16>
      tpu.vector_store %alloca[%c1_17, %c9, %c0_18], %23 {strides = array<i32>} : memref<10x10x8xbf16, #tpu.memory_space<vmem>>, vector<8x1x8xbf16>,
      %c2 = arith.constant 2 : index
      %c0_19 = arith.constant 0 : index
      %c0_20 = arith.constant 0 : index
      %25 = vector.load %alloca[%c2, %c0_19, %c0_20] : memref<10x10x8xbf16, #tpu.memory_space<vmem>>, vector<1x10x8xbf16>
      %c0_21 = arith.constant 0 : index
      %c0_22 = arith.constant 0 : index
      %c0_23 = arith.constant 0 : index
      %26 = vector.load %alloca[%c0_21, %c0_22, %c0_23] : memref<10x10x8xbf16, #tpu.memory_space<vmem>>, vector<1x10x8xbf16>
      tpu.vector_store %alloca[%c0_21, %c0_22, %c0_23], %25 {strides = array<i32>} : memref<10x10x8xbf16, #tpu.memory_space<vmem>>, vector<1x10x8xbf16>,
      %c7 = arith.constant 7 : index
      %c0_24 = arith.constant 0 : index
      %c0_25 = arith.constant 0 : index
      %27 = vector.load %alloca[%c7, %c0_24, %c0_25] : memref<10x10x8xbf16, #tpu.memory_space<vmem>>, vector<1x10x8xbf16>
      %c9_26 = arith.constant 9 : index
      %c0_27 = arith.constant 0 : index
      %c0_28 = arith.constant 0 : index
      %28 = vector.load %alloca[%c9_26, %c0_27, %c0_28] : memref<10x10x8xbf16, #tpu.memory_space<vmem>>, vector<1x10x8xbf16>
      tpu.vector_store %alloca[%c9_26, %c0_27, %c0_28], %27 {strides = array<i32>} : memref<10x10x8xbf16, #tpu.memory_space<vmem>>, vector<1x10x8xbf16>,
      %c0_29 = arith.constant 0 : index
      %c0_30 = arith.constant 0 : index
      %c0_31 = arith.constant 0 : index
      %c0_32 = arith.constant 0 : index
      %29 = vector.load %arg4[%c0_29, %c0_30, %c0_31, %c0_32] : memref<3x3x8x8xbf16, #tpu.memory_space<vmem>>, vector<3x3x8x8xbf16>
      %cst_33 = arith.constant 0.000000e+00 : f32
      %30 = vector.broadcast %cst_33 : f32 to vector<64x8xf32>
      %c0_34 = arith.constant 0 : index
      %c0_35 = arith.constant 0 : index
      %c0_36 = arith.constant 0 : index
      %31 = vector.load %alloca[%c0_34, %c0_35, %c0_36] : memref<10x10x8xbf16, #tpu.memory_space<vmem>>, vector<8x8x8xbf16>
      %32 = vector.shape_cast %31 : vector<8x8x8xbf16> to vector<64x8xbf16>
      %33 = vector.extract_strided_slice %29 {offsets = [0, 0, 0, 0], sizes = [1, 1, 8, 8], strides = [1, 1, 1, 1]} : vector<3x3x8x8xbf16> to vector<1x1x8x8xbf16>
      %34 = vector.shape_cast %33 : vector<1x1x8x8xbf16> to vector<8x8xbf16>
      %cst_37 = arith.constant dense<0.000000e+00> : vector<64x8xf32>
      %35 = tpu.matmul %32, %34, %cst_37 {dimension_numbers = #tpu.dot_dimension_numbers<[1], [0], [0], [1], [0, 0, 1, 1], [], []>} : vector<64x8xbf16>, vector<8x8xbf16>, vector<64x8xf32> -> vector<64x8xf32>
      %36 = arith.addf %30, %35 : vector<64x8xf32>
      %c0_38 = arith.constant 0 : index
      %c1_39 = arith.constant 1 : index
      %c0_40 = arith.constant 0 : index
      %37 = vector.load %alloca[%c0_38, %c1_39, %c0_40] : memref<10x10x8xbf16, #tpu.memory_space<vmem>>, vector<8x8x8xbf16>
      %38 = vector.shape_cast %37 : vector<8x8x8xbf16> to vector<64x8xbf16>
      %39 = vector.extract_strided_slice %29 {offsets = [0, 1, 0, 0], sizes = [1, 1, 8, 8], strides = [1, 1, 1, 1]} : vector<3x3x8x8xbf16> to vector<1x1x8x8xbf16>
      %40 = vector.shape_cast %39 : vector<1x1x8x8xbf16> to vector<8x8xbf16>
      %cst_41 = arith.constant dense<0.000000e+00> : vector<64x8xf32>
      %41 = tpu.matmul %38, %40, %cst_41 {dimension_numbers = #tpu.dot_dimension_numbers<[1], [0], [0], [1], [0, 0, 1, 1], [], []>} : vector<64x8xbf16>, vector<8x8xbf16>, vector<64x8xf32> -> vector<64x8xf32>
      %42 = arith.addf %36, %41 : vector<64x8xf32>
      %c0_42 = arith.constant 0 : index
      %c2_43 = arith.constant 2 : index
      %c0_44 = arith.constant 0 : index
      %43 = vector.load %alloca[%c0_42, %c2_43, %c0_44] : memref<10x10x8xbf16, #tpu.memory_space<vmem>>, vector<8x8x8xbf16>
      %44 = vector.shape_cast %43 : vector<8x8x8xbf16> to vector<64x8xbf16>
      %45 = vector.extract_strided_slice %29 {offsets = [0, 2, 0, 0], sizes = [1, 1, 8, 8], strides = [1, 1, 1, 1]} : vector<3x3x8x8xbf16> to vector<1x1x8x8xbf16>
      %46 = vector.shape_cast %45 : vector<1x1x8x8xbf16> to vector<8x8xbf16>
      %cst_45 = arith.constant dense<0.000000e+00> : vector<64x8xf32>
      %47 = tpu.matmul %44, %46, %cst_45 {dimension_numbers = #tpu.dot_dimension_numbers<[1], [0], [0], [1], [0, 0, 1, 1], [], []>} : vector<64x8xbf16>, vector<8x8xbf16>, vector<64x8xf32> -> vector<64x8xf32>
      %48 = arith.addf %42, %47 : vector<64x8xf32>
      %c1_46 = arith.constant 1 : index
      %c0_47 = arith.constant 0 : index
      %c0_48 = arith.constant 0 : index
      %49 = vector.load %alloca[%c1_46, %c0_47, %c0_48] : memref<10x10x8xbf16, #tpu.memory_space<vmem>>, vector<8x8x8xbf16>
      %50 = vector.shape_cast %49 : vector<8x8x8xbf16> to vector<64x8xbf16>
      %51 = vector.extract_strided_slice %29 {offsets = [1, 0, 0, 0], sizes = [1, 1, 8, 8], strides = [1, 1, 1, 1]} : vector<3x3x8x8xbf16> to vector<1x1x8x8xbf16>
      %52 = vector.shape_cast %51 : vector<1x1x8x8xbf16> to vector<8x8xbf16>
      %cst_49 = arith.constant dense<0.000000e+00> : vector<64x8xf32>
      %53 = tpu.matmul %50, %52, %cst_49 {dimension_numbers = #tpu.dot_dimension_numbers<[1], [0], [0], [1], [0, 0, 1, 1], [], []>} : vector<64x8xbf16>, vector<8x8xbf16>, vector<64x8xf32> -> vector<64x8xf32>
      %54 = arith.addf %48, %53 : vector<64x8xf32>
      %c1_50 = arith.constant 1 : index
      %c1_51 = arith.constant 1 : index
      %c0_52 = arith.constant 0 : index
      %55 = vector.load %alloca[%c1_50, %c1_51, %c0_52] : memref<10x10x8xbf16, #tpu.memory_space<vmem>>, vector<8x8x8xbf16>
      %56 = vector.shape_cast %55 : vector<8x8x8xbf16> to vector<64x8xbf16>
      %57 = vector.extract_strided_slice %29 {offsets = [1, 1, 0, 0], sizes = [1, 1, 8, 8], strides = [1, 1, 1, 1]} : vector<3x3x8x8xbf16> to vector<1x1x8x8xbf16>
      %58 = vector.shape_cast %57 : vector<1x1x8x8xbf16> to vector<8x8xbf16>
      %cst_53 = arith.constant dense<0.000000e+00> : vector<64x8xf32>
      %59 = tpu.matmul %56, %58, %cst_53 {dimension_numbers = #tpu.dot_dimension_numbers<[1], [0], [0], [1], [0, 0, 1, 1], [], []>} : vector<64x8xbf16>, vector<8x8xbf16>, vector<64x8xf32> -> vector<64x8xf32>
      %60 = arith.addf %54, %59 : vector<64x8xf32>
      %c1_54 = arith.constant 1 : index
      %c2_55 = arith.constant 2 : index
      %c0_56 = arith.constant 0 : index
      %61 = vector.load %alloca[%c1_54, %c2_55, %c0_56] : memref<10x10x8xbf16, #tpu.memory_space<vmem>>, vector<8x8x8xbf16>
      %62 = vector.shape_cast %61 : vector<8x8x8xbf16> to vector<64x8xbf16>
      %63 = vector.extract_strided_slice %29 {offsets = [1, 2, 0, 0], sizes = [1, 1, 8, 8], strides = [1, 1, 1, 1]} : vector<3x3x8x8xbf16> to vector<1x1x8x8xbf16>
      %64 = vector.shape_cast %63 : vector<1x1x8x8xbf16> to vector<8x8xbf16>
      %cst_57 = arith.constant dense<0.000000e+00> : vector<64x8xf32>
      %65 = tpu.matmul %62, %64, %cst_57 {dimension_numbers = #tpu.dot_dimension_numbers<[1], [0], [0], [1], [0, 0, 1, 1], [], []>} : vector<64x8xbf16>, vector<8x8xbf16>, vector<64x8xf32> -> vector<64x8xf32>
      %66 = arith.addf %60, %65 : vector<64x8xf32>
      %c2_58 = arith.constant 2 : index
      %c0_59 = arith.constant 0 : index
      %c0_60 = arith.constant 0 : index
      %67 = vector.load %alloca[%c2_58, %c0_59, %c0_60] : memref<10x10x8xbf16, #tpu.memory_space<vmem>>, vector<8x8x8xbf16>
      %68 = vector.shape_cast %67 : vector<8x8x8xbf16> to vector<64x8xbf16>
      %69 = vector.extract_strided_slice %29 {offsets = [2, 0, 0, 0], sizes = [1, 1, 8, 8], strides = [1, 1, 1, 1]} : vector<3x3x8x8xbf16> to vector<1x1x8x8xbf16>
      %70 = vector.shape_cast %69 : vector<1x1x8x8xbf16> to vector<8x8xbf16>
      %cst_61 = arith.constant dense<0.000000e+00> : vector<64x8xf32>
      %71 = tpu.matmul %68, %70, %cst_61 {dimension_numbers = #tpu.dot_dimension_numbers<[1], [0], [0], [1], [0, 0, 1, 1], [], []>} : vector<64x8xbf16>, vector<8x8xbf16>, vector<64x8xf32> -> vector<64x8xf32>
      %72 = arith.addf %66, %71 : vector<64x8xf32>
      %c2_62 = arith.constant 2 : index
      %c1_63 = arith.constant 1 : index
      %c0_64 = arith.constant 0 : index
      %73 = vector.load %alloca[%c2_62, %c1_63, %c0_64] : memref<10x10x8xbf16, #tpu.memory_space<vmem>>, vector<8x8x8xbf16>
      %74 = vector.shape_cast %73 : vector<8x8x8xbf16> to vector<64x8xbf16>
      %75 = vector.extract_strided_slice %29 {offsets = [2, 1, 0, 0], sizes = [1, 1, 8, 8], strides = [1, 1, 1, 1]} : vector<3x3x8x8xbf16> to vector<1x1x8x8xbf16>
      %76 = vector.shape_cast %75 : vector<1x1x8x8xbf16> to vector<8x8xbf16>
      %cst_65 = arith.constant dense<0.000000e+00> : vector<64x8xf32>
      %77 = tpu.matmul %74, %76, %cst_65 {dimension_numbers = #tpu.dot_dimension_numbers<[1], [0], [0], [1], [0, 0, 1, 1], [], []>} : vector<64x8xbf16>, vector<8x8xbf16>, vector<64x8xf32> -> vector<64x8xf32>
      %78 = arith.addf %72, %77 : vector<64x8xf32>
      %c2_66 = arith.constant 2 : index
      %c2_67 = arith.constant 2 : index
      %c0_68 = arith.constant 0 : index
      %79 = vector.load %alloca[%c2_66, %c2_67, %c0_68] : memref<10x10x8xbf16, #tpu.memory_space<vmem>>, vector<8x8x8xbf16>
      %80 = vector.shape_cast %79 : vector<8x8x8xbf16> to vector<64x8xbf16>
      %81 = vector.extract_strided_slice %29 {offsets = [2, 2, 0, 0], sizes = [1, 1, 8, 8], strides = [1, 1, 1, 1]} : vector<3x3x8x8xbf16> to vector<1x1x8x8xbf16>
      %82 = vector.shape_cast %81 : vector<1x1x8x8xbf16> to vector<8x8xbf16>
      %cst_69 = arith.constant dense<0.000000e+00> : vector<64x8xf32>
      %83 = tpu.matmul %80, %82, %cst_69 {dimension_numbers = #tpu.dot_dimension_numbers<[1], [0], [0], [1], [0, 0, 1, 1], [], []>} : vector<64x8xbf16>, vector<8x8xbf16>, vector<64x8xf32> -> vector<64x8xf32>
      %84 = arith.addf %78, %83 : vector<64x8xf32>
      %c0_70 = arith.constant 0 : index
      %c0_71 = arith.constant 0 : index
      %85 = vector.load %arg5[%c0_70, %c0_71] : memref<1x8xf32, #tpu.memory_space<vmem>>, vector<1x8xf32>
      %86 = vector.broadcast %85 : vector<1x8xf32> to vector<64x8xf32>
      %87 = arith.addf %84, %86 : vector<64x8xf32>
      %cst_72 = arith.constant 0.000000e+00 : f32
      %88 = vector.broadcast %cst_72 : f32 to vector<64x8xf32>
      %89 = arith.maximumf %87, %88 : vector<64x8xf32>
      %90 = vector.shape_cast %89 : vector<64x8xf32> to vector<8x8x8xf32>
      tpu.yield %90 : vector<8x8x8xf32>
    }) : () -> vector<8x8x8xf32>
    %4 = "tpu.region"() ({
      %alloca = memref.alloca() : memref<10x10x8xbf16, #tpu.memory_space<vmem>>
      %19 = arith.truncf %3 : vector<8x8x8xf32> to vector<8x8x8xbf16>
      %c1 = arith.constant 1 : index
      %c1_12 = arith.constant 1 : index
      %c0_13 = arith.constant 0 : index
      %20 = vector.load %alloca[%c1, %c1_12, %c0_13] : memref<10x10x8xbf16, #tpu.memory_space<vmem>>, vector<8x8x8xbf16>
      tpu.vector_store %alloca[%c1, %c1_12, %c0_13], %19 {strides = array<i32>} : memref<10x10x8xbf16, #tpu.memory_space<vmem>>, vector<8x8x8xbf16>,
      %21 = vector.extract_strided_slice %19 {offsets = [0, 1, 0], sizes = [8, 1, 8], strides = [1, 1, 1]} : vector<8x8x8xbf16> to vector<8x1x8xbf16>
      %c1_14 = arith.constant 1 : index
      %c0_15 = arith.constant 0 : index
      %c0_16 = arith.constant 0 : index
      %22 = vector.load %alloca[%c1_14, %c0_15, %c0_16] : memref<10x10x8xbf16, #tpu.memory_space<vmem>>, vector<8x1x8xbf16>
      tpu.vector_store %alloca[%c1_14, %c0_15, %c0_16], %21 {strides = array<i32>} : memref<10x10x8xbf16, #tpu.memory_space<vmem>>, vector<8x1x8xbf16>,
      %23 = vector.extract_strided_slice %19 {offsets = [0, 6, 0], sizes = [8, 1, 8], strides = [1, 1, 1]} : vector<8x8x8xbf16> to vector<8x1x8xbf16>
      %c1_17 = arith.constant 1 : index
      %c9 = arith.constant 9 : index
      %c0_18 = arith.constant 0 : index
      %24 = vector.load %alloca[%c1_17, %c9, %c0_18] : memref<10x10x8xbf16, #tpu.memory_space<vmem>>, vector<8x1x8xbf16>
      tpu.vector_store %alloca[%c1_17, %c9, %c0_18], %23 {strides = array<i32>} : memref<10x10x8xbf16, #tpu.memory_space<vmem>>, vector<8x1x8xbf16>,
      %c2 = arith.constant 2 : index
      %c0_19 = arith.constant 0 : index
      %c0_20 = arith.constant 0 : index
      %25 = vector.load %alloca[%c2, %c0_19, %c0_20] : memref<10x10x8xbf16, #tpu.memory_space<vmem>>, vector<1x10x8xbf16>
      %c0_21 = arith.constant 0 : index
      %c0_22 = arith.constant 0 : index
      %c0_23 = arith.constant 0 : index
      %26 = vector.load %alloca[%c0_21, %c0_22, %c0_23] : memref<10x10x8xbf16, #tpu.memory_space<vmem>>, vector<1x10x8xbf16>
      tpu.vector_store %alloca[%c0_21, %c0_22, %c0_23], %25 {strides = array<i32>} : memref<10x10x8xbf16, #tpu.memory_space<vmem>>, vector<1x10x8xbf16>,
      %c7 = arith.constant 7 : index
      %c0_24 = arith.constant 0 : index
      %c0_25 = arith.constant 0 : index
      %27 = vector.load %alloca[%c7, %c0_24, %c0_25] : memref<10x10x8xbf16, #tpu.memory_space<vmem>>, vector<1x10x8xbf16>
      %c9_26 = arith.constant 9 : index
      %c0_27 = arith.constant 0 : index
      %c0_28 = arith.constant 0 : index
      %28 = vector.load %alloca[%c9_26, %c0_27, %c0_28] : memref<10x10x8xbf16, #tpu.memory_space<vmem>>, vector<1x10x8xbf16>
      tpu.vector_store %alloca[%c9_26, %c0_27, %c0_28], %27 {strides = array<i32>} : memref<10x10x8xbf16, #tpu.memory_space<vmem>>, vector<1x10x8xbf16>,
      %c0_29 = arith.constant 0 : index
      %c0_30 = arith.constant 0 : index
      %c0_31 = arith.constant 0 : index
      %c0_32 = arith.constant 0 : index
      %29 = vector.load %arg6[%c0_29, %c0_30, %c0_31, %c0_32] : memref<3x3x8x16xbf16, #tpu.memory_space<vmem>>, vector<3x3x8x16xbf16>
      %cst_33 = arith.constant 0.000000e+00 : f32
      %30 = vector.broadcast %cst_33 : f32 to vector<16x16xf32>
      %c0_34 = arith.constant 0 : index
      %c0_35 = arith.constant 0 : index
      %c0_36 = arith.constant 0 : index
      %31 = vector.load %alloca[%c0_34, %c0_35, %c0_36] : memref<10x10x8xbf16, #tpu.memory_space<vmem>>, vector<10x10x8xbf16>
      %32 = vector.shape_cast %31 : vector<10x10x8xbf16> to vector<5x2x5x2x8xbf16>
      %33 = vector.extract_strided_slice %32 {offsets = [0, 0, 0, 0, 0], sizes = [5, 1, 5, 1, 8], strides = [1, 1, 1, 1, 1]} : vector<5x2x5x2x8xbf16> to vector<5x1x5x1x8xbf16>
      %34 = vector.shape_cast %33 : vector<5x1x5x1x8xbf16> to vector<5x5x8xbf16>
      %35 = vector.extract_strided_slice %32 {offsets = [0, 0, 0, 1, 0], sizes = [5, 1, 5, 1, 8], strides = [1, 1, 1, 1, 1]} : vector<5x2x5x2x8xbf16> to vector<5x1x5x1x8xbf16>
      %36 = vector.shape_cast %35 : vector<5x1x5x1x8xbf16> to vector<5x5x8xbf16>
      %37 = vector.extract_strided_slice %32 {offsets = [0, 1, 0, 0, 0], sizes = [5, 1, 5, 1, 8], strides = [1, 1, 1, 1, 1]} : vector<5x2x5x2x8xbf16> to vector<5x1x5x1x8xbf16>
      %38 = vector.shape_cast %37 : vector<5x1x5x1x8xbf16> to vector<5x5x8xbf16>
      %39 = vector.extract_strided_slice %32 {offsets = [0, 1, 0, 1, 0], sizes = [5, 1, 5, 1, 8], strides = [1, 1, 1, 1, 1]} : vector<5x2x5x2x8xbf16> to vector<5x1x5x1x8xbf16>
      %40 = vector.shape_cast %39 : vector<5x1x5x1x8xbf16> to vector<5x5x8xbf16>
      %41 = vector.extract_strided_slice %34 {offsets = [0, 0, 0], sizes = [4, 4, 8], strides = [1, 1, 1]} : vector<5x5x8xbf16> to vector<4x4x8xbf16>
      %42 = vector.shape_cast %41 : vector<4x4x8xbf16> to vector<16x8xbf16>
      %43 = vector.extract_strided_slice %29 {offsets = [0, 0, 0, 0], sizes = [1, 1, 8, 16], strides = [1, 1, 1, 1]} : vector<3x3x8x16xbf16> to vector<1x1x8x16xbf16>
      %44 = vector.shape_cast %43 : vector<1x1x8x16xbf16> to vector<8x16xbf16>
      %cst_37 = arith.constant dense<0.000000e+00> : vector<16x16xf32>
      %45 = tpu.matmul %42, %44, %cst_37 {dimension_numbers = #tpu.dot_dimension_numbers<[1], [0], [0], [1], [0, 0, 1, 1], [], []>} : vector<16x8xbf16>, vector<8x16xbf16>, vector<16x16xf32> -> vector<16x16xf32>
      %46 = arith.addf %30, %45 : vector<16x16xf32>
      %47 = vector.extract_strided_slice %36 {offsets = [0, 0, 0], sizes = [4, 4, 8], strides = [1, 1, 1]} : vector<5x5x8xbf16> to vector<4x4x8xbf16>
      %48 = vector.shape_cast %47 : vector<4x4x8xbf16> to vector<16x8xbf16>
      %49 = vector.extract_strided_slice %29 {offsets = [0, 1, 0, 0], sizes = [1, 1, 8, 16], strides = [1, 1, 1, 1]} : vector<3x3x8x16xbf16> to vector<1x1x8x16xbf16>
      %50 = vector.shape_cast %49 : vector<1x1x8x16xbf16> to vector<8x16xbf16>
      %cst_38 = arith.constant dense<0.000000e+00> : vector<16x16xf32>
      %51 = tpu.matmul %48, %50, %cst_38 {dimension_numbers = #tpu.dot_dimension_numbers<[1], [0], [0], [1], [0, 0, 1, 1], [], []>} : vector<16x8xbf16>, vector<8x16xbf16>, vector<16x16xf32> -> vector<16x16xf32>
      %52 = arith.addf %46, %51 : vector<16x16xf32>
      %53 = vector.extract_strided_slice %34 {offsets = [0, 1, 0], sizes = [4, 4, 8], strides = [1, 1, 1]} : vector<5x5x8xbf16> to vector<4x4x8xbf16>
      %54 = vector.shape_cast %53 : vector<4x4x8xbf16> to vector<16x8xbf16>
      %55 = vector.extract_strided_slice %29 {offsets = [0, 2, 0, 0], sizes = [1, 1, 8, 16], strides = [1, 1, 1, 1]} : vector<3x3x8x16xbf16> to vector<1x1x8x16xbf16>
      %56 = vector.shape_cast %55 : vector<1x1x8x16xbf16> to vector<8x16xbf16>
      %cst_39 = arith.constant dense<0.000000e+00> : vector<16x16xf32>
      %57 = tpu.matmul %54, %56, %cst_39 {dimension_numbers = #tpu.dot_dimension_numbers<[1], [0], [0], [1], [0, 0, 1, 1], [], []>} : vector<16x8xbf16>, vector<8x16xbf16>, vector<16x16xf32> -> vector<16x16xf32>
      %58 = arith.addf %52, %57 : vector<16x16xf32>
      %59 = vector.extract_strided_slice %38 {offsets = [0, 0, 0], sizes = [4, 4, 8], strides = [1, 1, 1]} : vector<5x5x8xbf16> to vector<4x4x8xbf16>
      %60 = vector.shape_cast %59 : vector<4x4x8xbf16> to vector<16x8xbf16>
      %61 = vector.extract_strided_slice %29 {offsets = [1, 0, 0, 0], sizes = [1, 1, 8, 16], strides = [1, 1, 1, 1]} : vector<3x3x8x16xbf16> to vector<1x1x8x16xbf16>
      %62 = vector.shape_cast %61 : vector<1x1x8x16xbf16> to vector<8x16xbf16>
      %cst_40 = arith.constant dense<0.000000e+00> : vector<16x16xf32>
      %63 = tpu.matmul %60, %62, %cst_40 {dimension_numbers = #tpu.dot_dimension_numbers<[1], [0], [0], [1], [0, 0, 1, 1], [], []>} : vector<16x8xbf16>, vector<8x16xbf16>, vector<16x16xf32> -> vector<16x16xf32>
      %64 = arith.addf %58, %63 : vector<16x16xf32>
      %65 = vector.extract_strided_slice %40 {offsets = [0, 0, 0], sizes = [4, 4, 8], strides = [1, 1, 1]} : vector<5x5x8xbf16> to vector<4x4x8xbf16>
      %66 = vector.shape_cast %65 : vector<4x4x8xbf16> to vector<16x8xbf16>
      %67 = vector.extract_strided_slice %29 {offsets = [1, 1, 0, 0], sizes = [1, 1, 8, 16], strides = [1, 1, 1, 1]} : vector<3x3x8x16xbf16> to vector<1x1x8x16xbf16>
      %68 = vector.shape_cast %67 : vector<1x1x8x16xbf16> to vector<8x16xbf16>
      %cst_41 = arith.constant dense<0.000000e+00> : vector<16x16xf32>
      %69 = tpu.matmul %66, %68, %cst_41 {dimension_numbers = #tpu.dot_dimension_numbers<[1], [0], [0], [1], [0, 0, 1, 1], [], []>} : vector<16x8xbf16>, vector<8x16xbf16>, vector<16x16xf32> -> vector<16x16xf32>
      %70 = arith.addf %64, %69 : vector<16x16xf32>
      %71 = vector.extract_strided_slice %38 {offsets = [0, 1, 0], sizes = [4, 4, 8], strides = [1, 1, 1]} : vector<5x5x8xbf16> to vector<4x4x8xbf16>
      %72 = vector.shape_cast %71 : vector<4x4x8xbf16> to vector<16x8xbf16>
      %73 = vector.extract_strided_slice %29 {offsets = [1, 2, 0, 0], sizes = [1, 1, 8, 16], strides = [1, 1, 1, 1]} : vector<3x3x8x16xbf16> to vector<1x1x8x16xbf16>
      %74 = vector.shape_cast %73 : vector<1x1x8x16xbf16> to vector<8x16xbf16>
      %cst_42 = arith.constant dense<0.000000e+00> : vector<16x16xf32>
      %75 = tpu.matmul %72, %74, %cst_42 {dimension_numbers = #tpu.dot_dimension_numbers<[1], [0], [0], [1], [0, 0, 1, 1], [], []>} : vector<16x8xbf16>, vector<8x16xbf16>, vector<16x16xf32> -> vector<16x16xf32>
      %76 = arith.addf %70, %75 : vector<16x16xf32>
      %77 = vector.extract_strided_slice %34 {offsets = [1, 0, 0], sizes = [4, 4, 8], strides = [1, 1, 1]} : vector<5x5x8xbf16> to vector<4x4x8xbf16>
      %78 = vector.shape_cast %77 : vector<4x4x8xbf16> to vector<16x8xbf16>
      %79 = vector.extract_strided_slice %29 {offsets = [2, 0, 0, 0], sizes = [1, 1, 8, 16], strides = [1, 1, 1, 1]} : vector<3x3x8x16xbf16> to vector<1x1x8x16xbf16>
      %80 = vector.shape_cast %79 : vector<1x1x8x16xbf16> to vector<8x16xbf16>
      %cst_43 = arith.constant dense<0.000000e+00> : vector<16x16xf32>
      %81 = tpu.matmul %78, %80, %cst_43 {dimension_numbers = #tpu.dot_dimension_numbers<[1], [0], [0], [1], [0, 0, 1, 1], [], []>} : vector<16x8xbf16>, vector<8x16xbf16>, vector<16x16xf32> -> vector<16x16xf32>
      %82 = arith.addf %76, %81 : vector<16x16xf32>
      %83 = vector.extract_strided_slice %36 {offsets = [1, 0, 0], sizes = [4, 4, 8], strides = [1, 1, 1]} : vector<5x5x8xbf16> to vector<4x4x8xbf16>
      %84 = vector.shape_cast %83 : vector<4x4x8xbf16> to vector<16x8xbf16>
      %85 = vector.extract_strided_slice %29 {offsets = [2, 1, 0, 0], sizes = [1, 1, 8, 16], strides = [1, 1, 1, 1]} : vector<3x3x8x16xbf16> to vector<1x1x8x16xbf16>
      %86 = vector.shape_cast %85 : vector<1x1x8x16xbf16> to vector<8x16xbf16>
      %cst_44 = arith.constant dense<0.000000e+00> : vector<16x16xf32>
      %87 = tpu.matmul %84, %86, %cst_44 {dimension_numbers = #tpu.dot_dimension_numbers<[1], [0], [0], [1], [0, 0, 1, 1], [], []>} : vector<16x8xbf16>, vector<8x16xbf16>, vector<16x16xf32> -> vector<16x16xf32>
      %88 = arith.addf %82, %87 : vector<16x16xf32>
      %89 = vector.extract_strided_slice %34 {offsets = [1, 1, 0], sizes = [4, 4, 8], strides = [1, 1, 1]} : vector<5x5x8xbf16> to vector<4x4x8xbf16>
      %90 = vector.shape_cast %89 : vector<4x4x8xbf16> to vector<16x8xbf16>
      %91 = vector.extract_strided_slice %29 {offsets = [2, 2, 0, 0], sizes = [1, 1, 8, 16], strides = [1, 1, 1, 1]} : vector<3x3x8x16xbf16> to vector<1x1x8x16xbf16>
      %92 = vector.shape_cast %91 : vector<1x1x8x16xbf16> to vector<8x16xbf16>
      %cst_45 = arith.constant dense<0.000000e+00> : vector<16x16xf32>
      %93 = tpu.matmul %90, %92, %cst_45 {dimension_numbers = #tpu.dot_dimension_numbers<[1], [0], [0], [1], [0, 0, 1, 1], [], []>} : vector<16x8xbf16>, vector<8x16xbf16>, vector<16x16xf32> -> vector<16x16xf32>
      %94 = arith.addf %88, %93 : vector<16x16xf32>
      %c0_46 = arith.constant 0 : index
      %c0_47 = arith.constant 0 : index
      %95 = vector.load %arg7[%c0_46, %c0_47] : memref<1x16xf32, #tpu.memory_space<vmem>>, vector<1x16xf32>
      %96 = vector.broadcast %95 : vector<1x16xf32> to vector<16x16xf32>
      %97 = arith.addf %94, %96 : vector<16x16xf32>
      %cst_48 = arith.constant 0.000000e+00 : f32
      %98 = vector.broadcast %cst_48 : f32 to vector<16x16xf32>
      %99 = arith.maximumf %97, %98 : vector<16x16xf32>
      %100 = vector.shape_cast %99 : vector<16x16xf32> to vector<4x4x16xf32>
      tpu.yield %100 : vector<4x4x16xf32>
    }) : () -> vector<4x4x16xf32>
    %5 = "tpu.region"() ({
      %alloca = memref.alloca() : memref<6x6x16xbf16, #tpu.memory_space<vmem>>
      %19 = arith.truncf %4 : vector<4x4x16xf32> to vector<4x4x16xbf16>
      %c1 = arith.constant 1 : index
      %c1_12 = arith.constant 1 : index
      %c0_13 = arith.constant 0 : index
      %20 = vector.load %alloca[%c1, %c1_12, %c0_13] : memref<6x6x16xbf16, #tpu.memory_space<vmem>>, vector<4x4x16xbf16>
      tpu.vector_store %alloca[%c1, %c1_12, %c0_13], %19 {strides = array<i32>} : memref<6x6x16xbf16, #tpu.memory_space<vmem>>, vector<4x4x16xbf16>,
      %21 = vector.extract_strided_slice %19 {offsets = [0, 1, 0], sizes = [4, 1, 16], strides = [1, 1, 1]} : vector<4x4x16xbf16> to vector<4x1x16xbf16>
      %c1_14 = arith.constant 1 : index
      %c0_15 = arith.constant 0 : index
      %c0_16 = arith.constant 0 : index
      %22 = vector.load %alloca[%c1_14, %c0_15, %c0_16] : memref<6x6x16xbf16, #tpu.memory_space<vmem>>, vector<4x1x16xbf16>
      tpu.vector_store %alloca[%c1_14, %c0_15, %c0_16], %21 {strides = array<i32>} : memref<6x6x16xbf16, #tpu.memory_space<vmem>>, vector<4x1x16xbf16>,
      %23 = vector.extract_strided_slice %19 {offsets = [0, 2, 0], sizes = [4, 1, 16], strides = [1, 1, 1]} : vector<4x4x16xbf16> to vector<4x1x16xbf16>
      %c1_17 = arith.constant 1 : index
      %c5 = arith.constant 5 : index
      %c0_18 = arith.constant 0 : index
      %24 = vector.load %alloca[%c1_17, %c5, %c0_18] : memref<6x6x16xbf16, #tpu.memory_space<vmem>>, vector<4x1x16xbf16>
      tpu.vector_store %alloca[%c1_17, %c5, %c0_18], %23 {strides = array<i32>} : memref<6x6x16xbf16, #tpu.memory_space<vmem>>, vector<4x1x16xbf16>,
      %c2 = arith.constant 2 : index
      %c0_19 = arith.constant 0 : index
      %c0_20 = arith.constant 0 : index
      %25 = vector.load %alloca[%c2, %c0_19, %c0_20] : memref<6x6x16xbf16, #tpu.memory_space<vmem>>, vector<1x6x16xbf16>
      %c0_21 = arith.constant 0 : index
      %c0_22 = arith.constant 0 : index
      %c0_23 = arith.constant 0 : index
      %26 = vector.load %alloca[%c0_21, %c0_22, %c0_23] : memref<6x6x16xbf16, #tpu.memory_space<vmem>>, vector<1x6x16xbf16>
      tpu.vector_store %alloca[%c0_21, %c0_22, %c0_23], %25 {strides = array<i32>} : memref<6x6x16xbf16, #tpu.memory_space<vmem>>, vector<1x6x16xbf16>,
      %c3 = arith.constant 3 : index
      %c0_24 = arith.constant 0 : index
      %c0_25 = arith.constant 0 : index
      %27 = vector.load %alloca[%c3, %c0_24, %c0_25] : memref<6x6x16xbf16, #tpu.memory_space<vmem>>, vector<1x6x16xbf16>
      %c5_26 = arith.constant 5 : index
      %c0_27 = arith.constant 0 : index
      %c0_28 = arith.constant 0 : index
      %28 = vector.load %alloca[%c5_26, %c0_27, %c0_28] : memref<6x6x16xbf16, #tpu.memory_space<vmem>>, vector<1x6x16xbf16>
      tpu.vector_store %alloca[%c5_26, %c0_27, %c0_28], %27 {strides = array<i32>} : memref<6x6x16xbf16, #tpu.memory_space<vmem>>, vector<1x6x16xbf16>,
      %c0_29 = arith.constant 0 : index
      %c0_30 = arith.constant 0 : index
      %c0_31 = arith.constant 0 : index
      %c0_32 = arith.constant 0 : index
      %29 = vector.load %arg8[%c0_29, %c0_30, %c0_31, %c0_32] : memref<3x3x16x32xbf16, #tpu.memory_space<vmem>>, vector<3x3x16x32xbf16>
      %cst_33 = arith.constant 0.000000e+00 : f32
      %30 = vector.broadcast %cst_33 : f32 to vector<4x32xf32>
      %c0_34 = arith.constant 0 : index
      %c0_35 = arith.constant 0 : index
      %c0_36 = arith.constant 0 : index
      %31 = vector.load %alloca[%c0_34, %c0_35, %c0_36] : memref<6x6x16xbf16, #tpu.memory_space<vmem>>, vector<6x6x16xbf16>
      %32 = vector.shape_cast %31 : vector<6x6x16xbf16> to vector<3x2x3x2x16xbf16>
      %33 = vector.extract_strided_slice %32 {offsets = [0, 0, 0, 0, 0], sizes = [3, 1, 3, 1, 16], strides = [1, 1, 1, 1, 1]} : vector<3x2x3x2x16xbf16> to vector<3x1x3x1x16xbf16>
      %34 = vector.shape_cast %33 : vector<3x1x3x1x16xbf16> to vector<3x3x16xbf16>
      %35 = vector.extract_strided_slice %32 {offsets = [0, 0, 0, 1, 0], sizes = [3, 1, 3, 1, 16], strides = [1, 1, 1, 1, 1]} : vector<3x2x3x2x16xbf16> to vector<3x1x3x1x16xbf16>
      %36 = vector.shape_cast %35 : vector<3x1x3x1x16xbf16> to vector<3x3x16xbf16>
      %37 = vector.extract_strided_slice %32 {offsets = [0, 1, 0, 0, 0], sizes = [3, 1, 3, 1, 16], strides = [1, 1, 1, 1, 1]} : vector<3x2x3x2x16xbf16> to vector<3x1x3x1x16xbf16>
      %38 = vector.shape_cast %37 : vector<3x1x3x1x16xbf16> to vector<3x3x16xbf16>
      %39 = vector.extract_strided_slice %32 {offsets = [0, 1, 0, 1, 0], sizes = [3, 1, 3, 1, 16], strides = [1, 1, 1, 1, 1]} : vector<3x2x3x2x16xbf16> to vector<3x1x3x1x16xbf16>
      %40 = vector.shape_cast %39 : vector<3x1x3x1x16xbf16> to vector<3x3x16xbf16>
      %41 = vector.extract_strided_slice %34 {offsets = [0, 0, 0], sizes = [2, 2, 16], strides = [1, 1, 1]} : vector<3x3x16xbf16> to vector<2x2x16xbf16>
      %42 = vector.shape_cast %41 : vector<2x2x16xbf16> to vector<4x16xbf16>
      %43 = vector.extract_strided_slice %29 {offsets = [0, 0, 0, 0], sizes = [1, 1, 16, 32], strides = [1, 1, 1, 1]} : vector<3x3x16x32xbf16> to vector<1x1x16x32xbf16>
      %44 = vector.shape_cast %43 : vector<1x1x16x32xbf16> to vector<16x32xbf16>
      %cst_37 = arith.constant dense<0.000000e+00> : vector<4x32xf32>
      %45 = tpu.matmul %42, %44, %cst_37 {dimension_numbers = #tpu.dot_dimension_numbers<[1], [0], [0], [1], [0, 0, 1, 1], [], []>} : vector<4x16xbf16>, vector<16x32xbf16>, vector<4x32xf32> -> vector<4x32xf32>
      %46 = arith.addf %30, %45 : vector<4x32xf32>
      %47 = vector.extract_strided_slice %36 {offsets = [0, 0, 0], sizes = [2, 2, 16], strides = [1, 1, 1]} : vector<3x3x16xbf16> to vector<2x2x16xbf16>
      %48 = vector.shape_cast %47 : vector<2x2x16xbf16> to vector<4x16xbf16>
      %49 = vector.extract_strided_slice %29 {offsets = [0, 1, 0, 0], sizes = [1, 1, 16, 32], strides = [1, 1, 1, 1]} : vector<3x3x16x32xbf16> to vector<1x1x16x32xbf16>
      %50 = vector.shape_cast %49 : vector<1x1x16x32xbf16> to vector<16x32xbf16>
      %cst_38 = arith.constant dense<0.000000e+00> : vector<4x32xf32>
      %51 = tpu.matmul %48, %50, %cst_38 {dimension_numbers = #tpu.dot_dimension_numbers<[1], [0], [0], [1], [0, 0, 1, 1], [], []>} : vector<4x16xbf16>, vector<16x32xbf16>, vector<4x32xf32> -> vector<4x32xf32>
      %52 = arith.addf %46, %51 : vector<4x32xf32>
      %53 = vector.extract_strided_slice %34 {offsets = [0, 1, 0], sizes = [2, 2, 16], strides = [1, 1, 1]} : vector<3x3x16xbf16> to vector<2x2x16xbf16>
      %54 = vector.shape_cast %53 : vector<2x2x16xbf16> to vector<4x16xbf16>
      %55 = vector.extract_strided_slice %29 {offsets = [0, 2, 0, 0], sizes = [1, 1, 16, 32], strides = [1, 1, 1, 1]} : vector<3x3x16x32xbf16> to vector<1x1x16x32xbf16>
      %56 = vector.shape_cast %55 : vector<1x1x16x32xbf16> to vector<16x32xbf16>
      %cst_39 = arith.constant dense<0.000000e+00> : vector<4x32xf32>
      %57 = tpu.matmul %54, %56, %cst_39 {dimension_numbers = #tpu.dot_dimension_numbers<[1], [0], [0], [1], [0, 0, 1, 1], [], []>} : vector<4x16xbf16>, vector<16x32xbf16>, vector<4x32xf32> -> vector<4x32xf32>
      %58 = arith.addf %52, %57 : vector<4x32xf32>
      %59 = vector.extract_strided_slice %38 {offsets = [0, 0, 0], sizes = [2, 2, 16], strides = [1, 1, 1]} : vector<3x3x16xbf16> to vector<2x2x16xbf16>
      %60 = vector.shape_cast %59 : vector<2x2x16xbf16> to vector<4x16xbf16>
      %61 = vector.extract_strided_slice %29 {offsets = [1, 0, 0, 0], sizes = [1, 1, 16, 32], strides = [1, 1, 1, 1]} : vector<3x3x16x32xbf16> to vector<1x1x16x32xbf16>
      %62 = vector.shape_cast %61 : vector<1x1x16x32xbf16> to vector<16x32xbf16>
      %cst_40 = arith.constant dense<0.000000e+00> : vector<4x32xf32>
      %63 = tpu.matmul %60, %62, %cst_40 {dimension_numbers = #tpu.dot_dimension_numbers<[1], [0], [0], [1], [0, 0, 1, 1], [], []>} : vector<4x16xbf16>, vector<16x32xbf16>, vector<4x32xf32> -> vector<4x32xf32>
      %64 = arith.addf %58, %63 : vector<4x32xf32>
      %65 = vector.extract_strided_slice %40 {offsets = [0, 0, 0], sizes = [2, 2, 16], strides = [1, 1, 1]} : vector<3x3x16xbf16> to vector<2x2x16xbf16>
      %66 = vector.shape_cast %65 : vector<2x2x16xbf16> to vector<4x16xbf16>
      %67 = vector.extract_strided_slice %29 {offsets = [1, 1, 0, 0], sizes = [1, 1, 16, 32], strides = [1, 1, 1, 1]} : vector<3x3x16x32xbf16> to vector<1x1x16x32xbf16>
      %68 = vector.shape_cast %67 : vector<1x1x16x32xbf16> to vector<16x32xbf16>
      %cst_41 = arith.constant dense<0.000000e+00> : vector<4x32xf32>
      %69 = tpu.matmul %66, %68, %cst_41 {dimension_numbers = #tpu.dot_dimension_numbers<[1], [0], [0], [1], [0, 0, 1, 1], [], []>} : vector<4x16xbf16>, vector<16x32xbf16>, vector<4x32xf32> -> vector<4x32xf32>
      %70 = arith.addf %64, %69 : vector<4x32xf32>
      %71 = vector.extract_strided_slice %38 {offsets = [0, 1, 0], sizes = [2, 2, 16], strides = [1, 1, 1]} : vector<3x3x16xbf16> to vector<2x2x16xbf16>
      %72 = vector.shape_cast %71 : vector<2x2x16xbf16> to vector<4x16xbf16>
      %73 = vector.extract_strided_slice %29 {offsets = [1, 2, 0, 0], sizes = [1, 1, 16, 32], strides = [1, 1, 1, 1]} : vector<3x3x16x32xbf16> to vector<1x1x16x32xbf16>
      %74 = vector.shape_cast %73 : vector<1x1x16x32xbf16> to vector<16x32xbf16>
      %cst_42 = arith.constant dense<0.000000e+00> : vector<4x32xf32>
      %75 = tpu.matmul %72, %74, %cst_42 {dimension_numbers = #tpu.dot_dimension_numbers<[1], [0], [0], [1], [0, 0, 1, 1], [], []>} : vector<4x16xbf16>, vector<16x32xbf16>, vector<4x32xf32> -> vector<4x32xf32>
      %76 = arith.addf %70, %75 : vector<4x32xf32>
      %77 = vector.extract_strided_slice %34 {offsets = [1, 0, 0], sizes = [2, 2, 16], strides = [1, 1, 1]} : vector<3x3x16xbf16> to vector<2x2x16xbf16>
      %78 = vector.shape_cast %77 : vector<2x2x16xbf16> to vector<4x16xbf16>
      %79 = vector.extract_strided_slice %29 {offsets = [2, 0, 0, 0], sizes = [1, 1, 16, 32], strides = [1, 1, 1, 1]} : vector<3x3x16x32xbf16> to vector<1x1x16x32xbf16>
      %80 = vector.shape_cast %79 : vector<1x1x16x32xbf16> to vector<16x32xbf16>
      %cst_43 = arith.constant dense<0.000000e+00> : vector<4x32xf32>
      %81 = tpu.matmul %78, %80, %cst_43 {dimension_numbers = #tpu.dot_dimension_numbers<[1], [0], [0], [1], [0, 0, 1, 1], [], []>} : vector<4x16xbf16>, vector<16x32xbf16>, vector<4x32xf32> -> vector<4x32xf32>
      %82 = arith.addf %76, %81 : vector<4x32xf32>
      %83 = vector.extract_strided_slice %36 {offsets = [1, 0, 0], sizes = [2, 2, 16], strides = [1, 1, 1]} : vector<3x3x16xbf16> to vector<2x2x16xbf16>
      %84 = vector.shape_cast %83 : vector<2x2x16xbf16> to vector<4x16xbf16>
      %85 = vector.extract_strided_slice %29 {offsets = [2, 1, 0, 0], sizes = [1, 1, 16, 32], strides = [1, 1, 1, 1]} : vector<3x3x16x32xbf16> to vector<1x1x16x32xbf16>
      %86 = vector.shape_cast %85 : vector<1x1x16x32xbf16> to vector<16x32xbf16>
      %cst_44 = arith.constant dense<0.000000e+00> : vector<4x32xf32>
      %87 = tpu.matmul %84, %86, %cst_44 {dimension_numbers = #tpu.dot_dimension_numbers<[1], [0], [0], [1], [0, 0, 1, 1], [], []>} : vector<4x16xbf16>, vector<16x32xbf16>, vector<4x32xf32> -> vector<4x32xf32>
      %88 = arith.addf %82, %87 : vector<4x32xf32>
      %89 = vector.extract_strided_slice %34 {offsets = [1, 1, 0], sizes = [2, 2, 16], strides = [1, 1, 1]} : vector<3x3x16xbf16> to vector<2x2x16xbf16>
      %90 = vector.shape_cast %89 : vector<2x2x16xbf16> to vector<4x16xbf16>
      %91 = vector.extract_strided_slice %29 {offsets = [2, 2, 0, 0], sizes = [1, 1, 16, 32], strides = [1, 1, 1, 1]} : vector<3x3x16x32xbf16> to vector<1x1x16x32xbf16>
      %92 = vector.shape_cast %91 : vector<1x1x16x32xbf16> to vector<16x32xbf16>
      %cst_45 = arith.constant dense<0.000000e+00> : vector<4x32xf32>
      %93 = tpu.matmul %90, %92, %cst_45 {dimension_numbers = #tpu.dot_dimension_numbers<[1], [0], [0], [1], [0, 0, 1, 1], [], []>} : vector<4x16xbf16>, vector<16x32xbf16>, vector<4x32xf32> -> vector<4x32xf32>
      %94 = arith.addf %88, %93 : vector<4x32xf32>
      %c0_46 = arith.constant 0 : index
      %c0_47 = arith.constant 0 : index
      %95 = vector.load %arg9[%c0_46, %c0_47] : memref<1x32xf32, #tpu.memory_space<vmem>>, vector<1x32xf32>
      %96 = vector.broadcast %95 : vector<1x32xf32> to vector<4x32xf32>
      %97 = arith.addf %94, %96 : vector<4x32xf32>
      %cst_48 = arith.constant 0.000000e+00 : f32
      %98 = vector.broadcast %cst_48 : f32 to vector<4x32xf32>
      %99 = arith.maximumf %97, %98 : vector<4x32xf32>
      %100 = vector.shape_cast %99 : vector<4x32xf32> to vector<2x2x32xf32>
      tpu.yield %100 : vector<2x2x32xf32>
    }) : () -> vector<2x2x32xf32>
    %6 = vector.shape_cast %5 : vector<2x2x32xf32> to vector<4x32xf32>
    %cst = arith.constant dense<0.000000e+00> : vector<32xf32>
    %7 = vector.multi_reduction <add>, %6, %cst [0] : vector<4x32xf32> to vector<32xf32>
    %8 = vector.shape_cast %7 : vector<32xf32> to vector<1x32xf32>
    %cst_3 = arith.constant 4.000000e+00 : f32
    %9 = vector.broadcast %cst_3 : f32 to vector<1x32xf32>
    %10 = arith.divf %8, %9 : vector<1x32xf32>
    %11 = arith.truncf %10 : vector<1x32xf32> to vector<1x32xbf16>
    %c0_4 = arith.constant 0 : index
    %c0_5 = arith.constant 0 : index
    %12 = vector.load %arg10[%c0_4, %c0_5] : memref<32x128xbf16, #tpu.memory_space<vmem>>, vector<32x128xbf16>
    %cst_6 = arith.constant dense<0.000000e+00> : vector<1x128xf32>
    %13 = tpu.matmul %11, %12, %cst_6 {dimension_numbers = #tpu.dot_dimension_numbers<[1], [0], [0], [1], [0, 0, 1, 1], [], []>} : vector<1x32xbf16>, vector<32x128xbf16>, vector<1x128xf32> -> vector<1x128xf32>
    %c0_7 = arith.constant 0 : index
    %c0_8 = arith.constant 0 : index
    %14 = vector.load %arg11[%c0_7, %c0_8] : memref<1x128xf32, #tpu.memory_space<vmem>>, vector<1x128xf32>
    %15 = arith.addf %13, %14 : vector<1x128xf32>
    %c0_9 = arith.constant 0 : index
    %c0_10 = arith.constant 0 : index
    %c0_11 = arith.constant 0 : index
    %16 = vector.load %arg12[%c0_9, %c0_10, %c0_11] : memref<1x1x128xf32, #tpu.memory_space<vmem>>, vector<1x1x128xf32>
    %17 = vector.shape_cast %16 : vector<1x1x128xf32> to vector<1x128xf32>
    %18 = vector.shape_cast %15 : vector<1x128xf32> to vector<1x1x128xf32>
    tpu.vector_store %arg12[%c0_9, %c0_10, %c0_11], %18 {strides = array<i32>} : memref<1x1x128xf32, #tpu.memory_space<vmem>>, vector<1x1x128xf32>,
    return
  }
  func.func @transform_0(%arg0: i32) -> (i32, i32, i32, i32) {
    %c0_i32 = arith.constant 0 : i32
    %c0_i32_0 = arith.constant 0 : i32
    %c0_i32_1 = arith.constant 0 : i32
    %c0_i32_2 = arith.constant 0 : i32
    return %arg0, %c0_i32, %c0_i32_0, %c0_i32_1 : i32, i32, i32, i32
  }
  func.func @transform_1(%arg0: i32) -> (i32, i32, i32, i32) {
    %c0_i32 = arith.constant 0 : i32
    %c0_i32_0 = arith.constant 0 : i32
    %c0_i32_1 = arith.constant 0 : i32
    %c0_i32_2 = arith.constant 0 : i32
    %c0_i32_3 = arith.constant 0 : i32
    return %c0_i32, %c0_i32_0, %c0_i32_1, %c0_i32_2 : i32, i32, i32, i32
  }
  func.func @transform_2(%arg0: i32) -> (i32, i32) {
    %c0_i32 = arith.constant 0 : i32
    %c0_i32_0 = arith.constant 0 : i32
    %c0_i32_1 = arith.constant 0 : i32
    return %c0_i32, %c0_i32_0 : i32, i32
  }
  func.func @transform_3(%arg0: i32) -> (i32, i32, i32, i32) {
    %c0_i32 = arith.constant 0 : i32
    %c0_i32_0 = arith.constant 0 : i32
    %c0_i32_1 = arith.constant 0 : i32
    %c0_i32_2 = arith.constant 0 : i32
    %c0_i32_3 = arith.constant 0 : i32
    return %c0_i32, %c0_i32_0, %c0_i32_1, %c0_i32_2 : i32, i32, i32, i32
  }
  func.func @transform_4(%arg0: i32) -> (i32, i32) {
    %c0_i32 = arith.constant 0 : i32
    %c0_i32_0 = arith.constant 0 : i32
    %c0_i32_1 = arith.constant 0 : i32
    return %c0_i32, %c0_i32_0 : i32, i32
  }
  func.func @transform_5(%arg0: i32) -> (i32, i32, i32, i32) {
    %c0_i32 = arith.constant 0 : i32
    %c0_i32_0 = arith.constant 0 : i32
    %c0_i32_1 = arith.constant 0 : i32
    %c0_i32_2 = arith.constant 0 : i32
    %c0_i32_3 = arith.constant 0 : i32
    return %c0_i32, %c0_i32_0, %c0_i32_1, %c0_i32_2 : i32, i32, i32, i32
  }
  func.func @transform_6(%arg0: i32) -> (i32, i32) {
    %c0_i32 = arith.constant 0 : i32
    %c0_i32_0 = arith.constant 0 : i32
    %c0_i32_1 = arith.constant 0 : i32
    return %c0_i32, %c0_i32_0 : i32, i32
  }
  func.func @transform_7(%arg0: i32) -> (i32, i32, i32, i32) {
    %c0_i32 = arith.constant 0 : i32
    %c0_i32_0 = arith.constant 0 : i32
    %c0_i32_1 = arith.constant 0 : i32
    %c0_i32_2 = arith.constant 0 : i32
    %c0_i32_3 = arith.constant 0 : i32
    return %c0_i32, %c0_i32_0, %c0_i32_1, %c0_i32_2 : i32, i32, i32, i32
  }
  func.func @transform_8(%arg0: i32) -> (i32, i32) {
    %c0_i32 = arith.constant 0 : i32
    %c0_i32_0 = arith.constant 0 : i32
    %c0_i32_1 = arith.constant 0 : i32
    return %c0_i32, %c0_i32_0 : i32, i32
  }
  func.func @transform_9(%arg0: i32) -> (i32, i32) {
    %c0_i32 = arith.constant 0 : i32
    %c0_i32_0 = arith.constant 0 : i32
    %c0_i32_1 = arith.constant 0 : i32
    return %c0_i32, %c0_i32_0 : i32, i32
  }
  func.func @transform_10(%arg0: i32) -> (i32, i32) {
    %c0_i32 = arith.constant 0 : i32
    %c0_i32_0 = arith.constant 0 : i32
    %c0_i32_1 = arith.constant 0 : i32
    return %c0_i32, %c0_i32_0 : i32, i32
  }
  func.func @transform_11(%arg0: i32) -> (i32, i32, i32) {
    %c0_i32 = arith.constant 0 : i32
    %c0_i32_0 = arith.constant 0 : i32
    %c0_i32_1 = arith.constant 0 : i32
    return %arg0, %c0_i32, %c0_i32_0 : i32, i32, i32
  }
}

</mosaic_0001>

<llo_original>
// kernel: _lambda_.1
$region0: #{_lambda_.1}
  #allocation0 [shape = 'u32[]', space=smem, size = 0x4, offset = 0x4, fixed_abs, tag = 'smem constant byte address 0x4 - core index']
  #allocation1 [shape = 'u32[144,128]{1,0:T(1,128)}', space=vmem, size = 0x12000, scoped, tag = 'internal scratch']
  %s0 = inlined_call_operand.vmem [shape: bf16[2,16,16,4], index: 0, kind: input, shape index: {}]
  %s1 = inlined_call_operand.vmem [shape: bf16[3,3,4,8], index: 1, kind: input, shape index: {}]
  %s2 = inlined_call_operand.vmem [shape: f32[1,8], index: 2, kind: input, shape index: {}]
  %s3 = inlined_call_operand.vmem [shape: bf16[3,3,8,8], index: 3, kind: input, shape index: {}]
  %s4 = inlined_call_operand.vmem [shape: f32[1,8], index: 4, kind: input, shape index: {}]
  %s5 = inlined_call_operand.vmem [shape: bf16[3,3,8,16], index: 5, kind: input, shape index: {}]
  %s6 = inlined_call_operand.vmem [shape: f32[1,16], index: 6, kind: input, shape index: {}]
  %s7 = inlined_call_operand.vmem [shape: bf16[3,3,16,32], index: 7, kind: input, shape index: {}]
  %s8 = inlined_call_operand.vmem [shape: f32[1,32], index: 8, kind: input, shape index: {}]
  %s9 = inlined_call_operand.vmem [shape: bf16[32,128], index: 9, kind: input, shape index: {}]
  %s10 = inlined_call_operand.vmem [shape: f32[1,128], index: 10, kind: input, shape index: {}]
  %s11 = inlined_call_operand.vmem [shape: f32[2,1,128], index: 11, kind: output, shape index: {}]
  %s12 = sld [smem:[#allocation0]]
  $region81: #{_lambda_.1} parent=0
    _
  %s14 = ssub.s32 1, %s12
  %s15 = scalar_select 0, %s14, %s12
  loop: start=0, step=1, limit=4
  $region2: #{_lambda_.1} parent=0 // loop_pre_header
    _
  $region3: #{_lambda_.1} parent=0 // loop_header
    %s17 = sphi 0, %s21
    %p18 = scmp.ge.s32.totalorder %s17, 4
    %s27 = sphi 0, %s29
    %s30 = sphi 0, %s27
    %s31 = sphi 0, %s30
    %s47 = sphi 0, %s31
    %s51 = sphi 0, %s51
    %s53 = sphi 0, %s51
    %s54 = sphi 0, %s53
    %s68 = sphi 0, %s54
    %s72 = sphi 0, %s72
    %s74 = sphi 0, %s72
    %s75 = sphi 0, %s74
    %s89 = sphi 0, %s75
    %s93 = sphi 0, %s93
    %s95 = sphi 0, %s93
    %s96 = sphi 0, %s95
    %s110 = sphi 0, %s96
    %s114 = sphi 0, %s114
    %s116 = sphi 0, %s114
    %s117 = sphi 0, %s116
    %s131 = sphi 0, %s117
    %s135 = sphi 0, %s135
    %s137 = sphi 0, %s135
    %s138 = sphi 0, %s137
    %s152 = sphi 0, %s138
    %s156 = sphi 0, %s156
    %s158 = sphi 0, %s156
    %s159 = sphi 0, %s158
    %s173 = sphi 0, %s159
    %s177 = sphi 0, %s177
    %s179 = sphi 0, %s177
    %s180 = sphi 0, %s179
    %s194 = sphi 0, %s180
    %s198 = sphi 0, %s198
    %s200 = sphi 0, %s198
    %s201 = sphi 0, %s200
    %s215 = sphi 0, %s201
    %s219 = sphi 0, %s219
    %s221 = sphi 0, %s219
    %s222 = sphi 0, %s221
    %s236 = sphi 0, %s222
    %s240 = sphi 0, %s240
    %s242 = sphi 0, %s240
    %s243 = sphi 0, %s242
    %s257 = sphi 0, %s243
    %s263 = sphi 0, %s265
    %s266 = sphi 0, %s263
    %s267 = sphi 0, %s266
    %s283 = sphi 0, %s267
  $region4: #{_lambda_.1} parent=0 // loop_header_branch
    %20 = sbr.rel (%p18) target = $region8
  $region5: #{_lambda_.1} parent=0 // loop_body
    %s22 = ssub.s32 %s17, 1
    %s23 = ssub.s32 %s17, 2
    %s24 = sadd.s32 %s17, 1
    %s25 = ssub.s32 %s17, %s24
    %p26 = scmp.eq.s32.totalorder %s25, 0
    %s28 = sadd.s32 %s27, 1
    %s29 = scalar_select %p26, %s27, %s28
    %p32 = pneg %p26
    %p33 = scmp.eq.s32.totalorder %s17, 1
    %p34 = por %p32, %p33
    %p35 = scmp.ne.s32.totalorder %s27, %s30
    %p36 = scmp.eq.s32.totalorder %s17, 0
    %p37 = por %p35, %p36
    %p38 = scmp.ne.s32.totalorder %s27, %s30
    %p39 = scmp.eq.s32.totalorder %s22, 1
    %p40 = por %p38, %p39
    %p41 = scmp.ne.s32.totalorder %s30, %s31
    %p42 = scmp.eq.s32.totalorder %s22, 0
    %p43 = por %p41, %p42
    %p44 = scmp.ne.s32.totalorder %s30, %s31
    %p45 = scmp.eq.s32.totalorder %s23, 1
    %p46 = por %p44, %p45
    %p48 = scmp.ne.s32.totalorder %s31, %s47
    %p49 = scmp.eq.s32.totalorder %s23, 0
    %p50 = por %p48, %p49
    %s52 = sadd.s32 %s51, 1
    %p55 = scmp.eq.s32.totalorder %s17, 1
    %p56 = scmp.ne.s32.totalorder %s51, %s53
    %p57 = scmp.eq.s32.totalorder %s17, 0
    %p58 = por %p56, %p57
    %p59 = scmp.ne.s32.totalorder %s51, %s53
    %p60 = scmp.eq.s32.totalorder %s22, 1
    %p61 = por %p59, %p60
    %p62 = scmp.ne.s32.totalorder %s53, %s54
    %p63 = scmp.eq.s32.totalorder %s22, 0
    %p64 = por %p62, %p63
    %p65 = scmp.ne.s32.totalorder %s53, %s54
    %p66 = scmp.eq.s32.totalorder %s23, 1
    %p67 = por %p65, %p66
    %p69 = scmp.ne.s32.totalorder %s54, %s68
    %p70 = scmp.eq.s32.totalorder %s23, 0
    %p71 = por %p69, %p70
    %s73 = sadd.s32 %s72, 1
    %p76 = scmp.eq.s32.totalorder %s17, 1
    %p77 = scmp.ne.s32.totalorder %s72, %s74
    %p78 = scmp.eq.s32.totalorder %s17, 0
    %p79 = por %p77, %p78
    %p80 = scmp.ne.s32.totalorder %s72, %s74
    %p81 = scmp.eq.s32.totalorder %s22, 1
    %p82 = por %p80, %p81
    %p83 = scmp.ne.s32.totalorder %s74, %s75
    %p84 = scmp.eq.s32.totalorder %s22, 0
    %p85 = por %p83, %p84
    %p86 = scmp.ne.s32.totalorder %s74, %s75
    %p87 = scmp.eq.s32.totalorder %s23, 1
    %p88 = por %p86, %p87
    %p90 = scmp.ne.s32.totalorder %s75, %s89
    %p91 = scmp.eq.s32.totalorder %s23, 0
    %p92 = por %p90, %p91
    %s94 = sadd.s32 %s93, 1
    %p97 = scmp.eq.s32.totalorder %s17, 1
    %p98 = scmp.ne.s32.totalorder %s93, %s95
    %p99 = scmp.eq.s32.totalorder %s17, 0
    %p100 = por %p98, %p99
    %p101 = scmp.ne.s32.totalorder %s93, %s95
    %p102 = scmp.eq.s32.totalorder %s22, 1
    %p103 = por %p101, %p102
    %p104 = scmp.ne.s32.totalorder %s95, %s96
    %p105 = scmp.eq.s32.totalorder %s22, 0
    %p106 = por %p104, %p105
    %p107 = scmp.ne.s32.totalorder %s95, %s96
    %p108 = scmp.eq.s32.totalorder %s23, 1
    %p109 = por %p107, %p108
    %p111 = scmp.ne.s32.totalorder %s96, %s110
    %p112 = scmp.eq.s32.totalorder %s23, 0
    %p113 = por %p111, %p112
    %s115 = sadd.s32 %s114, 1
    %p118 = scmp.eq.s32.totalorder %s17, 1
    %p119 = scmp.ne.s32.totalorder %s114, %s116
    %p120 = scmp.eq.s32.totalorder %s17, 0
    %p121 = por %p119, %p120
    %p122 = scmp.ne.s32.totalorder %s114, %s116
    %p123 = scmp.eq.s32.totalorder %s22, 1
    %p124 = por %p122, %p123
    %p125 = scmp.ne.s32.totalorder %s116, %s117
    %p126 = scmp.eq.s32.totalorder %s22, 0
    %p127 = por %p125, %p126
    %p128 = scmp.ne.s32.totalorder %s116, %s117
    %p129 = scmp.eq.s32.totalorder %s23, 1
    %p130 = por %p128, %p129
    %p132 = scmp.ne.s32.totalorder %s117, %s131
    %p133 = scmp.eq.s32.totalorder %s23, 0
    %p134 = por %p132, %p133
    %s136 = sadd.s32 %s135, 1
    %p139 = scmp.eq.s32.totalorder %s17, 1
    %p140 = scmp.ne.s32.totalorder %s135, %s137
    %p141 = scmp.eq.s32.totalorder %s17, 0
    %p142 = por %p140, %p141
    %p143 = scmp.ne.s32.totalorder %s135, %s137
    %p144 = scmp.eq.s32.totalorder %s22, 1
    %p145 = por %p143, %p144
    %p146 = scmp.ne.s32.totalorder %s137, %s138
    %p147 = scmp.eq.s32.totalorder %s22, 0
    %p148 = por %p146, %p147
    %p149 = scmp.ne.s32.totalorder %s137, %s138
    %p150 = scmp.eq.s32.totalorder %s23, 1
    %p151 = por %p149, %p150
    %p153 = scmp.ne.s32.totalorder %s138, %s152
    %p154 = scmp.eq.s32.totalorder %s23, 0
    %p155 = por %p153, %p154
    %s157 = sadd.s32 %s156, 1
    %p160 = scmp.eq.s32.totalorder %s17, 1
    %p161 = scmp.ne.s32.totalorder %s156, %s158
    %p162 = scmp.eq.s32.totalorder %s17, 0
    %p163 = por %p161, %p162
    %p164 = scmp.ne.s32.totalorder %s156, %s158
    %p165 = scmp.eq.s32.totalorder %s22, 1
    %p166 = por %p164, %p165
    %p167 = scmp.ne.s32.totalorder %s158, %s159
    %p168 = scmp.eq.s32.totalorder %s22, 0
    %p169 = por %p167, %p168
    %p170 = scmp.ne.s32.totalorder %s158, %s159
    %p171 = scmp.eq.s32.totalorder %s23, 1
    %p172 = por %p170, %p171
    %p174 = scmp.ne.s32.totalorder %s159, %s173
    %p175 = scmp.eq.s32.totalorder %s23, 0
    %p176 = por %p174, %p175
    %s178 = sadd.s32 %s177, 1
    %p181 = scmp.eq.s32.totalorder %s17, 1
    %p182 = scmp.ne.s32.totalorder %s177, %s179
    %p183 = scmp.eq.s32.totalorder %s17, 0
    %p184 = por %p182, %p183
    %p185 = scmp.ne.s32.totalorder %s177, %s179
    %p186 = scmp.eq.s32.totalorder %s22, 1
    %p187 = por %p185, %p186
    %p188 = scmp.ne.s32.totalorder %s179, %s180
    %p189 = scmp.eq.s32.totalorder %s22, 0
    %p190 = por %p188, %p189
    %p191 = scmp.ne.s32.totalorder %s179, %s180
    %p192 = scmp.eq.s32.totalorder %s23, 1
    %p193 = por %p191, %p192
    %p195 = scmp.ne.s32.totalorder %s180, %s194
    %p196 = scmp.eq.s32.totalorder %s23, 0
    %p197 = por %p195, %p196
    %s199 = sadd.s32 %s198, 1
    %p202 = scmp.eq.s32.totalorder %s17, 1
    %p203 = scmp.ne.s32.totalorder %s198, %s200
    %p204 = scmp.eq.s32.totalorder %s17, 0
    %p205 = por %p203, %p204
    %p206 = scmp.ne.s32.totalorder %s198, %s200
    %p207 = scmp.eq.s32.totalorder %s22, 1
    %p208 = por %p206, %p207
    %p209 = scmp.ne.s32.totalorder %s200, %s201
    %p210 = scmp.eq.s32.totalorder %s22, 0
    %p211 = por %p209, %p210
    %p212 = scmp.ne.s32.totalorder %s200, %s201
    %p213 = scmp.eq.s32.totalorder %s23, 1
    %p214 = por %p212, %p213
    %p216 = scmp.ne.s32.totalorder %s201, %s215
    %p217 = scmp.eq.s32.totalorder %s23, 0
    %p218 = por %p216, %p217
    %s220 = sadd.s32 %s219, 1
    %p223 = scmp.eq.s32.totalorder %s17, 1
    %p224 = scmp.ne.s32.totalorder %s219, %s221
    %p225 = scmp.eq.s32.totalorder %s17, 0
    %p226 = por %p224, %p225
    %p227 = scmp.ne.s32.totalorder %s219, %s221
    %p228 = scmp.eq.s32.totalorder %s22, 1
    %p229 = por %p227, %p228
    %p230 = scmp.ne.s32.totalorder %s221, %s222
    %p231 = scmp.eq.s32.totalorder %s22, 0
    %p232 = por %p230, %p231
    %p233 = scmp.ne.s32.totalorder %s221, %s222
    %p234 = scmp.eq.s32.totalorder %s23, 1
    %p235 = por %p233, %p234
    %p237 = scmp.ne.s32.totalorder %s222, %s236
    %p238 = scmp.eq.s32.totalorder %s23, 0
    %p239 = por %p237, %p238
    %s241 = sadd.s32 %s240, 1
    %p244 = scmp.eq.s32.totalorder %s17, 1
    %p245 = scmp.ne.s32.totalorder %s240, %s242
    %p246 = scmp.eq.s32.totalorder %s17, 0
    %p247 = por %p245, %p246
    %p248 = scmp.ne.s32.totalorder %s240, %s242
    %p249 = scmp.eq.s32.totalorder %s22, 1
    %p250 = por %p248, %p249
    %p251 = scmp.ne.s32.totalorder %s242, %s243
    %p252 = scmp.eq.s32.totalorder %s22, 0
    %p253 = por %p251, %p252
    %p254 = scmp.ne.s32.totalorder %s242, %s243
    %p255 = scmp.eq.s32.totalorder %s23, 1
    %p256 = por %p254, %p255
    %p258 = scmp.ne.s32.totalorder %s243, %s257
    %p259 = scmp.eq.s32.totalorder %s23, 0
    %p260 = por %p258, %p259
    %s261 = ssub.s32 %s17, %s24
    %p262 = scmp.eq.s32.totalorder %s261, 0
    %s264 = sadd.s32 %s263, 1
    %s265 = scalar_select %p262, %s263, %s264
    %p268 = pneg %p262
    %p269 = scmp.eq.s32.totalorder %s17, 1
    %p270 = por %p268, %p269
    %p271 = scmp.ne.s32.totalorder %s263, %s266
    %p272 = scmp.eq.s32.totalorder %s17, 0
    %p273 = por %p271, %p272
    %p274 = scmp.ne.s32.totalorder %s263, %s266
    %p275 = scmp.eq.s32.totalorder %s22, 1
    %p276 = por %p274, %p275
    %p277 = scmp.ne.s32.totalorder %s266, %s267
    %p278 = scmp.eq.s32.totalorder %s22, 0
    %p279 = por %p277, %p278
    %p280 = scmp.ne.s32.totalorder %s266, %s267
    %p281 = scmp.eq.s32.totalorder %s23, 1
    %p282 = por %p280, %p281
    %p284 = scmp.ne.s32.totalorder %s267, %s283
    %p285 = scmp.eq.s32.totalorder %s23, 0
    %p286 = por %p284, %p285
    %p287 = scmp.le.s32.totalorder 1, %s17
    %p288 = scmp.lt.s32.totalorder %s17, 3
    %p289 = pnand %p287, %p288
    %p290 = pneg %p289
    // Predicated region
    $region9: #{_lambda_.1} parent=5 // pred_check
      _
    $region10: #{_lambda_.1} parent=5 // pred_check_branch
      %292 = sbr.rel (%p289) target = $region12
    $region11: #{_lambda_.1} parent=5 // pred_region
      %s293 = ssub.s32 %s17, 1
      // Predicated region
      $region13: #{_lambda_.1} parent=11 // pred_check
        %p294 = pneg %p64
      $region14: #{_lambda_.1} parent=11 // pred_check_branch
        %296 = sbr.rel (%p294) target = $region16
      $region15: #{_lambda_.1} parent=11 // pred_region
        _
      $region16: #{_lambda_.1} parent=11 // pred_fallthru
        _
      // Predicated region
      $region17: #{_lambda_.1} parent=11 // pred_check
        %p297 = pneg %p85
      $region18: #{_lambda_.1} parent=11 // pred_check_branch
        %299 = sbr.rel (%p297) target = $region20
      $region19: #{_lambda_.1} parent=11 // pred_region
        _
      $region20: #{_lambda_.1} parent=11 // pred_fallthru
        _
      // Predicated region
      $region21: #{_lambda_.1} parent=11 // pred_check
        %p300 = pneg %p106
      $region22: #{_lambda_.1} parent=11 // pred_check_branch
        %302 = sbr.rel (%p300) target = $region24
      $region23: #{_lambda_.1} parent=11 // pred_region
        _
      $region24: #{_lambda_.1} parent=11 // pred_fallthru
        _
      // Predicated region
      $region25: #{_lambda_.1} parent=11 // pred_check
        %p303 = pneg %p127
      $region26: #{_lambda_.1} parent=11 // pred_check_branch
        %305 = sbr.rel (%p303) target = $region28
      $region27: #{_lambda_.1} parent=11 // pred_region
        _
      $region28: #{_lambda_.1} parent=11 // pred_fallthru
        _
      // Predicated region
      $region29: #{_lambda_.1} parent=11 // pred_check
        %p306 = pneg %p148
      $region30: #{_lambda_.1} parent=11 // pred_check_branch
        %308 = sbr.rel (%p306) target = $region32
      $region31: #{_lambda_.1} parent=11 // pred_region
        _
      $region32: #{_lambda_.1} parent=11 // pred_fallthru
        _
      // Predicated region
      $region33: #{_lambda_.1} parent=11 // pred_check
        %p309 = pneg %p169
      $region34: #{_lambda_.1} parent=11 // pred_check_branch
        %311 = sbr.rel (%p309) target = $region36
      $region35: #{_lambda_.1} parent=11 // pred_region
        _
      $region36: #{_lambda_.1} parent=11 // pred_fallthru
        _
      // Predicated region
      $region37: #{_lambda_.1} parent=11 // pred_check
        %p312 = pneg %p190
      $region38: #{_lambda_.1} parent=11 // pred_check_branch
        %314 = sbr.rel (%p312) target = $region40
      $region39: #{_lambda_.1} parent=11 // pred_region
        _
      $region40: #{_lambda_.1} parent=11 // pred_fallthru
        _
      // Predicated region
      $region41: #{_lambda_.1} parent=11 // pred_check
        %p315 = pneg %p211
      $region42: #{_lambda_.1} parent=11 // pred_check_branch
        %317 = sbr.rel (%p315) target = $region44
      $region43: #{_lambda_.1} parent=11 // pred_region
        _
      $region44: #{_lambda_.1} parent=11 // pred_fallthru
        _
      // Predicated region
      $region45: #{_lambda_.1} parent=11 // pred_check
        %p318 = pneg %p232
      $region46: #{_lambda_.1} parent=11 // pred_check_branch
        %320 = sbr.rel (%p318) target = $region48
      $region47: #{_lambda_.1} parent=11 // pred_region
        _
      $region48: #{_lambda_.1} parent=11 // pred_fallthru
        _
      // Predicated region
      $region49: #{_lambda_.1} parent=11 // pred_check
        %p321 = pneg %p253
      $region50: #{_lambda_.1} parent=11 // pred_check_branch
        %323 = sbr.rel (%p321) target = $region52
      $region51: #{_lambda_.1} parent=11 // pred_region
        _
      $region52: #{_lambda_.1} parent=11 // pred_fallthru
        _
    $region12: #{_lambda_.1} parent=5 // pred_fallthru
      _
    %p324 = scmp.lt.s32.totalorder %s17, 2
    // Predicated region
    $region53: #{_lambda_.1} parent=5 // pred_check
      %p325 = pneg %p324
    $region54: #{_lambda_.1} parent=5 // pred_check_branch
      %327 = sbr.rel (%p325) target = $region56
    $region55: #{_lambda_.1} parent=5 // pred_region
      // Predicated region
      $region57: #{_lambda_.1} parent=55 // pred_check
        %p328 = pneg %p37
      $region58: #{_lambda_.1} parent=55 // pred_check_branch
        %330 = sbr.rel (%p328) target = $region60
      $region59: #{_lambda_.1} parent=55 // pred_region
        %p331 = scmp.lt.s32.totalorder %s17, 1
        %s332 = scalar_select %p331, %s17, 1
        %s333 = smul.addr %s332, 32
        %s334 = smul.addr %s333, 4
        %s335 = scalar_lea.vmem %s0, %s334
      $region60: #{_lambda_.1} parent=55 // pred_fallthru
        _
    $region56: #{_lambda_.1} parent=5 // pred_fallthru
      _
    %p336 = scmp.le.s32.totalorder 1, %s17
    %p337 = scmp.lt.s32.totalorder %s17, 3
    %p338 = pnand %p336, %p337
    %p339 = pneg %p338
    // Predicated region
    $region61: #{_lambda_.1} parent=5 // pred_check
      _
    $region62: #{_lambda_.1} parent=5 // pred_check_branch
      %341 = sbr.rel (%p338) target = $region64
    $region63: #{_lambda_.1} parent=5 // pred_region
      %s342 = ssub.s32 %s17, 1
      %p343 = scmp.lt.s32.totalorder %s22, 1
      %s344 = scalar_select %p343, %s22, 1
      %s345 = smul.addr %s344, 32
      %s346 = smul.addr %s345, 4
      %s347 = scalar_lea.vmem %s0, %s346
      %p348 = pneg %p43
      %p349 = pneg %p40
      %p350 = pneg %p64
      %p351 = pneg %p61
      %p352 = pneg %p85
      %p353 = pneg %p82
      %p354 = pneg %p106
      %p355 = pneg %p103
      %p356 = pneg %p127
      %p357 = pneg %p124
      %p358 = pneg %p148
      %p359 = pneg %p145
      %p360 = pneg %p169
      %p361 = pneg %p166
      %p362 = pneg %p190
      %p363 = pneg %p187
      %p364 = pneg %p211
      %p365 = pneg %p208
      %p366 = pneg %p232
      %p367 = pneg %p229
      %p368 = pneg %p253
      %p369 = pneg %p250
      %p370 = pneg %p279
      %p371 = pneg %p276
      %p372 = scmp.lt.s32.totalorder %s22, 1
      %s373 = scalar_select %p372, %s22, 1
      %s374 = scalar_lea.vmem %s11, %s373
      %p375 = scmp.lt.s32.totalorder %s22, 1
      %s376 = scalar_select %p375, %s22, 1
      %s377 = smul.addr %s376, 32
      %s378 = smul.addr %s377, 4
      %s379 = scalar_lea.vmem %s0, %s378
      %p380 = scmp.lt.s32.totalorder %s22, 1
      %s381 = scalar_select %p380, %s22, 1
      %s382 = scalar_lea.vmem %s11, %s381
      %v384 = vld [vmem:[%s379] sm:$0xf]
      %v385 = vld [vmem:[%s379 + $0x4] sm:$0xf]
      %v386 = vld [vmem:[%s379 + $0x8] sm:$0xf]
      %v387 = vld [vmem:[%s379 + $0xc] sm:$0xf]
      %v388 = vld [vmem:[%s379 + $0x10] sm:$0xf]
      %v389 = vld [vmem:[%s379 + $0x14] sm:$0xf]
      %v390 = vld [vmem:[%s379 + $0x18] sm:$0xf]
      %v391 = vld [vmem:[%s379 + $0x1c] sm:$0xf]
      %v392 = vld [vmem:[%s379 + $0x20] sm:$0xf]
      %v393 = vld [vmem:[%s379 + $0x24] sm:$0xf]
      %v394 = vld [vmem:[%s379 + $0x28] sm:$0xf]
      %v395 = vld [vmem:[%s379 + $0x2c] sm:$0xf]
      %v396 = vld [vmem:[%s379 + $0x30] sm:$0xf]
      %v397 = vld [vmem:[%s379 + $0x34] sm:$0xf]
      %v398 = vld [vmem:[%s379 + $0x38] sm:$0xf]
      %v399 = vld [vmem:[%s379 + $0x3c] sm:$0xf]
      %v400 = vld [vmem:[%s379 + $0x40] sm:$0xf]
      %v401 = vld [vmem:[%s379 + $0x44] sm:$0xf]
      %v402 = vld [vmem:[%s379 + $0x48] sm:$0xf]
      %v403 = vld [vmem:[%s379 + $0x4c] sm:$0xf]
      %v404 = vld [vmem:[%s379 + $0x50] sm:$0xf]
      %v405 = vld [vmem:[%s379 + $0x54] sm:$0xf]
      %v406 = vld [vmem:[%s379 + $0x58] sm:$0xf]
      %v407 = vld [vmem:[%s379 + $0x5c] sm:$0xf]
      %v408 = vld [vmem:[%s379 + $0x60] sm:$0xf]
      %v409 = vld [vmem:[%s379 + $0x64] sm:$0xf]
      %v410 = vld [vmem:[%s379 + $0x68] sm:$0xf]
      %v411 = vld [vmem:[%s379 + $0x6c] sm:$0xf]
      %v412 = vld [vmem:[%s379 + $0x70] sm:$0xf]
      %v413 = vld [vmem:[%s379 + $0x74] sm:$0xf]
      %v414 = vld [vmem:[%s379 + $0x78] sm:$0xf]
      %v415 = vld [vmem:[%s379 + $0x7c] sm:$0xf]
      $region65: #{_lambda_.1} parent=63
        #allocation2 [shape = 'u8[110592]{0}', space=vmem, size = 0x1b000, scoped, tag = 'scoped memory for _lambda_.1']
        %vm416 = vsmask.f32 256
        %vm417 = vsmask.f32 4368
        %vm418 = vmor %vm416, %vm417
        %v420 = vshrl.u32 %v384, 16
        %v422 = vrot.slane %v420, 7
        %v423 = vshll.u32 %v384, 16
        %v425 = vor.u32 %v422, %v423
        %v426 = vrot.slane %v422, 4
        %v428 = vshrl.u32 %v385, 16
        %v430 = vrot.slane %v428, 7
        %v431 = vshll.u32 %v385, 16
        %v433 = vor.u32 %v430, %v431
        %v434 = vsel %vm418, %v426, %v433
        %v435 = vrot.slane %v430, 4
        %v437 = vshrl.u32 %v386, 16
        %v439 = vrot.slane %v437, 7
        %v440 = vshll.u32 %v386, 16
        %v442 = vor.u32 %v439, %v440
        %v443 = vrot.slane %v439, 4
        %v445 = vshrl.u32 %v387, 16
        %v447 = vrot.slane %v445, 7
        %v448 = vshll.u32 %v387, 16
        %v450 = vor.u32 %v447, %v448
        %v451 = vsel %vm418, %v443, %v450
        %v452 = vrot.slane %v447, 4
        %v454 = vshrl.u32 %v388, 16
        %v456 = vrot.slane %v454, 7
        %v457 = vshll.u32 %v388, 16
        %v459 = vor.u32 %v456, %v457
        %v460 = vrot.slane %v456, 4
        %v462 = vshrl.u32 %v389, 16
        %v464 = vrot.slane %v462, 7
        %v465 = vshll.u32 %v389, 16
        %v467 = vor.u32 %v464, %v465
        %v468 = vsel %vm418, %v460, %v467
        %v469 = vrot.slane %v464, 4
        %v471 = vshrl.u32 %v390, 16
        %v473 = vrot.slane %v471, 7
        %v474 = vshll.u32 %v390, 16
        %v476 = vor.u32 %v473, %v474
        %v477 = vrot.slane %v473, 4
        %v479 = vshrl.u32 %v391, 16
        %v481 = vrot.slane %v479, 7
        %v482 = vshll.u32 %v391, 16
        %v484 = vor.u32 %v481, %v482
        %v485 = vsel %vm418, %v477, %v484
        %v486 = vrot.slane %v481, 4
        %v488 = vshrl.u32 %v392, 16
        %v490 = vrot.slane %v488, 7
        %v491 = vshll.u32 %v392, 16
        %v493 = vor.u32 %v490, %v491
        %v494 = vrot.slane %v490, 4
        %v496 = vshrl.u32 %v393, 16
        %v498 = vrot.slane %v496, 7
        %v499 = vshll.u32 %v393, 16
        %v501 = vor.u32 %v498, %v499
        %v502 = vsel %vm418, %v494, %v501
        %v503 = vrot.slane %v498, 4
        %v505 = vshrl.u32 %v394, 16
        %v507 = vrot.slane %v505, 7
        %v508 = vshll.u32 %v394, 16
        %v510 = vor.u32 %v507, %v508
        %v511 = vrot.slane %v507, 4
        %v513 = vshrl.u32 %v395, 16
        %v515 = vrot.slane %v513, 7
        %v516 = vshll.u32 %v395, 16
        %v518 = vor.u32 %v515, %v516
        %v519 = vsel %vm418, %v511, %v518
        %v520 = vrot.slane %v515, 4
        %v522 = vshrl.u32 %v396, 16
        %v524 = vrot.slane %v522, 7
        %v525 = vshll.u32 %v396, 16
        %v527 = vor.u32 %v524, %v525
        %v528 = vrot.slane %v524, 4
        %v530 = vshrl.u32 %v397, 16
        %v532 = vrot.slane %v530, 7
        %v533 = vshll.u32 %v397, 16
        %v535 = vor.u32 %v532, %v533
        %v536 = vsel %vm418, %v528, %v535
        %v537 = vrot.slane %v532, 4
        %v539 = vshrl.u32 %v398, 16
        %v541 = vrot.slane %v539, 7
        %v542 = vshll.u32 %v398, 16
        %v544 = vor.u32 %v541, %v542
        %v545 = vrot.slane %v541, 4
        %v547 = vshrl.u32 %v399, 16
        %v549 = vrot.slane %v547, 7
        %v550 = vshll.u32 %v399, 16
        %v552 = vor.u32 %v549, %v550
        %v553 = vsel %vm418, %v545, %v552
        %v554 = vrot.slane %v549, 4
        %v556 = vshrl.u32 %v400, 16
        %v558 = vrot.slane %v556, 7
        %v559 = vshll.u32 %v400, 16
        %v561 = vor.u32 %v558, %v559
        %v562 = vrot.slane %v558, 4
        %v564 = vshrl.u32 %v401, 16
        %v566 = vrot.slane %v564, 7
        %v567 = vshll.u32 %v401, 16
        %v569 = vor.u32 %v566, %v567
        %v570 = vsel %vm418, %v562, %v569
        %v571 = vrot.slane %v566, 4
        %v573 = vshrl.u32 %v402, 16
        %v575 = vrot.slane %v573, 7
        %v576 = vshll.u32 %v402, 16
        %v578 = vor.u32 %v575, %v576
        %v579 = vrot.slane %v575, 4
        %v581 = vshrl.u32 %v403, 16
        %v583 = vrot.slane %v581, 7
        %v584 = vshll.u32 %v403, 16
        %v586 = vor.u32 %v583, %v584
        %v587 = vsel %vm418, %v579, %v586
        %v588 = vrot.slane %v583, 4
        %v590 = vshrl.u32 %v404, 16
        %v592 = vrot.slane %v590, 7
        %v593 = vshll.u32 %v404, 16
        %v595 = vor.u32 %v592, %v593
        %v596 = vrot.slane %v592, 4
        %v598 = vshrl.u32 %v405, 16
        %v600 = vrot.slane %v598, 7
        %v601 = vshll.u32 %v405, 16
        %v603 = vor.u32 %v600, %v601
        %v604 = vsel %vm418, %v596, %v603
        %v605 = vrot.slane %v600, 4
        %v607 = vshrl.u32 %v406, 16
        %v609 = vrot.slane %v607, 7
        %v610 = vshll.u32 %v406, 16
        %v612 = vor.u32 %v609, %v610
        %v613 = vrot.slane %v609, 4
        %v615 = vshrl.u32 %v407, 16
        %v617 = vrot.slane %v615, 7
        %v618 = vshll.u32 %v407, 16
        %v620 = vor.u32 %v617, %v618
        %v621 = vsel %vm418, %v613, %v620
        %v622 = vrot.slane %v617, 4
        %v624 = vshrl.u32 %v408, 16
        %v626 = vrot.slane %v624, 7
        %v627 = vshll.u32 %v408, 16
        %v629 = vor.u32 %v626, %v627
        %v630 = vrot.slane %v626, 4
        %v632 = vshrl.u32 %v409, 16
        %v634 = vrot.slane %v632, 7
        %v635 = vshll.u32 %v409, 16
        %v637 = vor.u32 %v634, %v635
        %v638 = vsel %vm418, %v630, %v637
        %v639 = vrot.slane %v634, 4
        %v641 = vshrl.u32 %v410, 16
        %v643 = vrot.slane %v641, 7
        %v644 = vshll.u32 %v410, 16
        %v646 = vor.u32 %v643, %v644
        %v647 = vrot.slane %v643, 4
        %v649 = vshrl.u32 %v411, 16
        %v651 = vrot.slane %v649, 7
        %v652 = vshll.u32 %v411, 16
        %v654 = vor.u32 %v651, %v652
        %v655 = vsel %vm418, %v647, %v654
        %v656 = vrot.slane %v651, 4
        %v658 = vshrl.u32 %v412, 16
        %v660 = vrot.slane %v658, 7
        %v661 = vshll.u32 %v412, 16
        %v663 = vor.u32 %v660, %v661
        %v664 = vrot.slane %v660, 4
        %v666 = vshrl.u32 %v413, 16
        %v668 = vrot.slane %v666, 7
        %v669 = vshll.u32 %v413, 16
        %v671 = vor.u32 %v668, %v669
        %v672 = vsel %vm418, %v664, %v671
        %v673 = vrot.slane %v668, 4
        %v675 = vshrl.u32 %v414, 16
        %v677 = vrot.slane %v675, 7
        %v678 = vshll.u32 %v414, 16
        %v680 = vor.u32 %v677, %v678
        %v681 = vrot.slane %v677, 4
        %v683 = vshrl.u32 %v415, 16
        %v685 = vrot.slane %v683, 7
        %v686 = vshll.u32 %v415, 16
        %v688 = vor.u32 %v685, %v686
        %v689 = vsel %vm418, %v681, %v688
        %v690 = vrot.slane %v685, 4
        %s739 = scalar_lea.vmem [#allocation2], 12
        %vm740 = vcmask 27648
        %vm741 = vsmask.f32 7938
        %vm742 = vmand %vm740, %vm741
        %v743 = vld [vmem:[%s739] sm:$0xf]
        %v744 = vsel %vm742, %v425, %v743
        %745 = vst [vmem:[%s739] sm:$0xf] %v744
        %vm746 = vcmask 27648
        %747 = vst.msk [vmem:[%s739 + $0x4] sm:$0xf] %vm746, %v434
        %vm748 = vcmask 24576
        %vm749 = vmand %vm748, %vm416
        %v750 = vld [vmem:[%s739 + $0x8] sm:$0x1]
        %v751 = vsel %vm749, %v435, %v750
        %752 = vst [vmem:[%s739 + $0x8] sm:$0x1] %v751
        %v753 = vld [vmem:[%s739 + $0xc] sm:$0xf]
        %v754 = vsel %vm742, %v442, %v753
        %755 = vst [vmem:[%s739 + $0xc] sm:$0xf] %v754
        %756 = vst.msk [vmem:[%s739 + $0x10] sm:$0xf] %vm746, %v451
        %v757 = vld [vmem:[%s739 + $0x14] sm:$0x1]
        %v758 = vsel %vm749, %v452, %v757
        %759 = vst [vmem:[%s739 + $0x14] sm:$0x1] %v758
        %v760 = vld [vmem:[%s739 + $0x18] sm:$0xf]
        %v761 = vsel %vm742, %v459, %v760
        %762 = vst [vmem:[%s739 + $0x18] sm:$0xf] %v761
        %763 = vst.msk [vmem:[%s739 + $0x1c] sm:$0xf] %vm746, %v468
        %v764 = vld [vmem:[%s739 + $0x20] sm:$0x1]
        %v765 = vsel %vm749, %v469, %v764
        %766 = vst [vmem:[%s739 + $0x20] sm:$0x1] %v765
        %v767 = vld [vmem:[%s739 + $0x24] sm:$0xf]
        %v768 = vsel %vm742, %v476, %v767
        %769 = vst [vmem:[%s739 + $0x24] sm:$0xf] %v768
        %770 = vst.msk [vmem:[%s739 + $0x28] sm:$0xf] %vm746, %v485
        %v771 = vld [vmem:[%s739 + $0x2c] sm:$0x1]
        %v772 = vsel %vm749, %v486, %v771
        %773 = vst [vmem:[%s739 + $0x2c] sm:$0x1] %v772
        %v774 = vld [vmem:[%s739 + $0x30] sm:$0xf]
        %v775 = vsel %vm742, %v493, %v774
        %776 = vst [vmem:[%s739 + $0x30] sm:$0xf] %v775
        %777 = vst.msk [vmem:[%s739 + $0x34] sm:$0xf] %vm746, %v502
        %v778 = vld [vmem:[%s739 + $0x38] sm:$0x1]
        %v779 = vsel %vm749, %v503, %v778
        %780 = vst [vmem:[%s739 + $0x38] sm:$0x1] %v779
        %v781 = vld [vmem:[%s739 + $0x3c] sm:$0xf]
        %v782 = vsel %vm742, %v510, %v781
        %783 = vst [vmem:[%s739 + $0x3c] sm:$0xf] %v782
        %784 = vst.msk [vmem:[%s739 + $0x40] sm:$0xf] %vm746, %v519
        %v785 = vld [vmem:[%s739 + $0x44] sm:$0x1]
        %v786 = vsel %vm749, %v520, %v785
        %787 = vst [vmem:[%s739 + $0x44] sm:$0x1] %v786
        %v788 = vld [vmem:[%s739 + $0x48] sm:$0xf]
        %v789 = vsel %vm742, %v527, %v788
        %790 = vst [vmem:[%s739 + $0x48] sm:$0xf] %v789
        %791 = vst.msk [vmem:[%s739 + $0x4c] sm:$0xf] %vm746, %v536
        %v792 = vld [vmem:[%s739 + $0x50] sm:$0x1]
        %v793 = vsel %vm749, %v537, %v792
        %794 = vst [vmem:[%s739 + $0x50] sm:$0x1] %v793
        %v795 = vld [vmem:[%s739 + $0x54] sm:$0xf]
        %v796 = vsel %vm742, %v544, %v795
        %797 = vst [vmem:[%s739 + $0x54] sm:$0xf] %v796
        %798 = vst.msk [vmem:[%s739 + $0x58] sm:$0xf] %vm746, %v553
        %v799 = vld [vmem:[%s739 + $0x5c] sm:$0x1]
        %v800 = vsel %vm749, %v554, %v799
        %801 = vst [vmem:[%s739 + $0x5c] sm:$0x1] %v800
        %v802 = vld [vmem:[%s739 + $0x60] sm:$0xf]
        %v803 = vsel %vm742, %v561, %v802
        %804 = vst [vmem:[%s739 + $0x60] sm:$0xf] %v803
        %805 = vst.msk [vmem:[%s739 + $0x64] sm:$0xf] %vm746, %v570
        %v806 = vld [vmem:[%s739 + $0x68] sm:$0x1]
        %v807 = vsel %vm749, %v571, %v806
        %808 = vst [vmem:[%s739 + $0x68] sm:$0x1] %v807
        %v809 = vld [vmem:[%s739 + $0x6c] sm:$0xf]
        %v810 = vsel %vm742, %v578, %v809
        %811 = vst [vmem:[%s739 + $0x6c] sm:$0xf] %v810
        %812 = vst.msk [vmem:[%s739 + $0x70] sm:$0xf] %vm746, %v587
        %v813 = vld [vmem:[%s739 + $0x74] sm:$0x1]
        %v814 = vsel %vm749, %v588, %v813
        %815 = vst [vmem:[%s739 + $0x74] sm:$0x1] %v814
        %v816 = vld [vmem:[%s739 + $0x78] sm:$0xf]
        %v817 = vsel %vm742, %v595, %v816
        %818 = vst [vmem:[%s739 + $0x78] sm:$0xf] %v817
        %819 = vst.msk [vmem:[%s739 + $0x7c] sm:$0xf] %vm746, %v604
        %v820 = vld [vmem:[%s739 + $0x80] sm:$0x1]
        %v821 = vsel %vm749, %v605, %v820
        %822 = vst [vmem:[%s739 + $0x80] sm:$0x1] %v821
        %v823 = vld [vmem:[%s739 + $0x84] sm:$0xf]
        %v824 = vsel %vm742, %v612, %v823
        %825 = vst [vmem:[%s739 + $0x84] sm:$0xf] %v824
        %826 = vst.msk [vmem:[%s739 + $0x88] sm:$0xf] %vm746, %v621
        %v827 = vld [vmem:[%s739 + $0x8c] sm:$0x1]
        %v828 = vsel %vm749, %v622, %v827
        %829 = vst [vmem:[%s739 + $0x8c] sm:$0x1] %v828
        %v830 = vld [vmem:[%s739 + $0x90] sm:$0xf]
        %v831 = vsel %vm742, %v629, %v830
        %832 = vst [vmem:[%s739 + $0x90] sm:$0xf] %v831
        %833 = vst.msk [vmem:[%s739 + $0x94] sm:$0xf] %vm746, %v638
        %v834 = vld [vmem:[%s739 + $0x98] sm:$0x1]
        %v835 = vsel %vm749, %v639, %v834
        %836 = vst [vmem:[%s739 + $0x98] sm:$0x1] %v835
        %v837 = vld [vmem:[%s739 + $0x9c] sm:$0xf]
        %v838 = vsel %vm742, %v646, %v837
        %839 = vst [vmem:[%s739 + $0x9c] sm:$0xf] %v838
        %840 = vst.msk [vmem:[%s739 + $0xa0] sm:$0xf] %vm746, %v655
        %v841 = vld [vmem:[%s739 + $0xa4] sm:$0x1]
        %v842 = vsel %vm749, %v656, %v841
        %843 = vst [vmem:[%s739 + $0xa4] sm:$0x1] %v842
        %v844 = vld [vmem:[%s739 + $0xa8] sm:$0xf]
        %v845 = vsel %vm742, %v663, %v844
        %846 = vst [vmem:[%s739 + $0xa8] sm:$0xf] %v845
        %847 = vst.msk [vmem:[%s739 + $0xac] sm:$0xf] %vm746, %v672
        %v848 = vld [vmem:[%s739 + $0xb0] sm:$0x1]
        %v849 = vsel %vm749, %v673, %v848
        %850 = vst [vmem:[%s739 + $0xb0] sm:$0x1] %v849
        %v851 = vld [vmem:[%s739 + $0xb4] sm:$0xf]
        %v852 = vsel %vm742, %v680, %v851
        %853 = vst [vmem:[%s739 + $0xb4] sm:$0xf] %v852
        %854 = vst.msk [vmem:[%s739 + $0xb8] sm:$0xf] %vm746, %v689
        %v855 = vld [vmem:[%s739 + $0xbc] sm:$0x1]
        %v856 = vsel %vm749, %v690, %v855
        %857 = vst [vmem:[%s739 + $0xbc] sm:$0x1] %v856
        %v858 = vrot.slane %v420, 4
        %v859 = vrot.slane %v858, 4
        %v860 = vrot.slane %v437, 4
        %v861 = vrot.slane %v860, 4
        %v862 = vrot.slane %v454, 4
        %v863 = vrot.slane %v862, 4
        %v864 = vrot.slane %v471, 4
        %v865 = vrot.slane %v864, 4
        %v866 = vrot.slane %v488, 4
        %v867 = vrot.slane %v866, 4
        %v868 = vrot.slane %v505, 4
        %v869 = vrot.slane %v868, 4
        %v870 = vrot.slane %v522, 4
        %v871 = vrot.slane %v870, 4
        %v872 = vrot.slane %v539, 4
        %v873 = vrot.slane %v872, 4
        %v874 = vrot.slane %v556, 4
        %v875 = vrot.slane %v874, 4
        %v876 = vrot.slane %v573, 4
        %v877 = vrot.slane %v876, 4
        %v878 = vrot.slane %v590, 4
        %v879 = vrot.slane %v878, 4
        %v880 = vrot.slane %v607, 4
        %v881 = vrot.slane %v880, 4
        %v882 = vrot.slane %v624, 4
        %v883 = vrot.slane %v882, 4
        %v884 = vrot.slane %v641, 4
        %v885 = vrot.slane %v884, 4
        %v886 = vrot.slane %v658, 4
        %v887 = vrot.slane %v886, 4
        %v888 = vrot.slane %v675, 4
        %v889 = vrot.slane %v888, 4
        %v906 = vld [vmem:[%s739] sm:$0x1]
        %v907 = vsel %vm749, %v859, %v906
        %908 = vst [vmem:[%s739] sm:$0x1] %v907
        %v909 = vld [vmem:[%s739 + $0xc] sm:$0x1]
        %v910 = vsel %vm749, %v861, %v909
        %911 = vst [vmem:[%s739 + $0xc] sm:$0x1] %v910
        %v912 = vld [vmem:[%s739 + $0x18] sm:$0x1]
        %v913 = vsel %vm749, %v863, %v912
        %914 = vst [vmem:[%s739 + $0x18] sm:$0x1] %v913
        %v915 = vld [vmem:[%s739 + $0x24] sm:$0x1]
        %v916 = vsel %vm749, %v865, %v915
        %917 = vst [vmem:[%s739 + $0x24] sm:$0x1] %v916
        %v918 = vld [vmem:[%s739 + $0x30] sm:$0x1]
        %v919 = vsel %vm749, %v867, %v918
        %920 = vst [vmem:[%s739 + $0x30] sm:$0x1] %v919
        %v921 = vld [vmem:[%s739 + $0x3c] sm:$0x1]
        %v922 = vsel %vm749, %v869, %v921
        %923 = vst [vmem:[%s739 + $0x3c] sm:$0x1] %v922
        %v924 = vld [vmem:[%s739 + $0x48] sm:$0x1]
        %v925 = vsel %vm749, %v871, %v924
        %926 = vst [vmem:[%s739 + $0x48] sm:$0x1] %v925
        %v927 = vld [vmem:[%s739 + $0x54] sm:$0x1]
        %v928 = vsel %vm749, %v873, %v927
        %929 = vst [vmem:[%s739 + $0x54] sm:$0x1] %v928
        %v930 = vld [vmem:[%s739 + $0x60] sm:$0x1]
        %v931 = vsel %vm749, %v875, %v930
        %932 = vst [vmem:[%s739 + $0x60] sm:$0x1] %v931
        %v933 = vld [vmem:[%s739 + $0x6c] sm:$0x1]
        %v934 = vsel %vm749, %v877, %v933
        %935 = vst [vmem:[%s739 + $0x6c] sm:$0x1] %v934
        %v936 = vld [vmem:[%s739 + $0x78] sm:$0x1]
        %v937 = vsel %vm749, %v879, %v936
        %938 = vst [vmem:[%s739 + $0x78] sm:$0x1] %v937
        %v939 = vld [vmem:[%s739 + $0x84] sm:$0x1]
        %v940 = vsel %vm749, %v881, %v939
        %941 = vst [vmem:[%s739 + $0x84] sm:$0x1] %v940
        %v942 = vld [vmem:[%s739 + $0x90] sm:$0x1]
        %v943 = vsel %vm749, %v883, %v942
        %944 = vst [vmem:[%s739 + $0x90] sm:$0x1] %v943
        %v945 = vld [vmem:[%s739 + $0x9c] sm:$0x1]
        %v946 = vsel %vm749, %v885, %v945
        %947 = vst [vmem:[%s739 + $0x9c] sm:$0x1] %v946
        %v948 = vld [vmem:[%s739 + $0xa8] sm:$0x1]
        %v949 = vsel %vm749, %v887, %v948
        %950 = vst [vmem:[%s739 + $0xa8] sm:$0x1] %v949
        %v951 = vld [vmem:[%s739 + $0xb4] sm:$0x1]
        %v952 = vsel %vm749, %v889, %v951
        %953 = vst [vmem:[%s739 + $0xb4] sm:$0x1] %v952
        %v954 = vrot.slane %v431, 7
        %v955 = vrot.slane %v954, 4
        %v956 = vrot.slane %v448, 7
        %v957 = vrot.slane %v956, 4
        %v958 = vrot.slane %v465, 7
        %v959 = vrot.slane %v958, 4
        %v960 = vrot.slane %v482, 7
        %v961 = vrot.slane %v960, 4
        %v962 = vrot.slane %v499, 7
        %v963 = vrot.slane %v962, 4
        %v964 = vrot.slane %v516, 7
        %v965 = vrot.slane %v964, 4
        %v966 = vrot.slane %v533, 7
        %v967 = vrot.slane %v966, 4
        %v968 = vrot.slane %v550, 7
        %v969 = vrot.slane %v968, 4
        %v970 = vrot.slane %v567, 7
        %v971 = vrot.slane %v970, 4
        %v972 = vrot.slane %v584, 7
        %v973 = vrot.slane %v972, 4
        %v974 = vrot.slane %v601, 7
        %v975 = vrot.slane %v974, 4
        %v976 = vrot.slane %v618, 7
        %v977 = vrot.slane %v976, 4
        %v978 = vrot.slane %v635, 7
        %v979 = vrot.slane %v978, 4
        %v980 = vrot.slane %v652, 7
        %v981 = vrot.slane %v980, 4
        %v982 = vrot.slane %v669, 7
        %v983 = vrot.slane %v982, 4
        %v984 = vrot.slane %v686, 7
        %v985 = vrot.slane %v984, 4
        %vm1002 = vmand %vm748, %vm741
        %v1003 = vld [vmem:[%s739 + $0x8] sm:$0x1]
        %v1004 = vsel %vm1002, %v955, %v1003
        %1005 = vst [vmem:[%s739 + $0x8] sm:$0x1] %v1004
        %v1006 = vld [vmem:[%s739 + $0x14] sm:$0x1]
        %v1007 = vsel %vm1002, %v957, %v1006
        %1008 = vst [vmem:[%s739 + $0x14] sm:$0x1] %v1007
        %v1009 = vld [vmem:[%s739 + $0x20] sm:$0x1]
        %v1010 = vsel %vm1002, %v959, %v1009
        %1011 = vst [vmem:[%s739 + $0x20] sm:$0x1] %v1010
        %v1012 = vld [vmem:[%s739 + $0x2c] sm:$0x1]
        %v1013 = vsel %vm1002, %v961, %v1012
        %1014 = vst [vmem:[%s739 + $0x2c] sm:$0x1] %v1013
        %v1015 = vld [vmem:[%s739 + $0x38] sm:$0x1]
        %v1016 = vsel %vm1002, %v963, %v1015
        %1017 = vst [vmem:[%s739 + $0x38] sm:$0x1] %v1016
        %v1018 = vld [vmem:[%s739 + $0x44] sm:$0x1]
        %v1019 = vsel %vm1002, %v965, %v1018
        %1020 = vst [vmem:[%s739 + $0x44] sm:$0x1] %v1019
        %v1021 = vld [vmem:[%s739 + $0x50] sm:$0x1]
        %v1022 = vsel %vm1002, %v967, %v1021
        %1023 = vst [vmem:[%s739 + $0x50] sm:$0x1] %v1022
        %v1024 = vld [vmem:[%s739 + $0x5c] sm:$0x1]
        %v1025 = vsel %vm1002, %v969, %v1024
        %1026 = vst [vmem:[%s739 + $0x5c] sm:$0x1] %v1025
        %v1027 = vld [vmem:[%s739 + $0x68] sm:$0x1]
        %v1028 = vsel %vm1002, %v971, %v1027
        %1029 = vst [vmem:[%s739 + $0x68] sm:$0x1] %v1028
        %v1030 = vld [vmem:[%s739 + $0x74] sm:$0x1]
        %v1031 = vsel %vm1002, %v973, %v1030
        %1032 = vst [vmem:[%s739 + $0x74] sm:$0x1] %v1031
        %v1033 = vld [vmem:[%s739 + $0x80] sm:$0x1]
        %v1034 = vsel %vm1002, %v975, %v1033
        %1035 = vst [vmem:[%s739 + $0x80] sm:$0x1] %v1034
        %v1036 = vld [vmem:[%s739 + $0x8c] sm:$0x1]
        %v1037 = vsel %vm1002, %v977, %v1036
        %1038 = vst [vmem:[%s739 + $0x8c] sm:$0x1] %v1037
        %v1039 = vld [vmem:[%s739 + $0x98] sm:$0x1]
        %v1040 = vsel %vm1002, %v979, %v1039
        %1041 = vst [vmem:[%s739 + $0x98] sm:$0x1] %v1040
        %v1042 = vld [vmem:[%s739 + $0xa4] sm:$0x1]
        %v1043 = vsel %vm1002, %v981, %v1042
        %1044 = vst [vmem:[%s739 + $0xa4] sm:$0x1] %v1043
        %v1045 = vld [vmem:[%s739 + $0xb0] sm:$0x1]
        %v1046 = vsel %vm1002, %v983, %v1045
        %1047 = vst [vmem:[%s739 + $0xb0] sm:$0x1] %v1046
        %v1048 = vld [vmem:[%s739 + $0xbc] sm:$0x1]
        %v1049 = vsel %vm1002, %v985, %v1048
        %1050 = vst [vmem:[%s739 + $0xbc] sm:$0x1] %v1049
        %s1051 = scalar_lea.vmem [#allocation2], 24
        %v1052 = vld [vmem:[%s1051] sm:$0xf]
        %v1053 = vld [vmem:[%s1051 + $0x4] sm:$0xf]
        %v1054 = vld [vmem:[%s1051 + $0x8] sm:$0x1]
        %1055 = vst.msk [vmem:[#allocation2] sm:$0xf] %vm746, %v1052
        %1056 = vst.msk [vmem:[#allocation2 + $0x4] sm:$0xf] %vm746, %v1053
        %vm1057 = vcmask 24576
        %1058 = vst.msk [vmem:[#allocation2 + $0x8] sm:$0x1] %vm1057, %v1054
        %s1059 = scalar_lea.vmem [#allocation2], 180
        %v1060 = vld [vmem:[%s1059] sm:$0xf]
        %v1061 = vld [vmem:[%s1059 + $0x4] sm:$0xf]
        %v1062 = vld [vmem:[%s1059 + $0x8] sm:$0x1]
        %s1063 = scalar_lea.vmem [#allocation2], 204
        %1064 = vst.msk [vmem:[%s1063] sm:$0xf] %vm746, %v1060
        %1065 = vst.msk [vmem:[%s1063 + $0x4] sm:$0xf] %vm746, %v1061
        %1066 = vst.msk [vmem:[%s1063 + $0x8] sm:$0x1] %vm1057, %v1062
        %v1067 = vld [vmem:[%s1] sm:$0x3]
        %v1068 = vld [vmem:[%s1 + $0x2] sm:$0x3]
        %v1069 = vld [vmem:[%s1 + $0x4] sm:$0x3]
        %v1070 = vld [vmem:[%s1 + $0x6] sm:$0x3]
        %v1071 = vld [vmem:[%s1 + $0x8] sm:$0x3]
        %v1072 = vld [vmem:[%s1 + $0xa] sm:$0x3]
        %v1073 = vld [vmem:[%s1 + $0xc] sm:$0x3]
        %v1074 = vld [vmem:[%s1 + $0xe] sm:$0x3]
        %v1075 = vld [vmem:[%s1 + $0x10] sm:$0x3]
        %v1076 = vld [vmem:[#allocation2] sm:$0xf]
        %v1077 = vld [vmem:[#allocation2 + $0x4] sm:$0xf]
        %v1078 = vld [vmem:[#allocation2 + $0x8] sm:$0x1]
        %v1079 = vld [vmem:[#allocation2 + $0xc] sm:$0xf]
        %v1080 = vld [vmem:[#allocation2 + $0x10] sm:$0xf]
        %v1081 = vld [vmem:[#allocation2 + $0x14] sm:$0x1]
        %v1082 = vld [vmem:[#allocation2 + $0x18] sm:$0xf]
        %v1083 = vld [vmem:[#allocation2 + $0x1c] sm:$0xf]
        %v1084 = vld [vmem:[#allocation2 + $0x20] sm:$0x1]
        %v1085 = vld [vmem:[#allocation2 + $0x24] sm:$0xf]
        %v1086 = vld [vmem:[#allocation2 + $0x28] sm:$0xf]
        %v1087 = vld [vmem:[#allocation2 + $0x2c] sm:$0x1]
        %v1088 = vld [vmem:[#allocation2 + $0x30] sm:$0xf]
        %v1089 = vld [vmem:[#allocation2 + $0x34] sm:$0xf]
        %v1090 = vld [vmem:[#allocation2 + $0x38] sm:$0x1]
        %v1091 = vld [vmem:[#allocation2 + $0x3c] sm:$0xf]
        %v1092 = vld [vmem:[#allocation2 + $0x40] sm:$0xf]
        %v1093 = vld [vmem:[#allocation2 + $0x44] sm:$0x1]
        %v1094 = vld [vmem:[#allocation2 + $0x48] sm:$0xf]
        %v1095 = vld [vmem:[#allocation2 + $0x4c] sm:$0xf]
        %v1096 = vld [vmem:[#allocation2 + $0x50] sm:$0x1]
        %v1097 = vld [vmem:[#allocation2 + $0x54] sm:$0xf]
        %v1098 = vld [vmem:[#allocation2 + $0x58] sm:$0xf]
        %v1099 = vld [vmem:[#allocation2 + $0x5c] sm:$0x1]
        %v1100 = vld [vmem:[#allocation2 + $0x60] sm:$0xf]
        %v1101 = vld [vmem:[#allocation2 + $0x64] sm:$0xf]
        %v1102 = vld [vmem:[#allocation2 + $0x68] sm:$0x1]
        %v1103 = vld [vmem:[#allocation2 + $0x6c] sm:$0xf]
        %v1104 = vld [vmem:[#allocation2 + $0x70] sm:$0xf]
        %v1105 = vld [vmem:[#allocation2 + $0x74] sm:$0x1]
        %v1106 = vld [vmem:[#allocation2 + $0x78] sm:$0xf]
        %v1107 = vld [vmem:[#allocation2 + $0x7c] sm:$0xf]
        %v1108 = vld [vmem:[#allocation2 + $0x80] sm:$0x1]
        %v1109 = vld [vmem:[#allocation2 + $0x84] sm:$0xf]
        %v1110 = vld [vmem:[#allocation2 + $0x88] sm:$0xf]
        %v1111 = vld [vmem:[#allocation2 + $0x8c] sm:$0x1]
        %v1112 = vld [vmem:[#allocation2 + $0x90] sm:$0xf]
        %v1113 = vld [vmem:[#allocation2 + $0x94] sm:$0xf]
        %v1114 = vld [vmem:[#allocation2 + $0x98] sm:$0x1]
        %v1115 = vld [vmem:[#allocation2 + $0x9c] sm:$0xf]
        %v1116 = vld [vmem:[#allocation2 + $0xa0] sm:$0xf]
        %v1117 = vld [vmem:[#allocation2 + $0xa4] sm:$0x1]
        %v1118 = vld [vmem:[#allocation2 + $0xa8] sm:$0xf]
        %v1119 = vld [vmem:[#allocation2 + $0xac] sm:$0xf]
        %v1120 = vld [vmem:[#allocation2 + $0xb0] sm:$0x1]
        %v1121 = vld [vmem:[#allocation2 + $0xb4] sm:$0xf]
        %v1122 = vld [vmem:[#allocation2 + $0xb8] sm:$0xf]
        %v1123 = vld [vmem:[#allocation2 + $0xbc] sm:$0x1]
        %v1124 = vld [vmem:[#allocation2 + $0xc0] sm:$0xf]
        %v1125 = vld [vmem:[#allocation2 + $0xc4] sm:$0xf]
        %v1126 = vld [vmem:[#allocation2 + $0xc8] sm:$0x1]
        %v1179 = vunpack.c.l.s4 1966171168
        %v1180 = vunpack.c.0.s8 %v1179
        %v1181 = vlaneseq
        %v1182 = vshrl.u32 %v1181, 7
        %v1183 = vsub.s32 %v1180, %v1182
        %v1184 = vrot.slane %v1076, %v1183
        %v1185 = vcombine.high %v1184, %v1184
        %v1187 = vunpack.c.l.s4 1966171168
        %v1188 = vunpack.c.0.s8 %v1187
        %v1189 = vlaneseq
        %v1190 = vshrl.u32 %v1189, 7
        %v1191 = vsub.s32 %v1188, %v1190
        %v1192 = vrot.slane %v1184, %v1191
        %v1194 = vunpack.c.l.s4 1966171168
        %v1195 = vunpack.c.0.s8 %v1194
        %v1196 = vlaneseq
        %v1197 = vshrl.u32 %v1196, 7
        %v1198 = vsub.s32 %v1195, %v1197
        %v1199 = vrot.slane %v1185, %v1198
        %v1200 = vcombine.high %v1192, %v1192
        %v1201 = vcombine.high %v1199, %v1199
        %v1203 = vunpack.c.l.s4 1966171168
        %v1204 = vunpack.c.0.s8 %v1203
        %v1205 = vlaneseq
        %v1206 = vshrl.u32 %v1205, 7
        %v1207 = vsub.s32 %v1204, %v1206
        %v1208 = vrot.slane %v1077, %v1207
        %v1209 = vcombine.high %v1208, %v1208
        %v1211 = vunpack.c.l.s4 1966171168
        %v1212 = vunpack.c.0.s8 %v1211
        %v1213 = vlaneseq
        %v1214 = vshrl.u32 %v1213, 7
        %v1215 = vsub.s32 %v1212, %v1214
        %v1216 = vrot.slane %v1208, %v1215
        %v1218 = vunpack.c.l.s4 1966171168
        %v1219 = vunpack.c.0.s8 %v1218
        %v1220 = vlaneseq
        %v1221 = vshrl.u32 %v1220, 7
        %v1222 = vsub.s32 %v1219, %v1221
        %v1223 = vrot.slane %v1209, %v1222
        %v1224 = vcombine.high %v1216, %v1216
        %v1225 = vcombine.high %v1223, %v1223
        %v1227 = vunpack.c.l.s4 1966171168
        %v1228 = vunpack.c.0.s8 %v1227
        %v1229 = vlaneseq
        %v1230 = vshrl.u32 %v1229, 7
        %v1231 = vsub.s32 %v1228, %v1230
        %v1232 = vrot.slane %v1078, %v1231
        %v1234 = vunpack.c.l.s4 1966171168
        %v1235 = vunpack.c.0.s8 %v1234
        %v1236 = vlaneseq
        %v1237 = vshrl.u32 %v1236, 7
        %v1238 = vsub.s32 %v1235, %v1237
        %v1239 = vrot.slane %v1232, %v1238
        %v1241 = vunpack.c.l.s4 1966171168
        %v1242 = vunpack.c.0.s8 %v1241
        %v1243 = vlaneseq
        %v1244 = vshrl.u32 %v1243, 7
        %v1245 = vsub.s32 %v1242, %v1244
        %v1246 = vrot.slane %v1079, %v1245
        %v1247 = vcombine.high %v1246, %v1246
        %v1249 = vunpack.c.l.s4 1966171168
        %v1250 = vunpack.c.0.s8 %v1249
        %v1251 = vlaneseq
        %v1252 = vshrl.u32 %v1251, 7
        %v1253 = vsub.s32 %v1250, %v1252
        %v1254 = vrot.slane %v1246, %v1253
        %v1256 = vunpack.c.l.s4 1966171168
        %v1257 = vunpack.c.0.s8 %v1256
        %v1258 = vlaneseq
        %v1259 = vshrl.u32 %v1258, 7
        %v1260 = vsub.s32 %v1257, %v1259
        %v1261 = vrot.slane %v1247, %v1260
        %v1262 = vcombine.high %v1254, %v1254
        %v1263 = vcombine.high %v1261, %v1261
        %v1265 = vunpack.c.l.s4 1966171168
        %v1266 = vunpack.c.0.s8 %v1265
        %v1267 = vlaneseq
        %v1268 = vshrl.u32 %v1267, 7
        %v1269 = vsub.s32 %v1266, %v1268
        %v1270 = vrot.slane %v1080, %v1269
        %v1271 = vcombine.high %v1270, %v1270
        %v1273 = vunpack.c.l.s4 1966171168
        %v1274 = vunpack.c.0.s8 %v1273
        %v1275 = vlaneseq
        %v1276 = vshrl.u32 %v1275, 7
        %v1277 = vsub.s32 %v1274, %v1276
        %v1278 = vrot.slane %v1270, %v1277
        %v1280 = vunpack.c.l.s4 1966171168
        %v1281 = vunpack.c.0.s8 %v1280
        %v1282 = vlaneseq
        %v1283 = vshrl.u32 %v1282, 7
        %v1284 = vsub.s32 %v1281, %v1283
        %v1285 = vrot.slane %v1271, %v1284
        %v1286 = vcombine.high %v1278, %v1278
        %v1287 = vcombine.high %v1285, %v1285
        %v1289 = vunpack.c.l.s4 1966171168
        %v1290 = vunpack.c.0.s8 %v1289
        %v1291 = vlaneseq
        %v1292 = vshrl.u32 %v1291, 7
        %v1293 = vsub.s32 %v1290, %v1292
        %v1294 = vrot.slane %v1081, %v1293
        %v1296 = vunpack.c.l.s4 1966171168
        %v1297 = vunpack.c.0.s8 %v1296
        %v1298 = vlaneseq
        %v1299 = vshrl.u32 %v1298, 7
        %v1300 = vsub.s32 %v1297, %v1299
        %v1301 = vrot.slane %v1294, %v1300
        %v1303 = vunpack.c.l.s4 1966171168
        %v1304 = vunpack.c.0.s8 %v1303
        %v1305 = vlaneseq
        %v1306 = vshrl.u32 %v1305, 7
        %v1307 = vsub.s32 %v1304, %v1306
        %v1308 = vrot.slane %v1082, %v1307
        %v1309 = vcombine.high %v1308, %v1308
        %v1311 = vunpack.c.l.s4 1966171168
        %v1312 = vunpack.c.0.s8 %v1311
        %v1313 = vlaneseq
        %v1314 = vshrl.u32 %v1313, 7
        %v1315 = vsub.s32 %v1312, %v1314
        %v1316 = vrot.slane %v1308, %v1315
        %v1318 = vunpack.c.l.s4 1966171168
        %v1319 = vunpack.c.0.s8 %v1318
        %v1320 = vlaneseq
        %v1321 = vshrl.u32 %v1320, 7
        %v1322 = vsub.s32 %v1319, %v1321
        %v1323 = vrot.slane %v1309, %v1322
        %v1324 = vcombine.high %v1316, %v1316
        %v1325 = vcombine.high %v1323, %v1323
        %v1327 = vunpack.c.l.s4 1966171168
        %v1328 = vunpack.c.0.s8 %v1327
        %v1329 = vlaneseq
        %v1330 = vshrl.u32 %v1329, 7
        %v1331 = vsub.s32 %v1328, %v1330
        %v1332 = vrot.slane %v1083, %v1331
        %v1333 = vcombine.high %v1332, %v1332
        %v1335 = vunpack.c.l.s4 1966171168
        %v1336 = vunpack.c.0.s8 %v1335
        %v1337 = vlaneseq
        %v1338 = vshrl.u32 %v1337, 7
        %v1339 = vsub.s32 %v1336, %v1338
        %v1340 = vrot.slane %v1332, %v1339
        %v1342 = vunpack.c.l.s4 1966171168
        %v1343 = vunpack.c.0.s8 %v1342
        %v1344 = vlaneseq
        %v1345 = vshrl.u32 %v1344, 7
        %v1346 = vsub.s32 %v1343, %v1345
        %v1347 = vrot.slane %v1333, %v1346
        %v1348 = vcombine.high %v1340, %v1340
        %v1349 = vcombine.high %v1347, %v1347
        %v1351 = vunpack.c.l.s4 1966171168
        %v1352 = vunpack.c.0.s8 %v1351
        %v1353 = vlaneseq
        %v1354 = vshrl.u32 %v1353, 7
        %v1355 = vsub.s32 %v1352, %v1354
        %v1356 = vrot.slane %v1084, %v1355
        %v1358 = vunpack.c.l.s4 1966171168
        %v1359 = vunpack.c.0.s8 %v1358
        %v1360 = vlaneseq
        %v1361 = vshrl.u32 %v1360, 7
        %v1362 = vsub.s32 %v1359, %v1361
        %v1363 = vrot.slane %v1356, %v1362
        %v1365 = vunpack.c.l.s4 1966171168
        %v1366 = vunpack.c.0.s8 %v1365
        %v1367 = vlaneseq
        %v1368 = vshrl.u32 %v1367, 7
        %v1369 = vsub.s32 %v1366, %v1368
        %v1370 = vrot.slane %v1085, %v1369
        %v1371 = vcombine.high %v1370, %v1370
        %v1373 = vunpack.c.l.s4 1966171168
        %v1374 = vunpack.c.0.s8 %v1373
        %v1375 = vlaneseq
        %v1376 = vshrl.u32 %v1375, 7
        %v1377 = vsub.s32 %v1374, %v1376
        %v1378 = vrot.slane %v1370, %v1377
        %v1380 = vunpack.c.l.s4 1966171168
        %v1381 = vunpack.c.0.s8 %v1380
        %v1382 = vlaneseq
        %v1383 = vshrl.u32 %v1382, 7
        %v1384 = vsub.s32 %v1381, %v1383
        %v1385 = vrot.slane %v1371, %v1384
        %v1386 = vcombine.high %v1378, %v1378
        %v1387 = vcombine.high %v1385, %v1385
        %v1389 = vunpack.c.l.s4 1966171168
        %v1390 = vunpack.c.0.s8 %v1389
        %v1391 = vlaneseq
        %v1392 = vshrl.u32 %v1391, 7
        %v1393 = vsub.s32 %v1390, %v1392
        %v1394 = vrot.slane %v1086, %v1393
        %v1395 = vcombine.high %v1394, %v1394
        %v1397 = vunpack.c.l.s4 1966171168
        %v1398 = vunpack.c.0.s8 %v1397
        %v1399 = vlaneseq
        %v1400 = vshrl.u32 %v1399, 7
        %v1401 = vsub.s32 %v1398, %v1400
        %v1402 = vrot.slane %v1394, %v1401
        %v1404 = vunpack.c.l.s4 1966171168
        %v1405 = vunpack.c.0.s8 %v1404
        %v1406 = vlaneseq
        %v1407 = vshrl.u32 %v1406, 7
        %v1408 = vsub.s32 %v1405, %v1407
        %v1409 = vrot.slane %v1395, %v1408
        %v1410 = vcombine.high %v1402, %v1402
        %v1411 = vcombine.high %v1409, %v1409
        %v1413 = vunpack.c.l.s4 1966171168
        %v1414 = vunpack.c.0.s8 %v1413
        %v1415 = vlaneseq
        %v1416 = vshrl.u32 %v1415, 7
        %v1417 = vsub.s32 %v1414, %v1416
        %v1418 = vrot.slane %v1087, %v1417
        %v1420 = vunpack.c.l.s4 1966171168
        %v1421 = vunpack.c.0.s8 %v1420
        %v1422 = vlaneseq
        %v1423 = vshrl.u32 %v1422, 7
        %v1424 = vsub.s32 %v1421, %v1423
        %v1425 = vrot.slane %v1418, %v1424
        %v1427 = vunpack.c.l.s4 1966171168
        %v1428 = vunpack.c.0.s8 %v1427
        %v1429 = vlaneseq
        %v1430 = vshrl.u32 %v1429, 7
        %v1431 = vsub.s32 %v1428, %v1430
        %v1432 = vrot.slane %v1088, %v1431
        %v1433 = vcombine.high %v1432, %v1432
        %v1435 = vunpack.c.l.s4 1966171168
        %v1436 = vunpack.c.0.s8 %v1435
        %v1437 = vlaneseq
        %v1438 = vshrl.u32 %v1437, 7
        %v1439 = vsub.s32 %v1436, %v1438
        %v1440 = vrot.slane %v1432, %v1439
        %v1442 = vunpack.c.l.s4 1966171168
        %v1443 = vunpack.c.0.s8 %v1442
        %v1444 = vlaneseq
        %v1445 = vshrl.u32 %v1444, 7
        %v1446 = vsub.s32 %v1443, %v1445
        %v1447 = vrot.slane %v1433, %v1446
        %v1448 = vcombine.high %v1440, %v1440
        %v1449 = vcombine.high %v1447, %v1447
        %v1451 = vunpack.c.l.s4 1966171168
        %v1452 = vunpack.c.0.s8 %v1451
        %v1453 = vlaneseq
        %v1454 = vshrl.u32 %v1453, 7
        %v1455 = vsub.s32 %v1452, %v1454
        %v1456 = vrot.slane %v1089, %v1455
        %v1457 = vcombine.high %v1456, %v1456
        %v1459 = vunpack.c.l.s4 1966171168
        %v1460 = vunpack.c.0.s8 %v1459
        %v1461 = vlaneseq
        %v1462 = vshrl.u32 %v1461, 7
        %v1463 = vsub.s32 %v1460, %v1462
        %v1464 = vrot.slane %v1456, %v1463
        %v1466 = vunpack.c.l.s4 1966171168
        %v1467 = vunpack.c.0.s8 %v1466
        %v1468 = vlaneseq
        %v1469 = vshrl.u32 %v1468, 7
        %v1470 = vsub.s32 %v1467, %v1469
        %v1471 = vrot.slane %v1457, %v1470
        %v1472 = vcombine.high %v1464, %v1464
        %v1473 = vcombine.high %v1471, %v1471
        %v1475 = vunpack.c.l.s4 1966171168
        %v1476 = vunpack.c.0.s8 %v1475
        %v1477 = vlaneseq
        %v1478 = vshrl.u32 %v1477, 7
        %v1479 = vsub.s32 %v1476, %v1478
        %v1480 = vrot.slane %v1090, %v1479
        %v1482 = vunpack.c.l.s4 1966171168
        %v1483 = vunpack.c.0.s8 %v1482
        %v1484 = vlaneseq
        %v1485 = vshrl.u32 %v1484, 7
        %v1486 = vsub.s32 %v1483, %v1485
        %v1487 = vrot.slane %v1480, %v1486
        %v1489 = vunpack.c.l.s4 1966171168
        %v1490 = vunpack.c.0.s8 %v1489
        %v1491 = vlaneseq
        %v1492 = vshrl.u32 %v1491, 7
        %v1493 = vsub.s32 %v1490, %v1492
        %v1494 = vrot.slane %v1091, %v1493
        %v1495 = vcombine.high %v1494, %v1494
        %v1497 = vunpack.c.l.s4 1966171168
        %v1498 = vunpack.c.0.s8 %v1497
        %v1499 = vlaneseq
        %v1500 = vshrl.u32 %v1499, 7
        %v1501 = vsub.s32 %v1498, %v1500
        %v1502 = vrot.slane %v1494, %v1501
        %v1504 = vunpack.c.l.s4 1966171168
        %v1505 = vunpack.c.0.s8 %v1504
        %v1506 = vlaneseq
        %v1507 = vshrl.u32 %v1506, 7
        %v1508 = vsub.s32 %v1505, %v1507
        %v1509 = vrot.slane %v1495, %v1508
        %v1510 = vcombine.high %v1502, %v1502
        %v1511 = vcombine.high %v1509, %v1509
        %v1513 = vunpack.c.l.s4 1966171168
        %v1514 = vunpack.c.0.s8 %v1513
        %v1515 = vlaneseq
        %v1516 = vshrl.u32 %v1515, 7
        %v1517 = vsub.s32 %v1514, %v1516
        %v1518 = vrot.slane %v1092, %v1517
        %v1519 = vcombine.high %v1518, %v1518
        %v1521 = vunpack.c.l.s4 1966171168
        %v1522 = vunpack.c.0.s8 %v1521
        %v1523 = vlaneseq
        %v1524 = vshrl.u32 %v1523, 7
        %v1525 = vsub.s32 %v1522, %v1524
        %v1526 = vrot.slane %v1518, %v1525
        %v1528 = vunpack.c.l.s4 1966171168
        %v1529 = vunpack.c.0.s8 %v1528
        %v1530 = vlaneseq
        %v1531 = vshrl.u32 %v1530, 7
        %v1532 = vsub.s32 %v1529, %v1531
        %v1533 = vrot.slane %v1519, %v1532
        %v1534 = vcombine.high %v1526, %v1526
        %v1535 = vcombine.high %v1533, %v1533
        %v1537 = vunpack.c.l.s4 1966171168
        %v1538 = vunpack.c.0.s8 %v1537
        %v1539 = vlaneseq
        %v1540 = vshrl.u32 %v1539, 7
        %v1541 = vsub.s32 %v1538, %v1540
        %v1542 = vrot.slane %v1093, %v1541
        %v1544 = vunpack.c.l.s4 1966171168
        %v1545 = vunpack.c.0.s8 %v1544
        %v1546 = vlaneseq
        %v1547 = vshrl.u32 %v1546, 7
        %v1548 = vsub.s32 %v1545, %v1547
        %v1549 = vrot.slane %v1542, %v1548
        %v1551 = vunpack.c.l.s4 1966171168
        %v1552 = vunpack.c.0.s8 %v1551
        %v1553 = vlaneseq
        %v1554 = vshrl.u32 %v1553, 7
        %v1555 = vsub.s32 %v1552, %v1554
        %v1556 = vrot.slane %v1094, %v1555
        %v1557 = vcombine.high %v1556, %v1556
        %v1559 = vunpack.c.l.s4 1966171168
        %v1560 = vunpack.c.0.s8 %v1559
        %v1561 = vlaneseq
        %v1562 = vshrl.u32 %v1561, 7
        %v1563 = vsub.s32 %v1560, %v1562
        %v1564 = vrot.slane %v1556, %v1563
        %v1566 = vunpack.c.l.s4 1966171168
        %v1567 = vunpack.c.0.s8 %v1566
        %v1568 = vlaneseq
        %v1569 = vshrl.u32 %v1568, 7
        %v1570 = vsub.s32 %v1567, %v1569
        %v1571 = vrot.slane %v1557, %v1570
        %v1572 = vcombine.high %v1564, %v1564
        %v1573 = vcombine.high %v1571, %v1571
        %v1575 = vunpack.c.l.s4 1966171168
        %v1576 = vunpack.c.0.s8 %v1575
        %v1577 = vlaneseq
        %v1578 = vshrl.u32 %v1577, 7
        %v1579 = vsub.s32 %v1576, %v1578
        %v1580 = vrot.slane %v1095, %v1579
        %v1581 = vcombine.high %v1580, %v1580
        %v1583 = vunpack.c.l.s4 1966171168
        %v1584 = vunpack.c.0.s8 %v1583
        %v1585 = vlaneseq
        %v1586 = vshrl.u32 %v1585, 7
        %v1587 = vsub.s32 %v1584, %v1586
        %v1588 = vrot.slane %v1580, %v1587
        %v1590 = vunpack.c.l.s4 1966171168
        %v1591 = vunpack.c.0.s8 %v1590
        %v1592 = vlaneseq
        %v1593 = vshrl.u32 %v1592, 7
        %v1594 = vsub.s32 %v1591, %v1593
        %v1595 = vrot.slane %v1581, %v1594
        %v1596 = vcombine.high %v1588, %v1588
        %v1597 = vcombine.high %v1595, %v1595
        %v1599 = vunpack.c.l.s4 1966171168
        %v1600 = vunpack.c.0.s8 %v1599
        %v1601 = vlaneseq
        %v1602 = vshrl.u32 %v1601, 7
        %v1603 = vsub.s32 %v1600, %v1602
        %v1604 = vrot.slane %v1096, %v1603
        %v1606 = vunpack.c.l.s4 1966171168
        %v1607 = vunpack.c.0.s8 %v1606
        %v1608 = vlaneseq
        %v1609 = vshrl.u32 %v1608, 7
        %v1610 = vsub.s32 %v1607, %v1609
        %v1611 = vrot.slane %v1604, %v1610
        %v1613 = vunpack.c.l.s4 1966171168
        %v1614 = vunpack.c.0.s8 %v1613
        %v1615 = vlaneseq
        %v1616 = vshrl.u32 %v1615, 7
        %v1617 = vsub.s32 %v1614, %v1616
        %v1618 = vrot.slane %v1097, %v1617
        %v1619 = vcombine.high %v1618, %v1618
        %v1621 = vunpack.c.l.s4 1966171168
        %v1622 = vunpack.c.0.s8 %v1621
        %v1623 = vlaneseq
        %v1624 = vshrl.u32 %v1623, 7
        %v1625 = vsub.s32 %v1622, %v1624
        %v1626 = vrot.slane %v1618, %v1625
        %v1628 = vunpack.c.l.s4 1966171168
        %v1629 = vunpack.c.0.s8 %v1628
        %v1630 = vlaneseq
        %v1631 = vshrl.u32 %v1630, 7
        %v1632 = vsub.s32 %v1629, %v1631
        %v1633 = vrot.slane %v1619, %v1632
        %v1634 = vcombine.high %v1626, %v1626
        %v1635 = vcombine.high %v1633, %v1633
        %v1637 = vunpack.c.l.s4 1966171168
        %v1638 = vunpack.c.0.s8 %v1637
        %v1639 = vlaneseq
        %v1640 = vshrl.u32 %v1639, 7
        %v1641 = vsub.s32 %v1638, %v1640
        %v1642 = vrot.slane %v1098, %v1641
        %v1643 = vcombine.high %v1642, %v1642
        %v1645 = vunpack.c.l.s4 1966171168
        %v1646 = vunpack.c.0.s8 %v1645
        %v1647 = vlaneseq
        %v1648 = vshrl.u32 %v1647, 7
        %v1649 = vsub.s32 %v1646, %v1648
        %v1650 = vrot.slane %v1642, %v1649
        %v1652 = vunpack.c.l.s4 1966171168
        %v1653 = vunpack.c.0.s8 %v1652
        %v1654 = vlaneseq
        %v1655 = vshrl.u32 %v1654, 7
        %v1656 = vsub.s32 %v1653, %v1655
        %v1657 = vrot.slane %v1643, %v1656
        %v1658 = vcombine.high %v1650, %v1650
        %v1659 = vcombine.high %v1657, %v1657
        %v1661 = vunpack.c.l.s4 1966171168
        %v1662 = vunpack.c.0.s8 %v1661
        %v1663 = vlaneseq
        %v1664 = vshrl.u32 %v1663, 7
        %v1665 = vsub.s32 %v1662, %v1664
        %v1666 = vrot.slane %v1099, %v1665
        %v1668 = vunpack.c.l.s4 1966171168
        %v1669 = vunpack.c.0.s8 %v1668
        %v1670 = vlaneseq
        %v1671 = vshrl.u32 %v1670, 7
        %v1672 = vsub.s32 %v1669, %v1671
        %v1673 = vrot.slane %v1666, %v1672
        %v1675 = vunpack.c.l.s4 1966171168
        %v1676 = vunpack.c.0.s8 %v1675
        %v1677 = vlaneseq
        %v1678 = vshrl.u32 %v1677, 7
        %v1679 = vsub.s32 %v1676, %v1678
        %v1680 = vrot.slane %v1100, %v1679
        %v1681 = vcombine.high %v1680, %v1680
        %v1683 = vunpack.c.l.s4 1966171168
        %v1684 = vunpack.c.0.s8 %v1683
        %v1685 = vlaneseq
        %v1686 = vshrl.u32 %v1685, 7
        %v1687 = vsub.s32 %v1684, %v1686
        %v1688 = vrot.slane %v1680, %v1687
        %v1690 = vunpack.c.l.s4 1966171168
        %v1691 = vunpack.c.0.s8 %v1690
        %v1692 = vlaneseq
        %v1693 = vshrl.u32 %v1692, 7
        %v1694 = vsub.s32 %v1691, %v1693
        %v1695 = vrot.slane %v1681, %v1694
        %v1696 = vcombine.high %v1688, %v1688
        %v1697 = vcombine.high %v1695, %v1695
        %v1699 = vunpack.c.l.s4 1966171168
        %v1700 = vunpack.c.0.s8 %v1699
        %v1701 = vlaneseq
        %v1702 = vshrl.u32 %v1701, 7
        %v1703 = vsub.s32 %v1700, %v1702
        %v1704 = vrot.slane %v1101, %v1703
        %v1705 = vcombine.high %v1704, %v1704
        %v1707 = vunpack.c.l.s4 1966171168
        %v1708 = vunpack.c.0.s8 %v1707
        %v1709 = vlaneseq
        %v1710 = vshrl.u32 %v1709, 7
        %v1711 = vsub.s32 %v1708, %v1710
        %v1712 = vrot.slane %v1704, %v1711
        %v1714 = vunpack.c.l.s4 1966171168
        %v1715 = vunpack.c.0.s8 %v1714
        %v1716 = vlaneseq
        %v1717 = vshrl.u32 %v1716, 7
        %v1718 = vsub.s32 %v1715, %v1717
        %v1719 = vrot.slane %v1705, %v1718
        %v1720 = vcombine.high %v1712, %v1712
        %v1721 = vcombine.high %v1719, %v1719
        %v1723 = vunpack.c.l.s4 1966171168
        %v1724 = vunpack.c.0.s8 %v1723
        %v1725 = vlaneseq
        %v1726 = vshrl.u32 %v1725, 7
        %v1727 = vsub.s32 %v1724, %v1726
        %v1728 = vrot.slane %v1102, %v1727
        %v1730 = vunpack.c.l.s4 1966171168
        %v1731 = vunpack.c.0.s8 %v1730
        %v1732 = vlaneseq
        %v1733 = vshrl.u32 %v1732, 7
        %v1734 = vsub.s32 %v1731, %v1733
        %v1735 = vrot.slane %v1728, %v1734
        %v1737 = vunpack.c.l.s4 1966171168
        %v1738 = vunpack.c.0.s8 %v1737
        %v1739 = vlaneseq
        %v1740 = vshrl.u32 %v1739, 7
        %v1741 = vsub.s32 %v1738, %v1740
        %v1742 = vrot.slane %v1103, %v1741
        %v1743 = vcombine.high %v1742, %v1742
        %v1745 = vunpack.c.l.s4 1966171168
        %v1746 = vunpack.c.0.s8 %v1745
        %v1747 = vlaneseq
        %v1748 = vshrl.u32 %v1747, 7
        %v1749 = vsub.s32 %v1746, %v1748
        %v1750 = vrot.slane %v1742, %v1749
        %v1752 = vunpack.c.l.s4 1966171168
        %v1753 = vunpack.c.0.s8 %v1752
        %v1754 = vlaneseq
        %v1755 = vshrl.u32 %v1754, 7
        %v1756 = vsub.s32 %v1753, %v1755
        %v1757 = vrot.slane %v1743, %v1756
        %v1758 = vcombine.high %v1750, %v1750
        %v1759 = vcombine.high %v1757, %v1757
        %v1761 = vunpack.c.l.s4 1966171168
        %v1762 = vunpack.c.0.s8 %v1761
        %v1763 = vlaneseq
        %v1764 = vshrl.u32 %v1763, 7
        %v1765 = vsub.s32 %v1762, %v1764
        %v1766 = vrot.slane %v1104, %v1765
        %v1767 = vcombine.high %v1766, %v1766
        %v1769 = vunpack.c.l.s4 1966171168
        %v1770 = vunpack.c.0.s8 %v1769
        %v1771 = vlaneseq
        %v1772 = vshrl.u32 %v1771, 7
        %v1773 = vsub.s32 %v1770, %v1772
        %v1774 = vrot.slane %v1766, %v1773
        %v1776 = vunpack.c.l.s4 1966171168
        %v1777 = vunpack.c.0.s8 %v1776
        %v1778 = vlaneseq
        %v1779 = vshrl.u32 %v1778, 7
        %v1780 = vsub.s32 %v1777, %v1779
        %v1781 = vrot.slane %v1767, %v1780
        %v1782 = vcombine.high %v1774, %v1774
        %v1783 = vcombine.high %v1781, %v1781
        %v1785 = vunpack.c.l.s4 1966171168
        %v1786 = vunpack.c.0.s8 %v1785
        %v1787 = vlaneseq
        %v1788 = vshrl.u32 %v1787, 7
        %v1789 = vsub.s32 %v1786, %v1788
        %v1790 = vrot.slane %v1105, %v1789
        %v1792 = vunpack.c.l.s4 1966171168
        %v1793 = vunpack.c.0.s8 %v1792
        %v1794 = vlaneseq
        %v1795 = vshrl.u32 %v1794, 7
        %v1796 = vsub.s32 %v1793, %v1795
        %v1797 = vrot.slane %v1790, %v1796
        %v1799 = vunpack.c.l.s4 1966171168
        %v1800 = vunpack.c.0.s8 %v1799
        %v1801 = vlaneseq
        %v1802 = vshrl.u32 %v1801, 7
        %v1803 = vsub.s32 %v1800, %v1802
        %v1804 = vrot.slane %v1106, %v1803
        %v1805 = vcombine.high %v1804, %v1804
        %v1807 = vunpack.c.l.s4 1966171168
        %v1808 = vunpack.c.0.s8 %v1807
        %v1809 = vlaneseq
        %v1810 = vshrl.u32 %v1809, 7
        %v1811 = vsub.s32 %v1808, %v1810
        %v1812 = vrot.slane %v1804, %v1811
        %v1814 = vunpack.c.l.s4 1966171168
        %v1815 = vunpack.c.0.s8 %v1814
        %v1816 = vlaneseq
        %v1817 = vshrl.u32 %v1816, 7
        %v1818 = vsub.s32 %v1815, %v1817
        %v1819 = vrot.slane %v1805, %v1818
        %v1820 = vcombine.high %v1812, %v1812
        %v1821 = vcombine.high %v1819, %v1819
        %v1823 = vunpack.c.l.s4 1966171168
        %v1824 = vunpack.c.0.s8 %v1823
        %v1825 = vlaneseq
        %v1826 = vshrl.u32 %v1825, 7
        %v1827 = vsub.s32 %v1824, %v1826
        %v1828 = vrot.slane %v1107, %v1827
        %v1829 = vcombine.high %v1828, %v1828
        %v1831 = vunpack.c.l.s4 1966171168
        %v1832 = vunpack.c.0.s8 %v1831
        %v1833 = vlaneseq
        %v1834 = vshrl.u32 %v1833, 7
        %v1835 = vsub.s32 %v1832, %v1834
        %v1836 = vrot.slane %v1828, %v1835
        %v1838 = vunpack.c.l.s4 1966171168
        %v1839 = vunpack.c.0.s8 %v1838
        %v1840 = vlaneseq
        %v1841 = vshrl.u32 %v1840, 7
        %v1842 = vsub.s32 %v1839, %v1841
        %v1843 = vrot.slane %v1829, %v1842
        %v1844 = vcombine.high %v1836, %v1836
        %v1845 = vcombine.high %v1843, %v1843
        %v1847 = vunpack.c.l.s4 1966171168
        %v1848 = vunpack.c.0.s8 %v1847
        %v1849 = vlaneseq
        %v1850 = vshrl.u32 %v1849, 7
        %v1851 = vsub.s32 %v1848, %v1850
        %v1852 = vrot.slane %v1108, %v1851
        %v1854 = vunpack.c.l.s4 1966171168
        %v1855 = vunpack.c.0.s8 %v1854
        %v1856 = vlaneseq
        %v1857 = vshrl.u32 %v1856, 7
        %v1858 = vsub.s32 %v1855, %v1857
        %v1859 = vrot.slane %v1852, %v1858
        %v1861 = vunpack.c.l.s4 1966171168
        %v1862 = vunpack.c.0.s8 %v1861
        %v1863 = vlaneseq
        %v1864 = vshrl.u32 %v1863, 7
        %v1865 = vsub.s32 %v1862, %v1864
        %v1866 = vrot.slane %v1109, %v1865
        %v1867 = vcombine.high %v1866, %v1866
        %v1869 = vunpack.c.l.s4 1966171168
        %v1870 = vunpack.c.0.s8 %v1869
        %v1871 = vlaneseq
        %v1872 = vshrl.u32 %v1871, 7
        %v1873 = vsub.s32 %v1870, %v1872
        %v1874 = vrot.slane %v1866, %v1873
        %v1876 = vunpack.c.l.s4 1966171168
        %v1877 = vunpack.c.0.s8 %v1876
        %v1878 = vlaneseq
        %v1879 = vshrl.u32 %v1878, 7
        %v1880 = vsub.s32 %v1877, %v1879
        %v1881 = vrot.slane %v1867, %v1880
        %v1882 = vcombine.high %v1874, %v1874
        %v1883 = vcombine.high %v1881, %v1881
        %v1885 = vunpack.c.l.s4 1966171168
        %v1886 = vunpack.c.0.s8 %v1885
        %v1887 = vlaneseq
        %v1888 = vshrl.u32 %v1887, 7
        %v1889 = vsub.s32 %v1886, %v1888
        %v1890 = vrot.slane %v1110, %v1889
        %v1891 = vcombine.high %v1890, %v1890
        %v1893 = vunpack.c.l.s4 1966171168
        %v1894 = vunpack.c.0.s8 %v1893
        %v1895 = vlaneseq
        %v1896 = vshrl.u32 %v1895, 7
        %v1897 = vsub.s32 %v1894, %v1896
        %v1898 = vrot.slane %v1890, %v1897
        %v1900 = vunpack.c.l.s4 1966171168
        %v1901 = vunpack.c.0.s8 %v1900
        %v1902 = vlaneseq
        %v1903 = vshrl.u32 %v1902, 7
        %v1904 = vsub.s32 %v1901, %v1903
        %v1905 = vrot.slane %v1891, %v1904
        %v1906 = vcombine.high %v1898, %v1898
        %v1907 = vcombine.high %v1905, %v1905
        %v1909 = vunpack.c.l.s4 1966171168
        %v1910 = vunpack.c.0.s8 %v1909
        %v1911 = vlaneseq
        %v1912 = vshrl.u32 %v1911, 7
        %v1913 = vsub.s32 %v1910, %v1912
        %v1914 = vrot.slane %v1111, %v1913
        %v1916 = vunpack.c.l.s4 1966171168
        %v1917 = vunpack.c.0.s8 %v1916
        %v1918 = vlaneseq
        %v1919 = vshrl.u32 %v1918, 7
        %v1920 = vsub.s32 %v1917, %v1919
        %v1921 = vrot.slane %v1914, %v1920
        %v1923 = vunpack.c.l.s4 1966171168
        %v1924 = vunpack.c.0.s8 %v1923
        %v1925 = vlaneseq
        %v1926 = vshrl.u32 %v1925, 7
        %v1927 = vsub.s32 %v1924, %v1926
        %v1928 = vrot.slane %v1112, %v1927
        %v1929 = vcombine.high %v1928, %v1928
        %v1931 = vunpack.c.l.s4 1966171168
        %v1932 = vunpack.c.0.s8 %v1931
        %v1933 = vlaneseq
        %v1934 = vshrl.u32 %v1933, 7
        %v1935 = vsub.s32 %v1932, %v1934
        %v1936 = vrot.slane %v1928, %v1935
        %v1938 = vunpack.c.l.s4 1966171168
        %v1939 = vunpack.c.0.s8 %v1938
        %v1940 = vlaneseq
        %v1941 = vshrl.u32 %v1940, 7
        %v1942 = vsub.s32 %v1939, %v1941
        %v1943 = vrot.slane %v1929, %v1942
        %v1944 = vcombine.high %v1936, %v1936
        %v1945 = vcombine.high %v1943, %v1943
        %v1947 = vunpack.c.l.s4 1966171168
        %v1948 = vunpack.c.0.s8 %v1947
        %v1949 = vlaneseq
        %v1950 = vshrl.u32 %v1949, 7
        %v1951 = vsub.s32 %v1948, %v1950
        %v1952 = vrot.slane %v1113, %v1951
        %v1953 = vcombine.high %v1952, %v1952
        %v1955 = vunpack.c.l.s4 1966171168
        %v1956 = vunpack.c.0.s8 %v1955
        %v1957 = vlaneseq
        %v1958 = vshrl.u32 %v1957, 7
        %v1959 = vsub.s32 %v1956, %v1958
        %v1960 = vrot.slane %v1952, %v1959
        %v1962 = vunpack.c.l.s4 1966171168
        %v1963 = vunpack.c.0.s8 %v1962
        %v1964 = vlaneseq
        %v1965 = vshrl.u32 %v1964, 7
        %v1966 = vsub.s32 %v1963, %v1965
        %v1967 = vrot.slane %v1953, %v1966
        %v1968 = vcombine.high %v1960, %v1960
        %v1969 = vcombine.high %v1967, %v1967
        %v1971 = vunpack.c.l.s4 1966171168
        %v1972 = vunpack.c.0.s8 %v1971
        %v1973 = vlaneseq
        %v1974 = vshrl.u32 %v1973, 7
        %v1975 = vsub.s32 %v1972, %v1974
        %v1976 = vrot.slane %v1114, %v1975
        %v1978 = vunpack.c.l.s4 1966171168
        %v1979 = vunpack.c.0.s8 %v1978
        %v1980 = vlaneseq
        %v1981 = vshrl.u32 %v1980, 7
        %v1982 = vsub.s32 %v1979, %v1981
        %v1983 = vrot.slane %v1976, %v1982
        %v1985 = vunpack.c.l.s4 1966171168
        %v1986 = vunpack.c.0.s8 %v1985
        %v1987 = vlaneseq
        %v1988 = vshrl.u32 %v1987, 7
        %v1989 = vsub.s32 %v1986, %v1988
        %v1990 = vrot.slane %v1115, %v1989
        %v1991 = vcombine.high %v1990, %v1990
        %v1993 = vunpack.c.l.s4 1966171168
        %v1994 = vunpack.c.0.s8 %v1993
        %v1995 = vlaneseq
        %v1996 = vshrl.u32 %v1995, 7
        %v1997 = vsub.s32 %v1994, %v1996
        %v1998 = vrot.slane %v1990, %v1997
        %v2000 = vunpack.c.l.s4 1966171168
        %v2001 = vunpack.c.0.s8 %v2000
        %v2002 = vlaneseq
        %v2003 = vshrl.u32 %v2002, 7
        %v2004 = vsub.s32 %v2001, %v2003
        %v2005 = vrot.slane %v1991, %v2004
        %v2006 = vcombine.high %v1998, %v1998
        %v2007 = vcombine.high %v2005, %v2005
        %v2009 = vunpack.c.l.s4 1966171168
        %v2010 = vunpack.c.0.s8 %v2009
        %v2011 = vlaneseq
        %v2012 = vshrl.u32 %v2011, 7
        %v2013 = vsub.s32 %v2010, %v2012
        %v2014 = vrot.slane %v1116, %v2013
        %v2015 = vcombine.high %v2014, %v2014
        %v2017 = vunpack.c.l.s4 1966171168
        %v2018 = vunpack.c.0.s8 %v2017
        %v2019 = vlaneseq
        %v2020 = vshrl.u32 %v2019, 7
        %v2021 = vsub.s32 %v2018, %v2020
        %v2022 = vrot.slane %v2014, %v2021
        %v2024 = vunpack.c.l.s4 1966171168
        %v2025 = vunpack.c.0.s8 %v2024
        %v2026 = vlaneseq
        %v2027 = vshrl.u32 %v2026, 7
        %v2028 = vsub.s32 %v2025, %v2027
        %v2029 = vrot.slane %v2015, %v2028
        %v2030 = vcombine.high %v2022, %v2022
        %v2031 = vcombine.high %v2029, %v2029
        %v2033 = vunpack.c.l.s4 1966171168
        %v2034 = vunpack.c.0.s8 %v2033
        %v2035 = vlaneseq
        %v2036 = vshrl.u32 %v2035, 7
        %v2037 = vsub.s32 %v2034, %v2036
        %v2038 = vrot.slane %v1117, %v2037
        %v2040 = vunpack.c.l.s4 1966171168
        %v2041 = vunpack.c.0.s8 %v2040
        %v2042 = vlaneseq
        %v2043 = vshrl.u32 %v2042, 7
        %v2044 = vsub.s32 %v2041, %v2043
        %v2045 = vrot.slane %v2038, %v2044
        %v2047 = vunpack.c.l.s4 1966171168
        %v2048 = vunpack.c.0.s8 %v2047
        %v2049 = vlaneseq
        %v2050 = vshrl.u32 %v2049, 7
        %v2051 = vsub.s32 %v2048, %v2050
        %v2052 = vrot.slane %v1118, %v2051
        %v2053 = vcombine.high %v2052, %v2052
        %v2055 = vunpack.c.l.s4 1966171168
        %v2056 = vunpack.c.0.s8 %v2055
        %v2057 = vlaneseq
        %v2058 = vshrl.u32 %v2057, 7
        %v2059 = vsub.s32 %v2056, %v2058
        %v2060 = vrot.slane %v2052, %v2059
        %v2062 = vunpack.c.l.s4 1966171168
        %v2063 = vunpack.c.0.s8 %v2062
        %v2064 = vlaneseq
        %v2065 = vshrl.u32 %v2064, 7
        %v2066 = vsub.s32 %v2063, %v2065
        %v2067 = vrot.slane %v2053, %v2066
        %v2068 = vcombine.high %v2060, %v2060
        %v2069 = vcombine.high %v2067, %v2067
        %v2071 = vunpack.c.l.s4 1966171168
        %v2072 = vunpack.c.0.s8 %v2071
        %v2073 = vlaneseq
        %v2074 = vshrl.u32 %v2073, 7
        %v2075 = vsub.s32 %v2072, %v2074
        %v2076 = vrot.slane %v1119, %v2075
        %v2077 = vcombine.high %v2076, %v2076
        %v2079 = vunpack.c.l.s4 1966171168
        %v2080 = vunpack.c.0.s8 %v2079
        %v2081 = vlaneseq
        %v2082 = vshrl.u32 %v2081, 7
        %v2083 = vsub.s32 %v2080, %v2082
        %v2084 = vrot.slane %v2076, %v2083
        %v2086 = vunpack.c.l.s4 1966171168
        %v2087 = vunpack.c.0.s8 %v2086
        %v2088 = vlaneseq
        %v2089 = vshrl.u32 %v2088, 7
        %v2090 = vsub.s32 %v2087, %v2089
        %v2091 = vrot.slane %v2077, %v2090
        %v2092 = vcombine.high %v2084, %v2084
        %v2093 = vcombine.high %v2091, %v2091
        %v2095 = vunpack.c.l.s4 1966171168
        %v2096 = vunpack.c.0.s8 %v2095
        %v2097 = vlaneseq
        %v2098 = vshrl.u32 %v2097, 7
        %v2099 = vsub.s32 %v2096, %v2098
        %v2100 = vrot.slane %v1120, %v2099
        %v2102 = vunpack.c.l.s4 1966171168
        %v2103 = vunpack.c.0.s8 %v2102
        %v2104 = vlaneseq
        %v2105 = vshrl.u32 %v2104, 7
        %v2106 = vsub.s32 %v2103, %v2105
        %v2107 = vrot.slane %v2100, %v2106
        %v2109 = vunpack.c.l.s4 1966171168
        %v2110 = vunpack.c.0.s8 %v2109
        %v2111 = vlaneseq
        %v2112 = vshrl.u32 %v2111, 7
        %v2113 = vsub.s32 %v2110, %v2112
        %v2114 = vrot.slane %v1121, %v2113
        %v2115 = vcombine.high %v2114, %v2114
        %v2117 = vunpack.c.l.s4 1966171168
        %v2118 = vunpack.c.0.s8 %v2117
        %v2119 = vlaneseq
        %v2120 = vshrl.u32 %v2119, 7
        %v2121 = vsub.s32 %v2118, %v2120
        %v2122 = vrot.slane %v2114, %v2121
        %v2124 = vunpack.c.l.s4 1966171168
        %v2125 = vunpack.c.0.s8 %v2124
        %v2126 = vlaneseq
        %v2127 = vshrl.u32 %v2126, 7
        %v2128 = vsub.s32 %v2125, %v2127
        %v2129 = vrot.slane %v2115, %v2128
        %v2130 = vcombine.high %v2122, %v2122
        %v2131 = vcombine.high %v2129, %v2129
        %v2133 = vunpack.c.l.s4 1966171168
        %v2134 = vunpack.c.0.s8 %v2133
        %v2135 = vlaneseq
        %v2136 = vshrl.u32 %v2135, 7
        %v2137 = vsub.s32 %v2134, %v2136
        %v2138 = vrot.slane %v1122, %v2137
        %v2139 = vcombine.high %v2138, %v2138
        %v2141 = vunpack.c.l.s4 1966171168
        %v2142 = vunpack.c.0.s8 %v2141
        %v2143 = vlaneseq
        %v2144 = vshrl.u32 %v2143, 7
        %v2145 = vsub.s32 %v2142, %v2144
        %v2146 = vrot.slane %v2138, %v2145
        %v2148 = vunpack.c.l.s4 1966171168
        %v2149 = vunpack.c.0.s8 %v2148
        %v2150 = vlaneseq
        %v2151 = vshrl.u32 %v2150, 7
        %v2152 = vsub.s32 %v2149, %v2151
        %v2153 = vrot.slane %v2139, %v2152
        %v2154 = vcombine.high %v2146, %v2146
        %v2155 = vcombine.high %v2153, %v2153
        %v2157 = vunpack.c.l.s4 1966171168
        %v2158 = vunpack.c.0.s8 %v2157
        %v2159 = vlaneseq
        %v2160 = vshrl.u32 %v2159, 7
        %v2161 = vsub.s32 %v2158, %v2160
        %v2162 = vrot.slane %v1123, %v2161
        %v2164 = vunpack.c.l.s4 1966171168
        %v2165 = vunpack.c.0.s8 %v2164
        %v2166 = vlaneseq
        %v2167 = vshrl.u32 %v2166, 7
        %v2168 = vsub.s32 %v2165, %v2167
        %v2169 = vrot.slane %v2162, %v2168
        %v2171 = vunpack.c.l.s4 1966171168
        %v2172 = vunpack.c.0.s8 %v2171
        %v2173 = vlaneseq
        %v2174 = vshrl.u32 %v2173, 7
        %v2175 = vsub.s32 %v2172, %v2174
        %v2176 = vrot.slane %v1124, %v2175
        %v2177 = vcombine.high %v2176, %v2176
        %v2179 = vunpack.c.l.s4 1966171168
        %v2180 = vunpack.c.0.s8 %v2179
        %v2181 = vlaneseq
        %v2182 = vshrl.u32 %v2181, 7
        %v2183 = vsub.s32 %v2180, %v2182
        %v2184 = vrot.slane %v2176, %v2183
        %v2186 = vunpack.c.l.s4 1966171168
        %v2187 = vunpack.c.0.s8 %v2186
        %v2188 = vlaneseq
        %v2189 = vshrl.u32 %v2188, 7
        %v2190 = vsub.s32 %v2187, %v2189
        %v2191 = vrot.slane %v2177, %v2190
        %v2192 = vcombine.high %v2184, %v2184
        %v2193 = vcombine.high %v2191, %v2191
        %v2195 = vunpack.c.l.s4 1966171168
        %v2196 = vunpack.c.0.s8 %v2195
        %v2197 = vlaneseq
        %v2198 = vshrl.u32 %v2197, 7
        %v2199 = vsub.s32 %v2196, %v2198
        %v2200 = vrot.slane %v1125, %v2199
        %v2201 = vcombine.high %v2200, %v2200
        %v2203 = vunpack.c.l.s4 1966171168
        %v2204 = vunpack.c.0.s8 %v2203
        %v2205 = vlaneseq
        %v2206 = vshrl.u32 %v2205, 7
        %v2207 = vsub.s32 %v2204, %v2206
        %v2208 = vrot.slane %v2200, %v2207
        %v2210 = vunpack.c.l.s4 1966171168
        %v2211 = vunpack.c.0.s8 %v2210
        %v2212 = vlaneseq
        %v2213 = vshrl.u32 %v2212, 7
        %v2214 = vsub.s32 %v2211, %v2213
        %v2215 = vrot.slane %v2201, %v2214
        %v2216 = vcombine.high %v2208, %v2208
        %v2217 = vcombine.high %v2215, %v2215
        %v2219 = vunpack.c.l.s4 1966171168
        %v2220 = vunpack.c.0.s8 %v2219
        %v2221 = vlaneseq
        %v2222 = vshrl.u32 %v2221, 7
        %v2223 = vsub.s32 %v2220, %v2222
        %v2224 = vrot.slane %v1126, %v2223
        %v2226 = vunpack.c.l.s4 1966171168
        %v2227 = vunpack.c.0.s8 %v2226
        %v2228 = vlaneseq
        %v2229 = vshrl.u32 %v2228, 7
        %v2230 = vsub.s32 %v2227, %v2229
        %v2231 = vrot.slane %v2224, %v2230
        %v2233 = vunpack.c.l.s4 1966171168
        %v2234 = vunpack.c.0.s8 %v2233
        %v2235 = vlaneseq
        %v2236 = vshrl.u32 %v2235, 7
        %v2237 = vsub.s32 %v2234, %v2236
        %v2238 = vrot.slane %v1192, %v2237
        %v2240 = vunpack.c.l.s4 1966171168
        %v2241 = vunpack.c.0.s8 %v2240
        %v2242 = vlaneseq
        %v2243 = vshrl.u32 %v2242, 7
        %v2244 = vsub.s32 %v2241, %v2243
        %v2245 = vrot.slane %v2238, %v2244
        %v2247 = vunpack.c.l.s4 1966171168
        %v2248 = vunpack.c.0.s8 %v2247
        %v2249 = vlaneseq
        %v2250 = vshrl.u32 %v2249, 7
        %v2251 = vsub.s32 %v2248, %v2250
        %v2252 = vrot.slane %v1199, %v2251
        %v2254 = vunpack.c.l.s4 1966171168
        %v2255 = vunpack.c.0.s8 %v2254
        %v2256 = vlaneseq
        %v2257 = vshrl.u32 %v2256, 7
        %v2258 = vsub.s32 %v2255, %v2257
        %v2259 = vrot.slane %v2252, %v2258
        %v2261 = vunpack.c.l.s4 1966171168
        %v2262 = vunpack.c.0.s8 %v2261
        %v2263 = vlaneseq
        %v2264 = vshrl.u32 %v2263, 7
        %v2265 = vsub.s32 %v2262, %v2264
        %v2266 = vrot.slane %v1200, %v2265
        %v2268 = vunpack.c.l.s4 1966171168
        %v2269 = vunpack.c.0.s8 %v2268
        %v2270 = vlaneseq
        %v2271 = vshrl.u32 %v2270, 7
        %v2272 = vsub.s32 %v2269, %v2271
        %v2273 = vrot.slane %v2266, %v2272
        %v2275 = vunpack.c.l.s4 1966171168
        %v2276 = vunpack.c.0.s8 %v2275
        %v2277 = vlaneseq
        %v2278 = vshrl.u32 %v2277, 7
        %v2279 = vsub.s32 %v2276, %v2278
        %v2280 = vrot.slane %v1201, %v2279
        %v2282 = vunpack.c.l.s4 1966171168
        %v2283 = vunpack.c.0.s8 %v2282
        %v2284 = vlaneseq
        %v2285 = vshrl.u32 %v2284, 7
        %v2286 = vsub.s32 %v2283, %v2285
        %v2287 = vrot.slane %v2280, %v2286
        %v2289 = vunpack.c.l.s4 1966171168
        %v2290 = vunpack.c.0.s8 %v2289
        %v2291 = vlaneseq
        %v2292 = vshrl.u32 %v2291, 7
        %v2293 = vsub.s32 %v2290, %v2292
        %v2294 = vrot.slane %v1216, %v2293
        %v2296 = vunpack.c.l.s4 1966171168
        %v2297 = vunpack.c.0.s8 %v2296
        %v2298 = vlaneseq
        %v2299 = vshrl.u32 %v2298, 7
        %v2300 = vsub.s32 %v2297, %v2299
        %v2301 = vrot.slane %v2294, %v2300
        %v2303 = vunpack.c.l.s4 1966171168
        %v2304 = vunpack.c.0.s8 %v2303
        %v2305 = vlaneseq
        %v2306 = vshrl.u32 %v2305, 7
        %v2307 = vsub.s32 %v2304, %v2306
        %v2308 = vrot.slane %v1223, %v2307
        %v2310 = vunpack.c.l.s4 1966171168
        %v2311 = vunpack.c.0.s8 %v2310
        %v2312 = vlaneseq
        %v2313 = vshrl.u32 %v2312, 7
        %v2314 = vsub.s32 %v2311, %v2313
        %v2315 = vrot.slane %v2308, %v2314
        %v2317 = vunpack.c.l.s4 1966171168
        %v2318 = vunpack.c.0.s8 %v2317
        %v2319 = vlaneseq
        %v2320 = vshrl.u32 %v2319, 7
        %v2321 = vsub.s32 %v2318, %v2320
        %v2322 = vrot.slane %v1224, %v2321
        %v2324 = vunpack.c.l.s4 1966171168
        %v2325 = vunpack.c.0.s8 %v2324
        %v2326 = vlaneseq
        %v2327 = vshrl.u32 %v2326, 7
        %v2328 = vsub.s32 %v2325, %v2327
        %v2329 = vrot.slane %v2322, %v2328
        %v2331 = vunpack.c.l.s4 1966171168
        %v2332 = vunpack.c.0.s8 %v2331
        %v2333 = vlaneseq
        %v2334 = vshrl.u32 %v2333, 7
        %v2335 = vsub.s32 %v2332, %v2334
        %v2336 = vrot.slane %v1225, %v2335
        %v2338 = vunpack.c.l.s4 1966171168
        %v2339 = vunpack.c.0.s8 %v2338
        %v2340 = vlaneseq
        %v2341 = vshrl.u32 %v2340, 7
        %v2342 = vsub.s32 %v2339, %v2341
        %v2343 = vrot.slane %v2336, %v2342
        %v2345 = vunpack.c.l.s4 1966171168
        %v2346 = vunpack.c.0.s8 %v2345
        %v2347 = vlaneseq
        %v2348 = vshrl.u32 %v2347, 7
        %v2349 = vsub.s32 %v2346, %v2348
        %v2350 = vrot.slane %v1316, %v2349
        %v2352 = vunpack.c.l.s4 1966171168
        %v2353 = vunpack.c.0.s8 %v2352
        %v2354 = vlaneseq
        %v2355 = vshrl.u32 %v2354, 7
        %v2356 = vsub.s32 %v2353, %v2355
        %v2357 = vrot.slane %v2350, %v2356
        %v2359 = vunpack.c.l.s4 1966171168
        %v2360 = vunpack.c.0.s8 %v2359
        %v2361 = vlaneseq
        %v2362 = vshrl.u32 %v2361, 7
        %v2363 = vsub.s32 %v2360, %v2362
        %v2364 = vrot.slane %v1323, %v2363
        %v2366 = vunpack.c.l.s4 1966171168
        %v2367 = vunpack.c.0.s8 %v2366
        %v2368 = vlaneseq
        %v2369 = vshrl.u32 %v2368, 7
        %v2370 = vsub.s32 %v2367, %v2369
        %v2371 = vrot.slane %v2364, %v2370
        %v2373 = vunpack.c.l.s4 1966171168
        %v2374 = vunpack.c.0.s8 %v2373
        %v2375 = vlaneseq
        %v2376 = vshrl.u32 %v2375, 7
        %v2377 = vsub.s32 %v2374, %v2376
        %v2378 = vrot.slane %v1324, %v2377
        %v2380 = vunpack.c.l.s4 1966171168
        %v2381 = vunpack.c.0.s8 %v2380
        %v2382 = vlaneseq
        %v2383 = vshrl.u32 %v2382, 7
        %v2384 = vsub.s32 %v2381, %v2383
        %v2385 = vrot.slane %v2378, %v2384
        %v2387 = vunpack.c.l.s4 1966171168
        %v2388 = vunpack.c.0.s8 %v2387
        %v2389 = vlaneseq
        %v2390 = vshrl.u32 %v2389, 7
        %v2391 = vsub.s32 %v2388, %v2390
        %v2392 = vrot.slane %v1325, %v2391
        %v2394 = vunpack.c.l.s4 1966171168
        %v2395 = vunpack.c.0.s8 %v2394
        %v2396 = vlaneseq
        %v2397 = vshrl.u32 %v2396, 7
        %v2398 = vsub.s32 %v2395, %v2397
        %v2399 = vrot.slane %v2392, %v2398
        %v2401 = vunpack.c.l.s4 1966171168
        %v2402 = vunpack.c.0.s8 %v2401
        %v2403 = vlaneseq
        %v2404 = vshrl.u32 %v2403, 7
        %v2405 = vsub.s32 %v2402, %v2404
        %v2406 = vrot.slane %v1340, %v2405
        %v2408 = vunpack.c.l.s4 1966171168
        %v2409 = vunpack.c.0.s8 %v2408
        %v2410 = vlaneseq
        %v2411 = vshrl.u32 %v2410, 7
        %v2412 = vsub.s32 %v2409, %v2411
        %v2413 = vrot.slane %v2406, %v2412
        %v2415 = vunpack.c.l.s4 1966171168
        %v2416 = vunpack.c.0.s8 %v2415
        %v2417 = vlaneseq
        %v2418 = vshrl.u32 %v2417, 7
        %v2419 = vsub.s32 %v2416, %v2418
        %v2420 = vrot.slane %v1347, %v2419
        %v2422 = vunpack.c.l.s4 1966171168
        %v2423 = vunpack.c.0.s8 %v2422
        %v2424 = vlaneseq
        %v2425 = vshrl.u32 %v2424, 7
        %v2426 = vsub.s32 %v2423, %v2425
        %v2427 = vrot.slane %v2420, %v2426
        %v2429 = vunpack.c.l.s4 1966171168
        %v2430 = vunpack.c.0.s8 %v2429
        %v2431 = vlaneseq
        %v2432 = vshrl.u32 %v2431, 7
        %v2433 = vsub.s32 %v2430, %v2432
        %v2434 = vrot.slane %v1348, %v2433
        %v2436 = vunpack.c.l.s4 1966171168
        %v2437 = vunpack.c.0.s8 %v2436
        %v2438 = vlaneseq
        %v2439 = vshrl.u32 %v2438, 7
        %v2440 = vsub.s32 %v2437, %v2439
        %v2441 = vrot.slane %v2434, %v2440
        %v2443 = vunpack.c.l.s4 1966171168
        %v2444 = vunpack.c.0.s8 %v2443
        %v2445 = vlaneseq
        %v2446 = vshrl.u32 %v2445, 7
        %v2447 = vsub.s32 %v2444, %v2446
        %v2448 = vrot.slane %v1349, %v2447
        %v2450 = vunpack.c.l.s4 1966171168
        %v2451 = vunpack.c.0.s8 %v2450
        %v2452 = vlaneseq
        %v2453 = vshrl.u32 %v2452, 7
        %v2454 = vsub.s32 %v2451, %v2453
        %v2455 = vrot.slane %v2448, %v2454
        %v2457 = vunpack.c.l.s4 1966171168
        %v2458 = vunpack.c.0.s8 %v2457
        %v2459 = vlaneseq
        %v2460 = vshrl.u32 %v2459, 7
        %v2461 = vsub.s32 %v2458, %v2460
        %v2462 = vrot.slane %v1440, %v2461
        %v2464 = vunpack.c.l.s4 1966171168
        %v2465 = vunpack.c.0.s8 %v2464
        %v2466 = vlaneseq
        %v2467 = vshrl.u32 %v2466, 7
        %v2468 = vsub.s32 %v2465, %v2467
        %v2469 = vrot.slane %v2462, %v2468
        %v2471 = vunpack.c.l.s4 1966171168
        %v2472 = vunpack.c.0.s8 %v2471
        %v2473 = vlaneseq
        %v2474 = vshrl.u32 %v2473, 7
        %v2475 = vsub.s32 %v2472, %v2474
        %v2476 = vrot.slane %v1447, %v2475
        %v2478 = vunpack.c.l.s4 1966171168
        %v2479 = vunpack.c.0.s8 %v2478
        %v2480 = vlaneseq
        %v2481 = vshrl.u32 %v2480, 7
        %v2482 = vsub.s32 %v2479, %v2481
        %v2483 = vrot.slane %v2476, %v2482
        %v2485 = vunpack.c.l.s4 1966171168
        %v2486 = vunpack.c.0.s8 %v2485
        %v2487 = vlaneseq
        %v2488 = vshrl.u32 %v2487, 7
        %v2489 = vsub.s32 %v2486, %v2488
        %v2490 = vrot.slane %v1448, %v2489
        %v2492 = vunpack.c.l.s4 1966171168
        %v2493 = vunpack.c.0.s8 %v2492
        %v2494 = vlaneseq
        %v2495 = vshrl.u32 %v2494, 7
        %v2496 = vsub.s32 %v2493, %v2495
        %v2497 = vrot.slane %v2490, %v2496
        %v2499 = vunpack.c.l.s4 1966171168
        %v2500 = vunpack.c.0.s8 %v2499
        %v2501 = vlaneseq
        %v2502 = vshrl.u32 %v2501, 7
        %v2503 = vsub.s32 %v2500, %v2502
        %v2504 = vrot.slane %v1449, %v2503
        %v2506 = vunpack.c.l.s4 1966171168
        %v2507 = vunpack.c.0.s8 %v2506
        %v2508 = vlaneseq
        %v2509 = vshrl.u32 %v2508, 7
        %v2510 = vsub.s32 %v2507, %v2509
        %v2511 = vrot.slane %v2504, %v2510
        %v2513 = vunpack.c.l.s4 1966171168
        %v2514 = vunpack.c.0.s8 %v2513
        %v2515 = vlaneseq
        %v2516 = vshrl.u32 %v2515, 7
        %v2517 = vsub.s32 %v2514, %v2516
        %v2518 = vrot.slane %v1464, %v2517
        %v2520 = vunpack.c.l.s4 1966171168
        %v2521 = vunpack.c.0.s8 %v2520
        %v2522 = vlaneseq
        %v2523 = vshrl.u32 %v2522, 7
        %v2524 = vsub.s32 %v2521, %v2523
        %v2525 = vrot.slane %v2518, %v2524
        %v2527 = vunpack.c.l.s4 1966171168
        %v2528 = vunpack.c.0.s8 %v2527
        %v2529 = vlaneseq
        %v2530 = vshrl.u32 %v2529, 7
        %v2531 = vsub.s32 %v2528, %v2530
        %v2532 = vrot.slane %v1471, %v2531
        %v2534 = vunpack.c.l.s4 1966171168
        %v2535 = vunpack.c.0.s8 %v2534
        %v2536 = vlaneseq
        %v2537 = vshrl.u32 %v2536, 7
        %v2538 = vsub.s32 %v2535, %v2537
        %v2539 = vrot.slane %v2532, %v2538
        %v2541 = vunpack.c.l.s4 1966171168
        %v2542 = vunpack.c.0.s8 %v2541
        %v2543 = vlaneseq
        %v2544 = vshrl.u32 %v2543, 7
        %v2545 = vsub.s32 %v2542, %v2544
        %v2546 = vrot.slane %v1472, %v2545
        %v2548 = vunpack.c.l.s4 1966171168
        %v2549 = vunpack.c.0.s8 %v2548
        %v2550 = vlaneseq
        %v2551 = vshrl.u32 %v2550, 7
        %v2552 = vsub.s32 %v2549, %v2551
        %v2553 = vrot.slane %v2546, %v2552
        %v2555 = vunpack.c.l.s4 1966171168
        %v2556 = vunpack.c.0.s8 %v2555
        %v2557 = vlaneseq
        %v2558 = vshrl.u32 %v2557, 7
        %v2559 = vsub.s32 %v2556, %v2558
        %v2560 = vrot.slane %v1473, %v2559
        %v2562 = vunpack.c.l.s4 1966171168
        %v2563 = vunpack.c.0.s8 %v2562
        %v2564 = vlaneseq
        %v2565 = vshrl.u32 %v2564, 7
        %v2566 = vsub.s32 %v2563, %v2565
        %v2567 = vrot.slane %v2560, %v2566
        %v2569 = vunpack.c.l.s4 1966171168
        %v2570 = vunpack.c.0.s8 %v2569
        %v2571 = vlaneseq
        %v2572 = vshrl.u32 %v2571, 7
        %v2573 = vsub.s32 %v2570, %v2572
        %v2574 = vrot.slane %v1564, %v2573
        %v2576 = vunpack.c.l.s4 1966171168
        %v2577 = vunpack.c.0.s8 %v2576
        %v2578 = vlaneseq
        %v2579 = vshrl.u32 %v2578, 7
        %v2580 = vsub.s32 %v2577, %v2579
        %v2581 = vrot.slane %v2574, %v2580
        %v2583 = vunpack.c.l.s4 1966171168
        %v2584 = vunpack.c.0.s8 %v2583
        %v2585 = vlaneseq
        %v2586 = vshrl.u32 %v2585, 7
        %v2587 = vsub.s32 %v2584, %v2586
        %v2588 = vrot.slane %v1571, %v2587
        %v2590 = vunpack.c.l.s4 1966171168
        %v2591 = vunpack.c.0.s8 %v2590
        %v2592 = vlaneseq
        %v2593 = vshrl.u32 %v2592, 7
        %v2594 = vsub.s32 %v2591, %v2593
        %v2595 = vrot.slane %v2588, %v2594
        %v2597 = vunpack.c.l.s4 1966171168
        %v2598 = vunpack.c.0.s8 %v2597
        %v2599 = vlaneseq
        %v2600 = vshrl.u32 %v2599, 7
        %v2601 = vsub.s32 %v2598, %v2600
        %v2602 = vrot.slane %v1572, %v2601
        %v2604 = vunpack.c.l.s4 1966171168
        %v2605 = vunpack.c.0.s8 %v2604
        %v2606 = vlaneseq
        %v2607 = vshrl.u32 %v2606, 7
        %v2608 = vsub.s32 %v2605, %v2607
        %v2609 = vrot.slane %v2602, %v2608
        %v2611 = vunpack.c.l.s4 1966171168
        %v2612 = vunpack.c.0.s8 %v2611
        %v2613 = vlaneseq
        %v2614 = vshrl.u32 %v2613, 7
        %v2615 = vsub.s32 %v2612, %v2614
        %v2616 = vrot.slane %v1573, %v2615
        %v2618 = vunpack.c.l.s4 1966171168
        %v2619 = vunpack.c.0.s8 %v2618
        %v2620 = vlaneseq
        %v2621 = vshrl.u32 %v2620, 7
        %v2622 = vsub.s32 %v2619, %v2621
        %v2623 = vrot.slane %v2616, %v2622
        %v2625 = vunpack.c.l.s4 1966171168
        %v2626 = vunpack.c.0.s8 %v2625
        %v2627 = vlaneseq
        %v2628 = vshrl.u32 %v2627, 7
        %v2629 = vsub.s32 %v2626, %v2628
        %v2630 = vrot.slane %v1588, %v2629
        %v2632 = vunpack.c.l.s4 1966171168
        %v2633 = vunpack.c.0.s8 %v2632
        %v2634 = vlaneseq
        %v2635 = vshrl.u32 %v2634, 7
        %v2636 = vsub.s32 %v2633, %v2635
        %v2637 = vrot.slane %v2630, %v2636
        %v2639 = vunpack.c.l.s4 1966171168
        %v2640 = vunpack.c.0.s8 %v2639
        %v2641 = vlaneseq
        %v2642 = vshrl.u32 %v2641, 7
        %v2643 = vsub.s32 %v2640, %v2642
        %v2644 = vrot.slane %v1595, %v2643
        %v2646 = vunpack.c.l.s4 1966171168
        %v2647 = vunpack.c.0.s8 %v2646
        %v2648 = vlaneseq
        %v2649 = vshrl.u32 %v2648, 7
        %v2650 = vsub.s32 %v2647, %v2649
        %v2651 = vrot.slane %v2644, %v2650
        %v2653 = vunpack.c.l.s4 1966171168
        %v2654 = vunpack.c.0.s8 %v2653
        %v2655 = vlaneseq
        %v2656 = vshrl.u32 %v2655, 7
        %v2657 = vsub.s32 %v2654, %v2656
        %v2658 = vrot.slane %v1596, %v2657
        %v2660 = vunpack.c.l.s4 1966171168
        %v2661 = vunpack.c.0.s8 %v2660
        %v2662 = vlaneseq
        %v2663 = vshrl.u32 %v2662, 7
        %v2664 = vsub.s32 %v2661, %v2663
        %v2665 = vrot.slane %v2658, %v2664
        %v2667 = vunpack.c.l.s4 1966171168
        %v2668 = vunpack.c.0.s8 %v2667
        %v2669 = vlaneseq
        %v2670 = vshrl.u32 %v2669, 7
        %v2671 = vsub.s32 %v2668, %v2670
        %v2672 = vrot.slane %v1597, %v2671
        %v2674 = vunpack.c.l.s4 1966171168
        %v2675 = vunpack.c.0.s8 %v2674
        %v2676 = vlaneseq
        %v2677 = vshrl.u32 %v2676, 7
        %v2678 = vsub.s32 %v2675, %v2677
        %v2679 = vrot.slane %v2672, %v2678
        %v2681 = vunpack.c.l.s4 1966171168
        %v2682 = vunpack.c.0.s8 %v2681
        %v2683 = vlaneseq
        %v2684 = vshrl.u32 %v2683, 7
        %v2685 = vsub.s32 %v2682, %v2684
        %v2686 = vrot.slane %v1688, %v2685
        %v2688 = vunpack.c.l.s4 1966171168
        %v2689 = vunpack.c.0.s8 %v2688
        %v2690 = vlaneseq
        %v2691 = vshrl.u32 %v2690, 7
        %v2692 = vsub.s32 %v2689, %v2691
        %v2693 = vrot.slane %v2686, %v2692
        %v2695 = vunpack.c.l.s4 1966171168
        %v2696 = vunpack.c.0.s8 %v2695
        %v2697 = vlaneseq
        %v2698 = vshrl.u32 %v2697, 7
        %v2699 = vsub.s32 %v2696, %v2698
        %v2700 = vrot.slane %v1695, %v2699
        %v2702 = vunpack.c.l.s4 1966171168
        %v2703 = vunpack.c.0.s8 %v2702
        %v2704 = vlaneseq
        %v2705 = vshrl.u32 %v2704, 7
        %v2706 = vsub.s32 %v2703, %v2705
        %v2707 = vrot.slane %v2700, %v2706
        %v2709 = vunpack.c.l.s4 1966171168
        %v2710 = vunpack.c.0.s8 %v2709
        %v2711 = vlaneseq
        %v2712 = vshrl.u32 %v2711, 7
        %v2713 = vsub.s32 %v2710, %v2712
        %v2714 = vrot.slane %v1696, %v2713
        %v2716 = vunpack.c.l.s4 1966171168
        %v2717 = vunpack.c.0.s8 %v2716
        %v2718 = vlaneseq
        %v2719 = vshrl.u32 %v2718, 7
        %v2720 = vsub.s32 %v2717, %v2719
        %v2721 = vrot.slane %v2714, %v2720
        %v2723 = vunpack.c.l.s4 1966171168
        %v2724 = vunpack.c.0.s8 %v2723
        %v2725 = vlaneseq
        %v2726 = vshrl.u32 %v2725, 7
        %v2727 = vsub.s32 %v2724, %v2726
        %v2728 = vrot.slane %v1697, %v2727
        %v2730 = vunpack.c.l.s4 1966171168
        %v2731 = vunpack.c.0.s8 %v2730
        %v2732 = vlaneseq
        %v2733 = vshrl.u32 %v2732, 7
        %v2734 = vsub.s32 %v2731, %v2733
        %v2735 = vrot.slane %v2728, %v2734
        %v2737 = vunpack.c.l.s4 1966171168
        %v2738 = vunpack.c.0.s8 %v2737
        %v2739 = vlaneseq
        %v2740 = vshrl.u32 %v2739, 7
        %v2741 = vsub.s32 %v2738, %v2740
        %v2742 = vrot.slane %v1712, %v2741
        %v2744 = vunpack.c.l.s4 1966171168
        %v2745 = vunpack.c.0.s8 %v2744
        %v2746 = vlaneseq
        %v2747 = vshrl.u32 %v2746, 7
        %v2748 = vsub.s32 %v2745, %v2747
        %v2749 = vrot.slane %v2742, %v2748
        %v2751 = vunpack.c.l.s4 1966171168
        %v2752 = vunpack.c.0.s8 %v2751
        %v2753 = vlaneseq
        %v2754 = vshrl.u32 %v2753, 7
        %v2755 = vsub.s32 %v2752, %v2754
        %v2756 = vrot.slane %v1719, %v2755
        %v2758 = vunpack.c.l.s4 1966171168
        %v2759 = vunpack.c.0.s8 %v2758
        %v2760 = vlaneseq
        %v2761 = vshrl.u32 %v2760, 7
        %v2762 = vsub.s32 %v2759, %v2761
        %v2763 = vrot.slane %v2756, %v2762
        %v2765 = vunpack.c.l.s4 1966171168
        %v2766 = vunpack.c.0.s8 %v2765
        %v2767 = vlaneseq
        %v2768 = vshrl.u32 %v2767, 7
        %v2769 = vsub.s32 %v2766, %v2768
        %v2770 = vrot.slane %v1720, %v2769
        %v2772 = vunpack.c.l.s4 1966171168
        %v2773 = vunpack.c.0.s8 %v2772
        %v2774 = vlaneseq
        %v2775 = vshrl.u32 %v2774, 7
        %v2776 = vsub.s32 %v2773, %v2775
        %v2777 = vrot.slane %v2770, %v2776
        %v2779 = vunpack.c.l.s4 1966171168
        %v2780 = vunpack.c.0.s8 %v2779
        %v2781 = vlaneseq
        %v2782 = vshrl.u32 %v2781, 7
        %v2783 = vsub.s32 %v2780, %v2782
        %v2784 = vrot.slane %v1721, %v2783
        %v2786 = vunpack.c.l.s4 1966171168
        %v2787 = vunpack.c.0.s8 %v2786
        %v2788 = vlaneseq
        %v2789 = vshrl.u32 %v2788, 7
        %v2790 = vsub.s32 %v2787, %v2789
        %v2791 = vrot.slane %v2784, %v2790
        %v2793 = vunpack.c.l.s4 1966171168
        %v2794 = vunpack.c.0.s8 %v2793
        %v2795 = vlaneseq
        %v2796 = vshrl.u32 %v2795, 7
        %v2797 = vsub.s32 %v2794, %v2796
        %v2798 = vrot.slane %v1812, %v2797
        %v2800 = vunpack.c.l.s4 1966171168
        %v2801 = vunpack.c.0.s8 %v2800
        %v2802 = vlaneseq
        %v2803 = vshrl.u32 %v2802, 7
        %v2804 = vsub.s32 %v2801, %v2803
        %v2805 = vrot.slane %v2798, %v2804
        %v2807 = vunpack.c.l.s4 1966171168
        %v2808 = vunpack.c.0.s8 %v2807
        %v2809 = vlaneseq
        %v2810 = vshrl.u32 %v2809, 7
        %v2811 = vsub.s32 %v2808, %v2810
        %v2812 = vrot.slane %v1819, %v2811
        %v2814 = vunpack.c.l.s4 1966171168
        %v2815 = vunpack.c.0.s8 %v2814
        %v2816 = vlaneseq
        %v2817 = vshrl.u32 %v2816, 7
        %v2818 = vsub.s32 %v2815, %v2817
        %v2819 = vrot.slane %v2812, %v2818
        %v2821 = vunpack.c.l.s4 1966171168
        %v2822 = vunpack.c.0.s8 %v2821
        %v2823 = vlaneseq
        %v2824 = vshrl.u32 %v2823, 7
        %v2825 = vsub.s32 %v2822, %v2824
        %v2826 = vrot.slane %v1820, %v2825
        %v2828 = vunpack.c.l.s4 1966171168
        %v2829 = vunpack.c.0.s8 %v2828
        %v2830 = vlaneseq
        %v2831 = vshrl.u32 %v2830, 7
        %v2832 = vsub.s32 %v2829, %v2831
        %v2833 = vrot.slane %v2826, %v2832
        %v2835 = vunpack.c.l.s4 1966171168
        %v2836 = vunpack.c.0.s8 %v2835
        %v2837 = vlaneseq
        %v2838 = vshrl.u32 %v2837, 7
        %v2839 = vsub.s32 %v2836, %v2838
        %v2840 = vrot.slane %v1821, %v2839
        %v2842 = vunpack.c.l.s4 1966171168
        %v2843 = vunpack.c.0.s8 %v2842
        %v2844 = vlaneseq
        %v2845 = vshrl.u32 %v2844, 7
        %v2846 = vsub.s32 %v2843, %v2845
        %v2847 = vrot.slane %v2840, %v2846
        %v2849 = vunpack.c.l.s4 1966171168
        %v2850 = vunpack.c.0.s8 %v2849
        %v2851 = vlaneseq
        %v2852 = vshrl.u32 %v2851, 7
        %v2853 = vsub.s32 %v2850, %v2852
        %v2854 = vrot.slane %v1836, %v2853
        %v2856 = vunpack.c.l.s4 1966171168
        %v2857 = vunpack.c.0.s8 %v2856
        %v2858 = vlaneseq
        %v2859 = vshrl.u32 %v2858, 7
        %v2860 = vsub.s32 %v2857, %v2859
        %v2861 = vrot.slane %v2854, %v2860
        %v2863 = vunpack.c.l.s4 1966171168
        %v2864 = vunpack.c.0.s8 %v2863
        %v2865 = vlaneseq
        %v2866 = vshrl.u32 %v2865, 7
        %v2867 = vsub.s32 %v2864, %v2866
        %v2868 = vrot.slane %v1843, %v2867
        %v2870 = vunpack.c.l.s4 1966171168
        %v2871 = vunpack.c.0.s8 %v2870
        %v2872 = vlaneseq
        %v2873 = vshrl.u32 %v2872, 7
        %v2874 = vsub.s32 %v2871, %v2873
        %v2875 = vrot.slane %v2868, %v2874
        %v2877 = vunpack.c.l.s4 1966171168
        %v2878 = vunpack.c.0.s8 %v2877
        %v2879 = vlaneseq
        %v2880 = vshrl.u32 %v2879, 7
        %v2881 = vsub.s32 %v2878, %v2880
        %v2882 = vrot.slane %v1844, %v2881
        %v2884 = vunpack.c.l.s4 1966171168
        %v2885 = vunpack.c.0.s8 %v2884
        %v2886 = vlaneseq
        %v2887 = vshrl.u32 %v2886, 7
        %v2888 = vsub.s32 %v2885, %v2887
        %v2889 = vrot.slane %v2882, %v2888
        %v2891 = vunpack.c.l.s4 1966171168
        %v2892 = vunpack.c.0.s8 %v2891
        %v2893 = vlaneseq
        %v2894 = vshrl.u32 %v2893, 7
        %v2895 = vsub.s32 %v2892, %v2894
        %v2896 = vrot.slane %v1845, %v2895
        %v2898 = vunpack.c.l.s4 1966171168
        %v2899 = vunpack.c.0.s8 %v2898
        %v2900 = vlaneseq
        %v2901 = vshrl.u32 %v2900, 7
        %v2902 = vsub.s32 %v2899, %v2901
        %v2903 = vrot.slane %v2896, %v2902
        %v2905 = vunpack.c.l.s4 1966171168
        %v2906 = vunpack.c.0.s8 %v2905
        %v2907 = vlaneseq
        %v2908 = vshrl.u32 %v2907, 7
        %v2909 = vsub.s32 %v2906, %v2908
        %v2910 = vrot.slane %v1936, %v2909
        %v2912 = vunpack.c.l.s4 1966171168
        %v2913 = vunpack.c.0.s8 %v2912
        %v2914 = vlaneseq
        %v2915 = vshrl.u32 %v2914, 7
        %v2916 = vsub.s32 %v2913, %v2915
        %v2917 = vrot.slane %v2910, %v2916
        %v2919 = vunpack.c.l.s4 1966171168
        %v2920 = vunpack.c.0.s8 %v2919
        %v2921 = vlaneseq
        %v2922 = vshrl.u32 %v2921, 7
        %v2923 = vsub.s32 %v2920, %v2922
        %v2924 = vrot.slane %v1943, %v2923
        %v2926 = vunpack.c.l.s4 1966171168
        %v2927 = vunpack.c.0.s8 %v2926
        %v2928 = vlaneseq
        %v2929 = vshrl.u32 %v2928, 7
        %v2930 = vsub.s32 %v2927, %v2929
        %v2931 = vrot.slane %v2924, %v2930
        %v2933 = vunpack.c.l.s4 1966171168
        %v2934 = vunpack.c.0.s8 %v2933
        %v2935 = vlaneseq
        %v2936 = vshrl.u32 %v2935, 7
        %v2937 = vsub.s32 %v2934, %v2936
        %v2938 = vrot.slane %v1944, %v2937
        %v2940 = vunpack.c.l.s4 1966171168
        %v2941 = vunpack.c.0.s8 %v2940
        %v2942 = vlaneseq
        %v2943 = vshrl.u32 %v2942, 7
        %v2944 = vsub.s32 %v2941, %v2943
        %v2945 = vrot.slane %v2938, %v2944
        %v2947 = vunpack.c.l.s4 1966171168
        %v2948 = vunpack.c.0.s8 %v2947
        %v2949 = vlaneseq
        %v2950 = vshrl.u32 %v2949, 7
        %v2951 = vsub.s32 %v2948, %v2950
        %v2952 = vrot.slane %v1945, %v2951
        %v2954 = vunpack.c.l.s4 1966171168
        %v2955 = vunpack.c.0.s8 %v2954
        %v2956 = vlaneseq
        %v2957 = vshrl.u32 %v2956, 7
        %v2958 = vsub.s32 %v2955, %v2957
        %v2959 = vrot.slane %v2952, %v2958
        %v2961 = vunpack.c.l.s4 1966171168
        %v2962 = vunpack.c.0.s8 %v2961
        %v2963 = vlaneseq
        %v2964 = vshrl.u32 %v2963, 7
        %v2965 = vsub.s32 %v2962, %v2964
        %v2966 = vrot.slane %v1960, %v2965
        %v2968 = vunpack.c.l.s4 1966171168
        %v2969 = vunpack.c.0.s8 %v2968
        %v2970 = vlaneseq
        %v2971 = vshrl.u32 %v2970, 7
        %v2972 = vsub.s32 %v2969, %v2971
        %v2973 = vrot.slane %v2966, %v2972
        %v2975 = vunpack.c.l.s4 1966171168
        %v2976 = vunpack.c.0.s8 %v2975
        %v2977 = vlaneseq
        %v2978 = vshrl.u32 %v2977, 7
        %v2979 = vsub.s32 %v2976, %v2978
        %v2980 = vrot.slane %v1967, %v2979
        %v2982 = vunpack.c.l.s4 1966171168
        %v2983 = vunpack.c.0.s8 %v2982
        %v2984 = vlaneseq
        %v2985 = vshrl.u32 %v2984, 7
        %v2986 = vsub.s32 %v2983, %v2985
        %v2987 = vrot.slane %v2980, %v2986
        %v2989 = vunpack.c.l.s4 1966171168
        %v2990 = vunpack.c.0.s8 %v2989
        %v2991 = vlaneseq
        %v2992 = vshrl.u32 %v2991, 7
        %v2993 = vsub.s32 %v2990, %v2992
        %v2994 = vrot.slane %v1968, %v2993
        %v2996 = vunpack.c.l.s4 1966171168
        %v2997 = vunpack.c.0.s8 %v2996
        %v2998 = vlaneseq
        %v2999 = vshrl.u32 %v2998, 7
        %v3000 = vsub.s32 %v2997, %v2999
        %v3001 = vrot.slane %v2994, %v3000
        %v3003 = vunpack.c.l.s4 1966171168
        %v3004 = vunpack.c.0.s8 %v3003
        %v3005 = vlaneseq
        %v3006 = vshrl.u32 %v3005, 7
        %v3007 = vsub.s32 %v3004, %v3006
        %v3008 = vrot.slane %v1969, %v3007
        %v3010 = vunpack.c.l.s4 1966171168
        %v3011 = vunpack.c.0.s8 %v3010
        %v3012 = vlaneseq
        %v3013 = vshrl.u32 %v3012, 7
        %v3014 = vsub.s32 %v3011, %v3013
        %v3015 = vrot.slane %v3008, %v3014
        %v3017 = vunpack.c.l.s4 1966171168
        %v3018 = vunpack.c.0.s8 %v3017
        %v3019 = vlaneseq
        %v3020 = vshrl.u32 %v3019, 7
        %v3021 = vsub.s32 %v3018, %v3020
        %v3022 = vrot.slane %v2060, %v3021
        %v3024 = vunpack.c.l.s4 1966171168
        %v3025 = vunpack.c.0.s8 %v3024
        %v3026 = vlaneseq
        %v3027 = vshrl.u32 %v3026, 7
        %v3028 = vsub.s32 %v3025, %v3027
        %v3029 = vrot.slane %v3022, %v3028
        %v3031 = vunpack.c.l.s4 1966171168
        %v3032 = vunpack.c.0.s8 %v3031
        %v3033 = vlaneseq
        %v3034 = vshrl.u32 %v3033, 7
        %v3035 = vsub.s32 %v3032, %v3034
        %v3036 = vrot.slane %v2067, %v3035
        %v3038 = vunpack.c.l.s4 1966171168
        %v3039 = vunpack.c.0.s8 %v3038
        %v3040 = vlaneseq
        %v3041 = vshrl.u32 %v3040, 7
        %v3042 = vsub.s32 %v3039, %v3041
        %v3043 = vrot.slane %v3036, %v3042
        %v3045 = vunpack.c.l.s4 1966171168
        %v3046 = vunpack.c.0.s8 %v3045
        %v3047 = vlaneseq
        %v3048 = vshrl.u32 %v3047, 7
        %v3049 = vsub.s32 %v3046, %v3048
        %v3050 = vrot.slane %v2068, %v3049
        %v3052 = vunpack.c.l.s4 1966171168
        %v3053 = vunpack.c.0.s8 %v3052
        %v3054 = vlaneseq
        %v3055 = vshrl.u32 %v3054, 7
        %v3056 = vsub.s32 %v3053, %v3055
        %v3057 = vrot.slane %v3050, %v3056
        %v3059 = vunpack.c.l.s4 1966171168
        %v3060 = vunpack.c.0.s8 %v3059
        %v3061 = vlaneseq
        %v3062 = vshrl.u32 %v3061, 7
        %v3063 = vsub.s32 %v3060, %v3062
        %v3064 = vrot.slane %v2069, %v3063
        %v3066 = vunpack.c.l.s4 1966171168
        %v3067 = vunpack.c.0.s8 %v3066
        %v3068 = vlaneseq
        %v3069 = vshrl.u32 %v3068, 7
        %v3070 = vsub.s32 %v3067, %v3069
        %v3071 = vrot.slane %v3064, %v3070
        %v3073 = vunpack.c.l.s4 1966171168
        %v3074 = vunpack.c.0.s8 %v3073
        %v3075 = vlaneseq
        %v3076 = vshrl.u32 %v3075, 7
        %v3077 = vsub.s32 %v3074, %v3076
        %v3078 = vrot.slane %v2084, %v3077
        %v3080 = vunpack.c.l.s4 1966171168
        %v3081 = vunpack.c.0.s8 %v3080
        %v3082 = vlaneseq
        %v3083 = vshrl.u32 %v3082, 7
        %v3084 = vsub.s32 %v3081, %v3083
        %v3085 = vrot.slane %v3078, %v3084
        %v3087 = vunpack.c.l.s4 1966171168
        %v3088 = vunpack.c.0.s8 %v3087
        %v3089 = vlaneseq
        %v3090 = vshrl.u32 %v3089, 7
        %v3091 = vsub.s32 %v3088, %v3090
        %v3092 = vrot.slane %v2091, %v3091
        %v3094 = vunpack.c.l.s4 1966171168
        %v3095 = vunpack.c.0.s8 %v3094
        %v3096 = vlaneseq
        %v3097 = vshrl.u32 %v3096, 7
        %v3098 = vsub.s32 %v3095, %v3097
        %v3099 = vrot.slane %v3092, %v3098
        %v3101 = vunpack.c.l.s4 1966171168
        %v3102 = vunpack.c.0.s8 %v3101
        %v3103 = vlaneseq
        %v3104 = vshrl.u32 %v3103, 7
        %v3105 = vsub.s32 %v3102, %v3104
        %v3106 = vrot.slane %v2092, %v3105
        %v3108 = vunpack.c.l.s4 1966171168
        %v3109 = vunpack.c.0.s8 %v3108
        %v3110 = vlaneseq
        %v3111 = vshrl.u32 %v3110, 7
        %v3112 = vsub.s32 %v3109, %v3111
        %v3113 = vrot.slane %v3106, %v3112
        %v3115 = vunpack.c.l.s4 1966171168
        %v3116 = vunpack.c.0.s8 %v3115
        %v3117 = vlaneseq
        %v3118 = vshrl.u32 %v3117, 7
        %v3119 = vsub.s32 %v3116, %v3118
        %v3120 = vrot.slane %v2093, %v3119
        %v3122 = vunpack.c.l.s4 1966171168
        %v3123 = vunpack.c.0.s8 %v3122
        %v3124 = vlaneseq
        %v3125 = vshrl.u32 %v3124, 7
        %v3126 = vsub.s32 %v3123, %v3125
        %v3127 = vrot.slane %v3120, %v3126
        %v3128 = vunpack.c.l.b16 %v2245
        %v3129 = vunpack.c.l.b16 %v2259
        %v3130 = vunpack.c.l.b16 %v2273
        %v3131 = vunpack.c.l.b16 %v2287
        %v3132 = vunpack.c.l.b16 %v2301
        %v3133 = vunpack.c.l.b16 %v2315
        %v3134 = vunpack.c.l.b16 %v2329
        %v3135 = vunpack.c.l.b16 %v2343
        %v3136 = vunpack.c.l.b16 %v2357
        %v3137 = vunpack.c.l.b16 %v2371
        %v3138 = vunpack.c.l.b16 %v2385
        %v3139 = vunpack.c.l.b16 %v2399
        %v3140 = vunpack.c.l.b16 %v2413
        %v3141 = vunpack.c.l.b16 %v2427
        %v3142 = vunpack.c.l.b16 %v2441
        %v3143 = vunpack.c.l.b16 %v2455
        %v3144 = vunpack.c.l.b16 %v2469
        %v3145 = vunpack.c.l.b16 %v2483
        %v3146 = vunpack.c.l.b16 %v2497
        %v3147 = vunpack.c.l.b16 %v2511
        %v3148 = vunpack.c.l.b16 %v2525
        %v3149 = vunpack.c.l.b16 %v2539
        %v3150 = vunpack.c.l.b16 %v2553
        %v3151 = vunpack.c.l.b16 %v2567
        %v3152 = vunpack.c.l.b16 %v2581
        %v3153 = vunpack.c.l.b16 %v2595
        %v3154 = vunpack.c.l.b16 %v2609
        %v3155 = vunpack.c.l.b16 %v2623
        %v3156 = vunpack.c.l.b16 %v2637
        %v3157 = vunpack.c.l.b16 %v2651
        %v3158 = vunpack.c.l.b16 %v2665
        %v3159 = vunpack.c.l.b16 %v2679
        %v3160 = vunpack.c.l.b16 %v2693
        %v3161 = vunpack.c.l.b16 %v2707
        %v3162 = vunpack.c.l.b16 %v2721
        %v3163 = vunpack.c.l.b16 %v2735
        %v3164 = vunpack.c.l.b16 %v2749
        %v3165 = vunpack.c.l.b16 %v2763
        %v3166 = vunpack.c.l.b16 %v2777
        %v3167 = vunpack.c.l.b16 %v2791
        %v3168 = vunpack.c.l.b16 %v2805
        %v3169 = vunpack.c.l.b16 %v2819
        %v3170 = vunpack.c.l.b16 %v2833
        %v3171 = vunpack.c.l.b16 %v2847
        %v3172 = vunpack.c.l.b16 %v2861
        %v3173 = vunpack.c.l.b16 %v2875
        %v3174 = vunpack.c.l.b16 %v2889
        %v3175 = vunpack.c.l.b16 %v2903
        %v3176 = vunpack.c.l.b16 %v2917
        %v3177 = vunpack.c.l.b16 %v2931
        %v3178 = vunpack.c.l.b16 %v2945
        %v3179 = vunpack.c.l.b16 %v2959
        %v3180 = vunpack.c.l.b16 %v2973
        %v3181 = vunpack.c.l.b16 %v2987
        %v3182 = vunpack.c.l.b16 %v3001
        %v3183 = vunpack.c.l.b16 %v3015
        %v3184 = vunpack.c.l.b16 %v3029
        %v3185 = vunpack.c.l.b16 %v3043
        %v3186 = vunpack.c.l.b16 %v3057
        %v3187 = vunpack.c.l.b16 %v3071
        %v3188 = vunpack.c.l.b16 %v3085
        %v3189 = vunpack.c.l.b16 %v3099
        %v3190 = vunpack.c.l.b16 %v3113
        %v3191 = vunpack.c.l.b16 %v3127
        %v3192 = vrot.slane %v3128, 1
        %vm3193 = vcmask 1041409
        %v3194 = vsel %vm3193, %v3129, %v3192
        %v3195 = vrot.slane %v3130, 7
        %vm3196 = vcmask 1042434
        %v3197 = vsel %vm3196, %v3195, %v3194
        %v3198 = vrot.slane %v3131, 6
        %vm3199 = vcmask 1043459
        %v3200 = vsel %vm3199, %v3198, %v3197
        %v3201 = vrot.slane %v3132, 5
        %vm3202 = vcmask 1044484
        %v3203 = vsel %vm3202, %v3201, %v3200
        %v3204 = vrot.slane %v3133, 4
        %vm3205 = vcmask 1045509
        %v3206 = vsel %vm3205, %v3204, %v3203
        %v3207 = vrot.slane %v3134, 3
        %vm3208 = vcmask 1046534
        %v3209 = vsel %vm3208, %v3207, %v3206
        %v3210 = vrot.slane %v3135, 2
        %vm3211 = vcmask 1047559
        %v3212 = vsel %vm3211, %v3210, %v3209
        %v3213 = vrot.slane %v3136, 1
        %v3214 = vsel %vm3193, %v3137, %v3213
        %v3215 = vrot.slane %v3138, 7
        %v3216 = vsel %vm3196, %v3215, %v3214
        %v3217 = vrot.slane %v3139, 6
        %v3218 = vsel %vm3199, %v3217, %v3216
        %v3219 = vrot.slane %v3140, 5
        %v3220 = vsel %vm3202, %v3219, %v3218
        %v3221 = vrot.slane %v3141, 4
        %v3222 = vsel %vm3205, %v3221, %v3220
        %v3223 = vrot.slane %v3142, 3
        %v3224 = vsel %vm3208, %v3223, %v3222
        %v3225 = vrot.slane %v3143, 2
        %v3226 = vsel %vm3211, %v3225, %v3224
        %v3227 = vrot.slane %v3144, 1
        %v3228 = vsel %vm3193, %v3145, %v3227
        %v3229 = vrot.slane %v3146, 7
        %v3230 = vsel %vm3196, %v3229, %v3228
        %v3231 = vrot.slane %v3147, 6
        %v3232 = vsel %vm3199, %v3231, %v3230
        %v3233 = vrot.slane %v3148, 5
        %v3234 = vsel %vm3202, %v3233, %v3232
        %v3235 = vrot.slane %v3149, 4
        %v3236 = vsel %vm3205, %v3235, %v3234
        %v3237 = vrot.slane %v3150, 3
        %v3238 = vsel %vm3208, %v3237, %v3236
        %v3239 = vrot.slane %v3151, 2
        %v3240 = vsel %vm3211, %v3239, %v3238
        %v3241 = vrot.slane %v3152, 1
        %v3242 = vsel %vm3193, %v3153, %v3241
        %v3243 = vrot.slane %v3154, 7
        %v3244 = vsel %vm3196, %v3243, %v3242
        %v3245 = vrot.slane %v3155, 6
        %v3246 = vsel %vm3199, %v3245, %v3244
        %v3247 = vrot.slane %v3156, 5
        %v3248 = vsel %vm3202, %v3247, %v3246
        %v3249 = vrot.slane %v3157, 4
        %v3250 = vsel %vm3205, %v3249, %v3248
        %v3251 = vrot.slane %v3158, 3
        %v3252 = vsel %vm3208, %v3251, %v3250
        %v3253 = vrot.slane %v3159, 2
        %v3254 = vsel %vm3211, %v3253, %v3252
        %v3255 = vrot.slane %v3160, 1
        %v3256 = vsel %vm3193, %v3161, %v3255
        %v3257 = vrot.slane %v3162, 7
        %v3258 = vsel %vm3196, %v3257, %v3256
        %v3259 = vrot.slane %v3163, 6
        %v3260 = vsel %vm3199, %v3259, %v3258
        %v3261 = vrot.slane %v3164, 5
        %v3262 = vsel %vm3202, %v3261, %v3260
        %v3263 = vrot.slane %v3165, 4
        %v3264 = vsel %vm3205, %v3263, %v3262
        %v3265 = vrot.slane %v3166, 3
        %v3266 = vsel %vm3208, %v3265, %v3264
        %v3267 = vrot.slane %v3167, 2
        %v3268 = vsel %vm3211, %v3267, %v3266
        %v3269 = vrot.slane %v3168, 1
        %v3270 = vsel %vm3193, %v3169, %v3269
        %v3271 = vrot.slane %v3170, 7
        %v3272 = vsel %vm3196, %v3271, %v3270
        %v3273 = vrot.slane %v3171, 6
        %v3274 = vsel %vm3199, %v3273, %v3272
        %v3275 = vrot.slane %v3172, 5
        %v3276 = vsel %vm3202, %v3275, %v3274
        %v3277 = vrot.slane %v3173, 4
        %v3278 = vsel %vm3205, %v3277, %v3276
        %v3279 = vrot.slane %v3174, 3
        %v3280 = vsel %vm3208, %v3279, %v3278
        %v3281 = vrot.slane %v3175, 2
        %v3282 = vsel %vm3211, %v3281, %v3280
        %v3283 = vrot.slane %v3176, 1
        %v3284 = vsel %vm3193, %v3177, %v3283
        %v3285 = vrot.slane %v3178, 7
        %v3286 = vsel %vm3196, %v3285, %v3284
        %v3287 = vrot.slane %v3179, 6
        %v3288 = vsel %vm3199, %v3287, %v3286
        %v3289 = vrot.slane %v3180, 5
        %v3290 = vsel %vm3202, %v3289, %v3288
        %v3291 = vrot.slane %v3181, 4
        %v3292 = vsel %vm3205, %v3291, %v3290
        %v3293 = vrot.slane %v3182, 3
        %v3294 = vsel %vm3208, %v3293, %v3292
        %v3295 = vrot.slane %v3183, 2
        %v3296 = vsel %vm3211, %v3295, %v3294
        %v3297 = vrot.slane %v3184, 1
        %v3298 = vsel %vm3193, %v3185, %v3297
        %v3299 = vrot.slane %v3186, 7
        %v3300 = vsel %vm3196, %v3299, %v3298
        %v3301 = vrot.slane %v3187, 6
        %v3302 = vsel %vm3199, %v3301, %v3300
        %v3303 = vrot.slane %v3188, 5
        %v3304 = vsel %vm3202, %v3303, %v3302
        %v3305 = vrot.slane %v3189, 4
        %v3306 = vsel %vm3205, %v3305, %v3304
        %v3307 = vrot.slane %v3190, 3
        %v3308 = vsel %vm3208, %v3307, %v3306
        %v3309 = vrot.slane %v3191, 2
        %v3310 = vsel %vm3211, %v3309, %v3308
        %v3311 = vpack.c.b16 %v3226, %v3212
        %v3312 = vpack.c.b16 %v3254, %v3240
        %v3313 = vpack.c.b16 %v3282, %v3268
        %v3314 = vpack.c.b16 %v3310, %v3296
        %vm3315 = vcmask 31744
        %v3317 = vsel %vm3315, %v3311, 0
        %v3320 = vsel %vm3315, %v3312, 0
        %v3323 = vsel %vm3315, %v3313, 0
        %v3326 = vsel %vm3315, %v3314, 0
        %vm3328 = vcmask 1041408
        %v3330 = vsel %vm3328, %v1068, 0
        %3332 = vmatprep.subr.bf16.mxu0 0
        %3333 = vmatpush1.bf16.msra.mxu0 %v3330
        %3334 = vmatprep.subr.bf16.mxu0 0
        %3335 = vmatpush1.bf16.msra.mxu0 0
        %3336 = vmatprep.subr.bf16.mxu0 0
        %3337 = vmatpush1.bf16.msra.mxu0 0
        %3338 = vmatprep.subr.bf16.mxu0 0
        %3339 = vmatpush1.bf16.msra.mxu0 0
        %3340 = vmatprep.subr.bf16.mxu0 0
        %3341 = vmatpush1.bf16.msra.mxu0 0
        %3342 = vmatprep.subr.bf16.mxu0 0
        %3343 = vmatpush1.bf16.msra.mxu0 0
        %3344 = vmatprep.subr.bf16.mxu0 0
        %3345 = vmatpush1.bf16.msra.mxu0 0
        %3346 = vmatprep.subr.bf16.mxu0 0
        %3347 = vmatpush1.bf16.msra.mxu0 0
        %3348 = vmatprep.subr.bf16.mxu0 0
        %3349 = vmatpush1.bf16.msra.mxu0 0
        %3350 = vmatprep.subr.bf16.mxu0 0
        %3351 = vmatpush1.bf16.msra.mxu0 0
        %3352 = vmatprep.subr.bf16.mxu0 0
        %3353 = vmatpush1.bf16.msra.mxu0 0
        %3354 = vmatprep.subr.bf16.mxu0 0
        %3355 = vmatpush1.bf16.msra.mxu0 0
        %3356 = vmatprep.subr.bf16.mxu0 0
        %3357 = vmatpush1.bf16.msra.mxu0 0
        %3358 = vmatprep.subr.bf16.mxu0 0
        %3359 = vmatpush1.bf16.msra.mxu0 0
        %3360 = vmatprep.subr.bf16.mxu0 0
        %3361 = vmatpush1.bf16.msra.mxu0 0
        %3362 = vmatprep.subr.bf16.mxu0 0
        %3363 = vmatpush1.bf16.msra.mxu0 0
        %3364 = vmatprep.mubr.bf16.mxu0 0
        %3365 = vmatmul.mubr.bf16.gmra.mrb[0].mxu0 %v3317
        %v3366 = vpop.f32.mrb[0].mxu0
        %v3367 = vadd.f32 0.0, %v3366
        %v3368 = vpop.f32.mrb[0].mxu0
        %v3369 = vpop.f32.mrb[0].mxu0
        %v3370 = vadd.f32 0.0, %v3369
        %v3371 = vpop.f32.mrb[0].mxu0
        %3372 = vmatprep.mubr.bf16.mxu0 0
        %3373 = vmatmul.mubr.bf16.gmra.mrb[0].mxu0 %v3320
        %v3374 = vpop.f32.mrb[0].mxu0
        %v3375 = vadd.f32 0.0, %v3374
        %v3376 = vpop.f32.mrb[0].mxu0
        %v3377 = vpop.f32.mrb[0].mxu0
        %v3378 = vadd.f32 0.0, %v3377
        %v3379 = vpop.f32.mrb[0].mxu0
        %3380 = vmatprep.mubr.bf16.mxu0 0
        %3381 = vmatmul.mubr.bf16.gmra.mrb[0].mxu0 %v3323
        %v3382 = vpop.f32.mrb[0].mxu0
        %v3383 = vadd.f32 0.0, %v3382
        %v3384 = vpop.f32.mrb[0].mxu0
        %v3385 = vpop.f32.mrb[0].mxu0
        %v3386 = vadd.f32 0.0, %v3385
        %v3387 = vpop.f32.mrb[0].mxu0
        %3388 = vmatprep.mubr.bf16.mxu0 0
        %3389 = vmatmul.mubr.bf16.gmra.mrb[0].mxu0 %v3326
        %v3390 = vpop.f32.mrb[0].mxu0
        %v3391 = vadd.f32 0.0, %v3390
        %v3392 = vpop.f32.mrb[0].mxu0
        %v3393 = vpop.f32.mrb[0].mxu0
        %v3394 = vadd.f32 0.0, %v3393
        %v3395 = vpop.f32.mrb[0].mxu0
        %3396 = vdwg.mxu0
        %v3397 = vrot.slane %v3129, 7
        %v3398 = vsel %vm3193, %v3397, %v3128
        %v3399 = vrot.slane %v3130, 6
        %v3400 = vsel %vm3196, %v3399, %v3398
        %v3401 = vrot.slane %v3131, 5
        %v3402 = vsel %vm3199, %v3401, %v3400
        %v3403 = vrot.slane %v3132, 4
        %v3404 = vsel %vm3202, %v3403, %v3402
        %v3405 = vrot.slane %v3133, 3
        %v3406 = vsel %vm3205, %v3405, %v3404
        %v3407 = vrot.slane %v3134, 2
        %v3408 = vsel %vm3208, %v3407, %v3406
        %v3409 = vrot.slane %v3135, 1
        %v3410 = vsel %vm3211, %v3409, %v3408
        %v3411 = vrot.slane %v3137, 7
        %v3412 = vsel %vm3193, %v3411, %v3136
        %v3413 = vrot.slane %v3138, 6
        %v3414 = vsel %vm3196, %v3413, %v3412
        %v3415 = vrot.slane %v3139, 5
        %v3416 = vsel %vm3199, %v3415, %v3414
        %v3417 = vrot.slane %v3140, 4
        %v3418 = vsel %vm3202, %v3417, %v3416
        %v3419 = vrot.slane %v3141, 3
        %v3420 = vsel %vm3205, %v3419, %v3418
        %v3421 = vrot.slane %v3142, 2
        %v3422 = vsel %vm3208, %v3421, %v3420
        %v3423 = vrot.slane %v3143, 1
        %v3424 = vsel %vm3211, %v3423, %v3422
        %v3425 = vrot.slane %v3145, 7
        %v3426 = vsel %vm3193, %v3425, %v3144
        %v3427 = vrot.slane %v3146, 6
        %v3428 = vsel %vm3196, %v3427, %v3426
        %v3429 = vrot.slane %v3147, 5
        %v3430 = vsel %vm3199, %v3429, %v3428
        %v3431 = vrot.slane %v3148, 4
        %v3432 = vsel %vm3202, %v3431, %v3430
        %v3433 = vrot.slane %v3149, 3
        %v3434 = vsel %vm3205, %v3433, %v3432
        %v3435 = vrot.slane %v3150, 2
        %v3436 = vsel %vm3208, %v3435, %v3434
        %v3437 = vrot.slane %v3151, 1
        %v3438 = vsel %vm3211, %v3437, %v3436
        %v3439 = vrot.slane %v3153, 7
        %v3440 = vsel %vm3193, %v3439, %v3152
        %v3441 = vrot.slane %v3154, 6
        %v3442 = vsel %vm3196, %v3441, %v3440
        %v3443 = vrot.slane %v3155, 5
        %v3444 = vsel %vm3199, %v3443, %v3442
        %v3445 = vrot.slane %v3156, 4
        %v3446 = vsel %vm3202, %v3445, %v3444
        %v3447 = vrot.slane %v3157, 3
        %v3448 = vsel %vm3205, %v3447, %v3446
        %v3449 = vrot.slane %v3158, 2
        %v3450 = vsel %vm3208, %v3449, %v3448
        %v3451 = vrot.slane %v3159, 1
        %v3452 = vsel %vm3211, %v3451, %v3450
        %v3453 = vrot.slane %v3161, 7
        %v3454 = vsel %vm3193, %v3453, %v3160
        %v3455 = vrot.slane %v3162, 6
        %v3456 = vsel %vm3196, %v3455, %v3454
        %v3457 = vrot.slane %v3163, 5
        %v3458 = vsel %vm3199, %v3457, %v3456
        %v3459 = vrot.slane %v3164, 4
        %v3460 = vsel %vm3202, %v3459, %v3458
        %v3461 = vrot.slane %v3165, 3
        %v3462 = vsel %vm3205, %v3461, %v3460
        %v3463 = vrot.slane %v3166, 2
        %v3464 = vsel %vm3208, %v3463, %v3462
        %v3465 = vrot.slane %v3167, 1
        %v3466 = vsel %vm3211, %v3465, %v3464
        %v3467 = vrot.slane %v3169, 7
        %v3468 = vsel %vm3193, %v3467, %v3168
        %v3469 = vrot.slane %v3170, 6
        %v3470 = vsel %vm3196, %v3469, %v3468
        %v3471 = vrot.slane %v3171, 5
        %v3472 = vsel %vm3199, %v3471, %v3470
        %v3473 = vrot.slane %v3172, 4
        %v3474 = vsel %vm3202, %v3473, %v3472
        %v3475 = vrot.slane %v3173, 3
        %v3476 = vsel %vm3205, %v3475, %v3474
        %v3477 = vrot.slane %v3174, 2
        %v3478 = vsel %vm3208, %v3477, %v3476
        %v3479 = vrot.slane %v3175, 1
        %v3480 = vsel %vm3211, %v3479, %v3478
        %v3481 = vrot.slane %v3177, 7
        %v3482 = vsel %vm3193, %v3481, %v3176
        %v3483 = vrot.slane %v3178, 6
        %v3484 = vsel %vm3196, %v3483, %v3482
        %v3485 = vrot.slane %v3179, 5
        %v3486 = vsel %vm3199, %v3485, %v3484
        %v3487 = vrot.slane %v3180, 4
        %v3488 = vsel %vm3202, %v3487, %v3486
        %v3489 = vrot.slane %v3181, 3
        %v3490 = vsel %vm3205, %v3489, %v3488
        %v3491 = vrot.slane %v3182, 2
        %v3492 = vsel %vm3208, %v3491, %v3490
        %v3493 = vrot.slane %v3183, 1
        %v3494 = vsel %vm3211, %v3493, %v3492
        %v3495 = vrot.slane %v3185, 7
        %v3496 = vsel %vm3193, %v3495, %v3184
        %v3497 = vrot.slane %v3186, 6
        %v3498 = vsel %vm3196, %v3497, %v3496
        %v3499 = vrot.slane %v3187, 5
        %v3500 = vsel %vm3199, %v3499, %v3498
        %v3501 = vrot.slane %v3188, 4
        %v3502 = vsel %vm3202, %v3501, %v3500
        %v3503 = vrot.slane %v3189, 3
        %v3504 = vsel %vm3205, %v3503, %v3502
        %v3505 = vrot.slane %v3190, 2
        %v3506 = vsel %vm3208, %v3505, %v3504
        %v3507 = vrot.slane %v3191, 1
        %v3508 = vsel %vm3211, %v3507, %v3506
        %v3509 = vpack.c.b16 %v3424, %v3410
        %v3510 = vpack.c.b16 %v3452, %v3438
        %v3511 = vpack.c.b16 %v3480, %v3466
        %v3512 = vpack.c.b16 %v3508, %v3494
        %v3514 = vsel %vm3315, %v3509, 0
        %v3517 = vsel %vm3315, %v3510, 0
        %v3520 = vsel %vm3315, %v3511, 0
        %v3523 = vsel %vm3315, %v3512, 0
        %v3526 = vsel %vm3328, %v1067, 0
        %3528 = vmatprep.subr.bf16.mxu0 0
        %3529 = vmatpush1.bf16.msra.mxu0 %v3526
        %3530 = vmatprep.subr.bf16.mxu0 0
        %3531 = vmatpush1.bf16.msra.mxu0 0
        %3532 = vmatprep.subr.bf16.mxu0 0
        %3533 = vmatpush1.bf16.msra.mxu0 0
        %3534 = vmatprep.subr.bf16.mxu0 0
        %3535 = vmatpush1.bf16.msra.mxu0 0
        %3536 = vmatprep.subr.bf16.mxu0 0
        %3537 = vmatpush1.bf16.msra.mxu0 0
        %3538 = vmatprep.subr.bf16.mxu0 0
        %3539 = vmatpush1.bf16.msra.mxu0 0
        %3540 = vmatprep.subr.bf16.mxu0 0
        %3541 = vmatpush1.bf16.msra.mxu0 0
        %3542 = vmatprep.subr.bf16.mxu0 0
        %3543 = vmatpush1.bf16.msra.mxu0 0
        %3544 = vmatprep.subr.bf16.mxu0 0
        %3545 = vmatpush1.bf16.msra.mxu0 0
        %3546 = vmatprep.subr.bf16.mxu0 0
        %3547 = vmatpush1.bf16.msra.mxu0 0
        %3548 = vmatprep.subr.bf16.mxu0 0
        %3549 = vmatpush1.bf16.msra.mxu0 0
        %3550 = vmatprep.subr.bf16.mxu0 0
        %3551 = vmatpush1.bf16.msra.mxu0 0
        %3552 = vmatprep.subr.bf16.mxu0 0
        %3553 = vmatpush1.bf16.msra.mxu0 0
        %3554 = vmatprep.subr.bf16.mxu0 0
        %3555 = vmatpush1.bf16.msra.mxu0 0
        %3556 = vmatprep.subr.bf16.mxu0 0
        %3557 = vmatpush1.bf16.msra.mxu0 0
        %3558 = vmatprep.subr.bf16.mxu0 0
        %3559 = vmatpush1.bf16.msra.mxu0 0
        %3560 = vmatprep.mubr.bf16.mxu0 0
        %3561 = vmatmul.mubr.bf16.gmra.mrb[0].mxu0 %v3514
        %v3562 = vpop.f32.mrb[0].mxu0
        %v3563 = vadd.f32 %v3367, %v3562
        %v3564 = vpop.f32.mrb[0].mxu0
        %v3565 = vpop.f32.mrb[0].mxu0
        %v3566 = vadd.f32 %v3370, %v3565
        %v3567 = vpop.f32.mrb[0].mxu0
        %3568 = vmatprep.mubr.bf16.mxu0 0
        %3569 = vmatmul.mubr.bf16.gmra.mrb[0].mxu0 %v3517
        %v3570 = vpop.f32.mrb[0].mxu0
        %v3571 = vadd.f32 %v3375, %v3570
        %v3572 = vpop.f32.mrb[0].mxu0
        %v3573 = vpop.f32.mrb[0].mxu0
        %v3574 = vadd.f32 %v3378, %v3573
        %v3575 = vpop.f32.mrb[0].mxu0
        %3576 = vmatprep.mubr.bf16.mxu0 0
        %3577 = vmatmul.mubr.bf16.gmra.mrb[0].mxu0 %v3520
        %v3578 = vpop.f32.mrb[0].mxu0
        %v3579 = vadd.f32 %v3383, %v3578
        %v3580 = vpop.f32.mrb[0].mxu0
        %v3581 = vpop.f32.mrb[0].mxu0
        %v3582 = vadd.f32 %v3386, %v3581
        %v3583 = vpop.f32.mrb[0].mxu0
        %3584 = vmatprep.mubr.bf16.mxu0 0
        %3585 = vmatmul.mubr.bf16.gmra.mrb[0].mxu0 %v3523
        %v3586 = vpop.f32.mrb[0].mxu0
        %v3587 = vadd.f32 %v3391, %v3586
        %v3588 = vpop.f32.mrb[0].mxu0
        %v3589 = vpop.f32.mrb[0].mxu0
        %v3590 = vadd.f32 %v3394, %v3589
        %v3591 = vpop.f32.mrb[0].mxu0
        %3592 = vdwg.mxu0
        %v3594 = vunpack.c.l.s4 1966171168
        %v3595 = vunpack.c.0.s8 %v3594
        %v3596 = vlaneseq
        %v3597 = vshrl.u32 %v3596, 7
        %v3598 = vsub.s32 %v3595, %v3597
        %v3599 = vrot.slane %v1239, %v3598
        %v3601 = vunpack.c.l.s4 1966171168
        %v3602 = vunpack.c.0.s8 %v3601
        %v3603 = vlaneseq
        %v3604 = vshrl.u32 %v3603, 7
        %v3605 = vsub.s32 %v3602, %v3604
        %v3606 = vrot.slane %v3599, %v3605
        %v3608 = vunpack.c.l.s4 1966171168
        %v3609 = vunpack.c.0.s8 %v3608
        %v3610 = vlaneseq
        %v3611 = vshrl.u32 %v3610, 7
        %v3612 = vsub.s32 %v3609, %v3611
        %v3613 = vrot.slane %v1363, %v3612
        %v3615 = vunpack.c.l.s4 1966171168
        %v3616 = vunpack.c.0.s8 %v3615
        %v3617 = vlaneseq
        %v3618 = vshrl.u32 %v3617, 7
        %v3619 = vsub.s32 %v3616, %v3618
        %v3620 = vrot.slane %v3613, %v3619
        %v3622 = vunpack.c.l.s4 1966171168
        %v3623 = vunpack.c.0.s8 %v3622
        %v3624 = vlaneseq
        %v3625 = vshrl.u32 %v3624, 7
        %v3626 = vsub.s32 %v3623, %v3625
        %v3627 = vrot.slane %v1487, %v3626
        %v3629 = vunpack.c.l.s4 1966171168
        %v3630 = vunpack.c.0.s8 %v3629
        %v3631 = vlaneseq
        %v3632 = vshrl.u32 %v3631, 7
        %v3633 = vsub.s32 %v3630, %v3632
        %v3634 = vrot.slane %v3627, %v3633
        %v3636 = vunpack.c.l.s4 1966171168
        %v3637 = vunpack.c.0.s8 %v3636
        %v3638 = vlaneseq
        %v3639 = vshrl.u32 %v3638, 7
        %v3640 = vsub.s32 %v3637, %v3639
        %v3641 = vrot.slane %v1611, %v3640
        %v3643 = vunpack.c.l.s4 1966171168
        %v3644 = vunpack.c.0.s8 %v3643
        %v3645 = vlaneseq
        %v3646 = vshrl.u32 %v3645, 7
        %v3647 = vsub.s32 %v3644, %v3646
        %v3648 = vrot.slane %v3641, %v3647
        %v3650 = vunpack.c.l.s4 1966171168
        %v3651 = vunpack.c.0.s8 %v3650
        %v3652 = vlaneseq
        %v3653 = vshrl.u32 %v3652, 7
        %v3654 = vsub.s32 %v3651, %v3653
        %v3655 = vrot.slane %v1735, %v3654
        %v3657 = vunpack.c.l.s4 1966171168
        %v3658 = vunpack.c.0.s8 %v3657
        %v3659 = vlaneseq
        %v3660 = vshrl.u32 %v3659, 7
        %v3661 = vsub.s32 %v3658, %v3660
        %v3662 = vrot.slane %v3655, %v3661
        %v3664 = vunpack.c.l.s4 1966171168
        %v3665 = vunpack.c.0.s8 %v3664
        %v3666 = vlaneseq
        %v3667 = vshrl.u32 %v3666, 7
        %v3668 = vsub.s32 %v3665, %v3667
        %v3669 = vrot.slane %v1859, %v3668
        %v3671 = vunpack.c.l.s4 1966171168
        %v3672 = vunpack.c.0.s8 %v3671
        %v3673 = vlaneseq
        %v3674 = vshrl.u32 %v3673, 7
        %v3675 = vsub.s32 %v3672, %v3674
        %v3676 = vrot.slane %v3669, %v3675
        %v3678 = vunpack.c.l.s4 1966171168
        %v3679 = vunpack.c.0.s8 %v3678
        %v3680 = vlaneseq
        %v3681 = vshrl.u32 %v3680, 7
        %v3682 = vsub.s32 %v3679, %v3681
        %v3683 = vrot.slane %v1983, %v3682
        %v3685 = vunpack.c.l.s4 1966171168
        %v3686 = vunpack.c.0.s8 %v3685
        %v3687 = vlaneseq
        %v3688 = vshrl.u32 %v3687, 7
        %v3689 = vsub.s32 %v3686, %v3688
        %v3690 = vrot.slane %v3683, %v3689
        %v3692 = vunpack.c.l.s4 1966171168
        %v3693 = vunpack.c.0.s8 %v3692
        %v3694 = vlaneseq
        %v3695 = vshrl.u32 %v3694, 7
        %v3696 = vsub.s32 %v3693, %v3695
        %v3697 = vrot.slane %v2107, %v3696
        %v3699 = vunpack.c.l.s4 1966171168
        %v3700 = vunpack.c.0.s8 %v3699
        %v3701 = vlaneseq
        %v3702 = vshrl.u32 %v3701, 7
        %v3703 = vsub.s32 %v3700, %v3702
        %v3704 = vrot.slane %v3697, %v3703
        %v3705 = vunpack.c.l.b16 %v3606
        %v3706 = vunpack.c.l.b16 %v3620
        %v3707 = vunpack.c.l.b16 %v3634
        %v3708 = vunpack.c.l.b16 %v3648
        %v3709 = vunpack.c.l.b16 %v3662
        %v3710 = vunpack.c.l.b16 %v3676
        %v3711 = vunpack.c.l.b16 %v3690
        %v3712 = vunpack.c.l.b16 %v3704
        %v3713 = vsel %vm3193, %v3195, %v3129
        %v3714 = vsel %vm3196, %v3198, %v3713
        %v3715 = vsel %vm3199, %v3201, %v3714
        %v3716 = vsel %vm3202, %v3204, %v3715
        %v3717 = vsel %vm3205, %v3207, %v3716
        %v3718 = vsel %vm3208, %v3210, %v3717
        %v3719 = vrot.slane %v3705, 1
        %v3720 = vsel %vm3211, %v3719, %v3718
        %v3721 = vsel %vm3193, %v3215, %v3137
        %v3722 = vsel %vm3196, %v3217, %v3721
        %v3723 = vsel %vm3199, %v3219, %v3722
        %v3724 = vsel %vm3202, %v3221, %v3723
        %v3725 = vsel %vm3205, %v3223, %v3724
        %v3726 = vsel %vm3208, %v3225, %v3725
        %v3727 = vrot.slane %v3706, 1
        %v3728 = vsel %vm3211, %v3727, %v3726
        %v3729 = vsel %vm3193, %v3229, %v3145
        %v3730 = vsel %vm3196, %v3231, %v3729
        %v3731 = vsel %vm3199, %v3233, %v3730
        %v3732 = vsel %vm3202, %v3235, %v3731
        %v3733 = vsel %vm3205, %v3237, %v3732
        %v3734 = vsel %vm3208, %v3239, %v3733
        %v3735 = vrot.slane %v3707, 1
        %v3736 = vsel %vm3211, %v3735, %v3734
        %v3737 = vsel %vm3193, %v3243, %v3153
        %v3738 = vsel %vm3196, %v3245, %v3737
        %v3739 = vsel %vm3199, %v3247, %v3738
        %v3740 = vsel %vm3202, %v3249, %v3739
        %v3741 = vsel %vm3205, %v3251, %v3740
        %v3742 = vsel %vm3208, %v3253, %v3741
        %v3743 = vrot.slane %v3708, 1
        %v3744 = vsel %vm3211, %v3743, %v3742
        %v3745 = vsel %vm3193, %v3257, %v3161
        %v3746 = vsel %vm3196, %v3259, %v3745
        %v3747 = vsel %vm3199, %v3261, %v3746
        %v3748 = vsel %vm3202, %v3263, %v3747
        %v3749 = vsel %vm3205, %v3265, %v3748
        %v3750 = vsel %vm3208, %v3267, %v3749
        %v3751 = vrot.slane %v3709, 1
        %v3752 = vsel %vm3211, %v3751, %v3750
        %v3753 = vsel %vm3193, %v3271, %v3169
        %v3754 = vsel %vm3196, %v3273, %v3753
        %v3755 = vsel %vm3199, %v3275, %v3754
        %v3756 = vsel %vm3202, %v3277, %v3755
        %v3757 = vsel %vm3205, %v3279, %v3756
        %v3758 = vsel %vm3208, %v3281, %v3757
        %v3759 = vrot.slane %v3710, 1
        %v3760 = vsel %vm3211, %v3759, %v3758
        %v3761 = vsel %vm3193, %v3285, %v3177
        %v3762 = vsel %vm3196, %v3287, %v3761
        %v3763 = vsel %vm3199, %v3289, %v3762
        %v3764 = vsel %vm3202, %v3291, %v3763
        %v3765 = vsel %vm3205, %v3293, %v3764
        %v3766 = vsel %vm3208, %v3295, %v3765
        %v3767 = vrot.slane %v3711, 1
        %v3768 = vsel %vm3211, %v3767, %v3766
        %v3769 = vsel %vm3193, %v3299, %v3185
        %v3770 = vsel %vm3196, %v3301, %v3769
        %v3771 = vsel %vm3199, %v3303, %v3770
        %v3772 = vsel %vm3202, %v3305, %v3771
        %v3773 = vsel %vm3205, %v3307, %v3772
        %v3774 = vsel %vm3208, %v3309, %v3773
        %v3775 = vrot.slane %v3712, 1
        %v3776 = vsel %vm3211, %v3775, %v3774
        %v3777 = vpack.c.b16 %v3728, %v3720
        %v3778 = vpack.c.b16 %v3744, %v3736
        %v3779 = vpack.c.b16 %v3760, %v3752
        %v3780 = vpack.c.b16 %v3776, %v3768
        %v3782 = vsel %vm3315, %v3777, 0
        %v3785 = vsel %vm3315, %v3778, 0
        %v3788 = vsel %vm3315, %v3779, 0
        %v3791 = vsel %vm3315, %v3780, 0
        %v3794 = vsel %vm3328, %v1069, 0
        %3796 = vmatprep.subr.bf16.mxu0 0
        %3797 = vmatpush1.bf16.msra.mxu0 %v3794
        %3798 = vmatprep.subr.bf16.mxu0 0
        %3799 = vmatpush1.bf16.msra.mxu0 0
        %3800 = vmatprep.subr.bf16.mxu0 0
        %3801 = vmatpush1.bf16.msra.mxu0 0
        %3802 = vmatprep.subr.bf16.mxu0 0
        %3803 = vmatpush1.bf16.msra.mxu0 0
        %3804 = vmatprep.subr.bf16.mxu0 0
        %3805 = vmatpush1.bf16.msra.mxu0 0
        %3806 = vmatprep.subr.bf16.mxu0 0
        %3807 = vmatpush1.bf16.msra.mxu0 0
        %3808 = vmatprep.subr.bf16.mxu0 0
        %3809 = vmatpush1.bf16.msra.mxu0 0
        %3810 = vmatprep.subr.bf16.mxu0 0
        %3811 = vmatpush1.bf16.msra.mxu0 0
        %3812 = vmatprep.subr.bf16.mxu0 0
        %3813 = vmatpush1.bf16.msra.mxu0 0
        %3814 = vmatprep.subr.bf16.mxu0 0
        %3815 = vmatpush1.bf16.msra.mxu0 0
        %3816 = vmatprep.subr.bf16.mxu0 0
        %3817 = vmatpush1.bf16.msra.mxu0 0
        %3818 = vmatprep.subr.bf16.mxu0 0
        %3819 = vmatpush1.bf16.msra.mxu0 0
        %3820 = vmatprep.subr.bf16.mxu0 0
        %3821 = vmatpush1.bf16.msra.mxu0 0
        %3822 = vmatprep.subr.bf16.mxu0 0
        %3823 = vmatpush1.bf16.msra.mxu0 0
        %3824 = vmatprep.subr.bf16.mxu0 0
        %3825 = vmatpush1.bf16.msra.mxu0 0
        %3826 = vmatprep.subr.bf16.mxu0 0
        %3827 = vmatpush1.bf16.msra.mxu0 0
        %3828 = vmatprep.mubr.bf16.mxu0 0
        %3829 = vmatmul.mubr.bf16.gmra.mrb[0].mxu0 %v3782
        %v3830 = vpop.f32.mrb[0].mxu0
        %v3831 = vadd.f32 0.0, %v3830
        %v3832 = vpop.f32.mrb[0].mxu0
        %v3833 = vpop.f32.mrb[0].mxu0
        %v3834 = vadd.f32 0.0, %v3833
        %v3835 = vpop.f32.mrb[0].mxu0
        %3836 = vmatprep.mubr.bf16.mxu0 0
        %3837 = vmatmul.mubr.bf16.gmra.mrb[0].mxu0 %v3785
        %v3838 = vpop.f32.mrb[0].mxu0
        %v3839 = vadd.f32 0.0, %v3838
        %v3840 = vpop.f32.mrb[0].mxu0
        %v3841 = vpop.f32.mrb[0].mxu0
        %v3842 = vadd.f32 0.0, %v3841
        %v3843 = vpop.f32.mrb[0].mxu0
        %3844 = vmatprep.mubr.bf16.mxu0 0
        %3845 = vmatmul.mubr.bf16.gmra.mrb[0].mxu0 %v3788
        %v3846 = vpop.f32.mrb[0].mxu0
        %v3847 = vadd.f32 0.0, %v3846
        %v3848 = vpop.f32.mrb[0].mxu0
        %v3849 = vpop.f32.mrb[0].mxu0
        %v3850 = vadd.f32 0.0, %v3849
        %v3851 = vpop.f32.mrb[0].mxu0
        %3852 = vmatprep.mubr.bf16.mxu0 0
        %3853 = vmatmul.mubr.bf16.gmra.mrb[0].mxu0 %v3791
        %v3854 = vpop.f32.mrb[0].mxu0
        %v3855 = vadd.f32 0.0, %v3854
        %v3856 = vpop.f32.mrb[0].mxu0
        %v3857 = vpop.f32.mrb[0].mxu0
        %v3858 = vadd.f32 0.0, %v3857
        %v3859 = vpop.f32.mrb[0].mxu0
        %3860 = vdwg.mxu0
        %v3861 = vadd.f32 %v3563, %v3831
        %v3862 = vadd.f32 %v3566, %v3834
        %v3863 = vadd.f32 %v3571, %v3839
        %v3864 = vadd.f32 %v3574, %v3842
        %v3865 = vadd.f32 %v3579, %v3847
        %v3866 = vadd.f32 %v3582, %v3850
        %v3867 = vadd.f32 %v3587, %v3855
        %v3868 = vadd.f32 %v3590, %v3858
        %v3870 = vunpack.c.l.s4 1966171168
        %v3871 = vunpack.c.0.s8 %v3870
        %v3872 = vlaneseq
        %v3873 = vshrl.u32 %v3872, 7
        %v3874 = vsub.s32 %v3871, %v3873
        %v3875 = vrot.slane %v1254, %v3874
        %v3877 = vunpack.c.l.s4 1966171168
        %v3878 = vunpack.c.0.s8 %v3877
        %v3879 = vlaneseq
        %v3880 = vshrl.u32 %v3879, 7
        %v3881 = vsub.s32 %v3878, %v3880
        %v3882 = vrot.slane %v3875, %v3881
        %v3884 = vunpack.c.l.s4 1966171168
        %v3885 = vunpack.c.0.s8 %v3884
        %v3886 = vlaneseq
        %v3887 = vshrl.u32 %v3886, 7
        %v3888 = vsub.s32 %v3885, %v3887
        %v3889 = vrot.slane %v1261, %v3888
        %v3891 = vunpack.c.l.s4 1966171168
        %v3892 = vunpack.c.0.s8 %v3891
        %v3893 = vlaneseq
        %v3894 = vshrl.u32 %v3893, 7
        %v3895 = vsub.s32 %v3892, %v3894
        %v3896 = vrot.slane %v3889, %v3895
        %v3898 = vunpack.c.l.s4 1966171168
        %v3899 = vunpack.c.0.s8 %v3898
        %v3900 = vlaneseq
        %v3901 = vshrl.u32 %v3900, 7
        %v3902 = vsub.s32 %v3899, %v3901
        %v3903 = vrot.slane %v1262, %v3902
        %v3905 = vunpack.c.l.s4 1966171168
        %v3906 = vunpack.c.0.s8 %v3905
        %v3907 = vlaneseq
        %v3908 = vshrl.u32 %v3907, 7
        %v3909 = vsub.s32 %v3906, %v3908
        %v3910 = vrot.slane %v3903, %v3909
        %v3912 = vunpack.c.l.s4 1966171168
        %v3913 = vunpack.c.0.s8 %v3912
        %v3914 = vlaneseq
        %v3915 = vshrl.u32 %v3914, 7
        %v3916 = vsub.s32 %v3913, %v3915
        %v3917 = vrot.slane %v1263, %v3916
        %v3919 = vunpack.c.l.s4 1966171168
        %v3920 = vunpack.c.0.s8 %v3919
        %v3921 = vlaneseq
        %v3922 = vshrl.u32 %v3921, 7
        %v3923 = vsub.s32 %v3920, %v3922
        %v3924 = vrot.slane %v3917, %v3923
        %v3926 = vunpack.c.l.s4 1966171168
        %v3927 = vunpack.c.0.s8 %v3926
        %v3928 = vlaneseq
        %v3929 = vshrl.u32 %v3928, 7
        %v3930 = vsub.s32 %v3927, %v3929
        %v3931 = vrot.slane %v1278, %v3930
        %v3933 = vunpack.c.l.s4 1966171168
        %v3934 = vunpack.c.0.s8 %v3933
        %v3935 = vlaneseq
        %v3936 = vshrl.u32 %v3935, 7
        %v3937 = vsub.s32 %v3934, %v3936
        %v3938 = vrot.slane %v3931, %v3937
        %v3940 = vunpack.c.l.s4 1966171168
        %v3941 = vunpack.c.0.s8 %v3940
        %v3942 = vlaneseq
        %v3943 = vshrl.u32 %v3942, 7
        %v3944 = vsub.s32 %v3941, %v3943
        %v3945 = vrot.slane %v1285, %v3944
        %v3947 = vunpack.c.l.s4 1966171168
        %v3948 = vunpack.c.0.s8 %v3947
        %v3949 = vlaneseq
        %v3950 = vshrl.u32 %v3949, 7
        %v3951 = vsub.s32 %v3948, %v3950
        %v3952 = vrot.slane %v3945, %v3951
        %v3954 = vunpack.c.l.s4 1966171168
        %v3955 = vunpack.c.0.s8 %v3954
        %v3956 = vlaneseq
        %v3957 = vshrl.u32 %v3956, 7
        %v3958 = vsub.s32 %v3955, %v3957
        %v3959 = vrot.slane %v1286, %v3958
        %v3961 = vunpack.c.l.s4 1966171168
        %v3962 = vunpack.c.0.s8 %v3961
        %v3963 = vlaneseq
        %v3964 = vshrl.u32 %v3963, 7
        %v3965 = vsub.s32 %v3962, %v3964
        %v3966 = vrot.slane %v3959, %v3965
        %v3968 = vunpack.c.l.s4 1966171168
        %v3969 = vunpack.c.0.s8 %v3968
        %v3970 = vlaneseq
        %v3971 = vshrl.u32 %v3970, 7
        %v3972 = vsub.s32 %v3969, %v3971
        %v3973 = vrot.slane %v1287, %v3972
        %v3975 = vunpack.c.l.s4 1966171168
        %v3976 = vunpack.c.0.s8 %v3975
        %v3977 = vlaneseq
        %v3978 = vshrl.u32 %v3977, 7
        %v3979 = vsub.s32 %v3976, %v3978
        %v3980 = vrot.slane %v3973, %v3979
        %v3982 = vunpack.c.l.s4 1966171168
        %v3983 = vunpack.c.0.s8 %v3982
        %v3984 = vlaneseq
        %v3985 = vshrl.u32 %v3984, 7
        %v3986 = vsub.s32 %v3983, %v3985
        %v3987 = vrot.slane %v1378, %v3986
        %v3989 = vunpack.c.l.s4 1966171168
        %v3990 = vunpack.c.0.s8 %v3989
        %v3991 = vlaneseq
        %v3992 = vshrl.u32 %v3991, 7
        %v3993 = vsub.s32 %v3990, %v3992
        %v3994 = vrot.slane %v3987, %v3993
        %v3996 = vunpack.c.l.s4 1966171168
        %v3997 = vunpack.c.0.s8 %v3996
        %v3998 = vlaneseq
        %v3999 = vshrl.u32 %v3998, 7
        %v4000 = vsub.s32 %v3997, %v3999
        %v4001 = vrot.slane %v1385, %v4000
        %v4003 = vunpack.c.l.s4 1966171168
        %v4004 = vunpack.c.0.s8 %v4003
        %v4005 = vlaneseq
        %v4006 = vshrl.u32 %v4005, 7
        %v4007 = vsub.s32 %v4004, %v4006
        %v4008 = vrot.slane %v4001, %v4007
        %v4010 = vunpack.c.l.s4 1966171168
        %v4011 = vunpack.c.0.s8 %v4010
        %v4012 = vlaneseq
        %v4013 = vshrl.u32 %v4012, 7
        %v4014 = vsub.s32 %v4011, %v4013
        %v4015 = vrot.slane %v1386, %v4014
        %v4017 = vunpack.c.l.s4 1966171168
        %v4018 = vunpack.c.0.s8 %v4017
        %v4019 = vlaneseq
        %v4020 = vshrl.u32 %v4019, 7
        %v4021 = vsub.s32 %v4018, %v4020
        %v4022 = vrot.slane %v4015, %v4021
        %v4024 = vunpack.c.l.s4 1966171168
        %v4025 = vunpack.c.0.s8 %v4024
        %v4026 = vlaneseq
        %v4027 = vshrl.u32 %v4026, 7
        %v4028 = vsub.s32 %v4025, %v4027
        %v4029 = vrot.slane %v1387, %v4028
        %v4031 = vunpack.c.l.s4 1966171168
        %v4032 = vunpack.c.0.s8 %v4031
        %v4033 = vlaneseq
        %v4034 = vshrl.u32 %v4033, 7
        %v4035 = vsub.s32 %v4032, %v4034
        %v4036 = vrot.slane %v4029, %v4035
        %v4038 = vunpack.c.l.s4 1966171168
        %v4039 = vunpack.c.0.s8 %v4038
        %v4040 = vlaneseq
        %v4041 = vshrl.u32 %v4040, 7
        %v4042 = vsub.s32 %v4039, %v4041
        %v4043 = vrot.slane %v1402, %v4042
        %v4045 = vunpack.c.l.s4 1966171168
        %v4046 = vunpack.c.0.s8 %v4045
        %v4047 = vlaneseq
        %v4048 = vshrl.u32 %v4047, 7
        %v4049 = vsub.s32 %v4046, %v4048
        %v4050 = vrot.slane %v4043, %v4049
        %v4052 = vunpack.c.l.s4 1966171168
        %v4053 = vunpack.c.0.s8 %v4052
        %v4054 = vlaneseq
        %v4055 = vshrl.u32 %v4054, 7
        %v4056 = vsub.s32 %v4053, %v4055
        %v4057 = vrot.slane %v1409, %v4056
        %v4059 = vunpack.c.l.s4 1966171168
        %v4060 = vunpack.c.0.s8 %v4059
        %v4061 = vlaneseq
        %v4062 = vshrl.u32 %v4061, 7
        %v4063 = vsub.s32 %v4060, %v4062
        %v4064 = vrot.slane %v4057, %v4063
        %v4066 = vunpack.c.l.s4 1966171168
        %v4067 = vunpack.c.0.s8 %v4066
        %v4068 = vlaneseq
        %v4069 = vshrl.u32 %v4068, 7
        %v4070 = vsub.s32 %v4067, %v4069
        %v4071 = vrot.slane %v1410, %v4070
        %v4073 = vunpack.c.l.s4 1966171168
        %v4074 = vunpack.c.0.s8 %v4073
        %v4075 = vlaneseq
        %v4076 = vshrl.u32 %v4075, 7
        %v4077 = vsub.s32 %v4074, %v4076
        %v4078 = vrot.slane %v4071, %v4077
        %v4080 = vunpack.c.l.s4 1966171168
        %v4081 = vunpack.c.0.s8 %v4080
        %v4082 = vlaneseq
        %v4083 = vshrl.u32 %v4082, 7
        %v4084 = vsub.s32 %v4081, %v4083
        %v4085 = vrot.slane %v1411, %v4084
        %v4087 = vunpack.c.l.s4 1966171168
        %v4088 = vunpack.c.0.s8 %v4087
        %v4089 = vlaneseq
        %v4090 = vshrl.u32 %v4089, 7
        %v4091 = vsub.s32 %v4088, %v4090
        %v4092 = vrot.slane %v4085, %v4091
        %v4094 = vunpack.c.l.s4 1966171168
        %v4095 = vunpack.c.0.s8 %v4094
        %v4096 = vlaneseq
        %v4097 = vshrl.u32 %v4096, 7
        %v4098 = vsub.s32 %v4095, %v4097
        %v4099 = vrot.slane %v1502, %v4098
        %v4101 = vunpack.c.l.s4 1966171168
        %v4102 = vunpack.c.0.s8 %v4101
        %v4103 = vlaneseq
        %v4104 = vshrl.u32 %v4103, 7
        %v4105 = vsub.s32 %v4102, %v4104
        %v4106 = vrot.slane %v4099, %v4105
        %v4108 = vunpack.c.l.s4 1966171168
        %v4109 = vunpack.c.0.s8 %v4108
        %v4110 = vlaneseq
        %v4111 = vshrl.u32 %v4110, 7
        %v4112 = vsub.s32 %v4109, %v4111
        %v4113 = vrot.slane %v1509, %v4112
        %v4115 = vunpack.c.l.s4 1966171168
        %v4116 = vunpack.c.0.s8 %v4115
        %v4117 = vlaneseq
        %v4118 = vshrl.u32 %v4117, 7
        %v4119 = vsub.s32 %v4116, %v4118
        %v4120 = vrot.slane %v4113, %v4119
        %v4122 = vunpack.c.l.s4 1966171168
        %v4123 = vunpack.c.0.s8 %v4122
        %v4124 = vlaneseq
        %v4125 = vshrl.u32 %v4124, 7
        %v4126 = vsub.s32 %v4123, %v4125
        %v4127 = vrot.slane %v1510, %v4126
        %v4129 = vunpack.c.l.s4 1966171168
        %v4130 = vunpack.c.0.s8 %v4129
        %v4131 = vlaneseq
        %v4132 = vshrl.u32 %v4131, 7
        %v4133 = vsub.s32 %v4130, %v4132
        %v4134 = vrot.slane %v4127, %v4133
        %v4136 = vunpack.c.l.s4 1966171168
        %v4137 = vunpack.c.0.s8 %v4136
        %v4138 = vlaneseq
        %v4139 = vshrl.u32 %v4138, 7
        %v4140 = vsub.s32 %v4137, %v4139
        %v4141 = vrot.slane %v1511, %v4140
        %v4143 = vunpack.c.l.s4 1966171168
        %v4144 = vunpack.c.0.s8 %v4143
        %v4145 = vlaneseq
        %v4146 = vshrl.u32 %v4145, 7
        %v4147 = vsub.s32 %v4144, %v4146
        %v4148 = vrot.slane %v4141, %v4147
        %v4150 = vunpack.c.l.s4 1966171168
        %v4151 = vunpack.c.0.s8 %v4150
        %v4152 = vlaneseq
        %v4153 = vshrl.u32 %v4152, 7
        %v4154 = vsub.s32 %v4151, %v4153
        %v4155 = vrot.slane %v1526, %v4154
        %v4157 = vunpack.c.l.s4 1966171168
        %v4158 = vunpack.c.0.s8 %v4157
        %v4159 = vlaneseq
        %v4160 = vshrl.u32 %v4159, 7
        %v4161 = vsub.s32 %v4158, %v4160
        %v4162 = vrot.slane %v4155, %v4161
        %v4164 = vunpack.c.l.s4 1966171168
        %v4165 = vunpack.c.0.s8 %v4164
        %v4166 = vlaneseq
        %v4167 = vshrl.u32 %v4166, 7
        %v4168 = vsub.s32 %v4165, %v4167
        %v4169 = vrot.slane %v1533, %v4168
        %v4171 = vunpack.c.l.s4 1966171168
        %v4172 = vunpack.c.0.s8 %v4171
        %v4173 = vlaneseq
        %v4174 = vshrl.u32 %v4173, 7
        %v4175 = vsub.s32 %v4172, %v4174
        %v4176 = vrot.slane %v4169, %v4175
        %v4178 = vunpack.c.l.s4 1966171168
        %v4179 = vunpack.c.0.s8 %v4178
        %v4180 = vlaneseq
        %v4181 = vshrl.u32 %v4180, 7
        %v4182 = vsub.s32 %v4179, %v4181
        %v4183 = vrot.slane %v1534, %v4182
        %v4185 = vunpack.c.l.s4 1966171168
        %v4186 = vunpack.c.0.s8 %v4185
        %v4187 = vlaneseq
        %v4188 = vshrl.u32 %v4187, 7
        %v4189 = vsub.s32 %v4186, %v4188
        %v4190 = vrot.slane %v4183, %v4189
        %v4192 = vunpack.c.l.s4 1966171168
        %v4193 = vunpack.c.0.s8 %v4192
        %v4194 = vlaneseq
        %v4195 = vshrl.u32 %v4194, 7
        %v4196 = vsub.s32 %v4193, %v4195
        %v4197 = vrot.slane %v1535, %v4196
        %v4199 = vunpack.c.l.s4 1966171168
        %v4200 = vunpack.c.0.s8 %v4199
        %v4201 = vlaneseq
        %v4202 = vshrl.u32 %v4201, 7
        %v4203 = vsub.s32 %v4200, %v4202
        %v4204 = vrot.slane %v4197, %v4203
        %v4206 = vunpack.c.l.s4 1966171168
        %v4207 = vunpack.c.0.s8 %v4206
        %v4208 = vlaneseq
        %v4209 = vshrl.u32 %v4208, 7
        %v4210 = vsub.s32 %v4207, %v4209
        %v4211 = vrot.slane %v1626, %v4210
        %v4213 = vunpack.c.l.s4 1966171168
        %v4214 = vunpack.c.0.s8 %v4213
        %v4215 = vlaneseq
        %v4216 = vshrl.u32 %v4215, 7
        %v4217 = vsub.s32 %v4214, %v4216
        %v4218 = vrot.slane %v4211, %v4217
        %v4220 = vunpack.c.l.s4 1966171168
        %v4221 = vunpack.c.0.s8 %v4220
        %v4222 = vlaneseq
        %v4223 = vshrl.u32 %v4222, 7
        %v4224 = vsub.s32 %v4221, %v4223
        %v4225 = vrot.slane %v1633, %v4224
        %v4227 = vunpack.c.l.s4 1966171168
        %v4228 = vunpack.c.0.s8 %v4227
        %v4229 = vlaneseq
        %v4230 = vshrl.u32 %v4229, 7
        %v4231 = vsub.s32 %v4228, %v4230
        %v4232 = vrot.slane %v4225, %v4231
        %v4234 = vunpack.c.l.s4 1966171168
        %v4235 = vunpack.c.0.s8 %v4234
        %v4236 = vlaneseq
        %v4237 = vshrl.u32 %v4236, 7
        %v4238 = vsub.s32 %v4235, %v4237
        %v4239 = vrot.slane %v1634, %v4238
        %v4241 = vunpack.c.l.s4 1966171168
        %v4242 = vunpack.c.0.s8 %v4241
        %v4243 = vlaneseq
        %v4244 = vshrl.u32 %v4243, 7
        %v4245 = vsub.s32 %v4242, %v4244
        %v4246 = vrot.slane %v4239, %v4245
        %v4248 = vunpack.c.l.s4 1966171168
        %v4249 = vunpack.c.0.s8 %v4248
        %v4250 = vlaneseq
        %v4251 = vshrl.u32 %v4250, 7
        %v4252 = vsub.s32 %v4249, %v4251
        %v4253 = vrot.slane %v1635, %v4252
        %v4255 = vunpack.c.l.s4 1966171168
        %v4256 = vunpack.c.0.s8 %v4255
        %v4257 = vlaneseq
        %v4258 = vshrl.u32 %v4257, 7
        %v4259 = vsub.s32 %v4256, %v4258
        %v4260 = vrot.slane %v4253, %v4259
        %v4262 = vunpack.c.l.s4 1966171168
        %v4263 = vunpack.c.0.s8 %v4262
        %v4264 = vlaneseq
        %v4265 = vshrl.u32 %v4264, 7
        %v4266 = vsub.s32 %v4263, %v4265
        %v4267 = vrot.slane %v1650, %v4266
        %v4269 = vunpack.c.l.s4 1966171168
        %v4270 = vunpack.c.0.s8 %v4269
        %v4271 = vlaneseq
        %v4272 = vshrl.u32 %v4271, 7
        %v4273 = vsub.s32 %v4270, %v4272
        %v4274 = vrot.slane %v4267, %v4273
        %v4276 = vunpack.c.l.s4 1966171168
        %v4277 = vunpack.c.0.s8 %v4276
        %v4278 = vlaneseq
        %v4279 = vshrl.u32 %v4278, 7
        %v4280 = vsub.s32 %v4277, %v4279
        %v4281 = vrot.slane %v1657, %v4280
        %v4283 = vunpack.c.l.s4 1966171168
        %v4284 = vunpack.c.0.s8 %v4283
        %v4285 = vlaneseq
        %v4286 = vshrl.u32 %v4285, 7
        %v4287 = vsub.s32 %v4284, %v4286
        %v4288 = vrot.slane %v4281, %v4287
        %v4290 = vunpack.c.l.s4 1966171168
        %v4291 = vunpack.c.0.s8 %v4290
        %v4292 = vlaneseq
        %v4293 = vshrl.u32 %v4292, 7
        %v4294 = vsub.s32 %v4291, %v4293
        %v4295 = vrot.slane %v1658, %v4294
        %v4297 = vunpack.c.l.s4 1966171168
        %v4298 = vunpack.c.0.s8 %v4297
        %v4299 = vlaneseq
        %v4300 = vshrl.u32 %v4299, 7
        %v4301 = vsub.s32 %v4298, %v4300
        %v4302 = vrot.slane %v4295, %v4301
        %v4304 = vunpack.c.l.s4 1966171168
        %v4305 = vunpack.c.0.s8 %v4304
        %v4306 = vlaneseq
        %v4307 = vshrl.u32 %v4306, 7
        %v4308 = vsub.s32 %v4305, %v4307
        %v4309 = vrot.slane %v1659, %v4308
        %v4311 = vunpack.c.l.s4 1966171168
        %v4312 = vunpack.c.0.s8 %v4311
        %v4313 = vlaneseq
        %v4314 = vshrl.u32 %v4313, 7
        %v4315 = vsub.s32 %v4312, %v4314
        %v4316 = vrot.slane %v4309, %v4315
        %v4318 = vunpack.c.l.s4 1966171168
        %v4319 = vunpack.c.0.s8 %v4318
        %v4320 = vlaneseq
        %v4321 = vshrl.u32 %v4320, 7
        %v4322 = vsub.s32 %v4319, %v4321
        %v4323 = vrot.slane %v1750, %v4322
        %v4325 = vunpack.c.l.s4 1966171168
        %v4326 = vunpack.c.0.s8 %v4325
        %v4327 = vlaneseq
        %v4328 = vshrl.u32 %v4327, 7
        %v4329 = vsub.s32 %v4326, %v4328
        %v4330 = vrot.slane %v4323, %v4329
        %v4332 = vunpack.c.l.s4 1966171168
        %v4333 = vunpack.c.0.s8 %v4332
        %v4334 = vlaneseq
        %v4335 = vshrl.u32 %v4334, 7
        %v4336 = vsub.s32 %v4333, %v4335
        %v4337 = vrot.slane %v1757, %v4336
        %v4339 = vunpack.c.l.s4 1966171168
        %v4340 = vunpack.c.0.s8 %v4339
        %v4341 = vlaneseq
        %v4342 = vshrl.u32 %v4341, 7
        %v4343 = vsub.s32 %v4340, %v4342
        %v4344 = vrot.slane %v4337, %v4343
        %v4346 = vunpack.c.l.s4 1966171168
        %v4347 = vunpack.c.0.s8 %v4346
        %v4348 = vlaneseq
        %v4349 = vshrl.u32 %v4348, 7
        %v4350 = vsub.s32 %v4347, %v4349
        %v4351 = vrot.slane %v1758, %v4350
        %v4353 = vunpack.c.l.s4 1966171168
        %v4354 = vunpack.c.0.s8 %v4353
        %v4355 = vlaneseq
        %v4356 = vshrl.u32 %v4355, 7
        %v4357 = vsub.s32 %v4354, %v4356
        %v4358 = vrot.slane %v4351, %v4357
        %v4360 = vunpack.c.l.s4 1966171168
        %v4361 = vunpack.c.0.s8 %v4360
        %v4362 = vlaneseq
        %v4363 = vshrl.u32 %v4362, 7
        %v4364 = vsub.s32 %v4361, %v4363
        %v4365 = vrot.slane %v1759, %v4364
        %v4367 = vunpack.c.l.s4 1966171168
        %v4368 = vunpack.c.0.s8 %v4367
        %v4369 = vlaneseq
        %v4370 = vshrl.u32 %v4369, 7
        %v4371 = vsub.s32 %v4368, %v4370
        %v4372 = vrot.slane %v4365, %v4371
        %v4374 = vunpack.c.l.s4 1966171168
        %v4375 = vunpack.c.0.s8 %v4374
        %v4376 = vlaneseq
        %v4377 = vshrl.u32 %v4376, 7
        %v4378 = vsub.s32 %v4375, %v4377
        %v4379 = vrot.slane %v1774, %v4378
        %v4381 = vunpack.c.l.s4 1966171168
        %v4382 = vunpack.c.0.s8 %v4381
        %v4383 = vlaneseq
        %v4384 = vshrl.u32 %v4383, 7
        %v4385 = vsub.s32 %v4382, %v4384
        %v4386 = vrot.slane %v4379, %v4385
        %v4388 = vunpack.c.l.s4 1966171168
        %v4389 = vunpack.c.0.s8 %v4388
        %v4390 = vlaneseq
        %v4391 = vshrl.u32 %v4390, 7
        %v4392 = vsub.s32 %v4389, %v4391
        %v4393 = vrot.slane %v1781, %v4392
        %v4395 = vunpack.c.l.s4 1966171168
        %v4396 = vunpack.c.0.s8 %v4395
        %v4397 = vlaneseq
        %v4398 = vshrl.u32 %v4397, 7
        %v4399 = vsub.s32 %v4396, %v4398
        %v4400 = vrot.slane %v4393, %v4399
        %v4402 = vunpack.c.l.s4 1966171168
        %v4403 = vunpack.c.0.s8 %v4402
        %v4404 = vlaneseq
        %v4405 = vshrl.u32 %v4404, 7
        %v4406 = vsub.s32 %v4403, %v4405
        %v4407 = vrot.slane %v1782, %v4406
        %v4409 = vunpack.c.l.s4 1966171168
        %v4410 = vunpack.c.0.s8 %v4409
        %v4411 = vlaneseq
        %v4412 = vshrl.u32 %v4411, 7
        %v4413 = vsub.s32 %v4410, %v4412
        %v4414 = vrot.slane %v4407, %v4413
        %v4416 = vunpack.c.l.s4 1966171168
        %v4417 = vunpack.c.0.s8 %v4416
        %v4418 = vlaneseq
        %v4419 = vshrl.u32 %v4418, 7
        %v4420 = vsub.s32 %v4417, %v4419
        %v4421 = vrot.slane %v1783, %v4420
        %v4423 = vunpack.c.l.s4 1966171168
        %v4424 = vunpack.c.0.s8 %v4423
        %v4425 = vlaneseq
        %v4426 = vshrl.u32 %v4425, 7
        %v4427 = vsub.s32 %v4424, %v4426
        %v4428 = vrot.slane %v4421, %v4427
        %v4430 = vunpack.c.l.s4 1966171168
        %v4431 = vunpack.c.0.s8 %v4430
        %v4432 = vlaneseq
        %v4433 = vshrl.u32 %v4432, 7
        %v4434 = vsub.s32 %v4431, %v4433
        %v4435 = vrot.slane %v1874, %v4434
        %v4437 = vunpack.c.l.s4 1966171168
        %v4438 = vunpack.c.0.s8 %v4437
        %v4439 = vlaneseq
        %v4440 = vshrl.u32 %v4439, 7
        %v4441 = vsub.s32 %v4438, %v4440
        %v4442 = vrot.slane %v4435, %v4441
        %v4444 = vunpack.c.l.s4 1966171168
        %v4445 = vunpack.c.0.s8 %v4444
        %v4446 = vlaneseq
        %v4447 = vshrl.u32 %v4446, 7
        %v4448 = vsub.s32 %v4445, %v4447
        %v4449 = vrot.slane %v1881, %v4448
        %v4451 = vunpack.c.l.s4 1966171168
        %v4452 = vunpack.c.0.s8 %v4451
        %v4453 = vlaneseq
        %v4454 = vshrl.u32 %v4453, 7
        %v4455 = vsub.s32 %v4452, %v4454
        %v4456 = vrot.slane %v4449, %v4455
        %v4458 = vunpack.c.l.s4 1966171168
        %v4459 = vunpack.c.0.s8 %v4458
        %v4460 = vlaneseq
        %v4461 = vshrl.u32 %v4460, 7
        %v4462 = vsub.s32 %v4459, %v4461
        %v4463 = vrot.slane %v1882, %v4462
        %v4465 = vunpack.c.l.s4 1966171168
        %v4466 = vunpack.c.0.s8 %v4465
        %v4467 = vlaneseq
        %v4468 = vshrl.u32 %v4467, 7
        %v4469 = vsub.s32 %v4466, %v4468
        %v4470 = vrot.slane %v4463, %v4469
        %v4472 = vunpack.c.l.s4 1966171168
        %v4473 = vunpack.c.0.s8 %v4472
        %v4474 = vlaneseq
        %v4475 = vshrl.u32 %v4474, 7
        %v4476 = vsub.s32 %v4473, %v4475
        %v4477 = vrot.slane %v1883, %v4476
        %v4479 = vunpack.c.l.s4 1966171168
        %v4480 = vunpack.c.0.s8 %v4479
        %v4481 = vlaneseq
        %v4482 = vshrl.u32 %v4481, 7
        %v4483 = vsub.s32 %v4480, %v4482
        %v4484 = vrot.slane %v4477, %v4483
        %v4486 = vunpack.c.l.s4 1966171168
        %v4487 = vunpack.c.0.s8 %v4486
        %v4488 = vlaneseq
        %v4489 = vshrl.u32 %v4488, 7
        %v4490 = vsub.s32 %v4487, %v4489
        %v4491 = vrot.slane %v1898, %v4490
        %v4493 = vunpack.c.l.s4 1966171168
        %v4494 = vunpack.c.0.s8 %v4493
        %v4495 = vlaneseq
        %v4496 = vshrl.u32 %v4495, 7
        %v4497 = vsub.s32 %v4494, %v4496
        %v4498 = vrot.slane %v4491, %v4497
        %v4500 = vunpack.c.l.s4 1966171168
        %v4501 = vunpack.c.0.s8 %v4500
        %v4502 = vlaneseq
        %v4503 = vshrl.u32 %v4502, 7
        %v4504 = vsub.s32 %v4501, %v4503
        %v4505 = vrot.slane %v1905, %v4504
        %v4507 = vunpack.c.l.s4 1966171168
        %v4508 = vunpack.c.0.s8 %v4507
        %v4509 = vlaneseq
        %v4510 = vshrl.u32 %v4509, 7
        %v4511 = vsub.s32 %v4508, %v4510
        %v4512 = vrot.slane %v4505, %v4511
        %v4514 = vunpack.c.l.s4 1966171168
        %v4515 = vunpack.c.0.s8 %v4514
        %v4516 = vlaneseq
        %v4517 = vshrl.u32 %v4516, 7
        %v4518 = vsub.s32 %v4515, %v4517
        %v4519 = vrot.slane %v1906, %v4518
        %v4521 = vunpack.c.l.s4 1966171168
        %v4522 = vunpack.c.0.s8 %v4521
        %v4523 = vlaneseq
        %v4524 = vshrl.u32 %v4523, 7
        %v4525 = vsub.s32 %v4522, %v4524
        %v4526 = vrot.slane %v4519, %v4525
        %v4528 = vunpack.c.l.s4 1966171168
        %v4529 = vunpack.c.0.s8 %v4528
        %v4530 = vlaneseq
        %v4531 = vshrl.u32 %v4530, 7
        %v4532 = vsub.s32 %v4529, %v4531
        %v4533 = vrot.slane %v1907, %v4532
        %v4535 = vunpack.c.l.s4 1966171168
        %v4536 = vunpack.c.0.s8 %v4535
        %v4537 = vlaneseq
        %v4538 = vshrl.u32 %v4537, 7
        %v4539 = vsub.s32 %v4536, %v4538
        %v4540 = vrot.slane %v4533, %v4539
        %v4542 = vunpack.c.l.s4 1966171168
        %v4543 = vunpack.c.0.s8 %v4542
        %v4544 = vlaneseq
        %v4545 = vshrl.u32 %v4544, 7
        %v4546 = vsub.s32 %v4543, %v4545
        %v4547 = vrot.slane %v1998, %v4546
        %v4549 = vunpack.c.l.s4 1966171168
        %v4550 = vunpack.c.0.s8 %v4549
        %v4551 = vlaneseq
        %v4552 = vshrl.u32 %v4551, 7
        %v4553 = vsub.s32 %v4550, %v4552
        %v4554 = vrot.slane %v4547, %v4553
        %v4556 = vunpack.c.l.s4 1966171168
        %v4557 = vunpack.c.0.s8 %v4556
        %v4558 = vlaneseq
        %v4559 = vshrl.u32 %v4558, 7
        %v4560 = vsub.s32 %v4557, %v4559
        %v4561 = vrot.slane %v2005, %v4560
        %v4563 = vunpack.c.l.s4 1966171168
        %v4564 = vunpack.c.0.s8 %v4563
        %v4565 = vlaneseq
        %v4566 = vshrl.u32 %v4565, 7
        %v4567 = vsub.s32 %v4564, %v4566
        %v4568 = vrot.slane %v4561, %v4567
        %v4570 = vunpack.c.l.s4 1966171168
        %v4571 = vunpack.c.0.s8 %v4570
        %v4572 = vlaneseq
        %v4573 = vshrl.u32 %v4572, 7
        %v4574 = vsub.s32 %v4571, %v4573
        %v4575 = vrot.slane %v2006, %v4574
        %v4577 = vunpack.c.l.s4 1966171168
        %v4578 = vunpack.c.0.s8 %v4577
        %v4579 = vlaneseq
        %v4580 = vshrl.u32 %v4579, 7
        %v4581 = vsub.s32 %v4578, %v4580
        %v4582 = vrot.slane %v4575, %v4581
        %v4584 = vunpack.c.l.s4 1966171168
        %v4585 = vunpack.c.0.s8 %v4584
        %v4586 = vlaneseq
        %v4587 = vshrl.u32 %v4586, 7
        %v4588 = vsub.s32 %v4585, %v4587
        %v4589 = vrot.slane %v2007, %v4588
        %v4591 = vunpack.c.l.s4 1966171168
        %v4592 = vunpack.c.0.s8 %v4591
        %v4593 = vlaneseq
        %v4594 = vshrl.u32 %v4593, 7
        %v4595 = vsub.s32 %v4592, %v4594
        %v4596 = vrot.slane %v4589, %v4595
        %v4598 = vunpack.c.l.s4 1966171168
        %v4599 = vunpack.c.0.s8 %v4598
        %v4600 = vlaneseq
        %v4601 = vshrl.u32 %v4600, 7
        %v4602 = vsub.s32 %v4599, %v4601
        %v4603 = vrot.slane %v2022, %v4602
        %v4605 = vunpack.c.l.s4 1966171168
        %v4606 = vunpack.c.0.s8 %v4605
        %v4607 = vlaneseq
        %v4608 = vshrl.u32 %v4607, 7
        %v4609 = vsub.s32 %v4606, %v4608
        %v4610 = vrot.slane %v4603, %v4609
        %v4612 = vunpack.c.l.s4 1966171168
        %v4613 = vunpack.c.0.s8 %v4612
        %v4614 = vlaneseq
        %v4615 = vshrl.u32 %v4614, 7
        %v4616 = vsub.s32 %v4613, %v4615
        %v4617 = vrot.slane %v2029, %v4616
        %v4619 = vunpack.c.l.s4 1966171168
        %v4620 = vunpack.c.0.s8 %v4619
        %v4621 = vlaneseq
        %v4622 = vshrl.u32 %v4621, 7
        %v4623 = vsub.s32 %v4620, %v4622
        %v4624 = vrot.slane %v4617, %v4623
        %v4626 = vunpack.c.l.s4 1966171168
        %v4627 = vunpack.c.0.s8 %v4626
        %v4628 = vlaneseq
        %v4629 = vshrl.u32 %v4628, 7
        %v4630 = vsub.s32 %v4627, %v4629
        %v4631 = vrot.slane %v2030, %v4630
        %v4633 = vunpack.c.l.s4 1966171168
        %v4634 = vunpack.c.0.s8 %v4633
        %v4635 = vlaneseq
        %v4636 = vshrl.u32 %v4635, 7
        %v4637 = vsub.s32 %v4634, %v4636
        %v4638 = vrot.slane %v4631, %v4637
        %v4640 = vunpack.c.l.s4 1966171168
        %v4641 = vunpack.c.0.s8 %v4640
        %v4642 = vlaneseq
        %v4643 = vshrl.u32 %v4642, 7
        %v4644 = vsub.s32 %v4641, %v4643
        %v4645 = vrot.slane %v2031, %v4644
        %v4647 = vunpack.c.l.s4 1966171168
        %v4648 = vunpack.c.0.s8 %v4647
        %v4649 = vlaneseq
        %v4650 = vshrl.u32 %v4649, 7
        %v4651 = vsub.s32 %v4648, %v4650
        %v4652 = vrot.slane %v4645, %v4651
        %v4654 = vunpack.c.l.s4 1966171168
        %v4655 = vunpack.c.0.s8 %v4654
        %v4656 = vlaneseq
        %v4657 = vshrl.u32 %v4656, 7
        %v4658 = vsub.s32 %v4655, %v4657
        %v4659 = vrot.slane %v2122, %v4658
        %v4661 = vunpack.c.l.s4 1966171168
        %v4662 = vunpack.c.0.s8 %v4661
        %v4663 = vlaneseq
        %v4664 = vshrl.u32 %v4663, 7
        %v4665 = vsub.s32 %v4662, %v4664
        %v4666 = vrot.slane %v4659, %v4665
        %v4668 = vunpack.c.l.s4 1966171168
        %v4669 = vunpack.c.0.s8 %v4668
        %v4670 = vlaneseq
        %v4671 = vshrl.u32 %v4670, 7
        %v4672 = vsub.s32 %v4669, %v4671
        %v4673 = vrot.slane %v2129, %v4672
        %v4675 = vunpack.c.l.s4 1966171168
        %v4676 = vunpack.c.0.s8 %v4675
        %v4677 = vlaneseq
        %v4678 = vshrl.u32 %v4677, 7
        %v4679 = vsub.s32 %v4676, %v4678
        %v4680 = vrot.slane %v4673, %v4679
        %v4682 = vunpack.c.l.s4 1966171168
        %v4683 = vunpack.c.0.s8 %v4682
        %v4684 = vlaneseq
        %v4685 = vshrl.u32 %v4684, 7
        %v4686 = vsub.s32 %v4683, %v4685
        %v4687 = vrot.slane %v2130, %v4686
        %v4689 = vunpack.c.l.s4 1966171168
        %v4690 = vunpack.c.0.s8 %v4689
        %v4691 = vlaneseq
        %v4692 = vshrl.u32 %v4691, 7
        %v4693 = vsub.s32 %v4690, %v4692
        %v4694 = vrot.slane %v4687, %v4693
        %v4696 = vunpack.c.l.s4 1966171168
        %v4697 = vunpack.c.0.s8 %v4696
        %v4698 = vlaneseq
        %v4699 = vshrl.u32 %v4698, 7
        %v4700 = vsub.s32 %v4697, %v4699
        %v4701 = vrot.slane %v2131, %v4700
        %v4703 = vunpack.c.l.s4 1966171168
        %v4704 = vunpack.c.0.s8 %v4703
        %v4705 = vlaneseq
        %v4706 = vshrl.u32 %v4705, 7
        %v4707 = vsub.s32 %v4704, %v4706
        %v4708 = vrot.slane %v4701, %v4707
        %v4710 = vunpack.c.l.s4 1966171168
        %v4711 = vunpack.c.0.s8 %v4710
        %v4712 = vlaneseq
        %v4713 = vshrl.u32 %v4712, 7
        %v4714 = vsub.s32 %v4711, %v4713
        %v4715 = vrot.slane %v2146, %v4714
        %v4717 = vunpack.c.l.s4 1966171168
        %v4718 = vunpack.c.0.s8 %v4717
        %v4719 = vlaneseq
        %v4720 = vshrl.u32 %v4719, 7
        %v4721 = vsub.s32 %v4718, %v4720
        %v4722 = vrot.slane %v4715, %v4721
        %v4724 = vunpack.c.l.s4 1966171168
        %v4725 = vunpack.c.0.s8 %v4724
        %v4726 = vlaneseq
        %v4727 = vshrl.u32 %v4726, 7
        %v4728 = vsub.s32 %v4725, %v4727
        %v4729 = vrot.slane %v2153, %v4728
        %v4731 = vunpack.c.l.s4 1966171168
        %v4732 = vunpack.c.0.s8 %v4731
        %v4733 = vlaneseq
        %v4734 = vshrl.u32 %v4733, 7
        %v4735 = vsub.s32 %v4732, %v4734
        %v4736 = vrot.slane %v4729, %v4735
        %v4738 = vunpack.c.l.s4 1966171168
        %v4739 = vunpack.c.0.s8 %v4738
        %v4740 = vlaneseq
        %v4741 = vshrl.u32 %v4740, 7
        %v4742 = vsub.s32 %v4739, %v4741
        %v4743 = vrot.slane %v2154, %v4742
        %v4745 = vunpack.c.l.s4 1966171168
        %v4746 = vunpack.c.0.s8 %v4745
        %v4747 = vlaneseq
        %v4748 = vshrl.u32 %v4747, 7
        %v4749 = vsub.s32 %v4746, %v4748
        %v4750 = vrot.slane %v4743, %v4749
        %v4752 = vunpack.c.l.s4 1966171168
        %v4753 = vunpack.c.0.s8 %v4752
        %v4754 = vlaneseq
        %v4755 = vshrl.u32 %v4754, 7
        %v4756 = vsub.s32 %v4753, %v4755
        %v4757 = vrot.slane %v2155, %v4756
        %v4759 = vunpack.c.l.s4 1966171168
        %v4760 = vunpack.c.0.s8 %v4759
        %v4761 = vlaneseq
        %v4762 = vshrl.u32 %v4761, 7
        %v4763 = vsub.s32 %v4760, %v4762
        %v4764 = vrot.slane %v4757, %v4763
        %v4765 = vunpack.c.l.b16 %v3882
        %v4766 = vunpack.c.l.b16 %v3896
        %v4767 = vunpack.c.l.b16 %v3910
        %v4768 = vunpack.c.l.b16 %v3924
        %v4769 = vunpack.c.l.b16 %v3938
        %v4770 = vunpack.c.l.b16 %v3952
        %v4771 = vunpack.c.l.b16 %v3966
        %v4772 = vunpack.c.l.b16 %v3980
        %v4773 = vunpack.c.l.b16 %v3994
        %v4774 = vunpack.c.l.b16 %v4008
        %v4775 = vunpack.c.l.b16 %v4022
        %v4776 = vunpack.c.l.b16 %v4036
        %v4777 = vunpack.c.l.b16 %v4050
        %v4778 = vunpack.c.l.b16 %v4064
        %v4779 = vunpack.c.l.b16 %v4078
        %v4780 = vunpack.c.l.b16 %v4092
        %v4781 = vunpack.c.l.b16 %v4106
        %v4782 = vunpack.c.l.b16 %v4120
        %v4783 = vunpack.c.l.b16 %v4134
        %v4784 = vunpack.c.l.b16 %v4148
        %v4785 = vunpack.c.l.b16 %v4162
        %v4786 = vunpack.c.l.b16 %v4176
        %v4787 = vunpack.c.l.b16 %v4190
        %v4788 = vunpack.c.l.b16 %v4204
        %v4789 = vunpack.c.l.b16 %v4218
        %v4790 = vunpack.c.l.b16 %v4232
        %v4791 = vunpack.c.l.b16 %v4246
        %v4792 = vunpack.c.l.b16 %v4260
        %v4793 = vunpack.c.l.b16 %v4274
        %v4794 = vunpack.c.l.b16 %v4288
        %v4795 = vunpack.c.l.b16 %v4302
        %v4796 = vunpack.c.l.b16 %v4316
        %v4797 = vunpack.c.l.b16 %v4330
        %v4798 = vunpack.c.l.b16 %v4344
        %v4799 = vunpack.c.l.b16 %v4358
        %v4800 = vunpack.c.l.b16 %v4372
        %v4801 = vunpack.c.l.b16 %v4386
        %v4802 = vunpack.c.l.b16 %v4400
        %v4803 = vunpack.c.l.b16 %v4414
        %v4804 = vunpack.c.l.b16 %v4428
        %v4805 = vunpack.c.l.b16 %v4442
        %v4806 = vunpack.c.l.b16 %v4456
        %v4807 = vunpack.c.l.b16 %v4470
        %v4808 = vunpack.c.l.b16 %v4484
        %v4809 = vunpack.c.l.b16 %v4498
        %v4810 = vunpack.c.l.b16 %v4512
        %v4811 = vunpack.c.l.b16 %v4526
        %v4812 = vunpack.c.l.b16 %v4540
        %v4813 = vunpack.c.l.b16 %v4554
        %v4814 = vunpack.c.l.b16 %v4568
        %v4815 = vunpack.c.l.b16 %v4582
        %v4816 = vunpack.c.l.b16 %v4596
        %v4817 = vunpack.c.l.b16 %v4610
        %v4818 = vunpack.c.l.b16 %v4624
        %v4819 = vunpack.c.l.b16 %v4638
        %v4820 = vunpack.c.l.b16 %v4652
        %v4821 = vunpack.c.l.b16 %v4666
        %v4822 = vunpack.c.l.b16 %v4680
        %v4823 = vunpack.c.l.b16 %v4694
        %v4824 = vunpack.c.l.b16 %v4708
        %v4825 = vunpack.c.l.b16 %v4722
        %v4826 = vunpack.c.l.b16 %v4736
        %v4827 = vunpack.c.l.b16 %v4750
        %v4828 = vunpack.c.l.b16 %v4764
        %v4829 = vrot.slane %v4766, 7
        %v4830 = vsel %vm3193, %v4829, %v4765
        %v4831 = vrot.slane %v4767, 6
        %v4832 = vsel %vm3196, %v4831, %v4830
        %v4833 = vrot.slane %v4768, 5
        %v4834 = vsel %vm3199, %v4833, %v4832
        %v4835 = vrot.slane %v4769, 4
        %v4836 = vsel %vm3202, %v4835, %v4834
        %v4837 = vrot.slane %v4770, 3
        %v4838 = vsel %vm3205, %v4837, %v4836
        %v4839 = vrot.slane %v4771, 2
        %v4840 = vsel %vm3208, %v4839, %v4838
        %v4841 = vrot.slane %v4772, 1
        %v4842 = vsel %vm3211, %v4841, %v4840
        %v4843 = vrot.slane %v4774, 7
        %v4844 = vsel %vm3193, %v4843, %v4773
        %v4845 = vrot.slane %v4775, 6
        %v4846 = vsel %vm3196, %v4845, %v4844
        %v4847 = vrot.slane %v4776, 5
        %v4848 = vsel %vm3199, %v4847, %v4846
        %v4849 = vrot.slane %v4777, 4
        %v4850 = vsel %vm3202, %v4849, %v4848
        %v4851 = vrot.slane %v4778, 3
        %v4852 = vsel %vm3205, %v4851, %v4850
        %v4853 = vrot.slane %v4779, 2
        %v4854 = vsel %vm3208, %v4853, %v4852
        %v4855 = vrot.slane %v4780, 1
        %v4856 = vsel %vm3211, %v4855, %v4854
        %v4857 = vrot.slane %v4782, 7
        %v4858 = vsel %vm3193, %v4857, %v4781
        %v4859 = vrot.slane %v4783, 6
        %v4860 = vsel %vm3196, %v4859, %v4858
        %v4861 = vrot.slane %v4784, 5
        %v4862 = vsel %vm3199, %v4861, %v4860
        %v4863 = vrot.slane %v4785, 4
        %v4864 = vsel %vm3202, %v4863, %v4862
        %v4865 = vrot.slane %v4786, 3
        %v4866 = vsel %vm3205, %v4865, %v4864
        %v4867 = vrot.slane %v4787, 2
        %v4868 = vsel %vm3208, %v4867, %v4866
        %v4869 = vrot.slane %v4788, 1
        %v4870 = vsel %vm3211, %v4869, %v4868
        %v4871 = vrot.slane %v4790, 7
        %v4872 = vsel %vm3193, %v4871, %v4789
        %v4873 = vrot.slane %v4791, 6
        %v4874 = vsel %vm3196, %v4873, %v4872
        %v4875 = vrot.slane %v4792, 5
        %v4876 = vsel %vm3199, %v4875, %v4874
        %v4877 = vrot.slane %v4793, 4
        %v4878 = vsel %vm3202, %v4877, %v4876
        %v4879 = vrot.slane %v4794, 3
        %v4880 = vsel %vm3205, %v4879, %v4878
        %v4881 = vrot.slane %v4795, 2
        %v4882 = vsel %vm3208, %v4881, %v4880
        %v4883 = vrot.slane %v4796, 1
        %v4884 = vsel %vm3211, %v4883, %v4882
        %v4885 = vrot.slane %v4798, 7
        %v4886 = vsel %vm3193, %v4885, %v4797
        %v4887 = vrot.slane %v4799, 6
        %v4888 = vsel %vm3196, %v4887, %v4886
        %v4889 = vrot.slane %v4800, 5
        %v4890 = vsel %vm3199, %v4889, %v4888
        %v4891 = vrot.slane %v4801, 4
        %v4892 = vsel %vm3202, %v4891, %v4890
        %v4893 = vrot.slane %v4802, 3
        %v4894 = vsel %vm3205, %v4893, %v4892
        %v4895 = vrot.slane %v4803, 2
        %v4896 = vsel %vm3208, %v4895, %v4894
        %v4897 = vrot.slane %v4804, 1
        %v4898 = vsel %vm3211, %v4897, %v4896
        %v4899 = vrot.slane %v4806, 7
        %v4900 = vsel %vm3193, %v4899, %v4805
        %v4901 = vrot.slane %v4807, 6
        %v4902 = vsel %vm3196, %v4901, %v4900
        %v4903 = vrot.slane %v4808, 5
        %v4904 = vsel %vm3199, %v4903, %v4902
        %v4905 = vrot.slane %v4809, 4
        %v4906 = vsel %vm3202, %v4905, %v4904
        %v4907 = vrot.slane %v4810, 3
        %v4908 = vsel %vm3205, %v4907, %v4906
        %v4909 = vrot.slane %v4811, 2
        %v4910 = vsel %vm3208, %v4909, %v4908
        %v4911 = vrot.slane %v4812, 1
        %v4912 = vsel %vm3211, %v4911, %v4910
        %v4913 = vrot.slane %v4814, 7
        %v4914 = vsel %vm3193, %v4913, %v4813
        %v4915 = vrot.slane %v4815, 6
        %v4916 = vsel %vm3196, %v4915, %v4914
        %v4917 = vrot.slane %v4816, 5
        %v4918 = vsel %vm3199, %v4917, %v4916
        %v4919 = vrot.slane %v4817, 4
        %v4920 = vsel %vm3202, %v4919, %v4918
        %v4921 = vrot.slane %v4818, 3
        %v4922 = vsel %vm3205, %v4921, %v4920
        %v4923 = vrot.slane %v4819, 2
        %v4924 = vsel %vm3208, %v4923, %v4922
        %v4925 = vrot.slane %v4820, 1
        %v4926 = vsel %vm3211, %v4925, %v4924
        %v4927 = vrot.slane %v4822, 7
        %v4928 = vsel %vm3193, %v4927, %v4821
        %v4929 = vrot.slane %v4823, 6
        %v4930 = vsel %vm3196, %v4929, %v4928
        %v4931 = vrot.slane %v4824, 5
        %v4932 = vsel %vm3199, %v4931, %v4930
        %v4933 = vrot.slane %v4825, 4
        %v4934 = vsel %vm3202, %v4933, %v4932
        %v4935 = vrot.slane %v4826, 3
        %v4936 = vsel %vm3205, %v4935, %v4934
        %v4937 = vrot.slane %v4827, 2
        %v4938 = vsel %vm3208, %v4937, %v4936
        %v4939 = vrot.slane %v4828, 1
        %v4940 = vsel %vm3211, %v4939, %v4938
        %v4941 = vpack.c.b16 %v4856, %v4842
        %v4942 = vpack.c.b16 %v4884, %v4870
        %v4943 = vpack.c.b16 %v4912, %v4898
        %v4944 = vpack.c.b16 %v4940, %v4926
        %v4946 = vsel %vm3315, %v4941, 0
        %v4949 = vsel %vm3315, %v4942, 0
        %v4952 = vsel %vm3315, %v4943, 0
        %v4955 = vsel %vm3315, %v4944, 0
        %v4958 = vsel %vm3328, %v1070, 0
        %4960 = vmatprep.subr.bf16.mxu0 0
        %4961 = vmatpush1.bf16.msra.mxu0 %v4958
        %4962 = vmatprep.subr.bf16.mxu0 0
        %4963 = vmatpush1.bf16.msra.mxu0 0
        %4964 = vmatprep.subr.bf16.mxu0 0
        %4965 = vmatpush1.bf16.msra.mxu0 0
        %4966 = vmatprep.subr.bf16.mxu0 0
        %4967 = vmatpush1.bf16.msra.mxu0 0
        %4968 = vmatprep.subr.bf16.mxu0 0
        %4969 = vmatpush1.bf16.msra.mxu0 0
        %4970 = vmatprep.subr.bf16.mxu0 0
        %4971 = vmatpush1.bf16.msra.mxu0 0
        %4972 = vmatprep.subr.bf16.mxu0 0
        %4973 = vmatpush1.bf16.msra.mxu0 0
        %4974 = vmatprep.subr.bf16.mxu0 0
        %4975 = vmatpush1.bf16.msra.mxu0 0
        %4976 = vmatprep.subr.bf16.mxu0 0
        %4977 = vmatpush1.bf16.msra.mxu0 0
        %4978 = vmatprep.subr.bf16.mxu0 0
        %4979 = vmatpush1.bf16.msra.mxu0 0
        %4980 = vmatprep.subr.bf16.mxu0 0
        %4981 = vmatpush1.bf16.msra.mxu0 0
        %4982 = vmatprep.subr.bf16.mxu0 0
        %4983 = vmatpush1.bf16.msra.mxu0 0
        %4984 = vmatprep.subr.bf16.mxu0 0
        %4985 = vmatpush1.bf16.msra.mxu0 0
        %4986 = vmatprep.subr.bf16.mxu0 0
        %4987 = vmatpush1.bf16.msra.mxu0 0
        %4988 = vmatprep.subr.bf16.mxu0 0
        %4989 = vmatpush1.bf16.msra.mxu0 0
        %4990 = vmatprep.subr.bf16.mxu0 0
        %4991 = vmatpush1.bf16.msra.mxu0 0
        %4992 = vmatprep.mubr.bf16.mxu0 0
        %4993 = vmatmul.mubr.bf16.gmra.mrb[0].mxu0 %v4946
        %v4994 = vpop.f32.mrb[0].mxu0
        %v4995 = vadd.f32 0.0, %v4994
        %v4996 = vpop.f32.mrb[0].mxu0
        %v4997 = vpop.f32.mrb[0].mxu0
        %v4998 = vadd.f32 0.0, %v4997
        %v4999 = vpop.f32.mrb[0].mxu0
        %5000 = vmatprep.mubr.bf16.mxu0 0
        %5001 = vmatmul.mubr.bf16.gmra.mrb[0].mxu0 %v4949
        %v5002 = vpop.f32.mrb[0].mxu0
        %v5003 = vadd.f32 0.0, %v5002
        %v5004 = vpop.f32.mrb[0].mxu0
        %v5005 = vpop.f32.mrb[0].mxu0
        %v5006 = vadd.f32 0.0, %v5005
        %v5007 = vpop.f32.mrb[0].mxu0
        %5008 = vmatprep.mubr.bf16.mxu0 0
        %5009 = vmatmul.mubr.bf16.gmra.mrb[0].mxu0 %v4952
        %v5010 = vpop.f32.mrb[0].mxu0
        %v5011 = vadd.f32 0.0, %v5010
        %v5012 = vpop.f32.mrb[0].mxu0
        %v5013 = vpop.f32.mrb[0].mxu0
        %v5014 = vadd.f32 0.0, %v5013
        %v5015 = vpop.f32.mrb[0].mxu0
        %5016 = vmatprep.mubr.bf16.mxu0 0
        %5017 = vmatmul.mubr.bf16.gmra.mrb[0].mxu0 %v4955
        %v5018 = vpop.f32.mrb[0].mxu0
        %v5019 = vadd.f32 0.0, %v5018
        %v5020 = vpop.f32.mrb[0].mxu0
        %v5021 = vpop.f32.mrb[0].mxu0
        %v5022 = vadd.f32 0.0, %v5021
        %v5023 = vpop.f32.mrb[0].mxu0
        %5024 = vdwg.mxu0
        %v5025 = vadd.f32 %v3861, %v4995
        %v5026 = vadd.f32 %v3862, %v4998
        %v5027 = vadd.f32 %v3863, %v5003
        %v5028 = vadd.f32 %v3864, %v5006
        %v5029 = vadd.f32 %v3865, %v5011
        %v5030 = vadd.f32 %v3866, %v5014
        %v5031 = vadd.f32 %v3867, %v5019
        %v5032 = vadd.f32 %v3868, %v5022
        %v5033 = vrot.slane %v4765, 1
        %v5034 = vsel %vm3193, %v4766, %v5033
        %v5035 = vrot.slane %v4767, 7
        %v5036 = vsel %vm3196, %v5035, %v5034
        %v5037 = vrot.slane %v4768, 6
        %v5038 = vsel %vm3199, %v5037, %v5036
        %v5039 = vrot.slane %v4769, 5
        %v5040 = vsel %vm3202, %v5039, %v5038
        %v5041 = vrot.slane %v4770, 4
        %v5042 = vsel %vm3205, %v5041, %v5040
        %v5043 = vrot.slane %v4771, 3
        %v5044 = vsel %vm3208, %v5043, %v5042
        %v5045 = vrot.slane %v4772, 2
        %v5046 = vsel %vm3211, %v5045, %v5044
        %v5047 = vrot.slane %v4773, 1
        %v5048 = vsel %vm3193, %v4774, %v5047
        %v5049 = vrot.slane %v4775, 7
        %v5050 = vsel %vm3196, %v5049, %v5048
        %v5051 = vrot.slane %v4776, 6
        %v5052 = vsel %vm3199, %v5051, %v5050
        %v5053 = vrot.slane %v4777, 5
        %v5054 = vsel %vm3202, %v5053, %v5052
        %v5055 = vrot.slane %v4778, 4
        %v5056 = vsel %vm3205, %v5055, %v5054
        %v5057 = vrot.slane %v4779, 3
        %v5058 = vsel %vm3208, %v5057, %v5056
        %v5059 = vrot.slane %v4780, 2
        %v5060 = vsel %vm3211, %v5059, %v5058
        %v5061 = vrot.slane %v4781, 1
        %v5062 = vsel %vm3193, %v4782, %v5061
        %v5063 = vrot.slane %v4783, 7
        %v5064 = vsel %vm3196, %v5063, %v5062
        %v5065 = vrot.slane %v4784, 6
        %v5066 = vsel %vm3199, %v5065, %v5064
        %v5067 = vrot.slane %v4785, 5
        %v5068 = vsel %vm3202, %v5067, %v5066
        %v5069 = vrot.slane %v4786, 4
        %v5070 = vsel %vm3205, %v5069, %v5068
        %v5071 = vrot.slane %v4787, 3
        %v5072 = vsel %vm3208, %v5071, %v5070
        %v5073 = vrot.slane %v4788, 2
        %v5074 = vsel %vm3211, %v5073, %v5072
        %v5075 = vrot.slane %v4789, 1
        %v5076 = vsel %vm3193, %v4790, %v5075
        %v5077 = vrot.slane %v4791, 7
        %v5078 = vsel %vm3196, %v5077, %v5076
        %v5079 = vrot.slane %v4792, 6
        %v5080 = vsel %vm3199, %v5079, %v5078
        %v5081 = vrot.slane %v4793, 5
        %v5082 = vsel %vm3202, %v5081, %v5080
        %v5083 = vrot.slane %v4794, 4
        %v5084 = vsel %vm3205, %v5083, %v5082
        %v5085 = vrot.slane %v4795, 3
        %v5086 = vsel %vm3208, %v5085, %v5084
        %v5087 = vrot.slane %v4796, 2
        %v5088 = vsel %vm3211, %v5087, %v5086
        %v5089 = vrot.slane %v4797, 1
        %v5090 = vsel %vm3193, %v4798, %v5089
        %v5091 = vrot.slane %v4799, 7
        %v5092 = vsel %vm3196, %v5091, %v5090
        %v5093 = vrot.slane %v4800, 6
        %v5094 = vsel %vm3199, %v5093, %v5092
        %v5095 = vrot.slane %v4801, 5
        %v5096 = vsel %vm3202, %v5095, %v5094
        %v5097 = vrot.slane %v4802, 4
        %v5098 = vsel %vm3205, %v5097, %v5096
        %v5099 = vrot.slane %v4803, 3
        %v5100 = vsel %vm3208, %v5099, %v5098
        %v5101 = vrot.slane %v4804, 2
        %v5102 = vsel %vm3211, %v5101, %v5100
        %v5103 = vrot.slane %v4805, 1
        %v5104 = vsel %vm3193, %v4806, %v5103
        %v5105 = vrot.slane %v4807, 7
        %v5106 = vsel %vm3196, %v5105, %v5104
        %v5107 = vrot.slane %v4808, 6
        %v5108 = vsel %vm3199, %v5107, %v5106
        %v5109 = vrot.slane %v4809, 5
        %v5110 = vsel %vm3202, %v5109, %v5108
        %v5111 = vrot.slane %v4810, 4
        %v5112 = vsel %vm3205, %v5111, %v5110
        %v5113 = vrot.slane %v4811, 3
        %v5114 = vsel %vm3208, %v5113, %v5112
        %v5115 = vrot.slane %v4812, 2
        %v5116 = vsel %vm3211, %v5115, %v5114
        %v5117 = vrot.slane %v4813, 1
        %v5118 = vsel %vm3193, %v4814, %v5117
        %v5119 = vrot.slane %v4815, 7
        %v5120 = vsel %vm3196, %v5119, %v5118
        %v5121 = vrot.slane %v4816, 6
        %v5122 = vsel %vm3199, %v5121, %v5120
        %v5123 = vrot.slane %v4817, 5
        %v5124 = vsel %vm3202, %v5123, %v5122
        %v5125 = vrot.slane %v4818, 4
        %v5126 = vsel %vm3205, %v5125, %v5124
        %v5127 = vrot.slane %v4819, 3
        %v5128 = vsel %vm3208, %v5127, %v5126
        %v5129 = vrot.slane %v4820, 2
        %v5130 = vsel %vm3211, %v5129, %v5128
        %v5131 = vrot.slane %v4821, 1
        %v5132 = vsel %vm3193, %v4822, %v5131
        %v5133 = vrot.slane %v4823, 7
        %v5134 = vsel %vm3196, %v5133, %v5132
        %v5135 = vrot.slane %v4824, 6
        %v5136 = vsel %vm3199, %v5135, %v5134
        %v5137 = vrot.slane %v4825, 5
        %v5138 = vsel %vm3202, %v5137, %v5136
        %v5139 = vrot.slane %v4826, 4
        %v5140 = vsel %vm3205, %v5139, %v5138
        %v5141 = vrot.slane %v4827, 3
        %v5142 = vsel %vm3208, %v5141, %v5140
        %v5143 = vrot.slane %v4828, 2
        %v5144 = vsel %vm3211, %v5143, %v5142
        %v5145 = vpack.c.b16 %v5060, %v5046
        %v5146 = vpack.c.b16 %v5088, %v5074
        %v5147 = vpack.c.b16 %v5116, %v5102
        %v5148 = vpack.c.b16 %v5144, %v5130
        %v5150 = vsel %vm3315, %v5145, 0
        %v5153 = vsel %vm3315, %v5146, 0
        %v5156 = vsel %vm3315, %v5147, 0
        %v5159 = vsel %vm3315, %v5148, 0
        %v5162 = vsel %vm3328, %v1071, 0
        %5164 = vmatprep.subr.bf16.mxu0 0
        %5165 = vmatpush1.bf16.msra.mxu0 %v5162
        %5166 = vmatprep.subr.bf16.mxu0 0
        %5167 = vmatpush1.bf16.msra.mxu0 0
        %5168 = vmatprep.subr.bf16.mxu0 0
        %5169 = vmatpush1.bf16.msra.mxu0 0
        %5170 = vmatprep.subr.bf16.mxu0 0
        %5171 = vmatpush1.bf16.msra.mxu0 0
        %5172 = vmatprep.subr.bf16.mxu0 0
        %5173 = vmatpush1.bf16.msra.mxu0 0
        %5174 = vmatprep.subr.bf16.mxu0 0
        %5175 = vmatpush1.bf16.msra.mxu0 0
        %5176 = vmatprep.subr.bf16.mxu0 0
        %5177 = vmatpush1.bf16.msra.mxu0 0
        %5178 = vmatprep.subr.bf16.mxu0 0
        %5179 = vmatpush1.bf16.msra.mxu0 0
        %5180 = vmatprep.subr.bf16.mxu0 0
        %5181 = vmatpush1.bf16.msra.mxu0 0
        %5182 = vmatprep.subr.bf16.mxu0 0
        %5183 = vmatpush1.bf16.msra.mxu0 0
        %5184 = vmatprep.subr.bf16.mxu0 0
        %5185 = vmatpush1.bf16.msra.mxu0 0
        %5186 = vmatprep.subr.bf16.mxu0 0
        %5187 = vmatpush1.bf16.msra.mxu0 0
        %5188 = vmatprep.subr.bf16.mxu0 0
        %5189 = vmatpush1.bf16.msra.mxu0 0
        %5190 = vmatprep.subr.bf16.mxu0 0
        %5191 = vmatpush1.bf16.msra.mxu0 0
        %5192 = vmatprep.subr.bf16.mxu0 0
        %5193 = vmatpush1.bf16.msra.mxu0 0
        %5194 = vmatprep.subr.bf16.mxu0 0
        %5195 = vmatpush1.bf16.msra.mxu0 0
        %5196 = vmatprep.mubr.bf16.mxu0 0
        %5197 = vmatmul.mubr.bf16.gmra.mrb[0].mxu0 %v5150
        %v5198 = vpop.f32.mrb[0].mxu0
        %v5199 = vadd.f32 0.0, %v5198
        %v5200 = vpop.f32.mrb[0].mxu0
        %v5201 = vpop.f32.mrb[0].mxu0
        %v5202 = vadd.f32 0.0, %v5201
        %v5203 = vpop.f32.mrb[0].mxu0
        %5204 = vmatprep.mubr.bf16.mxu0 0
        %5205 = vmatmul.mubr.bf16.gmra.mrb[0].mxu0 %v5153
        %v5206 = vpop.f32.mrb[0].mxu0
        %v5207 = vadd.f32 0.0, %v5206
        %v5208 = vpop.f32.mrb[0].mxu0
        %v5209 = vpop.f32.mrb[0].mxu0
        %v5210 = vadd.f32 0.0, %v5209
        %v5211 = vpop.f32.mrb[0].mxu0
        %5212 = vmatprep.mubr.bf16.mxu0 0
        %5213 = vmatmul.mubr.bf16.gmra.mrb[0].mxu0 %v5156
        %v5214 = vpop.f32.mrb[0].mxu0
        %v5215 = vadd.f32 0.0, %v5214
        %v5216 = vpop.f32.mrb[0].mxu0
        %v5217 = vpop.f32.mrb[0].mxu0
        %v5218 = vadd.f32 0.0, %v5217
        %v5219 = vpop.f32.mrb[0].mxu0
        %5220 = vmatprep.mubr.bf16.mxu0 0
        %5221 = vmatmul.mubr.bf16.gmra.mrb[0].mxu0 %v5159
        %v5222 = vpop.f32.mrb[0].mxu0
        %v5223 = vadd.f32 0.0, %v5222
        %v5224 = vpop.f32.mrb[0].mxu0
        %v5225 = vpop.f32.mrb[0].mxu0
        %v5226 = vadd.f32 0.0, %v5225
        %v5227 = vpop.f32.mrb[0].mxu0
        %5228 = vdwg.mxu0
        %v5229 = vadd.f32 %v5025, %v5199
        %v5230 = vadd.f32 %v5026, %v5202
        %v5231 = vadd.f32 %v5027, %v5207
        %v5232 = vadd.f32 %v5028, %v5210
        %v5233 = vadd.f32 %v5029, %v5215
        %v5234 = vadd.f32 %v5030, %v5218
        %v5235 = vadd.f32 %v5031, %v5223
        %v5236 = vadd.f32 %v5032, %v5226
        %v5238 = vunpack.c.l.s4 1966171168
        %v5239 = vunpack.c.0.s8 %v5238
        %v5240 = vlaneseq
        %v5241 = vshrl.u32 %v5240, 7
        %v5242 = vsub.s32 %v5239, %v5241
        %v5243 = vrot.slane %v1301, %v5242
        %v5245 = vunpack.c.l.s4 1966171168
        %v5246 = vunpack.c.0.s8 %v5245
        %v5247 = vlaneseq
        %v5248 = vshrl.u32 %v5247, 7
        %v5249 = vsub.s32 %v5246, %v5248
        %v5250 = vrot.slane %v5243, %v5249
        %v5252 = vunpack.c.l.s4 1966171168
        %v5253 = vunpack.c.0.s8 %v5252
        %v5254 = vlaneseq
        %v5255 = vshrl.u32 %v5254, 7
        %v5256 = vsub.s32 %v5253, %v5255
        %v5257 = vrot.slane %v1425, %v5256
        %v5259 = vunpack.c.l.s4 1966171168
        %v5260 = vunpack.c.0.s8 %v5259
        %v5261 = vlaneseq
        %v5262 = vshrl.u32 %v5261, 7
        %v5263 = vsub.s32 %v5260, %v5262
        %v5264 = vrot.slane %v5257, %v5263
        %v5266 = vunpack.c.l.s4 1966171168
        %v5267 = vunpack.c.0.s8 %v5266
        %v5268 = vlaneseq
        %v5269 = vshrl.u32 %v5268, 7
        %v5270 = vsub.s32 %v5267, %v5269
        %v5271 = vrot.slane %v1549, %v5270
        %v5273 = vunpack.c.l.s4 1966171168
        %v5274 = vunpack.c.0.s8 %v5273
        %v5275 = vlaneseq
        %v5276 = vshrl.u32 %v5275, 7
        %v5277 = vsub.s32 %v5274, %v5276
        %v5278 = vrot.slane %v5271, %v5277
        %v5280 = vunpack.c.l.s4 1966171168
        %v5281 = vunpack.c.0.s8 %v5280
        %v5282 = vlaneseq
        %v5283 = vshrl.u32 %v5282, 7
        %v5284 = vsub.s32 %v5281, %v5283
        %v5285 = vrot.slane %v1673, %v5284
        %v5287 = vunpack.c.l.s4 1966171168
        %v5288 = vunpack.c.0.s8 %v5287
        %v5289 = vlaneseq
        %v5290 = vshrl.u32 %v5289, 7
        %v5291 = vsub.s32 %v5288, %v5290
        %v5292 = vrot.slane %v5285, %v5291
        %v5294 = vunpack.c.l.s4 1966171168
        %v5295 = vunpack.c.0.s8 %v5294
        %v5296 = vlaneseq
        %v5297 = vshrl.u32 %v5296, 7
        %v5298 = vsub.s32 %v5295, %v5297
        %v5299 = vrot.slane %v1797, %v5298
        %v5301 = vunpack.c.l.s4 1966171168
        %v5302 = vunpack.c.0.s8 %v5301
        %v5303 = vlaneseq
        %v5304 = vshrl.u32 %v5303, 7
        %v5305 = vsub.s32 %v5302, %v5304
        %v5306 = vrot.slane %v5299, %v5305
        %v5308 = vunpack.c.l.s4 1966171168
        %v5309 = vunpack.c.0.s8 %v5308
        %v5310 = vlaneseq
        %v5311 = vshrl.u32 %v5310, 7
        %v5312 = vsub.s32 %v5309, %v5311
        %v5313 = vrot.slane %v1921, %v5312
        %v5315 = vunpack.c.l.s4 1966171168
        %v5316 = vunpack.c.0.s8 %v5315
        %v5317 = vlaneseq
        %v5318 = vshrl.u32 %v5317, 7
        %v5319 = vsub.s32 %v5316, %v5318
        %v5320 = vrot.slane %v5313, %v5319
        %v5322 = vunpack.c.l.s4 1966171168
        %v5323 = vunpack.c.0.s8 %v5322
        %v5324 = vlaneseq
        %v5325 = vshrl.u32 %v5324, 7
        %v5326 = vsub.s32 %v5323, %v5325
        %v5327 = vrot.slane %v2045, %v5326
        %v5329 = vunpack.c.l.s4 1966171168
        %v5330 = vunpack.c.0.s8 %v5329
        %v5331 = vlaneseq
        %v5332 = vshrl.u32 %v5331, 7
        %v5333 = vsub.s32 %v5330, %v5332
        %v5334 = vrot.slane %v5327, %v5333
        %v5336 = vunpack.c.l.s4 1966171168
        %v5337 = vunpack.c.0.s8 %v5336
        %v5338 = vlaneseq
        %v5339 = vshrl.u32 %v5338, 7
        %v5340 = vsub.s32 %v5337, %v5339
        %v5341 = vrot.slane %v2169, %v5340
        %v5343 = vunpack.c.l.s4 1966171168
        %v5344 = vunpack.c.0.s8 %v5343
        %v5345 = vlaneseq
        %v5346 = vshrl.u32 %v5345, 7
        %v5347 = vsub.s32 %v5344, %v5346
        %v5348 = vrot.slane %v5341, %v5347
        %v5349 = vunpack.c.l.b16 %v5250
        %v5350 = vunpack.c.l.b16 %v5264
        %v5351 = vunpack.c.l.b16 %v5278
        %v5352 = vunpack.c.l.b16 %v5292
        %v5353 = vunpack.c.l.b16 %v5306
        %v5354 = vunpack.c.l.b16 %v5320
        %v5355 = vunpack.c.l.b16 %v5334
        %v5356 = vunpack.c.l.b16 %v5348
        %v5357 = vsel %vm3193, %v5035, %v4766
        %v5358 = vsel %vm3196, %v5037, %v5357
        %v5359 = vsel %vm3199, %v5039, %v5358
        %v5360 = vsel %vm3202, %v5041, %v5359
        %v5361 = vsel %vm3205, %v5043, %v5360
        %v5362 = vsel %vm3208, %v5045, %v5361
        %v5363 = vrot.slane %v5349, 1
        %v5364 = vsel %vm3211, %v5363, %v5362
        %v5365 = vsel %vm3193, %v5049, %v4774
        %v5366 = vsel %vm3196, %v5051, %v5365
        %v5367 = vsel %vm3199, %v5053, %v5366
        %v5368 = vsel %vm3202, %v5055, %v5367
        %v5369 = vsel %vm3205, %v5057, %v5368
        %v5370 = vsel %vm3208, %v5059, %v5369
        %v5371 = vrot.slane %v5350, 1
        %v5372 = vsel %vm3211, %v5371, %v5370
        %v5373 = vsel %vm3193, %v5063, %v4782
        %v5374 = vsel %vm3196, %v5065, %v5373
        %v5375 = vsel %vm3199, %v5067, %v5374
        %v5376 = vsel %vm3202, %v5069, %v5375
        %v5377 = vsel %vm3205, %v5071, %v5376
        %v5378 = vsel %vm3208, %v5073, %v5377
        %v5379 = vrot.slane %v5351, 1
        %v5380 = vsel %vm3211, %v5379, %v5378
        %v5381 = vsel %vm3193, %v5077, %v4790
        %v5382 = vsel %vm3196, %v5079, %v5381
        %v5383 = vsel %vm3199, %v5081, %v5382
        %v5384 = vsel %vm3202, %v5083, %v5383
        %v5385 = vsel %vm3205, %v5085, %v5384
        %v5386 = vsel %vm3208, %v5087, %v5385
        %v5387 = vrot.slane %v5352, 1
        %v5388 = vsel %vm3211, %v5387, %v5386
        %v5389 = vsel %vm3193, %v5091, %v4798
        %v5390 = vsel %vm3196, %v5093, %v5389
        %v5391 = vsel %vm3199, %v5095, %v5390
        %v5392 = vsel %vm3202, %v5097, %v5391
        %v5393 = vsel %vm3205, %v5099, %v5392
        %v5394 = vsel %vm3208, %v5101, %v5393
        %v5395 = vrot.slane %v5353, 1
        %v5396 = vsel %vm3211, %v5395, %v5394
        %v5397 = vsel %vm3193, %v5105, %v4806
        %v5398 = vsel %vm3196, %v5107, %v5397
        %v5399 = vsel %vm3199, %v5109, %v5398
        %v5400 = vsel %vm3202, %v5111, %v5399
        %v5401 = vsel %vm3205, %v5113, %v5400
        %v5402 = vsel %vm3208, %v5115, %v5401
        %v5403 = vrot.slane %v5354, 1
        %v5404 = vsel %vm3211, %v5403, %v5402
        %v5405 = vsel %vm3193, %v5119, %v4814
        %v5406 = vsel %vm3196, %v5121, %v5405
        %v5407 = vsel %vm3199, %v5123, %v5406
        %v5408 = vsel %vm3202, %v5125, %v5407
        %v5409 = vsel %vm3205, %v5127, %v5408
        %v5410 = vsel %vm3208, %v5129, %v5409
        %v5411 = vrot.slane %v5355, 1
        %v5412 = vsel %vm3211, %v5411, %v5410
        %v5413 = vsel %vm3193, %v5133, %v4822
        %v5414 = vsel %vm3196, %v5135, %v5413
        %v5415 = vsel %vm3199, %v5137, %v5414
        %v5416 = vsel %vm3202, %v5139, %v5415
        %v5417 = vsel %vm3205, %v5141, %v5416
        %v5418 = vsel %vm3208, %v5143, %v5417
        %v5419 = vrot.slane %v5356, 1
        %v5420 = vsel %vm3211, %v5419, %v5418
        %v5421 = vpack.c.b16 %v5372, %v5364
        %v5422 = vpack.c.b16 %v5388, %v5380
        %v5423 = vpack.c.b16 %v5404, %v5396
        %v5424 = vpack.c.b16 %v5420, %v5412
        %v5426 = vsel %vm3315, %v5421, 0
        %v5429 = vsel %vm3315, %v5422, 0
        %v5432 = vsel %vm3315, %v5423, 0
        %v5435 = vsel %vm3315, %v5424, 0
        %v5438 = vsel %vm3328, %v1072, 0
        %5440 = vmatprep.subr.bf16.mxu0 0
        %5441 = vmatpush1.bf16.msra.mxu0 %v5438
        %5442 = vmatprep.subr.bf16.mxu0 0
        %5443 = vmatpush1.bf16.msra.mxu0 0
        %5444 = vmatprep.subr.bf16.mxu0 0
        %5445 = vmatpush1.bf16.msra.mxu0 0
        %5446 = vmatprep.subr.bf16.mxu0 0
        %5447 = vmatpush1.bf16.msra.mxu0 0
        %5448 = vmatprep.subr.bf16.mxu0 0
        %5449 = vmatpush1.bf16.msra.mxu0 0
        %5450 = vmatprep.subr.bf16.mxu0 0
        %5451 = vmatpush1.bf16.msra.mxu0 0
        %5452 = vmatprep.subr.bf16.mxu0 0
        %5453 = vmatpush1.bf16.msra.mxu0 0
        %5454 = vmatprep.subr.bf16.mxu0 0
        %5455 = vmatpush1.bf16.msra.mxu0 0
        %5456 = vmatprep.subr.bf16.mxu0 0
        %5457 = vmatpush1.bf16.msra.mxu0 0
        %5458 = vmatprep.subr.bf16.mxu0 0
        %5459 = vmatpush1.bf16.msra.mxu0 0
        %5460 = vmatprep.subr.bf16.mxu0 0
        %5461 = vmatpush1.bf16.msra.mxu0 0
        %5462 = vmatprep.subr.bf16.mxu0 0
        %5463 = vmatpush1.bf16.msra.mxu0 0
        %5464 = vmatprep.subr.bf16.mxu0 0
        %5465 = vmatpush1.bf16.msra.mxu0 0
        %5466 = vmatprep.subr.bf16.mxu0 0
        %5467 = vmatpush1.bf16.msra.mxu0 0
        %5468 = vmatprep.subr.bf16.mxu0 0
        %5469 = vmatpush1.bf16.msra.mxu0 0
        %5470 = vmatprep.subr.bf16.mxu0 0
        %5471 = vmatpush1.bf16.msra.mxu0 0
        %5472 = vmatprep.mubr.bf16.mxu0 0
        %5473 = vmatmul.mubr.bf16.gmra.mrb[0].mxu0 %v5426
        %v5474 = vpop.f32.mrb[0].mxu0
        %v5475 = vadd.f32 0.0, %v5474
        %v5476 = vpop.f32.mrb[0].mxu0
        %v5477 = vpop.f32.mrb[0].mxu0
        %v5478 = vadd.f32 0.0, %v5477
        %v5479 = vpop.f32.mrb[0].mxu0
        %5480 = vmatprep.mubr.bf16.mxu0 0
        %5481 = vmatmul.mubr.bf16.gmra.mrb[0].mxu0 %v5429
        %v5482 = vpop.f32.mrb[0].mxu0
        %v5483 = vadd.f32 0.0, %v5482
        %v5484 = vpop.f32.mrb[0].mxu0
        %v5485 = vpop.f32.mrb[0].mxu0
        %v5486 = vadd.f32 0.0, %v5485
        %v5487 = vpop.f32.mrb[0].mxu0
        %5488 = vmatprep.mubr.bf16.mxu0 0
        %5489 = vmatmul.mubr.bf16.gmra.mrb[0].mxu0 %v5432
        %v5490 = vpop.f32.mrb[0].mxu0
        %v5491 = vadd.f32 0.0, %v5490
        %v5492 = vpop.f32.mrb[0].mxu0
        %v5493 = vpop.f32.mrb[0].mxu0
        %v5494 = vadd.f32 0.0, %v5493
        %v5495 = vpop.f32.mrb[0].mxu0
        %5496 = vmatprep.mubr.bf16.mxu0 0
        %5497 = vmatmul.mubr.bf16.gmra.mrb[0].mxu0 %v5435
        %v5498 = vpop.f32.mrb[0].mxu0
        %v5499 = vadd.f32 0.0, %v5498
        %v5500 = vpop.f32.mrb[0].mxu0
        %v5501 = vpop.f32.mrb[0].mxu0
        %v5502 = vadd.f32 0.0, %v5501
        %v5503 = vpop.f32.mrb[0].mxu0
        %5504 = vdwg.mxu0
        %v5505 = vadd.f32 %v5229, %v5475
        %v5506 = vadd.f32 %v5230, %v5478
        %v5507 = vadd.f32 %v5231, %v5483
        %v5508 = vadd.f32 %v5232, %v5486
        %v5509 = vadd.f32 %v5233, %v5491
        %v5510 = vadd.f32 %v5234, %v5494
        %v5511 = vadd.f32 %v5235, %v5499
        %v5512 = vadd.f32 %v5236, %v5502
        %v5514 = vunpack.c.l.s4 1966171168
        %v5515 = vunpack.c.0.s8 %v5514
        %v5516 = vlaneseq
        %v5517 = vshrl.u32 %v5516, 7
        %v5518 = vsub.s32 %v5515, %v5517
        %v5519 = vrot.slane %v2184, %v5518
        %v5521 = vunpack.c.l.s4 1966171168
        %v5522 = vunpack.c.0.s8 %v5521
        %v5523 = vlaneseq
        %v5524 = vshrl.u32 %v5523, 7
        %v5525 = vsub.s32 %v5522, %v5524
        %v5526 = vrot.slane %v5519, %v5525
        %v5528 = vunpack.c.l.s4 1966171168
        %v5529 = vunpack.c.0.s8 %v5528
        %v5530 = vlaneseq
        %v5531 = vshrl.u32 %v5530, 7
        %v5532 = vsub.s32 %v5529, %v5531
        %v5533 = vrot.slane %v2191, %v5532
        %v5535 = vunpack.c.l.s4 1966171168
        %v5536 = vunpack.c.0.s8 %v5535
        %v5537 = vlaneseq
        %v5538 = vshrl.u32 %v5537, 7
        %v5539 = vsub.s32 %v5536, %v5538
        %v5540 = vrot.slane %v5533, %v5539
        %v5542 = vunpack.c.l.s4 1966171168
        %v5543 = vunpack.c.0.s8 %v5542
        %v5544 = vlaneseq
        %v5545 = vshrl.u32 %v5544, 7
        %v5546 = vsub.s32 %v5543, %v5545
        %v5547 = vrot.slane %v2192, %v5546
        %v5549 = vunpack.c.l.s4 1966171168
        %v5550 = vunpack.c.0.s8 %v5549
        %v5551 = vlaneseq
        %v5552 = vshrl.u32 %v5551, 7
        %v5553 = vsub.s32 %v5550, %v5552
        %v5554 = vrot.slane %v5547, %v5553
        %v5556 = vunpack.c.l.s4 1966171168
        %v5557 = vunpack.c.0.s8 %v5556
        %v5558 = vlaneseq
        %v5559 = vshrl.u32 %v5558, 7
        %v5560 = vsub.s32 %v5557, %v5559
        %v5561 = vrot.slane %v2193, %v5560
        %v5563 = vunpack.c.l.s4 1966171168
        %v5564 = vunpack.c.0.s8 %v5563
        %v5565 = vlaneseq
        %v5566 = vshrl.u32 %v5565, 7
        %v5567 = vsub.s32 %v5564, %v5566
        %v5568 = vrot.slane %v5561, %v5567
        %v5570 = vunpack.c.l.s4 1966171168
        %v5571 = vunpack.c.0.s8 %v5570
        %v5572 = vlaneseq
        %v5573 = vshrl.u32 %v5572, 7
        %v5574 = vsub.s32 %v5571, %v5573
        %v5575 = vrot.slane %v2208, %v5574
        %v5577 = vunpack.c.l.s4 1966171168
        %v5578 = vunpack.c.0.s8 %v5577
        %v5579 = vlaneseq
        %v5580 = vshrl.u32 %v5579, 7
        %v5581 = vsub.s32 %v5578, %v5580
        %v5582 = vrot.slane %v5575, %v5581
        %v5584 = vunpack.c.l.s4 1966171168
        %v5585 = vunpack.c.0.s8 %v5584
        %v5586 = vlaneseq
        %v5587 = vshrl.u32 %v5586, 7
        %v5588 = vsub.s32 %v5585, %v5587
        %v5589 = vrot.slane %v2215, %v5588
        %v5591 = vunpack.c.l.s4 1966171168
        %v5592 = vunpack.c.0.s8 %v5591
        %v5593 = vlaneseq
        %v5594 = vshrl.u32 %v5593, 7
        %v5595 = vsub.s32 %v5592, %v5594
        %v5596 = vrot.slane %v5589, %v5595
        %v5598 = vunpack.c.l.s4 1966171168
        %v5599 = vunpack.c.0.s8 %v5598
        %v5600 = vlaneseq
        %v5601 = vshrl.u32 %v5600, 7
        %v5602 = vsub.s32 %v5599, %v5601
        %v5603 = vrot.slane %v2216, %v5602
        %v5605 = vunpack.c.l.s4 1966171168
        %v5606 = vunpack.c.0.s8 %v5605
        %v5607 = vlaneseq
        %v5608 = vshrl.u32 %v5607, 7
        %v5609 = vsub.s32 %v5606, %v5608
        %v5610 = vrot.slane %v5603, %v5609
        %v5612 = vunpack.c.l.s4 1966171168
        %v5613 = vunpack.c.0.s8 %v5612
        %v5614 = vlaneseq
        %v5615 = vshrl.u32 %v5614, 7
        %v5616 = vsub.s32 %v5613, %v5615
        %v5617 = vrot.slane %v2217, %v5616
        %v5619 = vunpack.c.l.s4 1966171168
        %v5620 = vunpack.c.0.s8 %v5619
        %v5621 = vlaneseq
        %v5622 = vshrl.u32 %v5621, 7
        %v5623 = vsub.s32 %v5620, %v5622
        %v5624 = vrot.slane %v5617, %v5623
        %v5625 = vunpack.c.l.b16 %v5526
        %v5626 = vunpack.c.l.b16 %v5540
        %v5627 = vunpack.c.l.b16 %v5554
        %v5628 = vunpack.c.l.b16 %v5568
        %v5629 = vunpack.c.l.b16 %v5582
        %v5630 = vunpack.c.l.b16 %v5596
        %v5631 = vunpack.c.l.b16 %v5610
        %v5632 = vunpack.c.l.b16 %v5624
        %v5633 = vrot.slane %v5626, 7
        %v5634 = vsel %vm3193, %v5633, %v5625
        %v5635 = vrot.slane %v5627, 6
        %v5636 = vsel %vm3196, %v5635, %v5634
        %v5637 = vrot.slane %v5628, 5
        %v5638 = vsel %vm3199, %v5637, %v5636
        %v5639 = vrot.slane %v5629, 4
        %v5640 = vsel %vm3202, %v5639, %v5638
        %v5641 = vrot.slane %v5630, 3
        %v5642 = vsel %vm3205, %v5641, %v5640
        %v5643 = vrot.slane %v5631, 2
        %v5644 = vsel %vm3208, %v5643, %v5642
        %v5645 = vrot.slane %v5632, 1
        %v5646 = vsel %vm3211, %v5645, %v5644
        %v5647 = vpack.c.b16 %v3438, %v3424
        %v5648 = vpack.c.b16 %v3466, %v3452
        %v5649 = vpack.c.b16 %v3494, %v3480
        %v5650 = vpack.c.b16 %v5646, %v3508
        %v5652 = vsel %vm3315, %v5647, 0
        %v5655 = vsel %vm3315, %v5648, 0
        %v5658 = vsel %vm3315, %v5649, 0
        %v5661 = vsel %vm3315, %v5650, 0
        %v5664 = vsel %vm3328, %v1073, 0
        %5666 = vmatprep.subr.bf16.mxu0 0
        %5667 = vmatpush1.bf16.msra.mxu0 %v5664
        %5668 = vmatprep.subr.bf16.mxu0 0
        %5669 = vmatpush1.bf16.msra.mxu0 0
        %5670 = vmatprep.subr.bf16.mxu0 0
        %5671 = vmatpush1.bf16.msra.mxu0 0
        %5672 = vmatprep.subr.bf16.mxu0 0
        %5673 = vmatpush1.bf16.msra.mxu0 0
        %5674 = vmatprep.subr.bf16.mxu0 0
        %5675 = vmatpush1.bf16.msra.mxu0 0
        %5676 = vmatprep.subr.bf16.mxu0 0
        %5677 = vmatpush1.bf16.msra.mxu0 0
        %5678 = vmatprep.subr.bf16.mxu0 0
        %5679 = vmatpush1.bf16.msra.mxu0 0
        %5680 = vmatprep.subr.bf16.mxu0 0
        %5681 = vmatpush1.bf16.msra.mxu0 0
        %5682 = vmatprep.subr.bf16.mxu0 0
        %5683 = vmatpush1.bf16.msra.mxu0 0
        %5684 = vmatprep.subr.bf16.mxu0 0
        %5685 = vmatpush1.bf16.msra.mxu0 0
        %5686 = vmatprep.subr.bf16.mxu0 0
        %5687 = vmatpush1.bf16.msra.mxu0 0
        %5688 = vmatprep.subr.bf16.mxu0 0
        %5689 = vmatpush1.bf16.msra.mxu0 0
        %5690 = vmatprep.subr.bf16.mxu0 0
        %5691 = vmatpush1.bf16.msra.mxu0 0
        %5692 = vmatprep.subr.bf16.mxu0 0
        %5693 = vmatpush1.bf16.msra.mxu0 0
        %5694 = vmatprep.subr.bf16.mxu0 0
        %5695 = vmatpush1.bf16.msra.mxu0 0
        %5696 = vmatprep.subr.bf16.mxu0 0
        %5697 = vmatpush1.bf16.msra.mxu0 0
        %5698 = vmatprep.mubr.bf16.mxu0 0
        %5699 = vmatmul.mubr.bf16.gmra.mrb[0].mxu0 %v5652
        %v5700 = vpop.f32.mrb[0].mxu0
        %v5701 = vadd.f32 0.0, %v5700
        %v5702 = vpop.f32.mrb[0].mxu0
        %v5703 = vpop.f32.mrb[0].mxu0
        %v5704 = vadd.f32 0.0, %v5703
        %v5705 = vpop.f32.mrb[0].mxu0
        %5706 = vmatprep.mubr.bf16.mxu0 0
        %5707 = vmatmul.mubr.bf16.gmra.mrb[0].mxu0 %v5655
        %v5708 = vpop.f32.mrb[0].mxu0
        %v5709 = vadd.f32 0.0, %v5708
        %v5710 = vpop.f32.mrb[0].mxu0
        %v5711 = vpop.f32.mrb[0].mxu0
        %v5712 = vadd.f32 0.0, %v5711
        %v5713 = vpop.f32.mrb[0].mxu0
        %5714 = vmatprep.mubr.bf16.mxu0 0
        %5715 = vmatmul.mubr.bf16.gmra.mrb[0].mxu0 %v5658
        %v5716 = vpop.f32.mrb[0].mxu0
        %v5717 = vadd.f32 0.0, %v5716
        %v5718 = vpop.f32.mrb[0].mxu0
        %v5719 = vpop.f32.mrb[0].mxu0
        %v5720 = vadd.f32 0.0, %v5719
        %v5721 = vpop.f32.mrb[0].mxu0
        %5722 = vmatprep.mubr.bf16.mxu0 0
        %5723 = vmatmul.mubr.bf16.gmra.mrb[0].mxu0 %v5661
        %v5724 = vpop.f32.mrb[0].mxu0
        %v5725 = vadd.f32 0.0, %v5724
        %v5726 = vpop.f32.mrb[0].mxu0
        %v5727 = vpop.f32.mrb[0].mxu0
        %v5728 = vadd.f32 0.0, %v5727
        %v5729 = vpop.f32.mrb[0].mxu0
        %5730 = vdwg.mxu0
        %v5731 = vadd.f32 %v5505, %v5701
        %v5732 = vadd.f32 %v5506, %v5704
        %v5733 = vadd.f32 %v5507, %v5709
        %v5734 = vadd.f32 %v5508, %v5712
        %v5735 = vadd.f32 %v5509, %v5717
        %v5736 = vadd.f32 %v5510, %v5720
        %v5737 = vadd.f32 %v5511, %v5725
        %v5738 = vadd.f32 %v5512, %v5728
        %v5739 = vrot.slane %v5625, 1
        %v5740 = vsel %vm3193, %v5626, %v5739
        %v5741 = vrot.slane %v5627, 7
        %v5742 = vsel %vm3196, %v5741, %v5740
        %v5743 = vrot.slane %v5628, 6
        %v5744 = vsel %vm3199, %v5743, %v5742
        %v5745 = vrot.slane %v5629, 5
        %v5746 = vsel %vm3202, %v5745, %v5744
        %v5747 = vrot.slane %v5630, 4
        %v5748 = vsel %vm3205, %v5747, %v5746
        %v5749 = vrot.slane %v5631, 3
        %v5750 = vsel %vm3208, %v5749, %v5748
        %v5751 = vrot.slane %v5632, 2
        %v5752 = vsel %vm3211, %v5751, %v5750
        %v5753 = vpack.c.b16 %v3240, %v3226
        %v5754 = vpack.c.b16 %v3268, %v3254
        %v5755 = vpack.c.b16 %v3296, %v3282
        %v5756 = vpack.c.b16 %v5752, %v3310
        %v5758 = vsel %vm3315, %v5753, 0
        %v5761 = vsel %vm3315, %v5754, 0
        %v5764 = vsel %vm3315, %v5755, 0
        %v5767 = vsel %vm3315, %v5756, 0
        %v5770 = vsel %vm3328, %v1074, 0
        %5772 = vmatprep.subr.bf16.mxu0 0
        %5773 = vmatpush1.bf16.msra.mxu0 %v5770
        %5774 = vmatprep.subr.bf16.mxu0 0
        %5775 = vmatpush1.bf16.msra.mxu0 0
        %5776 = vmatprep.subr.bf16.mxu0 0
        %5777 = vmatpush1.bf16.msra.mxu0 0
        %5778 = vmatprep.subr.bf16.mxu0 0
        %5779 = vmatpush1.bf16.msra.mxu0 0
        %5780 = vmatprep.subr.bf16.mxu0 0
        %5781 = vmatpush1.bf16.msra.mxu0 0
        %5782 = vmatprep.subr.bf16.mxu0 0
        %5783 = vmatpush1.bf16.msra.mxu0 0
        %5784 = vmatprep.subr.bf16.mxu0 0
        %5785 = vmatpush1.bf16.msra.mxu0 0
        %5786 = vmatprep.subr.bf16.mxu0 0
        %5787 = vmatpush1.bf16.msra.mxu0 0
        %5788 = vmatprep.subr.bf16.mxu0 0
        %5789 = vmatpush1.bf16.msra.mxu0 0
        %5790 = vmatprep.subr.bf16.mxu0 0
        %5791 = vmatpush1.bf16.msra.mxu0 0
        %5792 = vmatprep.subr.bf16.mxu0 0
        %5793 = vmatpush1.bf16.msra.mxu0 0
        %5794 = vmatprep.subr.bf16.mxu0 0
        %5795 = vmatpush1.bf16.msra.mxu0 0
        %5796 = vmatprep.subr.bf16.mxu0 0
        %5797 = vmatpush1.bf16.msra.mxu0 0
        %5798 = vmatprep.subr.bf16.mxu0 0
        %5799 = vmatpush1.bf16.msra.mxu0 0
        %5800 = vmatprep.subr.bf16.mxu0 0
        %5801 = vmatpush1.bf16.msra.mxu0 0
        %5802 = vmatprep.subr.bf16.mxu0 0
        %5803 = vmatpush1.bf16.msra.mxu0 0
        %5804 = vmatprep.mubr.bf16.mxu0 0
        %5805 = vmatmul.mubr.bf16.gmra.mrb[0].mxu0 %v5758
        %v5806 = vpop.f32.mrb[0].mxu0
        %v5807 = vadd.f32 0.0, %v5806
        %v5808 = vpop.f32.mrb[0].mxu0
        %v5809 = vpop.f32.mrb[0].mxu0
        %v5810 = vadd.f32 0.0, %v5809
        %v5811 = vpop.f32.mrb[0].mxu0
        %5812 = vmatprep.mubr.bf16.mxu0 0
        %5813 = vmatmul.mubr.bf16.gmra.mrb[0].mxu0 %v5761
        %v5814 = vpop.f32.mrb[0].mxu0
        %v5815 = vadd.f32 0.0, %v5814
        %v5816 = vpop.f32.mrb[0].mxu0
        %v5817 = vpop.f32.mrb[0].mxu0
        %v5818 = vadd.f32 0.0, %v5817
        %v5819 = vpop.f32.mrb[0].mxu0
        %5820 = vmatprep.mubr.bf16.mxu0 0
        %5821 = vmatmul.mubr.bf16.gmra.mrb[0].mxu0 %v5764
        %v5822 = vpop.f32.mrb[0].mxu0
        %v5823 = vadd.f32 0.0, %v5822
        %v5824 = vpop.f32.mrb[0].mxu0
        %v5825 = vpop.f32.mrb[0].mxu0
        %v5826 = vadd.f32 0.0, %v5825
        %v5827 = vpop.f32.mrb[0].mxu0
        %5828 = vmatprep.mubr.bf16.mxu0 0
        %5829 = vmatmul.mubr.bf16.gmra.mrb[0].mxu0 %v5767
        %v5830 = vpop.f32.mrb[0].mxu0
        %v5831 = vadd.f32 0.0, %v5830
        %v5832 = vpop.f32.mrb[0].mxu0
        %v5833 = vpop.f32.mrb[0].mxu0
        %v5834 = vadd.f32 0.0, %v5833
        %v5835 = vpop.f32.mrb[0].mxu0
        %5836 = vdwg.mxu0
        %v5837 = vadd.f32 %v5731, %v5807
        %v5838 = vadd.f32 %v5732, %v5810
        %v5839 = vadd.f32 %v5733, %v5815
        %v5840 = vadd.f32 %v5734, %v5818
        %v5841 = vadd.f32 %v5735, %v5823
        %v5842 = vadd.f32 %v5736, %v5826
        %v5843 = vadd.f32 %v5737, %v5831
        %v5844 = vadd.f32 %v5738, %v5834
        %v5846 = vunpack.c.l.s4 1966171168
        %v5847 = vunpack.c.0.s8 %v5846
        %v5848 = vlaneseq
        %v5849 = vshrl.u32 %v5848, 7
        %v5850 = vsub.s32 %v5847, %v5849
        %v5851 = vrot.slane %v2231, %v5850
        %v5853 = vunpack.c.l.s4 1966171168
        %v5854 = vunpack.c.0.s8 %v5853
        %v5855 = vlaneseq
        %v5856 = vshrl.u32 %v5855, 7
        %v5857 = vsub.s32 %v5854, %v5856
        %v5858 = vrot.slane %v5851, %v5857
        %v5859 = vunpack.c.l.b16 %v5858
        %v5860 = vsel %vm3193, %v5741, %v5626
        %v5861 = vsel %vm3196, %v5743, %v5860
        %v5862 = vsel %vm3199, %v5745, %v5861
        %v5863 = vsel %vm3202, %v5747, %v5862
        %v5864 = vsel %vm3205, %v5749, %v5863
        %v5865 = vsel %vm3208, %v5751, %v5864
        %v5866 = vrot.slane %v5859, 1
        %v5867 = vsel %vm3211, %v5866, %v5865
        %v5868 = vpack.c.b16 %v3736, %v3728
        %v5869 = vpack.c.b16 %v3752, %v3744
        %v5870 = vpack.c.b16 %v3768, %v3760
        %v5871 = vpack.c.b16 %v5867, %v3776
        %v5873 = vsel %vm3315, %v5868, 0
        %v5876 = vsel %vm3315, %v5869, 0
        %v5879 = vsel %vm3315, %v5870, 0
        %v5882 = vsel %vm3315, %v5871, 0
        %v5885 = vsel %vm3328, %v1075, 0
        %5887 = vmatprep.subr.bf16.mxu0 0
        %5888 = vmatpush1.bf16.msra.mxu0 %v5885
        %5889 = vmatprep.subr.bf16.mxu0 0
        %5890 = vmatpush1.bf16.msra.mxu0 0
        %5891 = vmatprep.subr.bf16.mxu0 0
        %5892 = vmatpush1.bf16.msra.mxu0 0
        %5893 = vmatprep.subr.bf16.mxu0 0
        %5894 = vmatpush1.bf16.msra.mxu0 0
        %5895 = vmatprep.subr.bf16.mxu0 0
        %5896 = vmatpush1.bf16.msra.mxu0 0
        %5897 = vmatprep.subr.bf16.mxu0 0
        %5898 = vmatpush1.bf16.msra.mxu0 0
        %5899 = vmatprep.subr.bf16.mxu0 0
        %5900 = vmatpush1.bf16.msra.mxu0 0
        %5901 = vmatprep.subr.bf16.mxu0 0
        %5902 = vmatpush1.bf16.msra.mxu0 0
        %5903 = vmatprep.subr.bf16.mxu0 0
        %5904 = vmatpush1.bf16.msra.mxu0 0
        %5905 = vmatprep.subr.bf16.mxu0 0
        %5906 = vmatpush1.bf16.msra.mxu0 0
        %5907 = vmatprep.subr.bf16.mxu0 0
        %5908 = vmatpush1.bf16.msra.mxu0 0
        %5909 = vmatprep.subr.bf16.mxu0 0
        %5910 = vmatpush1.bf16.msra.mxu0 0
        %5911 = vmatprep.subr.bf16.mxu0 0
        %5912 = vmatpush1.bf16.msra.mxu0 0
        %5913 = vmatprep.subr.bf16.mxu0 0
        %5914 = vmatpush1.bf16.msra.mxu0 0
        %5915 = vmatprep.subr.bf16.mxu0 0
        %5916 = vmatpush1.bf16.msra.mxu0 0
        %5917 = vmatprep.subr.bf16.mxu0 0
        %5918 = vmatpush1.bf16.msra.mxu0 0
        %5919 = vmatprep.mubr.bf16.mxu0 0
        %5920 = vmatmul.mubr.bf16.gmra.mrb[0].mxu0 %v5873
        %v5921 = vpop.f32.mrb[0].mxu0
        %v5922 = vadd.f32 0.0, %v5921
        %v5923 = vpop.f32.mrb[0].mxu0
        %v5924 = vpop.f32.mrb[0].mxu0
        %v5925 = vadd.f32 0.0, %v5924
        %v5926 = vpop.f32.mrb[0].mxu0
        %5927 = vmatprep.mubr.bf16.mxu0 0
        %5928 = vmatmul.mubr.bf16.gmra.mrb[0].mxu0 %v5876
        %v5929 = vpop.f32.mrb[0].mxu0
        %v5930 = vadd.f32 0.0, %v5929
        %v5931 = vpop.f32.mrb[0].mxu0
        %v5932 = vpop.f32.mrb[0].mxu0
        %v5933 = vadd.f32 0.0, %v5932
        %v5934 = vpop.f32.mrb[0].mxu0
        %5935 = vmatprep.mubr.bf16.mxu0 0
        %5936 = vmatmul.mubr.bf16.gmra.mrb[0].mxu0 %v5879
        %v5937 = vpop.f32.mrb[0].mxu0
        %v5938 = vadd.f32 0.0, %v5937
        %v5939 = vpop.f32.mrb[0].mxu0
        %v5940 = vpop.f32.mrb[0].mxu0
        %v5941 = vadd.f32 0.0, %v5940
        %v5942 = vpop.f32.mrb[0].mxu0
        %5943 = vmatprep.mubr.bf16.mxu0 0
        %5944 = vmatmul.mubr.bf16.gmra.mrb[0].mxu0 %v5882
        %v5945 = vpop.f32.mrb[0].mxu0
        %v5946 = vadd.f32 0.0, %v5945
        %v5947 = vpop.f32.mrb[0].mxu0
        %v5948 = vpop.f32.mrb[0].mxu0
        %v5949 = vadd.f32 0.0, %v5948
        %v5950 = vpop.f32.mrb[0].mxu0
        %5951 = vdwg.mxu0
        %v5952 = vadd.f32 %v5837, %v5922
        %v5953 = vadd.f32 %v5838, %v5925
        %v5954 = vadd.f32 %v5839, %v5930
        %v5955 = vadd.f32 %v5840, %v5933
        %v5956 = vadd.f32 %v5841, %v5938
        %v5957 = vadd.f32 %v5842, %v5941
        %v5958 = vadd.f32 %v5843, %v5946
        %v5959 = vadd.f32 %v5844, %v5949
        %v5960 = vld [vmem:[%s2] sm:$0x1]
        %v5962 = vlaneseq
        %v5963 = vshrl.u32 %v5962, 7
        %v5964 = vsub.s32 0, %v5963
        %v5965 = vrot.slane %v5960, %v5964
        %v5967 = vadd.f32 %v5952, %v5965
        %v5968 = vadd.f32 %v5953, %v5965
        %v5969 = vadd.f32 %v5954, %v5965
        %v5970 = vadd.f32 %v5955, %v5965
        %v5971 = vadd.f32 %v5956, %v5965
        %v5972 = vadd.f32 %v5957, %v5965
        %v5973 = vadd.f32 %v5958, %v5965
        %v5974 = vadd.f32 %v5959, %v5965
        %v5975 = vmax.f32 %v5967, 0.0
        %v5976 = vmax.f32 %v5968, 0.0
        %v5977 = vmax.f32 %v5969, 0.0
        %v5978 = vmax.f32 %v5970, 0.0
        %v5979 = vmax.f32 %v5971, 0.0
        %v5980 = vmax.f32 %v5972, 0.0
        %v5981 = vmax.f32 %v5973, 0.0
        %v5982 = vmax.f32 %v5974, 0.0
      $region66: #{_lambda_.1} parent=63
        #allocation3 [shape = 'u8[40960]{0}', space=vmem, size = 0xa000, scoped, tag = 'scoped memory for _lambda_.1']
        %v5983 = vpack.c.bf16 %v5975, %v5975
        %v5984 = vpack.c.bf16 %v5976, %v5976
        %v5985 = vpack.c.bf16 %v5977, %v5977
        %v5986 = vpack.c.bf16 %v5978, %v5978
        %v5987 = vpack.c.bf16 %v5979, %v5979
        %v5988 = vpack.c.bf16 %v5980, %v5980
        %v5989 = vpack.c.bf16 %v5981, %v5981
        %v5990 = vpack.c.bf16 %v5982, %v5982
        %v5999 = vunpack.c.l.b16 %v5983
        %v6000 = vunpack.c.l.b16 %v5984
        %v6001 = vunpack.c.l.b16 %v5985
        %v6002 = vunpack.c.l.b16 %v5986
        %v6003 = vunpack.c.l.b16 %v5987
        %v6004 = vunpack.c.l.b16 %v5988
        %v6005 = vunpack.c.l.b16 %v5989
        %v6006 = vunpack.c.l.b16 %v5990
        %v6007 = vpack.c.b16 %v5999, %v5999
        %v6008 = vpack.c.b16 %v6000, %v6000
        %v6009 = vpack.c.b16 %v6001, %v6001
        %v6010 = vpack.c.b16 %v6002, %v6002
        %v6011 = vpack.c.b16 %v6003, %v6003
        %v6012 = vpack.c.b16 %v6004, %v6004
        %v6013 = vpack.c.b16 %v6005, %v6005
        %v6014 = vpack.c.b16 %v6006, %v6006
        %v6016 = vshrl.u32 %v6007, 16
        %v6018 = vrot.slane %v6016, 7
        %v6019 = vshll.u32 %v6007, 16
        %v6021 = vor.u32 %v6018, %v6019
        %v6022 = vrot.slane %v6018, 4
        %v6024 = vshrl.u32 %v6008, 16
        %v6026 = vrot.slane %v6024, 7
        %v6027 = vshll.u32 %v6008, 16
        %v6029 = vor.u32 %v6026, %v6027
        %v6030 = vrot.slane %v6026, 4
        %v6032 = vshrl.u32 %v6009, 16
        %v6034 = vrot.slane %v6032, 7
        %v6035 = vshll.u32 %v6009, 16
        %v6037 = vor.u32 %v6034, %v6035
        %v6038 = vrot.slane %v6034, 4
        %v6040 = vshrl.u32 %v6010, 16
        %v6042 = vrot.slane %v6040, 7
        %v6043 = vshll.u32 %v6010, 16
        %v6045 = vor.u32 %v6042, %v6043
        %v6046 = vrot.slane %v6042, 4
        %v6048 = vshrl.u32 %v6011, 16
        %v6050 = vrot.slane %v6048, 7
        %v6051 = vshll.u32 %v6011, 16
        %v6053 = vor.u32 %v6050, %v6051
        %v6054 = vrot.slane %v6050, 4
        %v6056 = vshrl.u32 %v6012, 16
        %v6058 = vrot.slane %v6056, 7
        %v6059 = vshll.u32 %v6012, 16
        %v6061 = vor.u32 %v6058, %v6059
        %v6062 = vrot.slane %v6058, 4
        %v6064 = vshrl.u32 %v6013, 16
        %v6066 = vrot.slane %v6064, 7
        %v6067 = vshll.u32 %v6013, 16
        %v6069 = vor.u32 %v6066, %v6067
        %v6070 = vrot.slane %v6066, 4
        %v6072 = vshrl.u32 %v6014, 16
        %v6074 = vrot.slane %v6072, 7
        %v6075 = vshll.u32 %v6014, 16
        %v6077 = vor.u32 %v6074, %v6075
        %v6078 = vrot.slane %v6074, 4
        %s6095 = scalar_lea.vmem [#allocation3], 8
        %vm6096 = vcmask 60416
        %vm6097 = vsmask.f32 7938
        %vm6098 = vmand %vm6096, %vm6097
        %v6099 = vld [vmem:[%s6095] sm:$0xf]
        %v6100 = vsel %vm6098, %v6021, %v6099
        %6101 = vst [vmem:[%s6095] sm:$0xf] %v6100
        %vm6102 = vcmask 57344
        %vm6103 = vsmask.f32 256
        %vm6104 = vmand %vm6102, %vm6103
        %v6105 = vld [vmem:[%s6095 + $0x4] sm:$0x1]
        %v6106 = vsel %vm6104, %v6022, %v6105
        %6107 = vst [vmem:[%s6095 + $0x4] sm:$0x1] %v6106
        %v6108 = vld [vmem:[%s6095 + $0x8] sm:$0xf]
        %v6109 = vsel %vm6098, %v6029, %v6108
        %6110 = vst [vmem:[%s6095 + $0x8] sm:$0xf] %v6109
        %v6111 = vld [vmem:[%s6095 + $0xc] sm:$0x1]
        %v6112 = vsel %vm6104, %v6030, %v6111
        %6113 = vst [vmem:[%s6095 + $0xc] sm:$0x1] %v6112
        %v6114 = vld [vmem:[%s6095 + $0x10] sm:$0xf]
        %v6115 = vsel %vm6098, %v6037, %v6114
        %6116 = vst [vmem:[%s6095 + $0x10] sm:$0xf] %v6115
        %v6117 = vld [vmem:[%s6095 + $0x14] sm:$0x1]
        %v6118 = vsel %vm6104, %v6038, %v6117
        %6119 = vst [vmem:[%s6095 + $0x14] sm:$0x1] %v6118
        %v6120 = vld [vmem:[%s6095 + $0x18] sm:$0xf]
        %v6121 = vsel %vm6098, %v6045, %v6120
        %6122 = vst [vmem:[%s6095 + $0x18] sm:$0xf] %v6121
        %v6123 = vld [vmem:[%s6095 + $0x1c] sm:$0x1]
        %v6124 = vsel %vm6104, %v6046, %v6123
        %6125 = vst [vmem:[%s6095 + $0x1c] sm:$0x1] %v6124
        %v6126 = vld [vmem:[%s6095 + $0x20] sm:$0xf]
        %v6127 = vsel %vm6098, %v6053, %v6126
        %6128 = vst [vmem:[%s6095 + $0x20] sm:$0xf] %v6127
        %v6129 = vld [vmem:[%s6095 + $0x24] sm:$0x1]
        %v6130 = vsel %vm6104, %v6054, %v6129
        %6131 = vst [vmem:[%s6095 + $0x24] sm:$0x1] %v6130
        %v6132 = vld [vmem:[%s6095 + $0x28] sm:$0xf]
        %v6133 = vsel %vm6098, %v6061, %v6132
        %6134 = vst [vmem:[%s6095 + $0x28] sm:$0xf] %v6133
        %v6135 = vld [vmem:[%s6095 + $0x2c] sm:$0x1]
        %v6136 = vsel %vm6104, %v6062, %v6135
        %6137 = vst [vmem:[%s6095 + $0x2c] sm:$0x1] %v6136
        %v6138 = vld [vmem:[%s6095 + $0x30] sm:$0xf]
        %v6139 = vsel %vm6098, %v6069, %v6138
        %6140 = vst [vmem:[%s6095 + $0x30] sm:$0xf] %v6139
        %v6141 = vld [vmem:[%s6095 + $0x34] sm:$0x1]
        %v6142 = vsel %vm6104, %v6070, %v6141
        %6143 = vst [vmem:[%s6095 + $0x34] sm:$0x1] %v6142
        %v6144 = vld [vmem:[%s6095 + $0x38] sm:$0xf]
        %v6145 = vsel %vm6098, %v6077, %v6144
        %6146 = vst [vmem:[%s6095 + $0x38] sm:$0xf] %v6145
        %v6147 = vld [vmem:[%s6095 + $0x3c] sm:$0x1]
        %v6148 = vsel %vm6104, %v6078, %v6147
        %6149 = vst [vmem:[%s6095 + $0x3c] sm:$0x1] %v6148
        %v6150 = vrot.slane %v6016, 4
        %v6151 = vrot.slane %v6150, 4
        %v6152 = vrot.slane %v6024, 4
        %v6153 = vrot.slane %v6152, 4
        %v6154 = vrot.slane %v6032, 4
        %v6155 = vrot.slane %v6154, 4
        %v6156 = vrot.slane %v6040, 4
        %v6157 = vrot.slane %v6156, 4
        %v6158 = vrot.slane %v6048, 4
        %v6159 = vrot.slane %v6158, 4
        %v6160 = vrot.slane %v6056, 4
        %v6161 = vrot.slane %v6160, 4
        %v6162 = vrot.slane %v6064, 4
        %v6163 = vrot.slane %v6162, 4
        %v6164 = vrot.slane %v6072, 4
        %v6165 = vrot.slane %v6164, 4
        %v6174 = vld [vmem:[%s6095] sm:$0x1]
        %v6175 = vsel %vm6104, %v6151, %v6174
        %6176 = vst [vmem:[%s6095] sm:$0x1] %v6175
        %v6177 = vld [vmem:[%s6095 + $0x8] sm:$0x1]
        %v6178 = vsel %vm6104, %v6153, %v6177
        %6179 = vst [vmem:[%s6095 + $0x8] sm:$0x1] %v6178
        %v6180 = vld [vmem:[%s6095 + $0x10] sm:$0x1]
        %v6181 = vsel %vm6104, %v6155, %v6180
        %6182 = vst [vmem:[%s6095 + $0x10] sm:$0x1] %v6181
        %v6183 = vld [vmem:[%s6095 + $0x18] sm:$0x1]
        %v6184 = vsel %vm6104, %v6157, %v6183
        %6185 = vst [vmem:[%s6095 + $0x18] sm:$0x1] %v6184
        %v6186 = vld [vmem:[%s6095 + $0x20] sm:$0x1]
        %v6187 = vsel %vm6104, %v6159, %v6186
        %6188 = vst [vmem:[%s6095 + $0x20] sm:$0x1] %v6187
        %v6189 = vld [vmem:[%s6095 + $0x28] sm:$0x1]
        %v6190 = vsel %vm6104, %v6161, %v6189
        %6191 = vst [vmem:[%s6095 + $0x28] sm:$0x1] %v6190
        %v6192 = vld [vmem:[%s6095 + $0x30] sm:$0x1]
        %v6193 = vsel %vm6104, %v6163, %v6192
        %6194 = vst [vmem:[%s6095 + $0x30] sm:$0x1] %v6193
        %v6195 = vld [vmem:[%s6095 + $0x38] sm:$0x1]
        %v6196 = vsel %vm6104, %v6165, %v6195
        %6197 = vst [vmem:[%s6095 + $0x38] sm:$0x1] %v6196
        %v6198 = vrot.slane %v6019, 7
        %v6199 = vrot.slane %v6198, 4
        %v6200 = vrot.slane %v6027, 7
        %v6201 = vrot.slane %v6200, 4
        %v6202 = vrot.slane %v6035, 7
        %v6203 = vrot.slane %v6202, 4
        %v6204 = vrot.slane %v6043, 7
        %v6205 = vrot.slane %v6204, 4
        %v6206 = vrot.slane %v6051, 7
        %v6207 = vrot.slane %v6206, 4
        %v6208 = vrot.slane %v6059, 7
        %v6209 = vrot.slane %v6208, 4
        %v6210 = vrot.slane %v6067, 7
        %v6211 = vrot.slane %v6210, 4
        %v6212 = vrot.slane %v6075, 7
        %v6213 = vrot.slane %v6212, 4
        %vm6222 = vmand %vm6102, %vm6097
        %v6223 = vld [vmem:[%s6095 + $0x4] sm:$0x1]
        %v6224 = vsel %vm6222, %v6199, %v6223
        %6225 = vst [vmem:[%s6095 + $0x4] sm:$0x1] %v6224
        %v6226 = vld [vmem:[%s6095 + $0xc] sm:$0x1]
        %v6227 = vsel %vm6222, %v6201, %v6226
        %6228 = vst [vmem:[%s6095 + $0xc] sm:$0x1] %v6227
        %v6229 = vld [vmem:[%s6095 + $0x14] sm:$0x1]
        %v6230 = vsel %vm6222, %v6203, %v6229
        %6231 = vst [vmem:[%s6095 + $0x14] sm:$0x1] %v6230
        %v6232 = vld [vmem:[%s6095 + $0x1c] sm:$0x1]
        %v6233 = vsel %vm6222, %v6205, %v6232
        %6234 = vst [vmem:[%s6095 + $0x1c] sm:$0x1] %v6233
        %v6235 = vld [vmem:[%s6095 + $0x24] sm:$0x1]
        %v6236 = vsel %vm6222, %v6207, %v6235
        %6237 = vst [vmem:[%s6095 + $0x24] sm:$0x1] %v6236
        %v6238 = vld [vmem:[%s6095 + $0x2c] sm:$0x1]
        %v6239 = vsel %vm6222, %v6209, %v6238
        %6240 = vst [vmem:[%s6095 + $0x2c] sm:$0x1] %v6239
        %v6241 = vld [vmem:[%s6095 + $0x34] sm:$0x1]
        %v6242 = vsel %vm6222, %v6211, %v6241
        %6243 = vst [vmem:[%s6095 + $0x34] sm:$0x1] %v6242
        %v6244 = vld [vmem:[%s6095 + $0x3c] sm:$0x1]
        %v6245 = vsel %vm6222, %v6213, %v6244
        %6246 = vst [vmem:[%s6095 + $0x3c] sm:$0x1] %v6245
        %s6247 = scalar_lea.vmem [#allocation3], 16
        %v6248 = vld [vmem:[%s6247] sm:$0xf]
        %v6249 = vld [vmem:[%s6247 + $0x4] sm:$0x1]
        %vm6250 = vcmask 60416
        %6251 = vst.msk [vmem:[#allocation3] sm:$0xf] %vm6250, %v6248
        %vm6252 = vcmask 57344
        %6253 = vst.msk [vmem:[#allocation3 + $0x4] sm:$0x1] %vm6252, %v6249
        %s6254 = scalar_lea.vmem [#allocation3], 56
        %v6255 = vld [vmem:[%s6254] sm:$0xf]
        %v6256 = vld [vmem:[%s6254 + $0x4] sm:$0x1]
        %s6257 = scalar_lea.vmem [#allocation3], 72
        %6258 = vst.msk [vmem:[%s6257] sm:$0xf] %vm6250, %v6255
        %6259 = vst.msk [vmem:[%s6257 + $0x4] sm:$0x1] %vm6252, %v6256
        %v6260 = vld [vmem:[%s3] sm:$0xf]
        %v6261 = vld [vmem:[%s3 + $0x4] sm:$0xf]
        %v6262 = vld [vmem:[%s3 + $0x8] sm:$0xf]
        %v6263 = vld [vmem:[%s3 + $0xc] sm:$0xf]
        %v6264 = vld [vmem:[%s3 + $0x10] sm:$0xf]
        %v6265 = vld [vmem:[%s3 + $0x14] sm:$0xf]
        %v6266 = vld [vmem:[%s3 + $0x18] sm:$0xf]
        %v6267 = vld [vmem:[%s3 + $0x1c] sm:$0xf]
        %v6268 = vld [vmem:[%s3 + $0x20] sm:$0xf]
        %v6269 = vld [vmem:[#allocation3] sm:$0xf]
        %v6270 = vld [vmem:[#allocation3 + $0x8] sm:$0xf]
        %v6271 = vld [vmem:[#allocation3 + $0x10] sm:$0xf]
        %v6272 = vld [vmem:[#allocation3 + $0x18] sm:$0xf]
        %v6273 = vld [vmem:[#allocation3 + $0x20] sm:$0xf]
        %v6274 = vld [vmem:[#allocation3 + $0x28] sm:$0xf]
        %v6275 = vld [vmem:[#allocation3 + $0x30] sm:$0xf]
        %v6276 = vld [vmem:[#allocation3 + $0x38] sm:$0xf]
        %v6277 = vld [vmem:[#allocation3 + $0x4] sm:$0x1]
        %v6278 = vld [vmem:[#allocation3 + $0xc] sm:$0x1]
        %v6279 = vld [vmem:[#allocation3 + $0x14] sm:$0x1]
        %v6280 = vld [vmem:[#allocation3 + $0x1c] sm:$0x1]
        %v6281 = vld [vmem:[#allocation3 + $0x24] sm:$0x1]
        %v6282 = vld [vmem:[#allocation3 + $0x2c] sm:$0x1]
        %v6283 = vld [vmem:[#allocation3 + $0x34] sm:$0x1]
        %v6284 = vld [vmem:[#allocation3 + $0x3c] sm:$0x1]
        %vm6285 = vsmask.f32 3328
        %vm6286 = vsmask.f32 7440
        %vm6287 = vmor %vm6285, %vm6286
        %v6289 = vshrl.u32 %v6269, 16
        %v6291 = vrot.slane %v6289, 4
        %v6292 = vshll.u32 %v6269, 16
        %v6294 = vrot.slane %v6292, 5
        %v6295 = vor.u32 %v6291, %v6294
        %v6296 = vrot.slane %v6295, 4
        %v6298 = vshll.u32 %v6277, 16
        %v6300 = vrot.slane %v6298, 5
        %v6301 = vsel %vm6287, %v6296, %v6300
        %v6303 = vshrl.u32 %v6270, 16
        %v6305 = vrot.slane %v6303, 4
        %v6306 = vshll.u32 %v6270, 16
        %v6308 = vrot.slane %v6306, 5
        %v6309 = vor.u32 %v6305, %v6308
        %v6310 = vrot.slane %v6309, 4
        %v6312 = vshll.u32 %v6278, 16
        %v6314 = vrot.slane %v6312, 5
        %v6315 = vsel %vm6287, %v6310, %v6314
        %v6317 = vshrl.u32 %v6271, 16
        %v6319 = vrot.slane %v6317, 4
        %v6320 = vshll.u32 %v6271, 16
        %v6322 = vrot.slane %v6320, 5
        %v6323 = vor.u32 %v6319, %v6322
        %v6324 = vrot.slane %v6323, 4
        %v6326 = vshll.u32 %v6279, 16
        %v6328 = vrot.slane %v6326, 5
        %v6329 = vsel %vm6287, %v6324, %v6328
        %v6331 = vshrl.u32 %v6272, 16
        %v6333 = vrot.slane %v6331, 4
        %v6334 = vshll.u32 %v6272, 16
        %v6336 = vrot.slane %v6334, 5
        %v6337 = vor.u32 %v6333, %v6336
        %v6338 = vrot.slane %v6337, 4
        %v6340 = vshll.u32 %v6280, 16
        %v6342 = vrot.slane %v6340, 5
        %v6343 = vsel %vm6287, %v6338, %v6342
        %v6345 = vshrl.u32 %v6273, 16
        %v6347 = vrot.slane %v6345, 4
        %v6348 = vshll.u32 %v6273, 16
        %v6350 = vrot.slane %v6348, 5
        %v6351 = vor.u32 %v6347, %v6350
        %v6352 = vrot.slane %v6351, 4
        %v6354 = vshll.u32 %v6281, 16
        %v6356 = vrot.slane %v6354, 5
        %v6357 = vsel %vm6287, %v6352, %v6356
        %v6359 = vshrl.u32 %v6274, 16
        %v6361 = vrot.slane %v6359, 4
        %v6362 = vshll.u32 %v6274, 16
        %v6364 = vrot.slane %v6362, 5
        %v6365 = vor.u32 %v6361, %v6364
        %v6366 = vrot.slane %v6365, 4
        %v6368 = vshll.u32 %v6282, 16
        %v6370 = vrot.slane %v6368, 5
        %v6371 = vsel %vm6287, %v6366, %v6370
        %v6373 = vshrl.u32 %v6275, 16
        %v6375 = vrot.slane %v6373, 4
        %v6376 = vshll.u32 %v6275, 16
        %v6378 = vrot.slane %v6376, 5
        %v6379 = vor.u32 %v6375, %v6378
        %v6380 = vrot.slane %v6379, 4
        %v6382 = vshll.u32 %v6283, 16
        %v6384 = vrot.slane %v6382, 5
        %v6385 = vsel %vm6287, %v6380, %v6384
        %v6387 = vshrl.u32 %v6276, 16
        %v6389 = vrot.slane %v6387, 4
        %v6390 = vshll.u32 %v6276, 16
        %v6392 = vrot.slane %v6390, 5
        %v6393 = vor.u32 %v6389, %v6392
        %v6394 = vrot.slane %v6393, 4
        %v6396 = vshll.u32 %v6284, 16
        %v6398 = vrot.slane %v6396, 5
        %v6399 = vsel %vm6287, %v6394, %v6398
        %v6400 = vunpack.c.l.b16 %v6301
        %v6401 = vunpack.c.l.b16 %v6315
        %v6402 = vunpack.c.l.b16 %v6329
        %v6403 = vunpack.c.l.b16 %v6343
        %v6404 = vunpack.c.l.b16 %v6357
        %v6405 = vunpack.c.l.b16 %v6371
        %v6406 = vunpack.c.l.b16 %v6385
        %v6407 = vunpack.c.l.b16 %v6399
        %v6408 = vpack.c.b16 %v6401, %v6400
        %v6409 = vpack.c.b16 %v6403, %v6402
        %v6410 = vpack.c.b16 %v6405, %v6404
        %v6411 = vpack.c.b16 %v6407, %v6406
        %vm6412 = vcmask 64512
        %v6414 = vsel %vm6412, %v6408, 0
        %v6417 = vsel %vm6412, %v6409, 0
        %v6420 = vsel %vm6412, %v6410, 0
        %v6423 = vsel %vm6412, %v6411, 0
        %vm6425 = vcmask 1043456
        %v6427 = vsel %vm6425, %v6261, 0
        %6429 = vmatprep.subr.bf16.mxu0 0
        %6430 = vmatpush1.bf16.msra.mxu0 %v6427
        %6431 = vmatprep.subr.bf16.mxu0 0
        %6432 = vmatpush1.bf16.msra.mxu0 0
        %6433 = vmatprep.subr.bf16.mxu0 0
        %6434 = vmatpush1.bf16.msra.mxu0 0
        %6435 = vmatprep.subr.bf16.mxu0 0
        %6436 = vmatpush1.bf16.msra.mxu0 0
        %6437 = vmatprep.subr.bf16.mxu0 0
        %6438 = vmatpush1.bf16.msra.mxu0 0
        %6439 = vmatprep.subr.bf16.mxu0 0
        %6440 = vmatpush1.bf16.msra.mxu0 0
        %6441 = vmatprep.subr.bf16.mxu0 0
        %6442 = vmatpush1.bf16.msra.mxu0 0
        %6443 = vmatprep.subr.bf16.mxu0 0
        %6444 = vmatpush1.bf16.msra.mxu0 0
        %6445 = vmatprep.subr.bf16.mxu0 0
        %6446 = vmatpush1.bf16.msra.mxu0 0
        %6447 = vmatprep.subr.bf16.mxu0 0
        %6448 = vmatpush1.bf16.msra.mxu0 0
        %6449 = vmatprep.subr.bf16.mxu0 0
        %6450 = vmatpush1.bf16.msra.mxu0 0
        %6451 = vmatprep.subr.bf16.mxu0 0
        %6452 = vmatpush1.bf16.msra.mxu0 0
        %6453 = vmatprep.subr.bf16.mxu0 0
        %6454 = vmatpush1.bf16.msra.mxu0 0
        %6455 = vmatprep.subr.bf16.mxu0 0
        %6456 = vmatpush1.bf16.msra.mxu0 0
        %6457 = vmatprep.subr.bf16.mxu0 0
        %6458 = vmatpush1.bf16.msra.mxu0 0
        %6459 = vmatprep.subr.bf16.mxu0 0
        %6460 = vmatpush1.bf16.msra.mxu0 0
        %6461 = vmatprep.mubr.bf16.mxu0 0
        %6462 = vmatmul.mubr.bf16.gmra.mrb[0].mxu0 %v6414
        %v6463 = vpop.f32.mrb[0].mxu0
        %v6464 = vadd.f32 0.0, %v6463
        %v6465 = vpop.f32.mrb[0].mxu0
        %v6466 = vpop.f32.mrb[0].mxu0
        %v6467 = vadd.f32 0.0, %v6466
        %v6468 = vpop.f32.mrb[0].mxu0
        %6469 = vmatprep.mubr.bf16.mxu0 0
        %6470 = vmatmul.mubr.bf16.gmra.mrb[0].mxu0 %v6417
        %v6471 = vpop.f32.mrb[0].mxu0
        %v6472 = vadd.f32 0.0, %v6471
        %v6473 = vpop.f32.mrb[0].mxu0
        %v6474 = vpop.f32.mrb[0].mxu0
        %v6475 = vadd.f32 0.0, %v6474
        %v6476 = vpop.f32.mrb[0].mxu0
        %6477 = vmatprep.mubr.bf16.mxu0 0
        %6478 = vmatmul.mubr.bf16.gmra.mrb[0].mxu0 %v6420
        %v6479 = vpop.f32.mrb[0].mxu0
        %v6480 = vadd.f32 0.0, %v6479
        %v6481 = vpop.f32.mrb[0].mxu0
        %v6482 = vpop.f32.mrb[0].mxu0
        %v6483 = vadd.f32 0.0, %v6482
        %v6484 = vpop.f32.mrb[0].mxu0
        %6485 = vmatprep.mubr.bf16.mxu0 0
        %6486 = vmatmul.mubr.bf16.gmra.mrb[0].mxu0 %v6423
        %v6487 = vpop.f32.mrb[0].mxu0
        %v6488 = vadd.f32 0.0, %v6487
        %v6489 = vpop.f32.mrb[0].mxu0
        %v6490 = vpop.f32.mrb[0].mxu0
        %v6491 = vadd.f32 0.0, %v6490
        %v6492 = vpop.f32.mrb[0].mxu0
        %6493 = vdwg.mxu0
        %v6502 = vunpack.c.l.b16 %v6269
        %v6503 = vunpack.c.l.b16 %v6270
        %v6504 = vunpack.c.l.b16 %v6271
        %v6505 = vunpack.c.l.b16 %v6272
        %v6506 = vunpack.c.l.b16 %v6273
        %v6507 = vunpack.c.l.b16 %v6274
        %v6508 = vunpack.c.l.b16 %v6275
        %v6509 = vunpack.c.l.b16 %v6276
        %v6510 = vpack.c.b16 %v6503, %v6502
        %v6511 = vpack.c.b16 %v6505, %v6504
        %v6512 = vpack.c.b16 %v6507, %v6506
        %v6513 = vpack.c.b16 %v6509, %v6508
        %v6515 = vsel %vm6412, %v6510, 0
        %v6518 = vsel %vm6412, %v6511, 0
        %v6521 = vsel %vm6412, %v6512, 0
        %v6524 = vsel %vm6412, %v6513, 0
        %v6527 = vsel %vm6425, %v6260, 0
        %6529 = vmatprep.subr.bf16.mxu0 0
        %6530 = vmatpush1.bf16.msra.mxu0 %v6527
        %6531 = vmatprep.subr.bf16.mxu0 0
        %6532 = vmatpush1.bf16.msra.mxu0 0
        %6533 = vmatprep.subr.bf16.mxu0 0
        %6534 = vmatpush1.bf16.msra.mxu0 0
        %6535 = vmatprep.subr.bf16.mxu0 0
        %6536 = vmatpush1.bf16.msra.mxu0 0
        %6537 = vmatprep.subr.bf16.mxu0 0
        %6538 = vmatpush1.bf16.msra.mxu0 0
        %6539 = vmatprep.subr.bf16.mxu0 0
        %6540 = vmatpush1.bf16.msra.mxu0 0
        %6541 = vmatprep.subr.bf16.mxu0 0
        %6542 = vmatpush1.bf16.msra.mxu0 0
        %6543 = vmatprep.subr.bf16.mxu0 0
        %6544 = vmatpush1.bf16.msra.mxu0 0
        %6545 = vmatprep.subr.bf16.mxu0 0
        %6546 = vmatpush1.bf16.msra.mxu0 0
        %6547 = vmatprep.subr.bf16.mxu0 0
        %6548 = vmatpush1.bf16.msra.mxu0 0
        %6549 = vmatprep.subr.bf16.mxu0 0
        %6550 = vmatpush1.bf16.msra.mxu0 0
        %6551 = vmatprep.subr.bf16.mxu0 0
        %6552 = vmatpush1.bf16.msra.mxu0 0
        %6553 = vmatprep.subr.bf16.mxu0 0
        %6554 = vmatpush1.bf16.msra.mxu0 0
        %6555 = vmatprep.subr.bf16.mxu0 0
        %6556 = vmatpush1.bf16.msra.mxu0 0
        %6557 = vmatprep.subr.bf16.mxu0 0
        %6558 = vmatpush1.bf16.msra.mxu0 0
        %6559 = vmatprep.subr.bf16.mxu0 0
        %6560 = vmatpush1.bf16.msra.mxu0 0
        %6561 = vmatprep.mubr.bf16.mxu0 0
        %6562 = vmatmul.mubr.bf16.gmra.mrb[0].mxu0 %v6515
        %v6563 = vpop.f32.mrb[0].mxu0
        %v6564 = vadd.f32 %v6464, %v6563
        %v6565 = vpop.f32.mrb[0].mxu0
        %v6566 = vpop.f32.mrb[0].mxu0
        %v6567 = vadd.f32 %v6467, %v6566
        %v6568 = vpop.f32.mrb[0].mxu0
        %6569 = vmatprep.mubr.bf16.mxu0 0
        %6570 = vmatmul.mubr.bf16.gmra.mrb[0].mxu0 %v6518
        %v6571 = vpop.f32.mrb[0].mxu0
        %v6572 = vadd.f32 %v6472, %v6571
        %v6573 = vpop.f32.mrb[0].mxu0
        %v6574 = vpop.f32.mrb[0].mxu0
        %v6575 = vadd.f32 %v6475, %v6574
        %v6576 = vpop.f32.mrb[0].mxu0
        %6577 = vmatprep.mubr.bf16.mxu0 0
        %6578 = vmatmul.mubr.bf16.gmra.mrb[0].mxu0 %v6521
        %v6579 = vpop.f32.mrb[0].mxu0
        %v6580 = vadd.f32 %v6480, %v6579
        %v6581 = vpop.f32.mrb[0].mxu0
        %v6582 = vpop.f32.mrb[0].mxu0
        %v6583 = vadd.f32 %v6483, %v6582
        %v6584 = vpop.f32.mrb[0].mxu0
        %6585 = vmatprep.mubr.bf16.mxu0 0
        %6586 = vmatmul.mubr.bf16.gmra.mrb[0].mxu0 %v6524
        %v6587 = vpop.f32.mrb[0].mxu0
        %v6588 = vadd.f32 %v6488, %v6587
        %v6589 = vpop.f32.mrb[0].mxu0
        %v6590 = vpop.f32.mrb[0].mxu0
        %v6591 = vadd.f32 %v6491, %v6590
        %v6592 = vpop.f32.mrb[0].mxu0
        %6593 = vdwg.mxu0
        %v6594 = vld [vmem:[#allocation3] sm:$0xe]
        %v6595 = vld [vmem:[#allocation3 + $0x8] sm:$0xe]
        %v6596 = vld [vmem:[#allocation3 + $0x10] sm:$0xe]
        %v6597 = vld [vmem:[#allocation3 + $0x18] sm:$0xe]
        %v6598 = vld [vmem:[#allocation3 + $0x20] sm:$0xe]
        %v6599 = vld [vmem:[#allocation3 + $0x28] sm:$0xe]
        %v6600 = vld [vmem:[#allocation3 + $0x30] sm:$0xe]
        %v6601 = vld [vmem:[#allocation3 + $0x38] sm:$0xe]
        %vm6618 = vcmask 1042432
        %vm6619 = vcmask 1046532
        %vm6620 = vmor %vm6618, %vm6619
        %v6621 = vrot.slane %v6594, 5
        %v6622 = vrot.slane %v6621, 4
        %v6623 = vrot.slane %v6277, 5
        %v6624 = vsel %vm6620, %v6622, %v6623
        %v6625 = vrot.slane %v6595, 5
        %v6626 = vrot.slane %v6625, 4
        %v6627 = vrot.slane %v6278, 5
        %v6628 = vsel %vm6620, %v6626, %v6627
        %v6629 = vrot.slane %v6596, 5
        %v6630 = vrot.slane %v6629, 4
        %v6631 = vrot.slane %v6279, 5
        %v6632 = vsel %vm6620, %v6630, %v6631
        %v6633 = vrot.slane %v6597, 5
        %v6634 = vrot.slane %v6633, 4
        %v6635 = vrot.slane %v6280, 5
        %v6636 = vsel %vm6620, %v6634, %v6635
        %v6637 = vrot.slane %v6598, 5
        %v6638 = vrot.slane %v6637, 4
        %v6639 = vrot.slane %v6281, 5
        %v6640 = vsel %vm6620, %v6638, %v6639
        %v6641 = vrot.slane %v6599, 5
        %v6642 = vrot.slane %v6641, 4
        %v6643 = vrot.slane %v6282, 5
        %v6644 = vsel %vm6620, %v6642, %v6643
        %v6645 = vrot.slane %v6600, 5
        %v6646 = vrot.slane %v6645, 4
        %v6647 = vrot.slane %v6283, 5
        %v6648 = vsel %vm6620, %v6646, %v6647
        %v6649 = vrot.slane %v6601, 5
        %v6650 = vrot.slane %v6649, 4
        %v6651 = vrot.slane %v6284, 5
        %v6652 = vsel %vm6620, %v6650, %v6651
        %v6653 = vunpack.c.l.b16 %v6624
        %v6654 = vunpack.c.l.b16 %v6628
        %v6655 = vunpack.c.l.b16 %v6632
        %v6656 = vunpack.c.l.b16 %v6636
        %v6657 = vunpack.c.l.b16 %v6640
        %v6658 = vunpack.c.l.b16 %v6644
        %v6659 = vunpack.c.l.b16 %v6648
        %v6660 = vunpack.c.l.b16 %v6652
        %v6661 = vpack.c.b16 %v6654, %v6653
        %v6662 = vpack.c.b16 %v6656, %v6655
        %v6663 = vpack.c.b16 %v6658, %v6657
        %v6664 = vpack.c.b16 %v6660, %v6659
        %v6666 = vsel %vm6412, %v6661, 0
        %v6669 = vsel %vm6412, %v6662, 0
        %v6672 = vsel %vm6412, %v6663, 0
        %v6675 = vsel %vm6412, %v6664, 0
        %v6678 = vsel %vm6425, %v6262, 0
        %6680 = vmatprep.subr.bf16.mxu0 0
        %6681 = vmatpush1.bf16.msra.mxu0 %v6678
        %6682 = vmatprep.subr.bf16.mxu0 0
        %6683 = vmatpush1.bf16.msra.mxu0 0
        %6684 = vmatprep.subr.bf16.mxu0 0
        %6685 = vmatpush1.bf16.msra.mxu0 0
        %6686 = vmatprep.subr.bf16.mxu0 0
        %6687 = vmatpush1.bf16.msra.mxu0 0
        %6688 = vmatprep.subr.bf16.mxu0 0
        %6689 = vmatpush1.bf16.msra.mxu0 0
        %6690 = vmatprep.subr.bf16.mxu0 0
        %6691 = vmatpush1.bf16.msra.mxu0 0
        %6692 = vmatprep.subr.bf16.mxu0 0
        %6693 = vmatpush1.bf16.msra.mxu0 0
        %6694 = vmatprep.subr.bf16.mxu0 0
        %6695 = vmatpush1.bf16.msra.mxu0 0
        %6696 = vmatprep.subr.bf16.mxu0 0
        %6697 = vmatpush1.bf16.msra.mxu0 0
        %6698 = vmatprep.subr.bf16.mxu0 0
        %6699 = vmatpush1.bf16.msra.mxu0 0
        %6700 = vmatprep.subr.bf16.mxu0 0
        %6701 = vmatpush1.bf16.msra.mxu0 0
        %6702 = vmatprep.subr.bf16.mxu0 0
        %6703 = vmatpush1.bf16.msra.mxu0 0
        %6704 = vmatprep.subr.bf16.mxu0 0
        %6705 = vmatpush1.bf16.msra.mxu0 0
        %6706 = vmatprep.subr.bf16.mxu0 0
        %6707 = vmatpush1.bf16.msra.mxu0 0
        %6708 = vmatprep.subr.bf16.mxu0 0
        %6709 = vmatpush1.bf16.msra.mxu0 0
        %6710 = vmatprep.subr.bf16.mxu0 0
        %6711 = vmatpush1.bf16.msra.mxu0 0
        %6712 = vmatprep.mubr.bf16.mxu0 0
        %6713 = vmatmul.mubr.bf16.gmra.mrb[0].mxu0 %v6666
        %v6714 = vpop.f32.mrb[0].mxu0
        %v6715 = vadd.f32 0.0, %v6714
        %v6716 = vpop.f32.mrb[0].mxu0
        %v6717 = vpop.f32.mrb[0].mxu0
        %v6718 = vadd.f32 0.0, %v6717
        %v6719 = vpop.f32.mrb[0].mxu0
        %6720 = vmatprep.mubr.bf16.mxu0 0
        %6721 = vmatmul.mubr.bf16.gmra.mrb[0].mxu0 %v6669
        %v6722 = vpop.f32.mrb[0].mxu0
        %v6723 = vadd.f32 0.0, %v6722
        %v6724 = vpop.f32.mrb[0].mxu0
        %v6725 = vpop.f32.mrb[0].mxu0
        %v6726 = vadd.f32 0.0, %v6725
        %v6727 = vpop.f32.mrb[0].mxu0
        %6728 = vmatprep.mubr.bf16.mxu0 0
        %6729 = vmatmul.mubr.bf16.gmra.mrb[0].mxu0 %v6672
        %v6730 = vpop.f32.mrb[0].mxu0
        %v6731 = vadd.f32 0.0, %v6730
        %v6732 = vpop.f32.mrb[0].mxu0
        %v6733 = vpop.f32.mrb[0].mxu0
        %v6734 = vadd.f32 0.0, %v6733
        %v6735 = vpop.f32.mrb[0].mxu0
        %6736 = vmatprep.mubr.bf16.mxu0 0
        %6737 = vmatmul.mubr.bf16.gmra.mrb[0].mxu0 %v6675
        %v6738 = vpop.f32.mrb[0].mxu0
        %v6739 = vadd.f32 0.0, %v6738
        %v6740 = vpop.f32.mrb[0].mxu0
        %v6741 = vpop.f32.mrb[0].mxu0
        %v6742 = vadd.f32 0.0, %v6741
        %v6743 = vpop.f32.mrb[0].mxu0
        %6744 = vdwg.mxu0
        %v6745 = vadd.f32 %v6564, %v6715
        %v6746 = vadd.f32 %v6567, %v6718
        %v6747 = vadd.f32 %v6572, %v6723
        %v6748 = vadd.f32 %v6575, %v6726
        %v6749 = vadd.f32 %v6580, %v6731
        %v6750 = vadd.f32 %v6583, %v6734
        %v6751 = vadd.f32 %v6588, %v6739
        %v6752 = vadd.f32 %v6591, %v6742
        %v6753 = vld [vmem:[%s6095] sm:$0xf]
        %v6754 = vld [vmem:[%s6095 + $0x8] sm:$0xf]
        %v6755 = vld [vmem:[%s6095 + $0x10] sm:$0xf]
        %v6756 = vld [vmem:[%s6095 + $0x18] sm:$0xf]
        %v6757 = vld [vmem:[%s6095 + $0x20] sm:$0xf]
        %v6758 = vld [vmem:[%s6095 + $0x28] sm:$0xf]
        %v6759 = vld [vmem:[%s6095 + $0x30] sm:$0xf]
        %v6760 = vld [vmem:[%s6095 + $0x38] sm:$0xf]
        %v6769 = vunpack.c.l.b16 %v6753
        %v6770 = vunpack.c.l.b16 %v6754
        %v6771 = vunpack.c.l.b16 %v6755
        %v6772 = vunpack.c.l.b16 %v6756
        %v6773 = vunpack.c.l.b16 %v6757
        %v6774 = vunpack.c.l.b16 %v6758
        %v6775 = vunpack.c.l.b16 %v6759
        %v6776 = vunpack.c.l.b16 %v6760
        %v6777 = vpack.c.b16 %v6770, %v6769
        %v6778 = vpack.c.b16 %v6772, %v6771
        %v6779 = vpack.c.b16 %v6774, %v6773
        %v6780 = vpack.c.b16 %v6776, %v6775
        %v6782 = vsel %vm6412, %v6777, 0
        %v6785 = vsel %vm6412, %v6778, 0
        %v6788 = vsel %vm6412, %v6779, 0
        %v6791 = vsel %vm6412, %v6780, 0
        %v6794 = vsel %vm6425, %v6263, 0
        %6796 = vmatprep.subr.bf16.mxu0 0
        %6797 = vmatpush1.bf16.msra.mxu0 %v6794
        %6798 = vmatprep.subr.bf16.mxu0 0
        %6799 = vmatpush1.bf16.msra.mxu0 0
        %6800 = vmatprep.subr.bf16.mxu0 0
        %6801 = vmatpush1.bf16.msra.mxu0 0
        %6802 = vmatprep.subr.bf16.mxu0 0
        %6803 = vmatpush1.bf16.msra.mxu0 0
        %6804 = vmatprep.subr.bf16.mxu0 0
        %6805 = vmatpush1.bf16.msra.mxu0 0
        %6806 = vmatprep.subr.bf16.mxu0 0
        %6807 = vmatpush1.bf16.msra.mxu0 0
        %6808 = vmatprep.subr.bf16.mxu0 0
        %6809 = vmatpush1.bf16.msra.mxu0 0
        %6810 = vmatprep.subr.bf16.mxu0 0
        %6811 = vmatpush1.bf16.msra.mxu0 0
        %6812 = vmatprep.subr.bf16.mxu0 0
        %6813 = vmatpush1.bf16.msra.mxu0 0
        %6814 = vmatprep.subr.bf16.mxu0 0
        %6815 = vmatpush1.bf16.msra.mxu0 0
        %6816 = vmatprep.subr.bf16.mxu0 0
        %6817 = vmatpush1.bf16.msra.mxu0 0
        %6818 = vmatprep.subr.bf16.mxu0 0
        %6819 = vmatpush1.bf16.msra.mxu0 0
        %6820 = vmatprep.subr.bf16.mxu0 0
        %6821 = vmatpush1.bf16.msra.mxu0 0
        %6822 = vmatprep.subr.bf16.mxu0 0
        %6823 = vmatpush1.bf16.msra.mxu0 0
        %6824 = vmatprep.subr.bf16.mxu0 0
        %6825 = vmatpush1.bf16.msra.mxu0 0
        %6826 = vmatprep.subr.bf16.mxu0 0
        %6827 = vmatpush1.bf16.msra.mxu0 0
        %6828 = vmatprep.mubr.bf16.mxu0 0
        %6829 = vmatmul.mubr.bf16.gmra.mrb[0].mxu0 %v6782
        %v6830 = vpop.f32.mrb[0].mxu0
        %v6831 = vadd.f32 0.0, %v6830
        %v6832 = vpop.f32.mrb[0].mxu0
        %v6833 = vpop.f32.mrb[0].mxu0
        %v6834 = vadd.f32 0.0, %v6833
        %v6835 = vpop.f32.mrb[0].mxu0
        %6836 = vmatprep.mubr.bf16.mxu0 0
        %6837 = vmatmul.mubr.bf16.gmra.mrb[0].mxu0 %v6785
        %v6838 = vpop.f32.mrb[0].mxu0
        %v6839 = vadd.f32 0.0, %v6838
        %v6840 = vpop.f32.mrb[0].mxu0
        %v6841 = vpop.f32.mrb[0].mxu0
        %v6842 = vadd.f32 0.0, %v6841
        %v6843 = vpop.f32.mrb[0].mxu0
        %6844 = vmatprep.mubr.bf16.mxu0 0
        %6845 = vmatmul.mubr.bf16.gmra.mrb[0].mxu0 %v6788
        %v6846 = vpop.f32.mrb[0].mxu0
        %v6847 = vadd.f32 0.0, %v6846
        %v6848 = vpop.f32.mrb[0].mxu0
        %v6849 = vpop.f32.mrb[0].mxu0
        %v6850 = vadd.f32 0.0, %v6849
        %v6851 = vpop.f32.mrb[0].mxu0
        %6852 = vmatprep.mubr.bf16.mxu0 0
        %6853 = vmatmul.mubr.bf16.gmra.mrb[0].mxu0 %v6791
        %v6854 = vpop.f32.mrb[0].mxu0
        %v6855 = vadd.f32 0.0, %v6854
        %v6856 = vpop.f32.mrb[0].mxu0
        %v6857 = vpop.f32.mrb[0].mxu0
        %v6858 = vadd.f32 0.0, %v6857
        %v6859 = vpop.f32.mrb[0].mxu0
        %6860 = vdwg.mxu0
        %v6861 = vadd.f32 %v6745, %v6831
        %v6862 = vadd.f32 %v6746, %v6834
        %v6863 = vadd.f32 %v6747, %v6839
        %v6864 = vadd.f32 %v6748, %v6842
        %v6865 = vadd.f32 %v6749, %v6847
        %v6866 = vadd.f32 %v6750, %v6850
        %v6867 = vadd.f32 %v6751, %v6855
        %v6868 = vadd.f32 %v6752, %v6858
        %v6869 = vld [vmem:[%s6095] sm:$0xf]
        %v6870 = vld [vmem:[%s6095 + $0x4] sm:$0x1]
        %v6871 = vld [vmem:[%s6095 + $0x8] sm:$0xf]
        %v6872 = vld [vmem:[%s6095 + $0xc] sm:$0x1]
        %v6873 = vld [vmem:[%s6095 + $0x10] sm:$0xf]
        %v6874 = vld [vmem:[%s6095 + $0x14] sm:$0x1]
        %v6875 = vld [vmem:[%s6095 + $0x18] sm:$0xf]
        %v6876 = vld [vmem:[%s6095 + $0x1c] sm:$0x1]
        %v6877 = vld [vmem:[%s6095 + $0x20] sm:$0xf]
        %v6878 = vld [vmem:[%s6095 + $0x24] sm:$0x1]
        %v6879 = vld [vmem:[%s6095 + $0x28] sm:$0xf]
        %v6880 = vld [vmem:[%s6095 + $0x2c] sm:$0x1]
        %v6881 = vld [vmem:[%s6095 + $0x30] sm:$0xf]
        %v6882 = vld [vmem:[%s6095 + $0x34] sm:$0x1]
        %v6883 = vld [vmem:[%s6095 + $0x38] sm:$0xf]
        %v6884 = vld [vmem:[%s6095 + $0x3c] sm:$0x1]
        %v6886 = vshrl.u32 %v6869, 16
        %v6888 = vrot.slane %v6886, 4
        %v6889 = vshll.u32 %v6869, 16
        %v6891 = vrot.slane %v6889, 5
        %v6892 = vor.u32 %v6888, %v6891
        %v6893 = vrot.slane %v6892, 4
        %v6895 = vshll.u32 %v6870, 16
        %v6897 = vrot.slane %v6895, 5
        %v6898 = vsel %vm6287, %v6893, %v6897
        %v6900 = vshrl.u32 %v6871, 16
        %v6902 = vrot.slane %v6900, 4
        %v6903 = vshll.u32 %v6871, 16
        %v6905 = vrot.slane %v6903, 5
        %v6906 = vor.u32 %v6902, %v6905
        %v6907 = vrot.slane %v6906, 4
        %v6909 = vshll.u32 %v6872, 16
        %v6911 = vrot.slane %v6909, 5
        %v6912 = vsel %vm6287, %v6907, %v6911
        %v6914 = vshrl.u32 %v6873, 16
        %v6916 = vrot.slane %v6914, 4
        %v6917 = vshll.u32 %v6873, 16
        %v6919 = vrot.slane %v6917, 5
        %v6920 = vor.u32 %v6916, %v6919
        %v6921 = vrot.slane %v6920, 4
        %v6923 = vshll.u32 %v6874, 16
        %v6925 = vrot.slane %v6923, 5
        %v6926 = vsel %vm6287, %v6921, %v6925
        %v6928 = vshrl.u32 %v6875, 16
        %v6930 = vrot.slane %v6928, 4
        %v6931 = vshll.u32 %v6875, 16
        %v6933 = vrot.slane %v6931, 5
        %v6934 = vor.u32 %v6930, %v6933
        %v6935 = vrot.slane %v6934, 4
        %v6937 = vshll.u32 %v6876, 16
        %v6939 = vrot.slane %v6937, 5
        %v6940 = vsel %vm6287, %v6935, %v6939
        %v6942 = vshrl.u32 %v6877, 16
        %v6944 = vrot.slane %v6942, 4
        %v6945 = vshll.u32 %v6877, 16
        %v6947 = vrot.slane %v6945, 5
        %v6948 = vor.u32 %v6944, %v6947
        %v6949 = vrot.slane %v6948, 4
        %v6951 = vshll.u32 %v6878, 16
        %v6953 = vrot.slane %v6951, 5
        %v6954 = vsel %vm6287, %v6949, %v6953
        %v6956 = vshrl.u32 %v6879, 16
        %v6958 = vrot.slane %v6956, 4
        %v6959 = vshll.u32 %v6879, 16
        %v6961 = vrot.slane %v6959, 5
        %v6962 = vor.u32 %v6958, %v6961
        %v6963 = vrot.slane %v6962, 4
        %v6965 = vshll.u32 %v6880, 16
        %v6967 = vrot.slane %v6965, 5
        %v6968 = vsel %vm6287, %v6963, %v6967
        %v6970 = vshrl.u32 %v6881, 16
        %v6972 = vrot.slane %v6970, 4
        %v6973 = vshll.u32 %v6881, 16
        %v6975 = vrot.slane %v6973, 5
        %v6976 = vor.u32 %v6972, %v6975
        %v6977 = vrot.slane %v6976, 4
        %v6979 = vshll.u32 %v6882, 16
        %v6981 = vrot.slane %v6979, 5
        %v6982 = vsel %vm6287, %v6977, %v6981
        %v6984 = vshrl.u32 %v6883, 16
        %v6986 = vrot.slane %v6984, 4
        %v6987 = vshll.u32 %v6883, 16
        %v6989 = vrot.slane %v6987, 5
        %v6990 = vor.u32 %v6986, %v6989
        %v6991 = vrot.slane %v6990, 4
        %v6993 = vshll.u32 %v6884, 16
        %v6995 = vrot.slane %v6993, 5
        %v6996 = vsel %vm6287, %v6991, %v6995
        %v6997 = vunpack.c.l.b16 %v6898
        %v6998 = vunpack.c.l.b16 %v6912
        %v6999 = vunpack.c.l.b16 %v6926
        %v7000 = vunpack.c.l.b16 %v6940
        %v7001 = vunpack.c.l.b16 %v6954
        %v7002 = vunpack.c.l.b16 %v6968
        %v7003 = vunpack.c.l.b16 %v6982
        %v7004 = vunpack.c.l.b16 %v6996
        %v7005 = vpack.c.b16 %v6998, %v6997
        %v7006 = vpack.c.b16 %v7000, %v6999
        %v7007 = vpack.c.b16 %v7002, %v7001
        %v7008 = vpack.c.b16 %v7004, %v7003
        %v7010 = vsel %vm6412, %v7005, 0
        %v7013 = vsel %vm6412, %v7006, 0
        %v7016 = vsel %vm6412, %v7007, 0
        %v7019 = vsel %vm6412, %v7008, 0
        %v7022 = vsel %vm6425, %v6264, 0
        %7024 = vmatprep.subr.bf16.mxu0 0
        %7025 = vmatpush1.bf16.msra.mxu0 %v7022
        %7026 = vmatprep.subr.bf16.mxu0 0
        %7027 = vmatpush1.bf16.msra.mxu0 0
        %7028 = vmatprep.subr.bf16.mxu0 0
        %7029 = vmatpush1.bf16.msra.mxu0 0
        %7030 = vmatprep.subr.bf16.mxu0 0
        %7031 = vmatpush1.bf16.msra.mxu0 0
        %7032 = vmatprep.subr.bf16.mxu0 0
        %7033 = vmatpush1.bf16.msra.mxu0 0
        %7034 = vmatprep.subr.bf16.mxu0 0
        %7035 = vmatpush1.bf16.msra.mxu0 0
        %7036 = vmatprep.subr.bf16.mxu0 0
        %7037 = vmatpush1.bf16.msra.mxu0 0
        %7038 = vmatprep.subr.bf16.mxu0 0
        %7039 = vmatpush1.bf16.msra.mxu0 0
        %7040 = vmatprep.subr.bf16.mxu0 0
        %7041 = vmatpush1.bf16.msra.mxu0 0
        %7042 = vmatprep.subr.bf16.mxu0 0
        %7043 = vmatpush1.bf16.msra.mxu0 0
        %7044 = vmatprep.subr.bf16.mxu0 0
        %7045 = vmatpush1.bf16.msra.mxu0 0
        %7046 = vmatprep.subr.bf16.mxu0 0
        %7047 = vmatpush1.bf16.msra.mxu0 0
        %7048 = vmatprep.subr.bf16.mxu0 0
        %7049 = vmatpush1.bf16.msra.mxu0 0
        %7050 = vmatprep.subr.bf16.mxu0 0
        %7051 = vmatpush1.bf16.msra.mxu0 0
        %7052 = vmatprep.subr.bf16.mxu0 0
        %7053 = vmatpush1.bf16.msra.mxu0 0
        %7054 = vmatprep.subr.bf16.mxu0 0
        %7055 = vmatpush1.bf16.msra.mxu0 0
        %7056 = vmatprep.mubr.bf16.mxu0 0
        %7057 = vmatmul.mubr.bf16.gmra.mrb[0].mxu0 %v7010
        %v7058 = vpop.f32.mrb[0].mxu0
        %v7059 = vadd.f32 0.0, %v7058
        %v7060 = vpop.f32.mrb[0].mxu0
        %v7061 = vpop.f32.mrb[0].mxu0
        %v7062 = vadd.f32 0.0, %v7061
        %v7063 = vpop.f32.mrb[0].mxu0
        %7064 = vmatprep.mubr.bf16.mxu0 0
        %7065 = vmatmul.mubr.bf16.gmra.mrb[0].mxu0 %v7013
        %v7066 = vpop.f32.mrb[0].mxu0
        %v7067 = vadd.f32 0.0, %v7066
        %v7068 = vpop.f32.mrb[0].mxu0
        %v7069 = vpop.f32.mrb[0].mxu0
        %v7070 = vadd.f32 0.0, %v7069
        %v7071 = vpop.f32.mrb[0].mxu0
        %7072 = vmatprep.mubr.bf16.mxu0 0
        %7073 = vmatmul.mubr.bf16.gmra.mrb[0].mxu0 %v7016
        %v7074 = vpop.f32.mrb[0].mxu0
        %v7075 = vadd.f32 0.0, %v7074
        %v7076 = vpop.f32.mrb[0].mxu0
        %v7077 = vpop.f32.mrb[0].mxu0
        %v7078 = vadd.f32 0.0, %v7077
        %v7079 = vpop.f32.mrb[0].mxu0
        %7080 = vmatprep.mubr.bf16.mxu0 0
        %7081 = vmatmul.mubr.bf16.gmra.mrb[0].mxu0 %v7019
        %v7082 = vpop.f32.mrb[0].mxu0
        %v7083 = vadd.f32 0.0, %v7082
        %v7084 = vpop.f32.mrb[0].mxu0
        %v7085 = vpop.f32.mrb[0].mxu0
        %v7086 = vadd.f32 0.0, %v7085
        %v7087 = vpop.f32.mrb[0].mxu0
        %7088 = vdwg.mxu0
        %v7089 = vadd.f32 %v6861, %v7059
        %v7090 = vadd.f32 %v6862, %v7062
        %v7091 = vadd.f32 %v6863, %v7067
        %v7092 = vadd.f32 %v6864, %v7070
        %v7093 = vadd.f32 %v6865, %v7075
        %v7094 = vadd.f32 %v6866, %v7078
        %v7095 = vadd.f32 %v6867, %v7083
        %v7096 = vadd.f32 %v6868, %v7086
        %v7097 = vld [vmem:[%s6095] sm:$0xe]
        %v7098 = vld [vmem:[%s6095 + $0x8] sm:$0xe]
        %v7099 = vld [vmem:[%s6095 + $0x10] sm:$0xe]
        %v7100 = vld [vmem:[%s6095 + $0x18] sm:$0xe]
        %v7101 = vld [vmem:[%s6095 + $0x20] sm:$0xe]
        %v7102 = vld [vmem:[%s6095 + $0x28] sm:$0xe]
        %v7103 = vld [vmem:[%s6095 + $0x30] sm:$0xe]
        %v7104 = vld [vmem:[%s6095 + $0x38] sm:$0xe]
        %v7121 = vrot.slane %v7097, 5
        %v7122 = vrot.slane %v7121, 4
        %v7123 = vrot.slane %v6870, 5
        %v7124 = vsel %vm6620, %v7122, %v7123
        %v7125 = vrot.slane %v7098, 5
        %v7126 = vrot.slane %v7125, 4
        %v7127 = vrot.slane %v6872, 5
        %v7128 = vsel %vm6620, %v7126, %v7127
        %v7129 = vrot.slane %v7099, 5
        %v7130 = vrot.slane %v7129, 4
        %v7131 = vrot.slane %v6874, 5
        %v7132 = vsel %vm6620, %v7130, %v7131
        %v7133 = vrot.slane %v7100, 5
        %v7134 = vrot.slane %v7133, 4
        %v7135 = vrot.slane %v6876, 5
        %v7136 = vsel %vm6620, %v7134, %v7135
        %v7137 = vrot.slane %v7101, 5
        %v7138 = vrot.slane %v7137, 4
        %v7139 = vrot.slane %v6878, 5
        %v7140 = vsel %vm6620, %v7138, %v7139
        %v7141 = vrot.slane %v7102, 5
        %v7142 = vrot.slane %v7141, 4
        %v7143 = vrot.slane %v6880, 5
        %v7144 = vsel %vm6620, %v7142, %v7143
        %v7145 = vrot.slane %v7103, 5
        %v7146 = vrot.slane %v7145, 4
        %v7147 = vrot.slane %v6882, 5
        %v7148 = vsel %vm6620, %v7146, %v7147
        %v7149 = vrot.slane %v7104, 5
        %v7150 = vrot.slane %v7149, 4
        %v7151 = vrot.slane %v6884, 5
        %v7152 = vsel %vm6620, %v7150, %v7151
        %v7153 = vunpack.c.l.b16 %v7124
        %v7154 = vunpack.c.l.b16 %v7128
        %v7155 = vunpack.c.l.b16 %v7132
        %v7156 = vunpack.c.l.b16 %v7136
        %v7157 = vunpack.c.l.b16 %v7140
        %v7158 = vunpack.c.l.b16 %v7144
        %v7159 = vunpack.c.l.b16 %v7148
        %v7160 = vunpack.c.l.b16 %v7152
        %v7161 = vpack.c.b16 %v7154, %v7153
        %v7162 = vpack.c.b16 %v7156, %v7155
        %v7163 = vpack.c.b16 %v7158, %v7157
        %v7164 = vpack.c.b16 %v7160, %v7159
        %v7166 = vsel %vm6412, %v7161, 0
        %v7169 = vsel %vm6412, %v7162, 0
        %v7172 = vsel %vm6412, %v7163, 0
        %v7175 = vsel %vm6412, %v7164, 0
        %v7178 = vsel %vm6425, %v6265, 0
        %7180 = vmatprep.subr.bf16.mxu0 0
        %7181 = vmatpush1.bf16.msra.mxu0 %v7178
        %7182 = vmatprep.subr.bf16.mxu0 0
        %7183 = vmatpush1.bf16.msra.mxu0 0
        %7184 = vmatprep.subr.bf16.mxu0 0
        %7185 = vmatpush1.bf16.msra.mxu0 0
        %7186 = vmatprep.subr.bf16.mxu0 0
        %7187 = vmatpush1.bf16.msra.mxu0 0
        %7188 = vmatprep.subr.bf16.mxu0 0
        %7189 = vmatpush1.bf16.msra.mxu0 0
        %7190 = vmatprep.subr.bf16.mxu0 0
        %7191 = vmatpush1.bf16.msra.mxu0 0
        %7192 = vmatprep.subr.bf16.mxu0 0
        %7193 = vmatpush1.bf16.msra.mxu0 0
        %7194 = vmatprep.subr.bf16.mxu0 0
        %7195 = vmatpush1.bf16.msra.mxu0 0
        %7196 = vmatprep.subr.bf16.mxu0 0
        %7197 = vmatpush1.bf16.msra.mxu0 0
        %7198 = vmatprep.subr.bf16.mxu0 0
        %7199 = vmatpush1.bf16.msra.mxu0 0
        %7200 = vmatprep.subr.bf16.mxu0 0
        %7201 = vmatpush1.bf16.msra.mxu0 0
        %7202 = vmatprep.subr.bf16.mxu0 0
        %7203 = vmatpush1.bf16.msra.mxu0 0
        %7204 = vmatprep.subr.bf16.mxu0 0
        %7205 = vmatpush1.bf16.msra.mxu0 0
        %7206 = vmatprep.subr.bf16.mxu0 0
        %7207 = vmatpush1.bf16.msra.mxu0 0
        %7208 = vmatprep.subr.bf16.mxu0 0
        %7209 = vmatpush1.bf16.msra.mxu0 0
        %7210 = vmatprep.subr.bf16.mxu0 0
        %7211 = vmatpush1.bf16.msra.mxu0 0
        %7212 = vmatprep.mubr.bf16.mxu0 0
        %7213 = vmatmul.mubr.bf16.gmra.mrb[0].mxu0 %v7166
        %v7214 = vpop.f32.mrb[0].mxu0
        %v7215 = vadd.f32 0.0, %v7214
        %v7216 = vpop.f32.mrb[0].mxu0
        %v7217 = vpop.f32.mrb[0].mxu0
        %v7218 = vadd.f32 0.0, %v7217
        %v7219 = vpop.f32.mrb[0].mxu0
        %7220 = vmatprep.mubr.bf16.mxu0 0
        %7221 = vmatmul.mubr.bf16.gmra.mrb[0].mxu0 %v7169
        %v7222 = vpop.f32.mrb[0].mxu0
        %v7223 = vadd.f32 0.0, %v7222
        %v7224 = vpop.f32.mrb[0].mxu0
        %v7225 = vpop.f32.mrb[0].mxu0
        %v7226 = vadd.f32 0.0, %v7225
        %v7227 = vpop.f32.mrb[0].mxu0
        %7228 = vmatprep.mubr.bf16.mxu0 0
        %7229 = vmatmul.mubr.bf16.gmra.mrb[0].mxu0 %v7172
        %v7230 = vpop.f32.mrb[0].mxu0
        %v7231 = vadd.f32 0.0, %v7230
        %v7232 = vpop.f32.mrb[0].mxu0
        %v7233 = vpop.f32.mrb[0].mxu0
        %v7234 = vadd.f32 0.0, %v7233
        %v7235 = vpop.f32.mrb[0].mxu0
        %7236 = vmatprep.mubr.bf16.mxu0 0
        %7237 = vmatmul.mubr.bf16.gmra.mrb[0].mxu0 %v7175
        %v7238 = vpop.f32.mrb[0].mxu0
        %v7239 = vadd.f32 0.0, %v7238
        %v7240 = vpop.f32.mrb[0].mxu0
        %v7241 = vpop.f32.mrb[0].mxu0
        %v7242 = vadd.f32 0.0, %v7241
        %v7243 = vpop.f32.mrb[0].mxu0
        %7244 = vdwg.mxu0
        %v7245 = vadd.f32 %v7089, %v7215
        %v7246 = vadd.f32 %v7090, %v7218
        %v7247 = vadd.f32 %v7091, %v7223
        %v7248 = vadd.f32 %v7092, %v7226
        %v7249 = vadd.f32 %v7093, %v7231
        %v7250 = vadd.f32 %v7094, %v7234
        %v7251 = vadd.f32 %v7095, %v7239
        %v7252 = vadd.f32 %v7096, %v7242
        %v7253 = vld [vmem:[%s6247] sm:$0xf]
        %v7254 = vld [vmem:[%s6247 + $0x8] sm:$0xf]
        %v7255 = vld [vmem:[%s6247 + $0x10] sm:$0xf]
        %v7256 = vld [vmem:[%s6247 + $0x18] sm:$0xf]
        %v7257 = vld [vmem:[%s6247 + $0x20] sm:$0xf]
        %v7258 = vld [vmem:[%s6247 + $0x28] sm:$0xf]
        %v7259 = vld [vmem:[%s6247 + $0x30] sm:$0xf]
        %v7260 = vld [vmem:[%s6247 + $0x38] sm:$0xf]
        %v7269 = vunpack.c.l.b16 %v7253
        %v7270 = vunpack.c.l.b16 %v7254
        %v7271 = vunpack.c.l.b16 %v7255
        %v7272 = vunpack.c.l.b16 %v7256
        %v7273 = vunpack.c.l.b16 %v7257
        %v7274 = vunpack.c.l.b16 %v7258
        %v7275 = vunpack.c.l.b16 %v7259
        %v7276 = vunpack.c.l.b16 %v7260
        %v7277 = vpack.c.b16 %v7270, %v7269
        %v7278 = vpack.c.b16 %v7272, %v7271
        %v7279 = vpack.c.b16 %v7274, %v7273
        %v7280 = vpack.c.b16 %v7276, %v7275
        %v7282 = vsel %vm6412, %v7277, 0
        %v7285 = vsel %vm6412, %v7278, 0
        %v7288 = vsel %vm6412, %v7279, 0
        %v7291 = vsel %vm6412, %v7280, 0
        %v7294 = vsel %vm6425, %v6266, 0
        %7296 = vmatprep.subr.bf16.mxu0 0
        %7297 = vmatpush1.bf16.msra.mxu0 %v7294
        %7298 = vmatprep.subr.bf16.mxu0 0
        %7299 = vmatpush1.bf16.msra.mxu0 0
        %7300 = vmatprep.subr.bf16.mxu0 0
        %7301 = vmatpush1.bf16.msra.mxu0 0
        %7302 = vmatprep.subr.bf16.mxu0 0
        %7303 = vmatpush1.bf16.msra.mxu0 0
        %7304 = vmatprep.subr.bf16.mxu0 0
        %7305 = vmatpush1.bf16.msra.mxu0 0
        %7306 = vmatprep.subr.bf16.mxu0 0
        %7307 = vmatpush1.bf16.msra.mxu0 0
        %7308 = vmatprep.subr.bf16.mxu0 0
        %7309 = vmatpush1.bf16.msra.mxu0 0
        %7310 = vmatprep.subr.bf16.mxu0 0
        %7311 = vmatpush1.bf16.msra.mxu0 0
        %7312 = vmatprep.subr.bf16.mxu0 0
        %7313 = vmatpush1.bf16.msra.mxu0 0
        %7314 = vmatprep.subr.bf16.mxu0 0
        %7315 = vmatpush1.bf16.msra.mxu0 0
        %7316 = vmatprep.subr.bf16.mxu0 0
        %7317 = vmatpush1.bf16.msra.mxu0 0
        %7318 = vmatprep.subr.bf16.mxu0 0
        %7319 = vmatpush1.bf16.msra.mxu0 0
        %7320 = vmatprep.subr.bf16.mxu0 0
        %7321 = vmatpush1.bf16.msra.mxu0 0
        %7322 = vmatprep.subr.bf16.mxu0 0
        %7323 = vmatpush1.bf16.msra.mxu0 0
        %7324 = vmatprep.subr.bf16.mxu0 0
        %7325 = vmatpush1.bf16.msra.mxu0 0
        %7326 = vmatprep.subr.bf16.mxu0 0
        %7327 = vmatpush1.bf16.msra.mxu0 0
        %7328 = vmatprep.mubr.bf16.mxu0 0
        %7329 = vmatmul.mubr.bf16.gmra.mrb[0].mxu0 %v7282
        %v7330 = vpop.f32.mrb[0].mxu0
        %v7331 = vadd.f32 0.0, %v7330
        %v7332 = vpop.f32.mrb[0].mxu0
        %v7333 = vpop.f32.mrb[0].mxu0
        %v7334 = vadd.f32 0.0, %v7333
        %v7335 = vpop.f32.mrb[0].mxu0
        %7336 = vmatprep.mubr.bf16.mxu0 0
        %7337 = vmatmul.mubr.bf16.gmra.mrb[0].mxu0 %v7285
        %v7338 = vpop.f32.mrb[0].mxu0
        %v7339 = vadd.f32 0.0, %v7338
        %v7340 = vpop.f32.mrb[0].mxu0
        %v7341 = vpop.f32.mrb[0].mxu0
        %v7342 = vadd.f32 0.0, %v7341
        %v7343 = vpop.f32.mrb[0].mxu0
        %7344 = vmatprep.mubr.bf16.mxu0 0
        %7345 = vmatmul.mubr.bf16.gmra.mrb[0].mxu0 %v7288
        %v7346 = vpop.f32.mrb[0].mxu0
        %v7347 = vadd.f32 0.0, %v7346
        %v7348 = vpop.f32.mrb[0].mxu0
        %v7349 = vpop.f32.mrb[0].mxu0
        %v7350 = vadd.f32 0.0, %v7349
        %v7351 = vpop.f32.mrb[0].mxu0
        %7352 = vmatprep.mubr.bf16.mxu0 0
        %7353 = vmatmul.mubr.bf16.gmra.mrb[0].mxu0 %v7291
        %v7354 = vpop.f32.mrb[0].mxu0
        %v7355 = vadd.f32 0.0, %v7354
        %v7356 = vpop.f32.mrb[0].mxu0
        %v7357 = vpop.f32.mrb[0].mxu0
        %v7358 = vadd.f32 0.0, %v7357
        %v7359 = vpop.f32.mrb[0].mxu0
        %7360 = vdwg.mxu0
        %v7361 = vadd.f32 %v7245, %v7331
        %v7362 = vadd.f32 %v7246, %v7334
        %v7363 = vadd.f32 %v7247, %v7339
        %v7364 = vadd.f32 %v7248, %v7342
        %v7365 = vadd.f32 %v7249, %v7347
        %v7366 = vadd.f32 %v7250, %v7350
        %v7367 = vadd.f32 %v7251, %v7355
        %v7368 = vadd.f32 %v7252, %v7358
        %v7369 = vld [vmem:[%s6247] sm:$0xf]
        %v7370 = vld [vmem:[%s6247 + $0x4] sm:$0x1]
        %v7371 = vld [vmem:[%s6247 + $0x8] sm:$0xf]
        %v7372 = vld [vmem:[%s6247 + $0xc] sm:$0x1]
        %v7373 = vld [vmem:[%s6247 + $0x10] sm:$0xf]
        %v7374 = vld [vmem:[%s6247 + $0x14] sm:$0x1]
        %v7375 = vld [vmem:[%s6247 + $0x18] sm:$0xf]
        %v7376 = vld [vmem:[%s6247 + $0x1c] sm:$0x1]
        %v7377 = vld [vmem:[%s6247 + $0x20] sm:$0xf]
        %v7378 = vld [vmem:[%s6247 + $0x24] sm:$0x1]
        %v7379 = vld [vmem:[%s6247 + $0x28] sm:$0xf]
        %v7380 = vld [vmem:[%s6247 + $0x2c] sm:$0x1]
        %v7381 = vld [vmem:[%s6247 + $0x30] sm:$0xf]
        %v7382 = vld [vmem:[%s6247 + $0x34] sm:$0x1]
        %v7383 = vld [vmem:[%s6247 + $0x38] sm:$0xf]
        %v7384 = vld [vmem:[%s6247 + $0x3c] sm:$0x1]
        %v7386 = vshrl.u32 %v7369, 16
        %v7388 = vrot.slane %v7386, 4
        %v7389 = vshll.u32 %v7369, 16
        %v7391 = vrot.slane %v7389, 5
        %v7392 = vor.u32 %v7388, %v7391
        %v7393 = vrot.slane %v7392, 4
        %v7395 = vshll.u32 %v7370, 16
        %v7397 = vrot.slane %v7395, 5
        %v7398 = vsel %vm6287, %v7393, %v7397
        %v7400 = vshrl.u32 %v7371, 16
        %v7402 = vrot.slane %v7400, 4
        %v7403 = vshll.u32 %v7371, 16
        %v7405 = vrot.slane %v7403, 5
        %v7406 = vor.u32 %v7402, %v7405
        %v7407 = vrot.slane %v7406, 4
        %v7409 = vshll.u32 %v7372, 16
        %v7411 = vrot.slane %v7409, 5
        %v7412 = vsel %vm6287, %v7407, %v7411
        %v7414 = vshrl.u32 %v7373, 16
        %v7416 = vrot.slane %v7414, 4
        %v7417 = vshll.u32 %v7373, 16
        %v7419 = vrot.slane %v7417, 5
        %v7420 = vor.u32 %v7416, %v7419
        %v7421 = vrot.slane %v7420, 4
        %v7423 = vshll.u32 %v7374, 16
        %v7425 = vrot.slane %v7423, 5
        %v7426 = vsel %vm6287, %v7421, %v7425
        %v7428 = vshrl.u32 %v7375, 16
        %v7430 = vrot.slane %v7428, 4
        %v7431 = vshll.u32 %v7375, 16
        %v7433 = vrot.slane %v7431, 5
        %v7434 = vor.u32 %v7430, %v7433
        %v7435 = vrot.slane %v7434, 4
        %v7437 = vshll.u32 %v7376, 16
        %v7439 = vrot.slane %v7437, 5
        %v7440 = vsel %vm6287, %v7435, %v7439
        %v7442 = vshrl.u32 %v7377, 16
        %v7444 = vrot.slane %v7442, 4
        %v7445 = vshll.u32 %v7377, 16
        %v7447 = vrot.slane %v7445, 5
        %v7448 = vor.u32 %v7444, %v7447
        %v7449 = vrot.slane %v7448, 4
        %v7451 = vshll.u32 %v7378, 16
        %v7453 = vrot.slane %v7451, 5
        %v7454 = vsel %vm6287, %v7449, %v7453
        %v7456 = vshrl.u32 %v7379, 16
        %v7458 = vrot.slane %v7456, 4
        %v7459 = vshll.u32 %v7379, 16
        %v7461 = vrot.slane %v7459, 5
        %v7462 = vor.u32 %v7458, %v7461
        %v7463 = vrot.slane %v7462, 4
        %v7465 = vshll.u32 %v7380, 16
        %v7467 = vrot.slane %v7465, 5
        %v7468 = vsel %vm6287, %v7463, %v7467
        %v7470 = vshrl.u32 %v7381, 16
        %v7472 = vrot.slane %v7470, 4
        %v7473 = vshll.u32 %v7381, 16
        %v7475 = vrot.slane %v7473, 5
        %v7476 = vor.u32 %v7472, %v7475
        %v7477 = vrot.slane %v7476, 4
        %v7479 = vshll.u32 %v7382, 16
        %v7481 = vrot.slane %v7479, 5
        %v7482 = vsel %vm6287, %v7477, %v7481
        %v7484 = vshrl.u32 %v7383, 16
        %v7486 = vrot.slane %v7484, 4
        %v7487 = vshll.u32 %v7383, 16
        %v7489 = vrot.slane %v7487, 5
        %v7490 = vor.u32 %v7486, %v7489
        %v7491 = vrot.slane %v7490, 4
        %v7493 = vshll.u32 %v7384, 16
        %v7495 = vrot.slane %v7493, 5
        %v7496 = vsel %vm6287, %v7491, %v7495
        %v7497 = vunpack.c.l.b16 %v7398
        %v7498 = vunpack.c.l.b16 %v7412
        %v7499 = vunpack.c.l.b16 %v7426
        %v7500 = vunpack.c.l.b16 %v7440
        %v7501 = vunpack.c.l.b16 %v7454
        %v7502 = vunpack.c.l.b16 %v7468
        %v7503 = vunpack.c.l.b16 %v7482
        %v7504 = vunpack.c.l.b16 %v7496
        %v7505 = vpack.c.b16 %v7498, %v7497
        %v7506 = vpack.c.b16 %v7500, %v7499
        %v7507 = vpack.c.b16 %v7502, %v7501
        %v7508 = vpack.c.b16 %v7504, %v7503
        %v7510 = vsel %vm6412, %v7505, 0
        %v7513 = vsel %vm6412, %v7506, 0
        %v7516 = vsel %vm6412, %v7507, 0
        %v7519 = vsel %vm6412, %v7508, 0
        %v7522 = vsel %vm6425, %v6267, 0
        %7524 = vmatprep.subr.bf16.mxu0 0
        %7525 = vmatpush1.bf16.msra.mxu0 %v7522
        %7526 = vmatprep.subr.bf16.mxu0 0
        %7527 = vmatpush1.bf16.msra.mxu0 0
        %7528 = vmatprep.subr.bf16.mxu0 0
        %7529 = vmatpush1.bf16.msra.mxu0 0
        %7530 = vmatprep.subr.bf16.mxu0 0
        %7531 = vmatpush1.bf16.msra.mxu0 0
        %7532 = vmatprep.subr.bf16.mxu0 0
        %7533 = vmatpush1.bf16.msra.mxu0 0
        %7534 = vmatprep.subr.bf16.mxu0 0
        %7535 = vmatpush1.bf16.msra.mxu0 0
        %7536 = vmatprep.subr.bf16.mxu0 0
        %7537 = vmatpush1.bf16.msra.mxu0 0
        %7538 = vmatprep.subr.bf16.mxu0 0
        %7539 = vmatpush1.bf16.msra.mxu0 0
        %7540 = vmatprep.subr.bf16.mxu0 0
        %7541 = vmatpush1.bf16.msra.mxu0 0
        %7542 = vmatprep.subr.bf16.mxu0 0
        %7543 = vmatpush1.bf16.msra.mxu0 0
        %7544 = vmatprep.subr.bf16.mxu0 0
        %7545 = vmatpush1.bf16.msra.mxu0 0
        %7546 = vmatprep.subr.bf16.mxu0 0
        %7547 = vmatpush1.bf16.msra.mxu0 0
        %7548 = vmatprep.subr.bf16.mxu0 0
        %7549 = vmatpush1.bf16.msra.mxu0 0
        %7550 = vmatprep.subr.bf16.mxu0 0
        %7551 = vmatpush1.bf16.msra.mxu0 0
        %7552 = vmatprep.subr.bf16.mxu0 0
        %7553 = vmatpush1.bf16.msra.mxu0 0
        %7554 = vmatprep.subr.bf16.mxu0 0
        %7555 = vmatpush1.bf16.msra.mxu0 0
        %7556 = vmatprep.mubr.bf16.mxu0 0
        %7557 = vmatmul.mubr.bf16.gmra.mrb[0].mxu0 %v7510
        %v7558 = vpop.f32.mrb[0].mxu0
        %v7559 = vadd.f32 0.0, %v7558
        %v7560 = vpop.f32.mrb[0].mxu0
        %v7561 = vpop.f32.mrb[0].mxu0
        %v7562 = vadd.f32 0.0, %v7561
        %v7563 = vpop.f32.mrb[0].mxu0
        %7564 = vmatprep.mubr.bf16.mxu0 0
        %7565 = vmatmul.mubr.bf16.gmra.mrb[0].mxu0 %v7513
        %v7566 = vpop.f32.mrb[0].mxu0
        %v7567 = vadd.f32 0.0, %v7566
        %v7568 = vpop.f32.mrb[0].mxu0
        %v7569 = vpop.f32.mrb[0].mxu0
        %v7570 = vadd.f32 0.0, %v7569
        %v7571 = vpop.f32.mrb[0].mxu0
        %7572 = vmatprep.mubr.bf16.mxu0 0
        %7573 = vmatmul.mubr.bf16.gmra.mrb[0].mxu0 %v7516
        %v7574 = vpop.f32.mrb[0].mxu0
        %v7575 = vadd.f32 0.0, %v7574
        %v7576 = vpop.f32.mrb[0].mxu0
        %v7577 = vpop.f32.mrb[0].mxu0
        %v7578 = vadd.f32 0.0, %v7577
        %v7579 = vpop.f32.mrb[0].mxu0
        %7580 = vmatprep.mubr.bf16.mxu0 0
        %7581 = vmatmul.mubr.bf16.gmra.mrb[0].mxu0 %v7519
        %v7582 = vpop.f32.mrb[0].mxu0
        %v7583 = vadd.f32 0.0, %v7582
        %v7584 = vpop.f32.mrb[0].mxu0
        %v7585 = vpop.f32.mrb[0].mxu0
        %v7586 = vadd.f32 0.0, %v7585
        %v7587 = vpop.f32.mrb[0].mxu0
        %7588 = vdwg.mxu0
        %v7589 = vadd.f32 %v7361, %v7559
        %v7590 = vadd.f32 %v7362, %v7562
        %v7591 = vadd.f32 %v7363, %v7567
        %v7592 = vadd.f32 %v7364, %v7570
        %v7593 = vadd.f32 %v7365, %v7575
        %v7594 = vadd.f32 %v7366, %v7578
        %v7595 = vadd.f32 %v7367, %v7583
        %v7596 = vadd.f32 %v7368, %v7586
        %v7597 = vld [vmem:[%s6247] sm:$0xe]
        %v7598 = vld [vmem:[%s6247 + $0x8] sm:$0xe]
        %v7599 = vld [vmem:[%s6247 + $0x10] sm:$0xe]
        %v7600 = vld [vmem:[%s6247 + $0x18] sm:$0xe]
        %v7601 = vld [vmem:[%s6247 + $0x20] sm:$0xe]
        %v7602 = vld [vmem:[%s6247 + $0x28] sm:$0xe]
        %v7603 = vld [vmem:[%s6247 + $0x30] sm:$0xe]
        %v7604 = vld [vmem:[%s6247 + $0x38] sm:$0xe]
        %v7621 = vrot.slane %v7597, 5
        %v7622 = vrot.slane %v7621, 4
        %v7623 = vrot.slane %v7370, 5
        %v7624 = vsel %vm6620, %v7622, %v7623
        %v7625 = vrot.slane %v7598, 5
        %v7626 = vrot.slane %v7625, 4
        %v7627 = vrot.slane %v7372, 5
        %v7628 = vsel %vm6620, %v7626, %v7627
        %v7629 = vrot.slane %v7599, 5
        %v7630 = vrot.slane %v7629, 4
        %v7631 = vrot.slane %v7374, 5
        %v7632 = vsel %vm6620, %v7630, %v7631
        %v7633 = vrot.slane %v7600, 5
        %v7634 = vrot.slane %v7633, 4
        %v7635 = vrot.slane %v7376, 5
        %v7636 = vsel %vm6620, %v7634, %v7635
        %v7637 = vrot.slane %v7601, 5
        %v7638 = vrot.slane %v7637, 4
        %v7639 = vrot.slane %v7378, 5
        %v7640 = vsel %vm6620, %v7638, %v7639
        %v7641 = vrot.slane %v7602, 5
        %v7642 = vrot.slane %v7641, 4
        %v7643 = vrot.slane %v7380, 5
        %v7644 = vsel %vm6620, %v7642, %v7643
        %v7645 = vrot.slane %v7603, 5
        %v7646 = vrot.slane %v7645, 4
        %v7647 = vrot.slane %v7382, 5
        %v7648 = vsel %vm6620, %v7646, %v7647
        %v7649 = vrot.slane %v7604, 5
        %v7650 = vrot.slane %v7649, 4
        %v7651 = vrot.slane %v7384, 5
        %v7652 = vsel %vm6620, %v7650, %v7651
        %v7653 = vunpack.c.l.b16 %v7624
        %v7654 = vunpack.c.l.b16 %v7628
        %v7655 = vunpack.c.l.b16 %v7632
        %v7656 = vunpack.c.l.b16 %v7636
        %v7657 = vunpack.c.l.b16 %v7640
        %v7658 = vunpack.c.l.b16 %v7644
        %v7659 = vunpack.c.l.b16 %v7648
        %v7660 = vunpack.c.l.b16 %v7652
        %v7661 = vpack.c.b16 %v7654, %v7653
        %v7662 = vpack.c.b16 %v7656, %v7655
        %v7663 = vpack.c.b16 %v7658, %v7657
        %v7664 = vpack.c.b16 %v7660, %v7659
        %v7666 = vsel %vm6412, %v7661, 0
        %v7669 = vsel %vm6412, %v7662, 0
        %v7672 = vsel %vm6412, %v7663, 0
        %v7675 = vsel %vm6412, %v7664, 0
        %v7678 = vsel %vm6425, %v6268, 0
        %7680 = vmatprep.subr.bf16.mxu0 0
        %7681 = vmatpush1.bf16.msra.mxu0 %v7678
        %7682 = vmatprep.subr.bf16.mxu0 0
        %7683 = vmatpush1.bf16.msra.mxu0 0
        %7684 = vmatprep.subr.bf16.mxu0 0
        %7685 = vmatpush1.bf16.msra.mxu0 0
        %7686 = vmatprep.subr.bf16.mxu0 0
        %7687 = vmatpush1.bf16.msra.mxu0 0
        %7688 = vmatprep.subr.bf16.mxu0 0
        %7689 = vmatpush1.bf16.msra.mxu0 0
        %7690 = vmatprep.subr.bf16.mxu0 0
        %7691 = vmatpush1.bf16.msra.mxu0 0
        %7692 = vmatprep.subr.bf16.mxu0 0
        %7693 = vmatpush1.bf16.msra.mxu0 0
        %7694 = vmatprep.subr.bf16.mxu0 0
        %7695 = vmatpush1.bf16.msra.mxu0 0
        %7696 = vmatprep.subr.bf16.mxu0 0
        %7697 = vmatpush1.bf16.msra.mxu0 0
        %7698 = vmatprep.subr.bf16.mxu0 0
        %7699 = vmatpush1.bf16.msra.mxu0 0
        %7700 = vmatprep.subr.bf16.mxu0 0
        %7701 = vmatpush1.bf16.msra.mxu0 0
        %7702 = vmatprep.subr.bf16.mxu0 0
        %7703 = vmatpush1.bf16.msra.mxu0 0
        %7704 = vmatprep.subr.bf16.mxu0 0
        %7705 = vmatpush1.bf16.msra.mxu0 0
        %7706 = vmatprep.subr.bf16.mxu0 0
        %7707 = vmatpush1.bf16.msra.mxu0 0
        %7708 = vmatprep.subr.bf16.mxu0 0
        %7709 = vmatpush1.bf16.msra.mxu0 0
        %7710 = vmatprep.subr.bf16.mxu0 0
        %7711 = vmatpush1.bf16.msra.mxu0 0
        %7712 = vmatprep.mubr.bf16.mxu0 0
        %7713 = vmatmul.mubr.bf16.gmra.mrb[0].mxu0 %v7666
        %v7714 = vpop.f32.mrb[0].mxu0
        %v7715 = vadd.f32 0.0, %v7714
        %v7716 = vpop.f32.mrb[0].mxu0
        %v7717 = vpop.f32.mrb[0].mxu0
        %v7718 = vadd.f32 0.0, %v7717
        %v7719 = vpop.f32.mrb[0].mxu0
        %7720 = vmatprep.mubr.bf16.mxu0 0
        %7721 = vmatmul.mubr.bf16.gmra.mrb[0].mxu0 %v7669
        %v7722 = vpop.f32.mrb[0].mxu0
        %v7723 = vadd.f32 0.0, %v7722
        %v7724 = vpop.f32.mrb[0].mxu0
        %v7725 = vpop.f32.mrb[0].mxu0
        %v7726 = vadd.f32 0.0, %v7725
        %v7727 = vpop.f32.mrb[0].mxu0
        %7728 = vmatprep.mubr.bf16.mxu0 0
        %7729 = vmatmul.mubr.bf16.gmra.mrb[0].mxu0 %v7672
        %v7730 = vpop.f32.mrb[0].mxu0
        %v7731 = vadd.f32 0.0, %v7730
        %v7732 = vpop.f32.mrb[0].mxu0
        %v7733 = vpop.f32.mrb[0].mxu0
        %v7734 = vadd.f32 0.0, %v7733
        %v7735 = vpop.f32.mrb[0].mxu0
        %7736 = vmatprep.mubr.bf16.mxu0 0
        %7737 = vmatmul.mubr.bf16.gmra.mrb[0].mxu0 %v7675
        %v7738 = vpop.f32.mrb[0].mxu0
        %v7739 = vadd.f32 0.0, %v7738
        %v7740 = vpop.f32.mrb[0].mxu0
        %v7741 = vpop.f32.mrb[0].mxu0
        %v7742 = vadd.f32 0.0, %v7741
        %v7743 = vpop.f32.mrb[0].mxu0
        %7744 = vdwg.mxu0
        %v7745 = vadd.f32 %v7589, %v7715
        %v7746 = vadd.f32 %v7590, %v7718
        %v7747 = vadd.f32 %v7591, %v7723
        %v7748 = vadd.f32 %v7592, %v7726
        %v7749 = vadd.f32 %v7593, %v7731
        %v7750 = vadd.f32 %v7594, %v7734
        %v7751 = vadd.f32 %v7595, %v7739
        %v7752 = vadd.f32 %v7596, %v7742
        %v7753 = vld [vmem:[%s4] sm:$0x1]
        %v7755 = vlaneseq
        %v7756 = vshrl.u32 %v7755, 7
        %v7757 = vsub.s32 0, %v7756
        %v7758 = vrot.slane %v7753, %v7757
        %v7760 = vadd.f32 %v7745, %v7758
        %v7761 = vadd.f32 %v7746, %v7758
        %v7762 = vadd.f32 %v7747, %v7758
        %v7763 = vadd.f32 %v7748, %v7758
        %v7764 = vadd.f32 %v7749, %v7758
        %v7765 = vadd.f32 %v7750, %v7758
        %v7766 = vadd.f32 %v7751, %v7758
        %v7767 = vadd.f32 %v7752, %v7758
        %v7768 = vmax.f32 %v7760, 0.0
        %v7769 = vmax.f32 %v7761, 0.0
        %v7770 = vmax.f32 %v7762, 0.0
        %v7771 = vmax.f32 %v7763, 0.0
        %v7772 = vmax.f32 %v7764, 0.0
        %v7773 = vmax.f32 %v7765, 0.0
        %v7774 = vmax.f32 %v7766, 0.0
        %v7775 = vmax.f32 %v7767, 0.0
      $region67: #{_lambda_.1} parent=63
        #allocation4 [shape = 'u8[40960]{0}', space=vmem, size = 0xa000, scoped, tag = 'scoped memory for _lambda_.1']
        %v7776 = vpack.c.bf16 %v7768, %v7768
        %v7777 = vpack.c.bf16 %v7769, %v7769
        %v7778 = vpack.c.bf16 %v7770, %v7770
        %v7779 = vpack.c.bf16 %v7771, %v7771
        %v7780 = vpack.c.bf16 %v7772, %v7772
        %v7781 = vpack.c.bf16 %v7773, %v7773
        %v7782 = vpack.c.bf16 %v7774, %v7774
        %v7783 = vpack.c.bf16 %v7775, %v7775
        %v7792 = vunpack.c.l.b16 %v7776
        %v7793 = vunpack.c.l.b16 %v7777
        %v7794 = vunpack.c.l.b16 %v7778
        %v7795 = vunpack.c.l.b16 %v7779
        %v7796 = vunpack.c.l.b16 %v7780
        %v7797 = vunpack.c.l.b16 %v7781
        %v7798 = vunpack.c.l.b16 %v7782
        %v7799 = vunpack.c.l.b16 %v7783
        %v7800 = vpack.c.b16 %v7792, %v7792
        %v7801 = vpack.c.b16 %v7793, %v7793
        %v7802 = vpack.c.b16 %v7794, %v7794
        %v7803 = vpack.c.b16 %v7795, %v7795
        %v7804 = vpack.c.b16 %v7796, %v7796
        %v7805 = vpack.c.b16 %v7797, %v7797
        %v7806 = vpack.c.b16 %v7798, %v7798
        %v7807 = vpack.c.b16 %v7799, %v7799
        %v7809 = vshrl.u32 %v7800, 16
        %v7811 = vrot.slane %v7809, 7
        %v7812 = vshll.u32 %v7800, 16
        %v7814 = vor.u32 %v7811, %v7812
        %v7815 = vrot.slane %v7811, 4
        %v7817 = vshrl.u32 %v7801, 16
        %v7819 = vrot.slane %v7817, 7
        %v7820 = vshll.u32 %v7801, 16
        %v7822 = vor.u32 %v7819, %v7820
        %v7823 = vrot.slane %v7819, 4
        %v7825 = vshrl.u32 %v7802, 16
        %v7827 = vrot.slane %v7825, 7
        %v7828 = vshll.u32 %v7802, 16
        %v7830 = vor.u32 %v7827, %v7828
        %v7831 = vrot.slane %v7827, 4
        %v7833 = vshrl.u32 %v7803, 16
        %v7835 = vrot.slane %v7833, 7
        %v7836 = vshll.u32 %v7803, 16
        %v7838 = vor.u32 %v7835, %v7836
        %v7839 = vrot.slane %v7835, 4
        %v7841 = vshrl.u32 %v7804, 16
        %v7843 = vrot.slane %v7841, 7
        %v7844 = vshll.u32 %v7804, 16
        %v7846 = vor.u32 %v7843, %v7844
        %v7847 = vrot.slane %v7843, 4
        %v7849 = vshrl.u32 %v7805, 16
        %v7851 = vrot.slane %v7849, 7
        %v7852 = vshll.u32 %v7805, 16
        %v7854 = vor.u32 %v7851, %v7852
        %v7855 = vrot.slane %v7851, 4
        %v7857 = vshrl.u32 %v7806, 16
        %v7859 = vrot.slane %v7857, 7
        %v7860 = vshll.u32 %v7806, 16
        %v7862 = vor.u32 %v7859, %v7860
        %v7863 = vrot.slane %v7859, 4
        %v7865 = vshrl.u32 %v7807, 16
        %v7867 = vrot.slane %v7865, 7
        %v7868 = vshll.u32 %v7807, 16
        %v7870 = vor.u32 %v7867, %v7868
        %v7871 = vrot.slane %v7867, 4
        %s7888 = scalar_lea.vmem [#allocation4], 8
        %vm7889 = vcmask 60416
        %vm7890 = vsmask.f32 7938
        %vm7891 = vmand %vm7889, %vm7890
        %v7892 = vld [vmem:[%s7888] sm:$0xf]
        %v7893 = vsel %vm7891, %v7814, %v7892
        %7894 = vst [vmem:[%s7888] sm:$0xf] %v7893
        %vm7895 = vcmask 57344
        %vm7896 = vsmask.f32 256
        %vm7897 = vmand %vm7895, %vm7896
        %v7898 = vld [vmem:[%s7888 + $0x4] sm:$0x1]
        %v7899 = vsel %vm7897, %v7815, %v7898
        %7900 = vst [vmem:[%s7888 + $0x4] sm:$0x1] %v7899
        %v7901 = vld [vmem:[%s7888 + $0x8] sm:$0xf]
        %v7902 = vsel %vm7891, %v7822, %v7901
        %7903 = vst [vmem:[%s7888 + $0x8] sm:$0xf] %v7902
        %v7904 = vld [vmem:[%s7888 + $0xc] sm:$0x1]
        %v7905 = vsel %vm7897, %v7823, %v7904
        %7906 = vst [vmem:[%s7888 + $0xc] sm:$0x1] %v7905
        %v7907 = vld [vmem:[%s7888 + $0x10] sm:$0xf]
        %v7908 = vsel %vm7891, %v7830, %v7907
        %7909 = vst [vmem:[%s7888 + $0x10] sm:$0xf] %v7908
        %v7910 = vld [vmem:[%s7888 + $0x14] sm:$0x1]
        %v7911 = vsel %vm7897, %v7831, %v7910
        %7912 = vst [vmem:[%s7888 + $0x14] sm:$0x1] %v7911
        %v7913 = vld [vmem:[%s7888 + $0x18] sm:$0xf]
        %v7914 = vsel %vm7891, %v7838, %v7913
        %7915 = vst [vmem:[%s7888 + $0x18] sm:$0xf] %v7914
        %v7916 = vld [vmem:[%s7888 + $0x1c] sm:$0x1]
        %v7917 = vsel %vm7897, %v7839, %v7916
        %7918 = vst [vmem:[%s7888 + $0x1c] sm:$0x1] %v7917
        %v7919 = vld [vmem:[%s7888 + $0x20] sm:$0xf]
        %v7920 = vsel %vm7891, %v7846, %v7919
        %7921 = vst [vmem:[%s7888 + $0x20] sm:$0xf] %v7920
        %v7922 = vld [vmem:[%s7888 + $0x24] sm:$0x1]
        %v7923 = vsel %vm7897, %v7847, %v7922
        %7924 = vst [vmem:[%s7888 + $0x24] sm:$0x1] %v7923
        %v7925 = vld [vmem:[%s7888 + $0x28] sm:$0xf]
        %v7926 = vsel %vm7891, %v7854, %v7925
        %7927 = vst [vmem:[%s7888 + $0x28] sm:$0xf] %v7926
        %v7928 = vld [vmem:[%s7888 + $0x2c] sm:$0x1]
        %v7929 = vsel %vm7897, %v7855, %v7928
        %7930 = vst [vmem:[%s7888 + $0x2c] sm:$0x1] %v7929
        %v7931 = vld [vmem:[%s7888 + $0x30] sm:$0xf]
        %v7932 = vsel %vm7891, %v7862, %v7931
        %7933 = vst [vmem:[%s7888 + $0x30] sm:$0xf] %v7932
        %v7934 = vld [vmem:[%s7888 + $0x34] sm:$0x1]
        %v7935 = vsel %vm7897, %v7863, %v7934
        %7936 = vst [vmem:[%s7888 + $0x34] sm:$0x1] %v7935
        %v7937 = vld [vmem:[%s7888 + $0x38] sm:$0xf]
        %v7938 = vsel %vm7891, %v7870, %v7937
        %7939 = vst [vmem:[%s7888 + $0x38] sm:$0xf] %v7938
        %v7940 = vld [vmem:[%s7888 + $0x3c] sm:$0x1]
        %v7941 = vsel %vm7897, %v7871, %v7940
        %7942 = vst [vmem:[%s7888 + $0x3c] sm:$0x1] %v7941
        %v7943 = vrot.slane %v7809, 4
        %v7944 = vrot.slane %v7943, 4
        %v7945 = vrot.slane %v7817, 4
        %v7946 = vrot.slane %v7945, 4
        %v7947 = vrot.slane %v7825, 4
        %v7948 = vrot.slane %v7947, 4
        %v7949 = vrot.slane %v7833, 4
        %v7950 = vrot.slane %v7949, 4
        %v7951 = vrot.slane %v7841, 4
        %v7952 = vrot.slane %v7951, 4
        %v7953 = vrot.slane %v7849, 4
        %v7954 = vrot.slane %v7953, 4
        %v7955 = vrot.slane %v7857, 4
        %v7956 = vrot.slane %v7955, 4
        %v7957 = vrot.slane %v7865, 4
        %v7958 = vrot.slane %v7957, 4
        %v7967 = vld [vmem:[%s7888] sm:$0x1]
        %v7968 = vsel %vm7897, %v7944, %v7967
        %7969 = vst [vmem:[%s7888] sm:$0x1] %v7968
        %v7970 = vld [vmem:[%s7888 + $0x8] sm:$0x1]
        %v7971 = vsel %vm7897, %v7946, %v7970
        %7972 = vst [vmem:[%s7888 + $0x8] sm:$0x1] %v7971
        %v7973 = vld [vmem:[%s7888 + $0x10] sm:$0x1]
        %v7974 = vsel %vm7897, %v7948, %v7973
        %7975 = vst [vmem:[%s7888 + $0x10] sm:$0x1] %v7974
        %v7976 = vld [vmem:[%s7888 + $0x18] sm:$0x1]
        %v7977 = vsel %vm7897, %v7950, %v7976
        %7978 = vst [vmem:[%s7888 + $0x18] sm:$0x1] %v7977
        %v7979 = vld [vmem:[%s7888 + $0x20] sm:$0x1]
        %v7980 = vsel %vm7897, %v7952, %v7979
        %7981 = vst [vmem:[%s7888 + $0x20] sm:$0x1] %v7980
        %v7982 = vld [vmem:[%s7888 + $0x28] sm:$0x1]
        %v7983 = vsel %vm7897, %v7954, %v7982
        %7984 = vst [vmem:[%s7888 + $0x28] sm:$0x1] %v7983
        %v7985 = vld [vmem:[%s7888 + $0x30] sm:$0x1]
        %v7986 = vsel %vm7897, %v7956, %v7985
        %7987 = vst [vmem:[%s7888 + $0x30] sm:$0x1] %v7986
        %v7988 = vld [vmem:[%s7888 + $0x38] sm:$0x1]
        %v7989 = vsel %vm7897, %v7958, %v7988
        %7990 = vst [vmem:[%s7888 + $0x38] sm:$0x1] %v7989
        %v7991 = vrot.slane %v7812, 7
        %v7992 = vrot.slane %v7991, 4
        %v7993 = vrot.slane %v7820, 7
        %v7994 = vrot.slane %v7993, 4
        %v7995 = vrot.slane %v7828, 7
        %v7996 = vrot.slane %v7995, 4
        %v7997 = vrot.slane %v7836, 7
        %v7998 = vrot.slane %v7997, 4
        %v7999 = vrot.slane %v7844, 7
        %v8000 = vrot.slane %v7999, 4
        %v8001 = vrot.slane %v7852, 7
        %v8002 = vrot.slane %v8001, 4
        %v8003 = vrot.slane %v7860, 7
        %v8004 = vrot.slane %v8003, 4
        %v8005 = vrot.slane %v7868, 7
        %v8006 = vrot.slane %v8005, 4
        %vm8015 = vmand %vm7895, %vm7890
        %v8016 = vld [vmem:[%s7888 + $0x4] sm:$0x1]
        %v8017 = vsel %vm8015, %v7992, %v8016
        %8018 = vst [vmem:[%s7888 + $0x4] sm:$0x1] %v8017
        %v8019 = vld [vmem:[%s7888 + $0xc] sm:$0x1]
        %v8020 = vsel %vm8015, %v7994, %v8019
        %8021 = vst [vmem:[%s7888 + $0xc] sm:$0x1] %v8020
        %v8022 = vld [vmem:[%s7888 + $0x14] sm:$0x1]
        %v8023 = vsel %vm8015, %v7996, %v8022
        %8024 = vst [vmem:[%s7888 + $0x14] sm:$0x1] %v8023
        %v8025 = vld [vmem:[%s7888 + $0x1c] sm:$0x1]
        %v8026 = vsel %vm8015, %v7998, %v8025
        %8027 = vst [vmem:[%s7888 + $0x1c] sm:$0x1] %v8026
        %v8028 = vld [vmem:[%s7888 + $0x24] sm:$0x1]
        %v8029 = vsel %vm8015, %v8000, %v8028
        %8030 = vst [vmem:[%s7888 + $0x24] sm:$0x1] %v8029
        %v8031 = vld [vmem:[%s7888 + $0x2c] sm:$0x1]
        %v8032 = vsel %vm8015, %v8002, %v8031
        %8033 = vst [vmem:[%s7888 + $0x2c] sm:$0x1] %v8032
        %v8034 = vld [vmem:[%s7888 + $0x34] sm:$0x1]
        %v8035 = vsel %vm8015, %v8004, %v8034
        %8036 = vst [vmem:[%s7888 + $0x34] sm:$0x1] %v8035
        %v8037 = vld [vmem:[%s7888 + $0x3c] sm:$0x1]
        %v8038 = vsel %vm8015, %v8006, %v8037
        %8039 = vst [vmem:[%s7888 + $0x3c] sm:$0x1] %v8038
        %s8040 = scalar_lea.vmem [#allocation4], 16
        %v8041 = vld [vmem:[%s8040] sm:$0xf]
        %v8042 = vld [vmem:[%s8040 + $0x4] sm:$0x1]
        %vm8043 = vcmask 60416
        %8044 = vst.msk [vmem:[#allocation4] sm:$0xf] %vm8043, %v8041
        %vm8045 = vcmask 57344
        %8046 = vst.msk [vmem:[#allocation4 + $0x4] sm:$0x1] %vm8045, %v8042
        %s8047 = scalar_lea.vmem [#allocation4], 56
        %v8048 = vld [vmem:[%s8047] sm:$0xf]
        %v8049 = vld [vmem:[%s8047 + $0x4] sm:$0x1]
        %s8050 = scalar_lea.vmem [#allocation4], 72
        %8051 = vst.msk [vmem:[%s8050] sm:$0xf] %vm8043, %v8048
        %8052 = vst.msk [vmem:[%s8050 + $0x4] sm:$0x1] %vm8045, %v8049
        %v8053 = vld [vmem:[%s5] sm:$0xf]
        %v8054 = vld [vmem:[%s5 + $0x4] sm:$0xf]
        %v8055 = vld [vmem:[%s5 + $0x8] sm:$0xf]
        %v8056 = vld [vmem:[%s5 + $0xc] sm:$0xf]
        %v8057 = vld [vmem:[%s5 + $0x10] sm:$0xf]
        %v8058 = vld [vmem:[%s5 + $0x14] sm:$0xf]
        %v8059 = vld [vmem:[%s5 + $0x18] sm:$0xf]
        %v8060 = vld [vmem:[%s5 + $0x1c] sm:$0xf]
        %v8061 = vld [vmem:[%s5 + $0x20] sm:$0xf]
        %v8062 = vld [vmem:[#allocation4] sm:$0xf]
        %v8063 = vld [vmem:[#allocation4 + $0x4] sm:$0x1]
        %v8064 = vld [vmem:[#allocation4 + $0x8] sm:$0xf]
        %v8065 = vld [vmem:[#allocation4 + $0xc] sm:$0x1]
        %v8066 = vld [vmem:[#allocation4 + $0x10] sm:$0xf]
        %v8067 = vld [vmem:[#allocation4 + $0x14] sm:$0x1]
        %v8068 = vld [vmem:[#allocation4 + $0x18] sm:$0xf]
        %v8069 = vld [vmem:[#allocation4 + $0x1c] sm:$0x1]
        %v8070 = vld [vmem:[#allocation4 + $0x20] sm:$0xf]
        %v8071 = vld [vmem:[#allocation4 + $0x24] sm:$0x1]
        %v8072 = vld [vmem:[#allocation4 + $0x28] sm:$0xf]
        %v8073 = vld [vmem:[#allocation4 + $0x2c] sm:$0x1]
        %v8074 = vld [vmem:[#allocation4 + $0x30] sm:$0xf]
        %v8075 = vld [vmem:[#allocation4 + $0x34] sm:$0x1]
        %v8076 = vld [vmem:[#allocation4 + $0x38] sm:$0xf]
        %v8077 = vld [vmem:[#allocation4 + $0x3c] sm:$0x1]
        %v8078 = vld [vmem:[#allocation4 + $0x40] sm:$0xf]
        %v8079 = vld [vmem:[#allocation4 + $0x44] sm:$0x1]
        %v8099 = vunpack.c.l.s4 1966171168
        %v8100 = vunpack.c.0.s8 %v8099
        %v8101 = vlaneseq
        %v8102 = vshrl.u32 %v8101, 7
        %v8103 = vsub.s32 %v8100, %v8102
        %v8104 = vrot.slane %v8062, %v8103
        %v8105 = vcombine.high %v8104, %v8104
        %v8107 = vunpack.c.l.s4 1966171168
        %v8108 = vunpack.c.0.s8 %v8107
        %v8109 = vlaneseq
        %v8110 = vshrl.u32 %v8109, 7
        %v8111 = vsub.s32 %v8108, %v8110
        %v8112 = vrot.slane %v8104, %v8111
        %v8114 = vunpack.c.l.s4 1966171168
        %v8115 = vunpack.c.0.s8 %v8114
        %v8116 = vlaneseq
        %v8117 = vshrl.u32 %v8116, 7
        %v8118 = vsub.s32 %v8115, %v8117
        %v8119 = vrot.slane %v8105, %v8118
        %v8120 = vcombine.high %v8112, %v8112
        %v8121 = vcombine.high %v8119, %v8119
        %v8123 = vunpack.c.l.s4 1966171168
        %v8124 = vunpack.c.0.s8 %v8123
        %v8125 = vlaneseq
        %v8126 = vshrl.u32 %v8125, 7
        %v8127 = vsub.s32 %v8124, %v8126
        %v8128 = vrot.slane %v8063, %v8127
        %v8130 = vunpack.c.l.s4 1966171168
        %v8131 = vunpack.c.0.s8 %v8130
        %v8132 = vlaneseq
        %v8133 = vshrl.u32 %v8132, 7
        %v8134 = vsub.s32 %v8131, %v8133
        %v8135 = vrot.slane %v8128, %v8134
        %v8137 = vunpack.c.l.s4 1966171168
        %v8138 = vunpack.c.0.s8 %v8137
        %v8139 = vlaneseq
        %v8140 = vshrl.u32 %v8139, 7
        %v8141 = vsub.s32 %v8138, %v8140
        %v8142 = vrot.slane %v8064, %v8141
        %v8143 = vcombine.high %v8142, %v8142
        %v8145 = vunpack.c.l.s4 1966171168
        %v8146 = vunpack.c.0.s8 %v8145
        %v8147 = vlaneseq
        %v8148 = vshrl.u32 %v8147, 7
        %v8149 = vsub.s32 %v8146, %v8148
        %v8150 = vrot.slane %v8142, %v8149
        %v8152 = vunpack.c.l.s4 1966171168
        %v8153 = vunpack.c.0.s8 %v8152
        %v8154 = vlaneseq
        %v8155 = vshrl.u32 %v8154, 7
        %v8156 = vsub.s32 %v8153, %v8155
        %v8157 = vrot.slane %v8143, %v8156
        %v8158 = vcombine.high %v8150, %v8150
        %v8159 = vcombine.high %v8157, %v8157
        %v8161 = vunpack.c.l.s4 1966171168
        %v8162 = vunpack.c.0.s8 %v8161
        %v8163 = vlaneseq
        %v8164 = vshrl.u32 %v8163, 7
        %v8165 = vsub.s32 %v8162, %v8164
        %v8166 = vrot.slane %v8065, %v8165
        %v8168 = vunpack.c.l.s4 1966171168
        %v8169 = vunpack.c.0.s8 %v8168
        %v8170 = vlaneseq
        %v8171 = vshrl.u32 %v8170, 7
        %v8172 = vsub.s32 %v8169, %v8171
        %v8173 = vrot.slane %v8166, %v8172
        %v8175 = vunpack.c.l.s4 1966171168
        %v8176 = vunpack.c.0.s8 %v8175
        %v8177 = vlaneseq
        %v8178 = vshrl.u32 %v8177, 7
        %v8179 = vsub.s32 %v8176, %v8178
        %v8180 = vrot.slane %v8066, %v8179
        %v8181 = vcombine.high %v8180, %v8180
        %v8183 = vunpack.c.l.s4 1966171168
        %v8184 = vunpack.c.0.s8 %v8183
        %v8185 = vlaneseq
        %v8186 = vshrl.u32 %v8185, 7
        %v8187 = vsub.s32 %v8184, %v8186
        %v8188 = vrot.slane %v8180, %v8187
        %v8190 = vunpack.c.l.s4 1966171168
        %v8191 = vunpack.c.0.s8 %v8190
        %v8192 = vlaneseq
        %v8193 = vshrl.u32 %v8192, 7
        %v8194 = vsub.s32 %v8191, %v8193
        %v8195 = vrot.slane %v8181, %v8194
        %v8196 = vcombine.high %v8188, %v8188
        %v8197 = vcombine.high %v8195, %v8195
        %v8199 = vunpack.c.l.s4 1966171168
        %v8200 = vunpack.c.0.s8 %v8199
        %v8201 = vlaneseq
        %v8202 = vshrl.u32 %v8201, 7
        %v8203 = vsub.s32 %v8200, %v8202
        %v8204 = vrot.slane %v8067, %v8203
        %v8206 = vunpack.c.l.s4 1966171168
        %v8207 = vunpack.c.0.s8 %v8206
        %v8208 = vlaneseq
        %v8209 = vshrl.u32 %v8208, 7
        %v8210 = vsub.s32 %v8207, %v8209
        %v8211 = vrot.slane %v8204, %v8210
        %v8213 = vunpack.c.l.s4 1966171168
        %v8214 = vunpack.c.0.s8 %v8213
        %v8215 = vlaneseq
        %v8216 = vshrl.u32 %v8215, 7
        %v8217 = vsub.s32 %v8214, %v8216
        %v8218 = vrot.slane %v8068, %v8217
        %v8219 = vcombine.high %v8218, %v8218
        %v8221 = vunpack.c.l.s4 1966171168
        %v8222 = vunpack.c.0.s8 %v8221
        %v8223 = vlaneseq
        %v8224 = vshrl.u32 %v8223, 7
        %v8225 = vsub.s32 %v8222, %v8224
        %v8226 = vrot.slane %v8218, %v8225
        %v8228 = vunpack.c.l.s4 1966171168
        %v8229 = vunpack.c.0.s8 %v8228
        %v8230 = vlaneseq
        %v8231 = vshrl.u32 %v8230, 7
        %v8232 = vsub.s32 %v8229, %v8231
        %v8233 = vrot.slane %v8219, %v8232
        %v8234 = vcombine.high %v8226, %v8226
        %v8235 = vcombine.high %v8233, %v8233
        %v8237 = vunpack.c.l.s4 1966171168
        %v8238 = vunpack.c.0.s8 %v8237
        %v8239 = vlaneseq
        %v8240 = vshrl.u32 %v8239, 7
        %v8241 = vsub.s32 %v8238, %v8240
        %v8242 = vrot.slane %v8069, %v8241
        %v8244 = vunpack.c.l.s4 1966171168
        %v8245 = vunpack.c.0.s8 %v8244
        %v8246 = vlaneseq
        %v8247 = vshrl.u32 %v8246, 7
        %v8248 = vsub.s32 %v8245, %v8247
        %v8249 = vrot.slane %v8242, %v8248
        %v8251 = vunpack.c.l.s4 1966171168
        %v8252 = vunpack.c.0.s8 %v8251
        %v8253 = vlaneseq
        %v8254 = vshrl.u32 %v8253, 7
        %v8255 = vsub.s32 %v8252, %v8254
        %v8256 = vrot.slane %v8070, %v8255
        %v8257 = vcombine.high %v8256, %v8256
        %v8259 = vunpack.c.l.s4 1966171168
        %v8260 = vunpack.c.0.s8 %v8259
        %v8261 = vlaneseq
        %v8262 = vshrl.u32 %v8261, 7
        %v8263 = vsub.s32 %v8260, %v8262
        %v8264 = vrot.slane %v8256, %v8263
        %v8266 = vunpack.c.l.s4 1966171168
        %v8267 = vunpack.c.0.s8 %v8266
        %v8268 = vlaneseq
        %v8269 = vshrl.u32 %v8268, 7
        %v8270 = vsub.s32 %v8267, %v8269
        %v8271 = vrot.slane %v8257, %v8270
        %v8272 = vcombine.high %v8264, %v8264
        %v8273 = vcombine.high %v8271, %v8271
        %v8275 = vunpack.c.l.s4 1966171168
        %v8276 = vunpack.c.0.s8 %v8275
        %v8277 = vlaneseq
        %v8278 = vshrl.u32 %v8277, 7
        %v8279 = vsub.s32 %v8276, %v8278
        %v8280 = vrot.slane %v8071, %v8279
        %v8282 = vunpack.c.l.s4 1966171168
        %v8283 = vunpack.c.0.s8 %v8282
        %v8284 = vlaneseq
        %v8285 = vshrl.u32 %v8284, 7
        %v8286 = vsub.s32 %v8283, %v8285
        %v8287 = vrot.slane %v8280, %v8286
        %v8289 = vunpack.c.l.s4 1966171168
        %v8290 = vunpack.c.0.s8 %v8289
        %v8291 = vlaneseq
        %v8292 = vshrl.u32 %v8291, 7
        %v8293 = vsub.s32 %v8290, %v8292
        %v8294 = vrot.slane %v8072, %v8293
        %v8295 = vcombine.high %v8294, %v8294
        %v8297 = vunpack.c.l.s4 1966171168
        %v8298 = vunpack.c.0.s8 %v8297
        %v8299 = vlaneseq
        %v8300 = vshrl.u32 %v8299, 7
        %v8301 = vsub.s32 %v8298, %v8300
        %v8302 = vrot.slane %v8294, %v8301
        %v8304 = vunpack.c.l.s4 1966171168
        %v8305 = vunpack.c.0.s8 %v8304
        %v8306 = vlaneseq
        %v8307 = vshrl.u32 %v8306, 7
        %v8308 = vsub.s32 %v8305, %v8307
        %v8309 = vrot.slane %v8295, %v8308
        %v8310 = vcombine.high %v8302, %v8302
        %v8311 = vcombine.high %v8309, %v8309
        %v8313 = vunpack.c.l.s4 1966171168
        %v8314 = vunpack.c.0.s8 %v8313
        %v8315 = vlaneseq
        %v8316 = vshrl.u32 %v8315, 7
        %v8317 = vsub.s32 %v8314, %v8316
        %v8318 = vrot.slane %v8073, %v8317
        %v8320 = vunpack.c.l.s4 1966171168
        %v8321 = vunpack.c.0.s8 %v8320
        %v8322 = vlaneseq
        %v8323 = vshrl.u32 %v8322, 7
        %v8324 = vsub.s32 %v8321, %v8323
        %v8325 = vrot.slane %v8318, %v8324
        %v8327 = vunpack.c.l.s4 1966171168
        %v8328 = vunpack.c.0.s8 %v8327
        %v8329 = vlaneseq
        %v8330 = vshrl.u32 %v8329, 7
        %v8331 = vsub.s32 %v8328, %v8330
        %v8332 = vrot.slane %v8074, %v8331
        %v8333 = vcombine.high %v8332, %v8332
        %v8335 = vunpack.c.l.s4 1966171168
        %v8336 = vunpack.c.0.s8 %v8335
        %v8337 = vlaneseq
        %v8338 = vshrl.u32 %v8337, 7
        %v8339 = vsub.s32 %v8336, %v8338
        %v8340 = vrot.slane %v8332, %v8339
        %v8342 = vunpack.c.l.s4 1966171168
        %v8343 = vunpack.c.0.s8 %v8342
        %v8344 = vlaneseq
        %v8345 = vshrl.u32 %v8344, 7
        %v8346 = vsub.s32 %v8343, %v8345
        %v8347 = vrot.slane %v8333, %v8346
        %v8348 = vcombine.high %v8340, %v8340
        %v8349 = vcombine.high %v8347, %v8347
        %v8351 = vunpack.c.l.s4 1966171168
        %v8352 = vunpack.c.0.s8 %v8351
        %v8353 = vlaneseq
        %v8354 = vshrl.u32 %v8353, 7
        %v8355 = vsub.s32 %v8352, %v8354
        %v8356 = vrot.slane %v8075, %v8355
        %v8358 = vunpack.c.l.s4 1966171168
        %v8359 = vunpack.c.0.s8 %v8358
        %v8360 = vlaneseq
        %v8361 = vshrl.u32 %v8360, 7
        %v8362 = vsub.s32 %v8359, %v8361
        %v8363 = vrot.slane %v8356, %v8362
        %v8365 = vunpack.c.l.s4 1966171168
        %v8366 = vunpack.c.0.s8 %v8365
        %v8367 = vlaneseq
        %v8368 = vshrl.u32 %v8367, 7
        %v8369 = vsub.s32 %v8366, %v8368
        %v8370 = vrot.slane %v8076, %v8369
        %v8371 = vcombine.high %v8370, %v8370
        %v8373 = vunpack.c.l.s4 1966171168
        %v8374 = vunpack.c.0.s8 %v8373
        %v8375 = vlaneseq
        %v8376 = vshrl.u32 %v8375, 7
        %v8377 = vsub.s32 %v8374, %v8376
        %v8378 = vrot.slane %v8370, %v8377
        %v8380 = vunpack.c.l.s4 1966171168
        %v8381 = vunpack.c.0.s8 %v8380
        %v8382 = vlaneseq
        %v8383 = vshrl.u32 %v8382, 7
        %v8384 = vsub.s32 %v8381, %v8383
        %v8385 = vrot.slane %v8371, %v8384
        %v8386 = vcombine.high %v8378, %v8378
        %v8387 = vcombine.high %v8385, %v8385
        %v8389 = vunpack.c.l.s4 1966171168
        %v8390 = vunpack.c.0.s8 %v8389
        %v8391 = vlaneseq
        %v8392 = vshrl.u32 %v8391, 7
        %v8393 = vsub.s32 %v8390, %v8392
        %v8394 = vrot.slane %v8077, %v8393
        %v8396 = vunpack.c.l.s4 1966171168
        %v8397 = vunpack.c.0.s8 %v8396
        %v8398 = vlaneseq
        %v8399 = vshrl.u32 %v8398, 7
        %v8400 = vsub.s32 %v8397, %v8399
        %v8401 = vrot.slane %v8394, %v8400
        %v8403 = vunpack.c.l.s4 1966171168
        %v8404 = vunpack.c.0.s8 %v8403
        %v8405 = vlaneseq
        %v8406 = vshrl.u32 %v8405, 7
        %v8407 = vsub.s32 %v8404, %v8406
        %v8408 = vrot.slane %v8078, %v8407
        %v8409 = vcombine.high %v8408, %v8408
        %v8411 = vunpack.c.l.s4 1966171168
        %v8412 = vunpack.c.0.s8 %v8411
        %v8413 = vlaneseq
        %v8414 = vshrl.u32 %v8413, 7
        %v8415 = vsub.s32 %v8412, %v8414
        %v8416 = vrot.slane %v8408, %v8415
        %v8418 = vunpack.c.l.s4 1966171168
        %v8419 = vunpack.c.0.s8 %v8418
        %v8420 = vlaneseq
        %v8421 = vshrl.u32 %v8420, 7
        %v8422 = vsub.s32 %v8419, %v8421
        %v8423 = vrot.slane %v8409, %v8422
        %v8424 = vcombine.high %v8416, %v8416
        %v8425 = vcombine.high %v8423, %v8423
        %v8427 = vunpack.c.l.s4 1966171168
        %v8428 = vunpack.c.0.s8 %v8427
        %v8429 = vlaneseq
        %v8430 = vshrl.u32 %v8429, 7
        %v8431 = vsub.s32 %v8428, %v8430
        %v8432 = vrot.slane %v8079, %v8431
        %v8434 = vunpack.c.l.s4 1966171168
        %v8435 = vunpack.c.0.s8 %v8434
        %v8436 = vlaneseq
        %v8437 = vshrl.u32 %v8436, 7
        %v8438 = vsub.s32 %v8435, %v8437
        %v8439 = vrot.slane %v8432, %v8438
        %v8441 = vunpack.c.l.s4 1966171168
        %v8442 = vunpack.c.0.s8 %v8441
        %v8443 = vlaneseq
        %v8444 = vshrl.u32 %v8443, 7
        %v8445 = vsub.s32 %v8442, %v8444
        %v8446 = vrot.slane %v8112, %v8445
        %v8448 = vunpack.c.l.s4 1966171168
        %v8449 = vunpack.c.0.s8 %v8448
        %v8450 = vlaneseq
        %v8451 = vshrl.u32 %v8450, 7
        %v8452 = vsub.s32 %v8449, %v8451
        %v8453 = vrot.slane %v8446, %v8452
        %v8455 = vunpack.c.l.s4 1966171168
        %v8456 = vunpack.c.0.s8 %v8455
        %v8457 = vlaneseq
        %v8458 = vshrl.u32 %v8457, 7
        %v8459 = vsub.s32 %v8456, %v8458
        %v8460 = vrot.slane %v8119, %v8459
        %v8462 = vunpack.c.l.s4 1966171168
        %v8463 = vunpack.c.0.s8 %v8462
        %v8464 = vlaneseq
        %v8465 = vshrl.u32 %v8464, 7
        %v8466 = vsub.s32 %v8463, %v8465
        %v8467 = vrot.slane %v8460, %v8466
        %v8469 = vunpack.c.l.s4 1966171168
        %v8470 = vunpack.c.0.s8 %v8469
        %v8471 = vlaneseq
        %v8472 = vshrl.u32 %v8471, 7
        %v8473 = vsub.s32 %v8470, %v8472
        %v8474 = vrot.slane %v8120, %v8473
        %v8476 = vunpack.c.l.s4 1966171168
        %v8477 = vunpack.c.0.s8 %v8476
        %v8478 = vlaneseq
        %v8479 = vshrl.u32 %v8478, 7
        %v8480 = vsub.s32 %v8477, %v8479
        %v8481 = vrot.slane %v8474, %v8480
        %v8483 = vunpack.c.l.s4 1966171168
        %v8484 = vunpack.c.0.s8 %v8483
        %v8485 = vlaneseq
        %v8486 = vshrl.u32 %v8485, 7
        %v8487 = vsub.s32 %v8484, %v8486
        %v8488 = vrot.slane %v8121, %v8487
        %v8490 = vunpack.c.l.s4 1966171168
        %v8491 = vunpack.c.0.s8 %v8490
        %v8492 = vlaneseq
        %v8493 = vshrl.u32 %v8492, 7
        %v8494 = vsub.s32 %v8491, %v8493
        %v8495 = vrot.slane %v8488, %v8494
        %v8497 = vunpack.c.l.s4 1966171168
        %v8498 = vunpack.c.0.s8 %v8497
        %v8499 = vlaneseq
        %v8500 = vshrl.u32 %v8499, 7
        %v8501 = vsub.s32 %v8498, %v8500
        %v8502 = vrot.slane %v8188, %v8501
        %v8504 = vunpack.c.l.s4 1966171168
        %v8505 = vunpack.c.0.s8 %v8504
        %v8506 = vlaneseq
        %v8507 = vshrl.u32 %v8506, 7
        %v8508 = vsub.s32 %v8505, %v8507
        %v8509 = vrot.slane %v8502, %v8508
        %v8511 = vunpack.c.l.s4 1966171168
        %v8512 = vunpack.c.0.s8 %v8511
        %v8513 = vlaneseq
        %v8514 = vshrl.u32 %v8513, 7
        %v8515 = vsub.s32 %v8512, %v8514
        %v8516 = vrot.slane %v8195, %v8515
        %v8518 = vunpack.c.l.s4 1966171168
        %v8519 = vunpack.c.0.s8 %v8518
        %v8520 = vlaneseq
        %v8521 = vshrl.u32 %v8520, 7
        %v8522 = vsub.s32 %v8519, %v8521
        %v8523 = vrot.slane %v8516, %v8522
        %v8525 = vunpack.c.l.s4 1966171168
        %v8526 = vunpack.c.0.s8 %v8525
        %v8527 = vlaneseq
        %v8528 = vshrl.u32 %v8527, 7
        %v8529 = vsub.s32 %v8526, %v8528
        %v8530 = vrot.slane %v8196, %v8529
        %v8532 = vunpack.c.l.s4 1966171168
        %v8533 = vunpack.c.0.s8 %v8532
        %v8534 = vlaneseq
        %v8535 = vshrl.u32 %v8534, 7
        %v8536 = vsub.s32 %v8533, %v8535
        %v8537 = vrot.slane %v8530, %v8536
        %v8539 = vunpack.c.l.s4 1966171168
        %v8540 = vunpack.c.0.s8 %v8539
        %v8541 = vlaneseq
        %v8542 = vshrl.u32 %v8541, 7
        %v8543 = vsub.s32 %v8540, %v8542
        %v8544 = vrot.slane %v8197, %v8543
        %v8546 = vunpack.c.l.s4 1966171168
        %v8547 = vunpack.c.0.s8 %v8546
        %v8548 = vlaneseq
        %v8549 = vshrl.u32 %v8548, 7
        %v8550 = vsub.s32 %v8547, %v8549
        %v8551 = vrot.slane %v8544, %v8550
        %v8553 = vunpack.c.l.s4 1966171168
        %v8554 = vunpack.c.0.s8 %v8553
        %v8555 = vlaneseq
        %v8556 = vshrl.u32 %v8555, 7
        %v8557 = vsub.s32 %v8554, %v8556
        %v8558 = vrot.slane %v8264, %v8557
        %v8560 = vunpack.c.l.s4 1966171168
        %v8561 = vunpack.c.0.s8 %v8560
        %v8562 = vlaneseq
        %v8563 = vshrl.u32 %v8562, 7
        %v8564 = vsub.s32 %v8561, %v8563
        %v8565 = vrot.slane %v8558, %v8564
        %v8567 = vunpack.c.l.s4 1966171168
        %v8568 = vunpack.c.0.s8 %v8567
        %v8569 = vlaneseq
        %v8570 = vshrl.u32 %v8569, 7
        %v8571 = vsub.s32 %v8568, %v8570
        %v8572 = vrot.slane %v8271, %v8571
        %v8574 = vunpack.c.l.s4 1966171168
        %v8575 = vunpack.c.0.s8 %v8574
        %v8576 = vlaneseq
        %v8577 = vshrl.u32 %v8576, 7
        %v8578 = vsub.s32 %v8575, %v8577
        %v8579 = vrot.slane %v8572, %v8578
        %v8581 = vunpack.c.l.s4 1966171168
        %v8582 = vunpack.c.0.s8 %v8581
        %v8583 = vlaneseq
        %v8584 = vshrl.u32 %v8583, 7
        %v8585 = vsub.s32 %v8582, %v8584
        %v8586 = vrot.slane %v8272, %v8585
        %v8588 = vunpack.c.l.s4 1966171168
        %v8589 = vunpack.c.0.s8 %v8588
        %v8590 = vlaneseq
        %v8591 = vshrl.u32 %v8590, 7
        %v8592 = vsub.s32 %v8589, %v8591
        %v8593 = vrot.slane %v8586, %v8592
        %v8595 = vunpack.c.l.s4 1966171168
        %v8596 = vunpack.c.0.s8 %v8595
        %v8597 = vlaneseq
        %v8598 = vshrl.u32 %v8597, 7
        %v8599 = vsub.s32 %v8596, %v8598
        %v8600 = vrot.slane %v8273, %v8599
        %v8602 = vunpack.c.l.s4 1966171168
        %v8603 = vunpack.c.0.s8 %v8602
        %v8604 = vlaneseq
        %v8605 = vshrl.u32 %v8604, 7
        %v8606 = vsub.s32 %v8603, %v8605
        %v8607 = vrot.slane %v8600, %v8606
        %v8609 = vunpack.c.l.s4 1966171168
        %v8610 = vunpack.c.0.s8 %v8609
        %v8611 = vlaneseq
        %v8612 = vshrl.u32 %v8611, 7
        %v8613 = vsub.s32 %v8610, %v8612
        %v8614 = vrot.slane %v8340, %v8613
        %v8616 = vunpack.c.l.s4 1966171168
        %v8617 = vunpack.c.0.s8 %v8616
        %v8618 = vlaneseq
        %v8619 = vshrl.u32 %v8618, 7
        %v8620 = vsub.s32 %v8617, %v8619
        %v8621 = vrot.slane %v8614, %v8620
        %v8623 = vunpack.c.l.s4 1966171168
        %v8624 = vunpack.c.0.s8 %v8623
        %v8625 = vlaneseq
        %v8626 = vshrl.u32 %v8625, 7
        %v8627 = vsub.s32 %v8624, %v8626
        %v8628 = vrot.slane %v8347, %v8627
        %v8630 = vunpack.c.l.s4 1966171168
        %v8631 = vunpack.c.0.s8 %v8630
        %v8632 = vlaneseq
        %v8633 = vshrl.u32 %v8632, 7
        %v8634 = vsub.s32 %v8631, %v8633
        %v8635 = vrot.slane %v8628, %v8634
        %v8637 = vunpack.c.l.s4 1966171168
        %v8638 = vunpack.c.0.s8 %v8637
        %v8639 = vlaneseq
        %v8640 = vshrl.u32 %v8639, 7
        %v8641 = vsub.s32 %v8638, %v8640
        %v8642 = vrot.slane %v8348, %v8641
        %v8644 = vunpack.c.l.s4 1966171168
        %v8645 = vunpack.c.0.s8 %v8644
        %v8646 = vlaneseq
        %v8647 = vshrl.u32 %v8646, 7
        %v8648 = vsub.s32 %v8645, %v8647
        %v8649 = vrot.slane %v8642, %v8648
        %v8651 = vunpack.c.l.s4 1966171168
        %v8652 = vunpack.c.0.s8 %v8651
        %v8653 = vlaneseq
        %v8654 = vshrl.u32 %v8653, 7
        %v8655 = vsub.s32 %v8652, %v8654
        %v8656 = vrot.slane %v8349, %v8655
        %v8658 = vunpack.c.l.s4 1966171168
        %v8659 = vunpack.c.0.s8 %v8658
        %v8660 = vlaneseq
        %v8661 = vshrl.u32 %v8660, 7
        %v8662 = vsub.s32 %v8659, %v8661
        %v8663 = vrot.slane %v8656, %v8662
        %v8664 = vunpack.c.l.b16 %v8453
        %v8665 = vunpack.c.l.b16 %v8467
        %v8666 = vunpack.c.l.b16 %v8481
        %v8667 = vunpack.c.l.b16 %v8495
        %v8668 = vunpack.c.l.b16 %v8509
        %v8669 = vunpack.c.l.b16 %v8523
        %v8670 = vunpack.c.l.b16 %v8537
        %v8671 = vunpack.c.l.b16 %v8551
        %v8672 = vunpack.c.l.b16 %v8565
        %v8673 = vunpack.c.l.b16 %v8579
        %v8674 = vunpack.c.l.b16 %v8593
        %v8675 = vunpack.c.l.b16 %v8607
        %v8676 = vunpack.c.l.b16 %v8621
        %v8677 = vunpack.c.l.b16 %v8635
        %v8678 = vunpack.c.l.b16 %v8649
        %v8679 = vunpack.c.l.b16 %v8663
        %v8680 = vrot.slane %v8664, 1
        %vm8681 = vcmask 1041409
        %v8682 = vsel %vm8681, %v8665, %v8680
        %v8683 = vrot.slane %v8666, 7
        %vm8684 = vcmask 1042434
        %v8685 = vsel %vm8684, %v8683, %v8682
        %v8686 = vrot.slane %v8667, 6
        %vm8687 = vcmask 1043459
        %v8688 = vsel %vm8687, %v8686, %v8685
        %v8689 = vrot.slane %v8668, 5
        %vm8690 = vcmask 1044484
        %v8691 = vsel %vm8690, %v8689, %v8688
        %v8692 = vrot.slane %v8669, 4
        %vm8693 = vcmask 1045509
        %v8694 = vsel %vm8693, %v8692, %v8691
        %v8695 = vrot.slane %v8670, 3
        %vm8696 = vcmask 1046534
        %v8697 = vsel %vm8696, %v8695, %v8694
        %v8698 = vrot.slane %v8671, 2
        %vm8699 = vcmask 1047559
        %v8700 = vsel %vm8699, %v8698, %v8697
        %v8701 = vrot.slane %v8672, 1
        %v8702 = vsel %vm8681, %v8673, %v8701
        %v8703 = vrot.slane %v8674, 7
        %v8704 = vsel %vm8684, %v8703, %v8702
        %v8705 = vrot.slane %v8675, 6
        %v8706 = vsel %vm8687, %v8705, %v8704
        %v8707 = vrot.slane %v8676, 5
        %v8708 = vsel %vm8690, %v8707, %v8706
        %v8709 = vrot.slane %v8677, 4
        %v8710 = vsel %vm8693, %v8709, %v8708
        %v8711 = vrot.slane %v8678, 3
        %v8712 = vsel %vm8696, %v8711, %v8710
        %v8713 = vrot.slane %v8679, 2
        %v8714 = vsel %vm8699, %v8713, %v8712
        %v8715 = vpack.c.b16 %v8714, %v8700
        %vm8716 = vcmask 64512
        %v8718 = vsel %vm8716, %v8715, 0
        %vm8720 = vcmask 1043456
        %v8722 = vsel %vm8720, %v8054, 0
        %8724 = vmatprep.subr.bf16.mxu0 0
        %8725 = vmatpush1.bf16.msra.mxu0 %v8722
        %8726 = vmatprep.subr.bf16.mxu0 0
        %8727 = vmatpush1.bf16.msra.mxu0 0
        %8728 = vmatprep.subr.bf16.mxu0 0
        %8729 = vmatpush1.bf16.msra.mxu0 0
        %8730 = vmatprep.subr.bf16.mxu0 0
        %8731 = vmatpush1.bf16.msra.mxu0 0
        %8732 = vmatprep.subr.bf16.mxu0 0
        %8733 = vmatpush1.bf16.msra.mxu0 0
        %8734 = vmatprep.subr.bf16.mxu0 0
        %8735 = vmatpush1.bf16.msra.mxu0 0
        %8736 = vmatprep.subr.bf16.mxu0 0
        %8737 = vmatpush1.bf16.msra.mxu0 0
        %8738 = vmatprep.subr.bf16.mxu0 0
        %8739 = vmatpush1.bf16.msra.mxu0 0
        %8740 = vmatprep.subr.bf16.mxu0 0
        %8741 = vmatpush1.bf16.msra.mxu0 0
        %8742 = vmatprep.subr.bf16.mxu0 0
        %8743 = vmatpush1.bf16.msra.mxu0 0
        %8744 = vmatprep.subr.bf16.mxu0 0
        %8745 = vmatpush1.bf16.msra.mxu0 0
        %8746 = vmatprep.subr.bf16.mxu0 0
        %8747 = vmatpush1.bf16.msra.mxu0 0
        %8748 = vmatprep.subr.bf16.mxu0 0
        %8749 = vmatpush1.bf16.msra.mxu0 0
        %8750 = vmatprep.subr.bf16.mxu0 0
        %8751 = vmatpush1.bf16.msra.mxu0 0
        %8752 = vmatprep.subr.bf16.mxu0 0
        %8753 = vmatpush1.bf16.msra.mxu0 0
        %8754 = vmatprep.subr.bf16.mxu0 0
        %8755 = vmatpush1.bf16.msra.mxu0 0
        %8756 = vmatprep.mubr.bf16.mxu0 0
        %8757 = vmatmul.mubr.bf16.gmra.mrb[0].mxu0 %v8718
        %v8758 = vpop.f32.mrb[0].mxu0
        %v8759 = vadd.f32 0.0, %v8758
        %v8760 = vpop.f32.mrb[0].mxu0
        %v8761 = vpop.f32.mrb[0].mxu0
        %v8762 = vadd.f32 0.0, %v8761
        %v8763 = vpop.f32.mrb[0].mxu0
        %8764 = vdwg.mxu0
        %v8765 = vrot.slane %v8665, 7
        %v8766 = vsel %vm8681, %v8765, %v8664
        %v8767 = vrot.slane %v8666, 6
        %v8768 = vsel %vm8684, %v8767, %v8766
        %v8769 = vrot.slane %v8667, 5
        %v8770 = vsel %vm8687, %v8769, %v8768
        %v8771 = vrot.slane %v8668, 4
        %v8772 = vsel %vm8690, %v8771, %v8770
        %v8773 = vrot.slane %v8669, 3
        %v8774 = vsel %vm8693, %v8773, %v8772
        %v8775 = vrot.slane %v8670, 2
        %v8776 = vsel %vm8696, %v8775, %v8774
        %v8777 = vrot.slane %v8671, 1
        %v8778 = vsel %vm8699, %v8777, %v8776
        %v8779 = vrot.slane %v8673, 7
        %v8780 = vsel %vm8681, %v8779, %v8672
        %v8781 = vrot.slane %v8674, 6
        %v8782 = vsel %vm8684, %v8781, %v8780
        %v8783 = vrot.slane %v8675, 5
        %v8784 = vsel %vm8687, %v8783, %v8782
        %v8785 = vrot.slane %v8676, 4
        %v8786 = vsel %vm8690, %v8785, %v8784
        %v8787 = vrot.slane %v8677, 3
        %v8788 = vsel %vm8693, %v8787, %v8786
        %v8789 = vrot.slane %v8678, 2
        %v8790 = vsel %vm8696, %v8789, %v8788
        %v8791 = vrot.slane %v8679, 1
        %v8792 = vsel %vm8699, %v8791, %v8790
        %v8793 = vpack.c.b16 %v8792, %v8778
        %v8795 = vsel %vm8716, %v8793, 0
        %v8798 = vsel %vm8720, %v8053, 0
        %8800 = vmatprep.subr.bf16.mxu0 0
        %8801 = vmatpush1.bf16.msra.mxu0 %v8798
        %8802 = vmatprep.subr.bf16.mxu0 0
        %8803 = vmatpush1.bf16.msra.mxu0 0
        %8804 = vmatprep.subr.bf16.mxu0 0
        %8805 = vmatpush1.bf16.msra.mxu0 0
        %8806 = vmatprep.subr.bf16.mxu0 0
        %8807 = vmatpush1.bf16.msra.mxu0 0
        %8808 = vmatprep.subr.bf16.mxu0 0
        %8809 = vmatpush1.bf16.msra.mxu0 0
        %8810 = vmatprep.subr.bf16.mxu0 0
        %8811 = vmatpush1.bf16.msra.mxu0 0
        %8812 = vmatprep.subr.bf16.mxu0 0
        %8813 = vmatpush1.bf16.msra.mxu0 0
        %8814 = vmatprep.subr.bf16.mxu0 0
        %8815 = vmatpush1.bf16.msra.mxu0 0
        %8816 = vmatprep.subr.bf16.mxu0 0
        %8817 = vmatpush1.bf16.msra.mxu0 0
        %8818 = vmatprep.subr.bf16.mxu0 0
        %8819 = vmatpush1.bf16.msra.mxu0 0
        %8820 = vmatprep.subr.bf16.mxu0 0
        %8821 = vmatpush1.bf16.msra.mxu0 0
        %8822 = vmatprep.subr.bf16.mxu0 0
        %8823 = vmatpush1.bf16.msra.mxu0 0
        %8824 = vmatprep.subr.bf16.mxu0 0
        %8825 = vmatpush1.bf16.msra.mxu0 0
        %8826 = vmatprep.subr.bf16.mxu0 0
        %8827 = vmatpush1.bf16.msra.mxu0 0
        %8828 = vmatprep.subr.bf16.mxu0 0
        %8829 = vmatpush1.bf16.msra.mxu0 0
        %8830 = vmatprep.subr.bf16.mxu0 0
        %8831 = vmatpush1.bf16.msra.mxu0 0
        %8832 = vmatprep.mubr.bf16.mxu0 0
        %8833 = vmatmul.mubr.bf16.gmra.mrb[0].mxu0 %v8795
        %v8834 = vpop.f32.mrb[0].mxu0
        %v8835 = vadd.f32 %v8759, %v8834
        %v8836 = vpop.f32.mrb[0].mxu0
        %v8837 = vpop.f32.mrb[0].mxu0
        %v8838 = vadd.f32 %v8762, %v8837
        %v8839 = vpop.f32.mrb[0].mxu0
        %8840 = vdwg.mxu0
        %v8842 = vunpack.c.l.s4 1966171168
        %v8843 = vunpack.c.0.s8 %v8842
        %v8844 = vlaneseq
        %v8845 = vshrl.u32 %v8844, 7
        %v8846 = vsub.s32 %v8843, %v8845
        %v8847 = vrot.slane %v8135, %v8846
        %v8849 = vunpack.c.l.s4 1966171168
        %v8850 = vunpack.c.0.s8 %v8849
        %v8851 = vlaneseq
        %v8852 = vshrl.u32 %v8851, 7
        %v8853 = vsub.s32 %v8850, %v8852
        %v8854 = vrot.slane %v8847, %v8853
        %v8856 = vunpack.c.l.s4 1966171168
        %v8857 = vunpack.c.0.s8 %v8856
        %v8858 = vlaneseq
        %v8859 = vshrl.u32 %v8858, 7
        %v8860 = vsub.s32 %v8857, %v8859
        %v8861 = vrot.slane %v8211, %v8860
        %v8863 = vunpack.c.l.s4 1966171168
        %v8864 = vunpack.c.0.s8 %v8863
        %v8865 = vlaneseq
        %v8866 = vshrl.u32 %v8865, 7
        %v8867 = vsub.s32 %v8864, %v8866
        %v8868 = vrot.slane %v8861, %v8867
        %v8870 = vunpack.c.l.s4 1966171168
        %v8871 = vunpack.c.0.s8 %v8870
        %v8872 = vlaneseq
        %v8873 = vshrl.u32 %v8872, 7
        %v8874 = vsub.s32 %v8871, %v8873
        %v8875 = vrot.slane %v8287, %v8874
        %v8877 = vunpack.c.l.s4 1966171168
        %v8878 = vunpack.c.0.s8 %v8877
        %v8879 = vlaneseq
        %v8880 = vshrl.u32 %v8879, 7
        %v8881 = vsub.s32 %v8878, %v8880
        %v8882 = vrot.slane %v8875, %v8881
        %v8884 = vunpack.c.l.s4 1966171168
        %v8885 = vunpack.c.0.s8 %v8884
        %v8886 = vlaneseq
        %v8887 = vshrl.u32 %v8886, 7
        %v8888 = vsub.s32 %v8885, %v8887
        %v8889 = vrot.slane %v8363, %v8888
        %v8891 = vunpack.c.l.s4 1966171168
        %v8892 = vunpack.c.0.s8 %v8891
        %v8893 = vlaneseq
        %v8894 = vshrl.u32 %v8893, 7
        %v8895 = vsub.s32 %v8892, %v8894
        %v8896 = vrot.slane %v8889, %v8895
        %v8897 = vunpack.c.l.b16 %v8854
        %v8898 = vunpack.c.l.b16 %v8868
        %v8899 = vunpack.c.l.b16 %v8882
        %v8900 = vunpack.c.l.b16 %v8896
        %v8901 = vsel %vm8681, %v8683, %v8665
        %v8902 = vsel %vm8684, %v8686, %v8901
        %v8903 = vrot.slane %v8897, 5
        %v8904 = vsel %vm8687, %v8903, %v8902
        %v8905 = vsel %vm8690, %v8692, %v8904
        %v8906 = vsel %vm8693, %v8695, %v8905
        %v8907 = vsel %vm8696, %v8698, %v8906
        %v8908 = vrot.slane %v8898, 1
        %v8909 = vsel %vm8699, %v8908, %v8907
        %v8910 = vsel %vm8681, %v8703, %v8673
        %v8911 = vsel %vm8684, %v8705, %v8910
        %v8912 = vrot.slane %v8899, 5
        %v8913 = vsel %vm8687, %v8912, %v8911
        %v8914 = vsel %vm8690, %v8709, %v8913
        %v8915 = vsel %vm8693, %v8711, %v8914
        %v8916 = vsel %vm8696, %v8713, %v8915
        %v8917 = vrot.slane %v8900, 1
        %v8918 = vsel %vm8699, %v8917, %v8916
        %v8919 = vpack.c.b16 %v8918, %v8909
        %v8921 = vsel %vm8716, %v8919, 0
        %v8924 = vsel %vm8720, %v8055, 0
        %8926 = vmatprep.subr.bf16.mxu0 0
        %8927 = vmatpush1.bf16.msra.mxu0 %v8924
        %8928 = vmatprep.subr.bf16.mxu0 0
        %8929 = vmatpush1.bf16.msra.mxu0 0
        %8930 = vmatprep.subr.bf16.mxu0 0
        %8931 = vmatpush1.bf16.msra.mxu0 0
        %8932 = vmatprep.subr.bf16.mxu0 0
        %8933 = vmatpush1.bf16.msra.mxu0 0
        %8934 = vmatprep.subr.bf16.mxu0 0
        %8935 = vmatpush1.bf16.msra.mxu0 0
        %8936 = vmatprep.subr.bf16.mxu0 0
        %8937 = vmatpush1.bf16.msra.mxu0 0
        %8938 = vmatprep.subr.bf16.mxu0 0
        %8939 = vmatpush1.bf16.msra.mxu0 0
        %8940 = vmatprep.subr.bf16.mxu0 0
        %8941 = vmatpush1.bf16.msra.mxu0 0
        %8942 = vmatprep.subr.bf16.mxu0 0
        %8943 = vmatpush1.bf16.msra.mxu0 0
        %8944 = vmatprep.subr.bf16.mxu0 0
        %8945 = vmatpush1.bf16.msra.mxu0 0
        %8946 = vmatprep.subr.bf16.mxu0 0
        %8947 = vmatpush1.bf16.msra.mxu0 0
        %8948 = vmatprep.subr.bf16.mxu0 0
        %8949 = vmatpush1.bf16.msra.mxu0 0
        %8950 = vmatprep.subr.bf16.mxu0 0
        %8951 = vmatpush1.bf16.msra.mxu0 0
        %8952 = vmatprep.subr.bf16.mxu0 0
        %8953 = vmatpush1.bf16.msra.mxu0 0
        %8954 = vmatprep.subr.bf16.mxu0 0
        %8955 = vmatpush1.bf16.msra.mxu0 0
        %8956 = vmatprep.subr.bf16.mxu0 0
        %8957 = vmatpush1.bf16.msra.mxu0 0
        %8958 = vmatprep.mubr.bf16.mxu0 0
        %8959 = vmatmul.mubr.bf16.gmra.mrb[0].mxu0 %v8921
        %v8960 = vpop.f32.mrb[0].mxu0
        %v8961 = vadd.f32 0.0, %v8960
        %v8962 = vpop.f32.mrb[0].mxu0
        %v8963 = vpop.f32.mrb[0].mxu0
        %v8964 = vadd.f32 0.0, %v8963
        %v8965 = vpop.f32.mrb[0].mxu0
        %8966 = vdwg.mxu0
        %v8967 = vadd.f32 %v8835, %v8961
        %v8968 = vadd.f32 %v8838, %v8964
        %v8970 = vunpack.c.l.s4 1966171168
        %v8971 = vunpack.c.0.s8 %v8970
        %v8972 = vlaneseq
        %v8973 = vshrl.u32 %v8972, 7
        %v8974 = vsub.s32 %v8971, %v8973
        %v8975 = vrot.slane %v8150, %v8974
        %v8977 = vunpack.c.l.s4 1966171168
        %v8978 = vunpack.c.0.s8 %v8977
        %v8979 = vlaneseq
        %v8980 = vshrl.u32 %v8979, 7
        %v8981 = vsub.s32 %v8978, %v8980
        %v8982 = vrot.slane %v8975, %v8981
        %v8984 = vunpack.c.l.s4 1966171168
        %v8985 = vunpack.c.0.s8 %v8984
        %v8986 = vlaneseq
        %v8987 = vshrl.u32 %v8986, 7
        %v8988 = vsub.s32 %v8985, %v8987
        %v8989 = vrot.slane %v8157, %v8988
        %v8991 = vunpack.c.l.s4 1966171168
        %v8992 = vunpack.c.0.s8 %v8991
        %v8993 = vlaneseq
        %v8994 = vshrl.u32 %v8993, 7
        %v8995 = vsub.s32 %v8992, %v8994
        %v8996 = vrot.slane %v8989, %v8995
        %v8998 = vunpack.c.l.s4 1966171168
        %v8999 = vunpack.c.0.s8 %v8998
        %v9000 = vlaneseq
        %v9001 = vshrl.u32 %v9000, 7
        %v9002 = vsub.s32 %v8999, %v9001
        %v9003 = vrot.slane %v8158, %v9002
        %v9005 = vunpack.c.l.s4 1966171168
        %v9006 = vunpack.c.0.s8 %v9005
        %v9007 = vlaneseq
        %v9008 = vshrl.u32 %v9007, 7
        %v9009 = vsub.s32 %v9006, %v9008
        %v9010 = vrot.slane %v9003, %v9009
        %v9012 = vunpack.c.l.s4 1966171168
        %v9013 = vunpack.c.0.s8 %v9012
        %v9014 = vlaneseq
        %v9015 = vshrl.u32 %v9014, 7
        %v9016 = vsub.s32 %v9013, %v9015
        %v9017 = vrot.slane %v8159, %v9016
        %v9019 = vunpack.c.l.s4 1966171168
        %v9020 = vunpack.c.0.s8 %v9019
        %v9021 = vlaneseq
        %v9022 = vshrl.u32 %v9021, 7
        %v9023 = vsub.s32 %v9020, %v9022
        %v9024 = vrot.slane %v9017, %v9023
        %v9026 = vunpack.c.l.s4 1966171168
        %v9027 = vunpack.c.0.s8 %v9026
        %v9028 = vlaneseq
        %v9029 = vshrl.u32 %v9028, 7
        %v9030 = vsub.s32 %v9027, %v9029
        %v9031 = vrot.slane %v8226, %v9030
        %v9033 = vunpack.c.l.s4 1966171168
        %v9034 = vunpack.c.0.s8 %v9033
        %v9035 = vlaneseq
        %v9036 = vshrl.u32 %v9035, 7
        %v9037 = vsub.s32 %v9034, %v9036
        %v9038 = vrot.slane %v9031, %v9037
        %v9040 = vunpack.c.l.s4 1966171168
        %v9041 = vunpack.c.0.s8 %v9040
        %v9042 = vlaneseq
        %v9043 = vshrl.u32 %v9042, 7
        %v9044 = vsub.s32 %v9041, %v9043
        %v9045 = vrot.slane %v8233, %v9044
        %v9047 = vunpack.c.l.s4 1966171168
        %v9048 = vunpack.c.0.s8 %v9047
        %v9049 = vlaneseq
        %v9050 = vshrl.u32 %v9049, 7
        %v9051 = vsub.s32 %v9048, %v9050
        %v9052 = vrot.slane %v9045, %v9051
        %v9054 = vunpack.c.l.s4 1966171168
        %v9055 = vunpack.c.0.s8 %v9054
        %v9056 = vlaneseq
        %v9057 = vshrl.u32 %v9056, 7
        %v9058 = vsub.s32 %v9055, %v9057
        %v9059 = vrot.slane %v8234, %v9058
        %v9061 = vunpack.c.l.s4 1966171168
        %v9062 = vunpack.c.0.s8 %v9061
        %v9063 = vlaneseq
        %v9064 = vshrl.u32 %v9063, 7
        %v9065 = vsub.s32 %v9062, %v9064
        %v9066 = vrot.slane %v9059, %v9065
        %v9068 = vunpack.c.l.s4 1966171168
        %v9069 = vunpack.c.0.s8 %v9068
        %v9070 = vlaneseq
        %v9071 = vshrl.u32 %v9070, 7
        %v9072 = vsub.s32 %v9069, %v9071
        %v9073 = vrot.slane %v8235, %v9072
        %v9075 = vunpack.c.l.s4 1966171168
        %v9076 = vunpack.c.0.s8 %v9075
        %v9077 = vlaneseq
        %v9078 = vshrl.u32 %v9077, 7
        %v9079 = vsub.s32 %v9076, %v9078
        %v9080 = vrot.slane %v9073, %v9079
        %v9082 = vunpack.c.l.s4 1966171168
        %v9083 = vunpack.c.0.s8 %v9082
        %v9084 = vlaneseq
        %v9085 = vshrl.u32 %v9084, 7
        %v9086 = vsub.s32 %v9083, %v9085
        %v9087 = vrot.slane %v8302, %v9086
        %v9089 = vunpack.c.l.s4 1966171168
        %v9090 = vunpack.c.0.s8 %v9089
        %v9091 = vlaneseq
        %v9092 = vshrl.u32 %v9091, 7
        %v9093 = vsub.s32 %v9090, %v9092
        %v9094 = vrot.slane %v9087, %v9093
        %v9096 = vunpack.c.l.s4 1966171168
        %v9097 = vunpack.c.0.s8 %v9096
        %v9098 = vlaneseq
        %v9099 = vshrl.u32 %v9098, 7
        %v9100 = vsub.s32 %v9097, %v9099
        %v9101 = vrot.slane %v8309, %v9100
        %v9103 = vunpack.c.l.s4 1966171168
        %v9104 = vunpack.c.0.s8 %v9103
        %v9105 = vlaneseq
        %v9106 = vshrl.u32 %v9105, 7
        %v9107 = vsub.s32 %v9104, %v9106
        %v9108 = vrot.slane %v9101, %v9107
        %v9110 = vunpack.c.l.s4 1966171168
        %v9111 = vunpack.c.0.s8 %v9110
        %v9112 = vlaneseq
        %v9113 = vshrl.u32 %v9112, 7
        %v9114 = vsub.s32 %v9111, %v9113
        %v9115 = vrot.slane %v8310, %v9114
        %v9117 = vunpack.c.l.s4 1966171168
        %v9118 = vunpack.c.0.s8 %v9117
        %v9119 = vlaneseq
        %v9120 = vshrl.u32 %v9119, 7
        %v9121 = vsub.s32 %v9118, %v9120
        %v9122 = vrot.slane %v9115, %v9121
        %v9124 = vunpack.c.l.s4 1966171168
        %v9125 = vunpack.c.0.s8 %v9124
        %v9126 = vlaneseq
        %v9127 = vshrl.u32 %v9126, 7
        %v9128 = vsub.s32 %v9125, %v9127
        %v9129 = vrot.slane %v8311, %v9128
        %v9131 = vunpack.c.l.s4 1966171168
        %v9132 = vunpack.c.0.s8 %v9131
        %v9133 = vlaneseq
        %v9134 = vshrl.u32 %v9133, 7
        %v9135 = vsub.s32 %v9132, %v9134
        %v9136 = vrot.slane %v9129, %v9135
        %v9138 = vunpack.c.l.s4 1966171168
        %v9139 = vunpack.c.0.s8 %v9138
        %v9140 = vlaneseq
        %v9141 = vshrl.u32 %v9140, 7
        %v9142 = vsub.s32 %v9139, %v9141
        %v9143 = vrot.slane %v8378, %v9142
        %v9145 = vunpack.c.l.s4 1966171168
        %v9146 = vunpack.c.0.s8 %v9145
        %v9147 = vlaneseq
        %v9148 = vshrl.u32 %v9147, 7
        %v9149 = vsub.s32 %v9146, %v9148
        %v9150 = vrot.slane %v9143, %v9149
        %v9152 = vunpack.c.l.s4 1966171168
        %v9153 = vunpack.c.0.s8 %v9152
        %v9154 = vlaneseq
        %v9155 = vshrl.u32 %v9154, 7
        %v9156 = vsub.s32 %v9153, %v9155
        %v9157 = vrot.slane %v8385, %v9156
        %v9159 = vunpack.c.l.s4 1966171168
        %v9160 = vunpack.c.0.s8 %v9159
        %v9161 = vlaneseq
        %v9162 = vshrl.u32 %v9161, 7
        %v9163 = vsub.s32 %v9160, %v9162
        %v9164 = vrot.slane %v9157, %v9163
        %v9166 = vunpack.c.l.s4 1966171168
        %v9167 = vunpack.c.0.s8 %v9166
        %v9168 = vlaneseq
        %v9169 = vshrl.u32 %v9168, 7
        %v9170 = vsub.s32 %v9167, %v9169
        %v9171 = vrot.slane %v8386, %v9170
        %v9173 = vunpack.c.l.s4 1966171168
        %v9174 = vunpack.c.0.s8 %v9173
        %v9175 = vlaneseq
        %v9176 = vshrl.u32 %v9175, 7
        %v9177 = vsub.s32 %v9174, %v9176
        %v9178 = vrot.slane %v9171, %v9177
        %v9180 = vunpack.c.l.s4 1966171168
        %v9181 = vunpack.c.0.s8 %v9180
        %v9182 = vlaneseq
        %v9183 = vshrl.u32 %v9182, 7
        %v9184 = vsub.s32 %v9181, %v9183
        %v9185 = vrot.slane %v8387, %v9184
        %v9187 = vunpack.c.l.s4 1966171168
        %v9188 = vunpack.c.0.s8 %v9187
        %v9189 = vlaneseq
        %v9190 = vshrl.u32 %v9189, 7
        %v9191 = vsub.s32 %v9188, %v9190
        %v9192 = vrot.slane %v9185, %v9191
        %v9193 = vunpack.c.l.b16 %v8982
        %v9194 = vunpack.c.l.b16 %v8996
        %v9195 = vunpack.c.l.b16 %v9010
        %v9196 = vunpack.c.l.b16 %v9024
        %v9197 = vunpack.c.l.b16 %v9038
        %v9198 = vunpack.c.l.b16 %v9052
        %v9199 = vunpack.c.l.b16 %v9066
        %v9200 = vunpack.c.l.b16 %v9080
        %v9201 = vunpack.c.l.b16 %v9094
        %v9202 = vunpack.c.l.b16 %v9108
        %v9203 = vunpack.c.l.b16 %v9122
        %v9204 = vunpack.c.l.b16 %v9136
        %v9205 = vunpack.c.l.b16 %v9150
        %v9206 = vunpack.c.l.b16 %v9164
        %v9207 = vunpack.c.l.b16 %v9178
        %v9208 = vunpack.c.l.b16 %v9192
        %v9209 = vrot.slane %v9194, 7
        %v9210 = vsel %vm8681, %v9209, %v9193
        %v9211 = vrot.slane %v9195, 6
        %v9212 = vsel %vm8684, %v9211, %v9210
        %v9213 = vrot.slane %v9196, 5
        %v9214 = vsel %vm8687, %v9213, %v9212
        %v9215 = vrot.slane %v9197, 4
        %v9216 = vsel %vm8690, %v9215, %v9214
        %v9217 = vrot.slane %v9198, 3
        %v9218 = vsel %vm8693, %v9217, %v9216
        %v9219 = vrot.slane %v9199, 2
        %v9220 = vsel %vm8696, %v9219, %v9218
        %v9221 = vrot.slane %v9200, 1
        %v9222 = vsel %vm8699, %v9221, %v9220
        %v9223 = vrot.slane %v9202, 7
        %v9224 = vsel %vm8681, %v9223, %v9201
        %v9225 = vrot.slane %v9203, 6
        %v9226 = vsel %vm8684, %v9225, %v9224
        %v9227 = vrot.slane %v9204, 5
        %v9228 = vsel %vm8687, %v9227, %v9226
        %v9229 = vrot.slane %v9205, 4
        %v9230 = vsel %vm8690, %v9229, %v9228
        %v9231 = vrot.slane %v9206, 3
        %v9232 = vsel %vm8693, %v9231, %v9230
        %v9233 = vrot.slane %v9207, 2
        %v9234 = vsel %vm8696, %v9233, %v9232
        %v9235 = vrot.slane %v9208, 1
        %v9236 = vsel %vm8699, %v9235, %v9234
        %v9237 = vpack.c.b16 %v9236, %v9222
        %v9239 = vsel %vm8716, %v9237, 0
        %v9242 = vsel %vm8720, %v8056, 0
        %9244 = vmatprep.subr.bf16.mxu0 0
        %9245 = vmatpush1.bf16.msra.mxu0 %v9242
        %9246 = vmatprep.subr.bf16.mxu0 0
        %9247 = vmatpush1.bf16.msra.mxu0 0
        %9248 = vmatprep.subr.bf16.mxu0 0
        %9249 = vmatpush1.bf16.msra.mxu0 0
        %9250 = vmatprep.subr.bf16.mxu0 0
        %9251 = vmatpush1.bf16.msra.mxu0 0
        %9252 = vmatprep.subr.bf16.mxu0 0
        %9253 = vmatpush1.bf16.msra.mxu0 0
        %9254 = vmatprep.subr.bf16.mxu0 0
        %9255 = vmatpush1.bf16.msra.mxu0 0
        %9256 = vmatprep.subr.bf16.mxu0 0
        %9257 = vmatpush1.bf16.msra.mxu0 0
        %9258 = vmatprep.subr.bf16.mxu0 0
        %9259 = vmatpush1.bf16.msra.mxu0 0
        %9260 = vmatprep.subr.bf16.mxu0 0
        %9261 = vmatpush1.bf16.msra.mxu0 0
        %9262 = vmatprep.subr.bf16.mxu0 0
        %9263 = vmatpush1.bf16.msra.mxu0 0
        %9264 = vmatprep.subr.bf16.mxu0 0
        %9265 = vmatpush1.bf16.msra.mxu0 0
        %9266 = vmatprep.subr.bf16.mxu0 0
        %9267 = vmatpush1.bf16.msra.mxu0 0
        %9268 = vmatprep.subr.bf16.mxu0 0
        %9269 = vmatpush1.bf16.msra.mxu0 0
        %9270 = vmatprep.subr.bf16.mxu0 0
        %9271 = vmatpush1.bf16.msra.mxu0 0
        %9272 = vmatprep.subr.bf16.mxu0 0
        %9273 = vmatpush1.bf16.msra.mxu0 0
        %9274 = vmatprep.subr.bf16.mxu0 0
        %9275 = vmatpush1.bf16.msra.mxu0 0
        %9276 = vmatprep.mubr.bf16.mxu0 0
        %9277 = vmatmul.mubr.bf16.gmra.mrb[0].mxu0 %v9239
        %v9278 = vpop.f32.mrb[0].mxu0
        %v9279 = vadd.f32 0.0, %v9278
        %v9280 = vpop.f32.mrb[0].mxu0
        %v9281 = vpop.f32.mrb[0].mxu0
        %v9282 = vadd.f32 0.0, %v9281
        %v9283 = vpop.f32.mrb[0].mxu0
        %9284 = vdwg.mxu0
        %v9285 = vadd.f32 %v8967, %v9279
        %v9286 = vadd.f32 %v8968, %v9282
        %v9287 = vrot.slane %v9193, 1
        %v9288 = vsel %vm8681, %v9194, %v9287
        %v9289 = vrot.slane %v9195, 7
        %v9290 = vsel %vm8684, %v9289, %v9288
        %v9291 = vrot.slane %v9196, 6
        %v9292 = vsel %vm8687, %v9291, %v9290
        %v9293 = vrot.slane %v9197, 5
        %v9294 = vsel %vm8690, %v9293, %v9292
        %v9295 = vrot.slane %v9198, 4
        %v9296 = vsel %vm8693, %v9295, %v9294
        %v9297 = vrot.slane %v9199, 3
        %v9298 = vsel %vm8696, %v9297, %v9296
        %v9299 = vrot.slane %v9200, 2
        %v9300 = vsel %vm8699, %v9299, %v9298
        %v9301 = vrot.slane %v9201, 1
        %v9302 = vsel %vm8681, %v9202, %v9301
        %v9303 = vrot.slane %v9203, 7
        %v9304 = vsel %vm8684, %v9303, %v9302
        %v9305 = vrot.slane %v9204, 6
        %v9306 = vsel %vm8687, %v9305, %v9304
        %v9307 = vrot.slane %v9205, 5
        %v9308 = vsel %vm8690, %v9307, %v9306
        %v9309 = vrot.slane %v9206, 4
        %v9310 = vsel %vm8693, %v9309, %v9308
        %v9311 = vrot.slane %v9207, 3
        %v9312 = vsel %vm8696, %v9311, %v9310
        %v9313 = vrot.slane %v9208, 2
        %v9314 = vsel %vm8699, %v9313, %v9312
        %v9315 = vpack.c.b16 %v9314, %v9300
        %v9317 = vsel %vm8716, %v9315, 0
        %v9320 = vsel %vm8720, %v8057, 0
        %9322 = vmatprep.subr.bf16.mxu0 0
        %9323 = vmatpush1.bf16.msra.mxu0 %v9320
        %9324 = vmatprep.subr.bf16.mxu0 0
        %9325 = vmatpush1.bf16.msra.mxu0 0
        %9326 = vmatprep.subr.bf16.mxu0 0
        %9327 = vmatpush1.bf16.msra.mxu0 0
        %9328 = vmatprep.subr.bf16.mxu0 0
        %9329 = vmatpush1.bf16.msra.mxu0 0
        %9330 = vmatprep.subr.bf16.mxu0 0
        %9331 = vmatpush1.bf16.msra.mxu0 0
        %9332 = vmatprep.subr.bf16.mxu0 0
        %9333 = vmatpush1.bf16.msra.mxu0 0
        %9334 = vmatprep.subr.bf16.mxu0 0
        %9335 = vmatpush1.bf16.msra.mxu0 0
        %9336 = vmatprep.subr.bf16.mxu0 0
        %9337 = vmatpush1.bf16.msra.mxu0 0
        %9338 = vmatprep.subr.bf16.mxu0 0
        %9339 = vmatpush1.bf16.msra.mxu0 0
        %9340 = vmatprep.subr.bf16.mxu0 0
        %9341 = vmatpush1.bf16.msra.mxu0 0
        %9342 = vmatprep.subr.bf16.mxu0 0
        %9343 = vmatpush1.bf16.msra.mxu0 0
        %9344 = vmatprep.subr.bf16.mxu0 0
        %9345 = vmatpush1.bf16.msra.mxu0 0
        %9346 = vmatprep.subr.bf16.mxu0 0
        %9347 = vmatpush1.bf16.msra.mxu0 0
        %9348 = vmatprep.subr.bf16.mxu0 0
        %9349 = vmatpush1.bf16.msra.mxu0 0
        %9350 = vmatprep.subr.bf16.mxu0 0
        %9351 = vmatpush1.bf16.msra.mxu0 0
        %9352 = vmatprep.subr.bf16.mxu0 0
        %9353 = vmatpush1.bf16.msra.mxu0 0
        %9354 = vmatprep.mubr.bf16.mxu0 0
        %9355 = vmatmul.mubr.bf16.gmra.mrb[0].mxu0 %v9317
        %v9356 = vpop.f32.mrb[0].mxu0
        %v9357 = vadd.f32 0.0, %v9356
        %v9358 = vpop.f32.mrb[0].mxu0
        %v9359 = vpop.f32.mrb[0].mxu0
        %v9360 = vadd.f32 0.0, %v9359
        %v9361 = vpop.f32.mrb[0].mxu0
        %9362 = vdwg.mxu0
        %v9363 = vadd.f32 %v9285, %v9357
        %v9364 = vadd.f32 %v9286, %v9360
        %v9366 = vunpack.c.l.s4 1966171168
        %v9367 = vunpack.c.0.s8 %v9366
        %v9368 = vlaneseq
        %v9369 = vshrl.u32 %v9368, 7
        %v9370 = vsub.s32 %v9367, %v9369
        %v9371 = vrot.slane %v8173, %v9370
        %v9373 = vunpack.c.l.s4 1966171168
        %v9374 = vunpack.c.0.s8 %v9373
        %v9375 = vlaneseq
        %v9376 = vshrl.u32 %v9375, 7
        %v9377 = vsub.s32 %v9374, %v9376
        %v9378 = vrot.slane %v9371, %v9377
        %v9380 = vunpack.c.l.s4 1966171168
        %v9381 = vunpack.c.0.s8 %v9380
        %v9382 = vlaneseq
        %v9383 = vshrl.u32 %v9382, 7
        %v9384 = vsub.s32 %v9381, %v9383
        %v9385 = vrot.slane %v8249, %v9384
        %v9387 = vunpack.c.l.s4 1966171168
        %v9388 = vunpack.c.0.s8 %v9387
        %v9389 = vlaneseq
        %v9390 = vshrl.u32 %v9389, 7
        %v9391 = vsub.s32 %v9388, %v9390
        %v9392 = vrot.slane %v9385, %v9391
        %v9394 = vunpack.c.l.s4 1966171168
        %v9395 = vunpack.c.0.s8 %v9394
        %v9396 = vlaneseq
        %v9397 = vshrl.u32 %v9396, 7
        %v9398 = vsub.s32 %v9395, %v9397
        %v9399 = vrot.slane %v8325, %v9398
        %v9401 = vunpack.c.l.s4 1966171168
        %v9402 = vunpack.c.0.s8 %v9401
        %v9403 = vlaneseq
        %v9404 = vshrl.u32 %v9403, 7
        %v9405 = vsub.s32 %v9402, %v9404
        %v9406 = vrot.slane %v9399, %v9405
        %v9408 = vunpack.c.l.s4 1966171168
        %v9409 = vunpack.c.0.s8 %v9408
        %v9410 = vlaneseq
        %v9411 = vshrl.u32 %v9410, 7
        %v9412 = vsub.s32 %v9409, %v9411
        %v9413 = vrot.slane %v8401, %v9412
        %v9415 = vunpack.c.l.s4 1966171168
        %v9416 = vunpack.c.0.s8 %v9415
        %v9417 = vlaneseq
        %v9418 = vshrl.u32 %v9417, 7
        %v9419 = vsub.s32 %v9416, %v9418
        %v9420 = vrot.slane %v9413, %v9419
        %v9421 = vunpack.c.l.b16 %v9378
        %v9422 = vunpack.c.l.b16 %v9392
        %v9423 = vunpack.c.l.b16 %v9406
        %v9424 = vunpack.c.l.b16 %v9420
        %v9425 = vsel %vm8681, %v9289, %v9194
        %v9426 = vsel %vm8684, %v9291, %v9425
        %v9427 = vrot.slane %v9421, 5
        %v9428 = vsel %vm8687, %v9427, %v9426
        %v9429 = vsel %vm8690, %v9295, %v9428
        %v9430 = vsel %vm8693, %v9297, %v9429
        %v9431 = vsel %vm8696, %v9299, %v9430
        %v9432 = vrot.slane %v9422, 1
        %v9433 = vsel %vm8699, %v9432, %v9431
        %v9434 = vsel %vm8681, %v9303, %v9202
        %v9435 = vsel %vm8684, %v9305, %v9434
        %v9436 = vrot.slane %v9423, 5
        %v9437 = vsel %vm8687, %v9436, %v9435
        %v9438 = vsel %vm8690, %v9309, %v9437
        %v9439 = vsel %vm8693, %v9311, %v9438
        %v9440 = vsel %vm8696, %v9313, %v9439
        %v9441 = vrot.slane %v9424, 1
        %v9442 = vsel %vm8699, %v9441, %v9440
        %v9443 = vpack.c.b16 %v9442, %v9433
        %v9445 = vsel %vm8716, %v9443, 0
        %v9448 = vsel %vm8720, %v8058, 0
        %9450 = vmatprep.subr.bf16.mxu0 0
        %9451 = vmatpush1.bf16.msra.mxu0 %v9448
        %9452 = vmatprep.subr.bf16.mxu0 0
        %9453 = vmatpush1.bf16.msra.mxu0 0
        %9454 = vmatprep.subr.bf16.mxu0 0
        %9455 = vmatpush1.bf16.msra.mxu0 0
        %9456 = vmatprep.subr.bf16.mxu0 0
        %9457 = vmatpush1.bf16.msra.mxu0 0
        %9458 = vmatprep.subr.bf16.mxu0 0
        %9459 = vmatpush1.bf16.msra.mxu0 0
        %9460 = vmatprep.subr.bf16.mxu0 0
        %9461 = vmatpush1.bf16.msra.mxu0 0
        %9462 = vmatprep.subr.bf16.mxu0 0
        %9463 = vmatpush1.bf16.msra.mxu0 0
        %9464 = vmatprep.subr.bf16.mxu0 0
        %9465 = vmatpush1.bf16.msra.mxu0 0
        %9466 = vmatprep.subr.bf16.mxu0 0
        %9467 = vmatpush1.bf16.msra.mxu0 0
        %9468 = vmatprep.subr.bf16.mxu0 0
        %9469 = vmatpush1.bf16.msra.mxu0 0
        %9470 = vmatprep.subr.bf16.mxu0 0
        %9471 = vmatpush1.bf16.msra.mxu0 0
        %9472 = vmatprep.subr.bf16.mxu0 0
        %9473 = vmatpush1.bf16.msra.mxu0 0
        %9474 = vmatprep.subr.bf16.mxu0 0
        %9475 = vmatpush1.bf16.msra.mxu0 0
        %9476 = vmatprep.subr.bf16.mxu0 0
        %9477 = vmatpush1.bf16.msra.mxu0 0
        %9478 = vmatprep.subr.bf16.mxu0 0
        %9479 = vmatpush1.bf16.msra.mxu0 0
        %9480 = vmatprep.subr.bf16.mxu0 0
        %9481 = vmatpush1.bf16.msra.mxu0 0
        %9482 = vmatprep.mubr.bf16.mxu0 0
        %9483 = vmatmul.mubr.bf16.gmra.mrb[0].mxu0 %v9445
        %v9484 = vpop.f32.mrb[0].mxu0
        %v9485 = vadd.f32 0.0, %v9484
        %v9486 = vpop.f32.mrb[0].mxu0
        %v9487 = vpop.f32.mrb[0].mxu0
        %v9488 = vadd.f32 0.0, %v9487
        %v9489 = vpop.f32.mrb[0].mxu0
        %9490 = vdwg.mxu0
        %v9491 = vadd.f32 %v9363, %v9485
        %v9492 = vadd.f32 %v9364, %v9488
        %v9494 = vunpack.c.l.s4 1966171168
        %v9495 = vunpack.c.0.s8 %v9494
        %v9496 = vlaneseq
        %v9497 = vshrl.u32 %v9496, 7
        %v9498 = vsub.s32 %v9495, %v9497
        %v9499 = vrot.slane %v8416, %v9498
        %v9501 = vunpack.c.l.s4 1966171168
        %v9502 = vunpack.c.0.s8 %v9501
        %v9503 = vlaneseq
        %v9504 = vshrl.u32 %v9503, 7
        %v9505 = vsub.s32 %v9502, %v9504
        %v9506 = vrot.slane %v9499, %v9505
        %v9508 = vunpack.c.l.s4 1966171168
        %v9509 = vunpack.c.0.s8 %v9508
        %v9510 = vlaneseq
        %v9511 = vshrl.u32 %v9510, 7
        %v9512 = vsub.s32 %v9509, %v9511
        %v9513 = vrot.slane %v8423, %v9512
        %v9515 = vunpack.c.l.s4 1966171168
        %v9516 = vunpack.c.0.s8 %v9515
        %v9517 = vlaneseq
        %v9518 = vshrl.u32 %v9517, 7
        %v9519 = vsub.s32 %v9516, %v9518
        %v9520 = vrot.slane %v9513, %v9519
        %v9522 = vunpack.c.l.s4 1966171168
        %v9523 = vunpack.c.0.s8 %v9522
        %v9524 = vlaneseq
        %v9525 = vshrl.u32 %v9524, 7
        %v9526 = vsub.s32 %v9523, %v9525
        %v9527 = vrot.slane %v8424, %v9526
        %v9529 = vunpack.c.l.s4 1966171168
        %v9530 = vunpack.c.0.s8 %v9529
        %v9531 = vlaneseq
        %v9532 = vshrl.u32 %v9531, 7
        %v9533 = vsub.s32 %v9530, %v9532
        %v9534 = vrot.slane %v9527, %v9533
        %v9536 = vunpack.c.l.s4 1966171168
        %v9537 = vunpack.c.0.s8 %v9536
        %v9538 = vlaneseq
        %v9539 = vshrl.u32 %v9538, 7
        %v9540 = vsub.s32 %v9537, %v9539
        %v9541 = vrot.slane %v8425, %v9540
        %v9543 = vunpack.c.l.s4 1966171168
        %v9544 = vunpack.c.0.s8 %v9543
        %v9545 = vlaneseq
        %v9546 = vshrl.u32 %v9545, 7
        %v9547 = vsub.s32 %v9544, %v9546
        %v9548 = vrot.slane %v9541, %v9547
        %v9549 = vunpack.c.l.b16 %v9506
        %v9550 = vunpack.c.l.b16 %v9520
        %v9551 = vunpack.c.l.b16 %v9534
        %v9552 = vunpack.c.l.b16 %v9548
        %v9553 = vrot.slane %v8669, 7
        %v9554 = vsel %vm8681, %v9553, %v8668
        %v9555 = vrot.slane %v8670, 6
        %v9556 = vsel %vm8684, %v9555, %v9554
        %v9557 = vrot.slane %v8671, 5
        %v9558 = vsel %vm8687, %v9557, %v9556
        %v9559 = vrot.slane %v8672, 4
        %v9560 = vsel %vm8690, %v9559, %v9558
        %v9561 = vrot.slane %v8673, 3
        %v9562 = vsel %vm8693, %v9561, %v9560
        %v9563 = vrot.slane %v8674, 2
        %v9564 = vsel %vm8696, %v9563, %v9562
        %v9565 = vrot.slane %v8675, 1
        %v9566 = vsel %vm8699, %v9565, %v9564
        %v9567 = vrot.slane %v8677, 7
        %v9568 = vsel %vm8681, %v9567, %v8676
        %v9569 = vrot.slane %v8678, 6
        %v9570 = vsel %vm8684, %v9569, %v9568
        %v9571 = vrot.slane %v8679, 5
        %v9572 = vsel %vm8687, %v9571, %v9570
        %v9573 = vrot.slane %v9549, 4
        %v9574 = vsel %vm8690, %v9573, %v9572
        %v9575 = vrot.slane %v9550, 3
        %v9576 = vsel %vm8693, %v9575, %v9574
        %v9577 = vrot.slane %v9551, 2
        %v9578 = vsel %vm8696, %v9577, %v9576
        %v9579 = vrot.slane %v9552, 1
        %v9580 = vsel %vm8699, %v9579, %v9578
        %v9581 = vpack.c.b16 %v9580, %v9566
        %v9583 = vsel %vm8716, %v9581, 0
        %v9586 = vsel %vm8720, %v8059, 0
        %9588 = vmatprep.subr.bf16.mxu0 0
        %9589 = vmatpush1.bf16.msra.mxu0 %v9586
        %9590 = vmatprep.subr.bf16.mxu0 0
        %9591 = vmatpush1.bf16.msra.mxu0 0
        %9592 = vmatprep.subr.bf16.mxu0 0
        %9593 = vmatpush1.bf16.msra.mxu0 0
        %9594 = vmatprep.subr.bf16.mxu0 0
        %9595 = vmatpush1.bf16.msra.mxu0 0
        %9596 = vmatprep.subr.bf16.mxu0 0
        %9597 = vmatpush1.bf16.msra.mxu0 0
        %9598 = vmatprep.subr.bf16.mxu0 0
        %9599 = vmatpush1.bf16.msra.mxu0 0
        %9600 = vmatprep.subr.bf16.mxu0 0
        %9601 = vmatpush1.bf16.msra.mxu0 0
        %9602 = vmatprep.subr.bf16.mxu0 0
        %9603 = vmatpush1.bf16.msra.mxu0 0
        %9604 = vmatprep.subr.bf16.mxu0 0
        %9605 = vmatpush1.bf16.msra.mxu0 0
        %9606 = vmatprep.subr.bf16.mxu0 0
        %9607 = vmatpush1.bf16.msra.mxu0 0
        %9608 = vmatprep.subr.bf16.mxu0 0
        %9609 = vmatpush1.bf16.msra.mxu0 0
        %9610 = vmatprep.subr.bf16.mxu0 0
        %9611 = vmatpush1.bf16.msra.mxu0 0
        %9612 = vmatprep.subr.bf16.mxu0 0
        %9613 = vmatpush1.bf16.msra.mxu0 0
        %9614 = vmatprep.subr.bf16.mxu0 0
        %9615 = vmatpush1.bf16.msra.mxu0 0
        %9616 = vmatprep.subr.bf16.mxu0 0
        %9617 = vmatpush1.bf16.msra.mxu0 0
        %9618 = vmatprep.subr.bf16.mxu0 0
        %9619 = vmatpush1.bf16.msra.mxu0 0
        %9620 = vmatprep.mubr.bf16.mxu0 0
        %9621 = vmatmul.mubr.bf16.gmra.mrb[0].mxu0 %v9583
        %v9622 = vpop.f32.mrb[0].mxu0
        %v9623 = vadd.f32 0.0, %v9622
        %v9624 = vpop.f32.mrb[0].mxu0
        %v9625 = vpop.f32.mrb[0].mxu0
        %v9626 = vadd.f32 0.0, %v9625
        %v9627 = vpop.f32.mrb[0].mxu0
        %9628 = vdwg.mxu0
        %v9629 = vadd.f32 %v9491, %v9623
        %v9630 = vadd.f32 %v9492, %v9626
        %v9631 = vrot.slane %v8668, 1
        %v9632 = vsel %vm8681, %v8669, %v9631
        %v9633 = vrot.slane %v8670, 7
        %v9634 = vsel %vm8684, %v9633, %v9632
        %v9635 = vrot.slane %v8671, 6
        %v9636 = vsel %vm8687, %v9635, %v9634
        %v9637 = vrot.slane %v8672, 5
        %v9638 = vsel %vm8690, %v9637, %v9636
        %v9639 = vrot.slane %v8673, 4
        %v9640 = vsel %vm8693, %v9639, %v9638
        %v9641 = vrot.slane %v8674, 3
        %v9642 = vsel %vm8696, %v9641, %v9640
        %v9643 = vrot.slane %v8675, 2
        %v9644 = vsel %vm8699, %v9643, %v9642
        %v9645 = vrot.slane %v8676, 1
        %v9646 = vsel %vm8681, %v8677, %v9645
        %v9647 = vrot.slane %v8678, 7
        %v9648 = vsel %vm8684, %v9647, %v9646
        %v9649 = vrot.slane %v8679, 6
        %v9650 = vsel %vm8687, %v9649, %v9648
        %v9651 = vrot.slane %v9549, 5
        %v9652 = vsel %vm8690, %v9651, %v9650
        %v9653 = vrot.slane %v9550, 4
        %v9654 = vsel %vm8693, %v9653, %v9652
        %v9655 = vrot.slane %v9551, 3
        %v9656 = vsel %vm8696, %v9655, %v9654
        %v9657 = vrot.slane %v9552, 2
        %v9658 = vsel %vm8699, %v9657, %v9656
        %v9659 = vpack.c.b16 %v9658, %v9644
        %v9661 = vsel %vm8716, %v9659, 0
        %v9664 = vsel %vm8720, %v8060, 0
        %9666 = vmatprep.subr.bf16.mxu0 0
        %9667 = vmatpush1.bf16.msra.mxu0 %v9664
        %9668 = vmatprep.subr.bf16.mxu0 0
        %9669 = vmatpush1.bf16.msra.mxu0 0
        %9670 = vmatprep.subr.bf16.mxu0 0
        %9671 = vmatpush1.bf16.msra.mxu0 0
        %9672 = vmatprep.subr.bf16.mxu0 0
        %9673 = vmatpush1.bf16.msra.mxu0 0
        %9674 = vmatprep.subr.bf16.mxu0 0
        %9675 = vmatpush1.bf16.msra.mxu0 0
        %9676 = vmatprep.subr.bf16.mxu0 0
        %9677 = vmatpush1.bf16.msra.mxu0 0
        %9678 = vmatprep.subr.bf16.mxu0 0
        %9679 = vmatpush1.bf16.msra.mxu0 0
        %9680 = vmatprep.subr.bf16.mxu0 0
        %9681 = vmatpush1.bf16.msra.mxu0 0
        %9682 = vmatprep.subr.bf16.mxu0 0
        %9683 = vmatpush1.bf16.msra.mxu0 0
        %9684 = vmatprep.subr.bf16.mxu0 0
        %9685 = vmatpush1.bf16.msra.mxu0 0
        %9686 = vmatprep.subr.bf16.mxu0 0
        %9687 = vmatpush1.bf16.msra.mxu0 0
        %9688 = vmatprep.subr.bf16.mxu0 0
        %9689 = vmatpush1.bf16.msra.mxu0 0
        %9690 = vmatprep.subr.bf16.mxu0 0
        %9691 = vmatpush1.bf16.msra.mxu0 0
        %9692 = vmatprep.subr.bf16.mxu0 0
        %9693 = vmatpush1.bf16.msra.mxu0 0
        %9694 = vmatprep.subr.bf16.mxu0 0
        %9695 = vmatpush1.bf16.msra.mxu0 0
        %9696 = vmatprep.subr.bf16.mxu0 0
        %9697 = vmatpush1.bf16.msra.mxu0 0
        %9698 = vmatprep.mubr.bf16.mxu0 0
        %9699 = vmatmul.mubr.bf16.gmra.mrb[0].mxu0 %v9661
        %v9700 = vpop.f32.mrb[0].mxu0
        %v9701 = vadd.f32 0.0, %v9700
        %v9702 = vpop.f32.mrb[0].mxu0
        %v9703 = vpop.f32.mrb[0].mxu0
        %v9704 = vadd.f32 0.0, %v9703
        %v9705 = vpop.f32.mrb[0].mxu0
        %9706 = vdwg.mxu0
        %v9707 = vadd.f32 %v9629, %v9701
        %v9708 = vadd.f32 %v9630, %v9704
        %v9710 = vunpack.c.l.s4 1966171168
        %v9711 = vunpack.c.0.s8 %v9710
        %v9712 = vlaneseq
        %v9713 = vshrl.u32 %v9712, 7
        %v9714 = vsub.s32 %v9711, %v9713
        %v9715 = vrot.slane %v8439, %v9714
        %v9717 = vunpack.c.l.s4 1966171168
        %v9718 = vunpack.c.0.s8 %v9717
        %v9719 = vlaneseq
        %v9720 = vshrl.u32 %v9719, 7
        %v9721 = vsub.s32 %v9718, %v9720
        %v9722 = vrot.slane %v9715, %v9721
        %v9723 = vunpack.c.l.b16 %v9722
        %v9724 = vsel %vm8681, %v9633, %v8669
        %v9725 = vsel %vm8684, %v9635, %v9724
        %v9726 = vrot.slane %v8898, 5
        %v9727 = vsel %vm8687, %v9726, %v9725
        %v9728 = vsel %vm8690, %v9639, %v9727
        %v9729 = vsel %vm8693, %v9641, %v9728
        %v9730 = vsel %vm8696, %v9643, %v9729
        %v9731 = vrot.slane %v8899, 1
        %v9732 = vsel %vm8699, %v9731, %v9730
        %v9733 = vsel %vm8681, %v9647, %v8677
        %v9734 = vsel %vm8684, %v9649, %v9733
        %v9735 = vrot.slane %v8900, 5
        %v9736 = vsel %vm8687, %v9735, %v9734
        %v9737 = vsel %vm8690, %v9653, %v9736
        %v9738 = vsel %vm8693, %v9655, %v9737
        %v9739 = vsel %vm8696, %v9657, %v9738
        %v9740 = vrot.slane %v9723, 1
        %v9741 = vsel %vm8699, %v9740, %v9739
        %v9742 = vpack.c.b16 %v9741, %v9732
        %v9744 = vsel %vm8716, %v9742, 0
        %v9747 = vsel %vm8720, %v8061, 0
        %9749 = vmatprep.subr.bf16.mxu0 0
        %9750 = vmatpush1.bf16.msra.mxu0 %v9747
        %9751 = vmatprep.subr.bf16.mxu0 0
        %9752 = vmatpush1.bf16.msra.mxu0 0
        %9753 = vmatprep.subr.bf16.mxu0 0
        %9754 = vmatpush1.bf16.msra.mxu0 0
        %9755 = vmatprep.subr.bf16.mxu0 0
        %9756 = vmatpush1.bf16.msra.mxu0 0
        %9757 = vmatprep.subr.bf16.mxu0 0
        %9758 = vmatpush1.bf16.msra.mxu0 0
        %9759 = vmatprep.subr.bf16.mxu0 0
        %9760 = vmatpush1.bf16.msra.mxu0 0
        %9761 = vmatprep.subr.bf16.mxu0 0
        %9762 = vmatpush1.bf16.msra.mxu0 0
        %9763 = vmatprep.subr.bf16.mxu0 0
        %9764 = vmatpush1.bf16.msra.mxu0 0
        %9765 = vmatprep.subr.bf16.mxu0 0
        %9766 = vmatpush1.bf16.msra.mxu0 0
        %9767 = vmatprep.subr.bf16.mxu0 0
        %9768 = vmatpush1.bf16.msra.mxu0 0
        %9769 = vmatprep.subr.bf16.mxu0 0
        %9770 = vmatpush1.bf16.msra.mxu0 0
        %9771 = vmatprep.subr.bf16.mxu0 0
        %9772 = vmatpush1.bf16.msra.mxu0 0
        %9773 = vmatprep.subr.bf16.mxu0 0
        %9774 = vmatpush1.bf16.msra.mxu0 0
        %9775 = vmatprep.subr.bf16.mxu0 0
        %9776 = vmatpush1.bf16.msra.mxu0 0
        %9777 = vmatprep.subr.bf16.mxu0 0
        %9778 = vmatpush1.bf16.msra.mxu0 0
        %9779 = vmatprep.subr.bf16.mxu0 0
        %9780 = vmatpush1.bf16.msra.mxu0 0
        %9781 = vmatprep.mubr.bf16.mxu0 0
        %9782 = vmatmul.mubr.bf16.gmra.mrb[0].mxu0 %v9744
        %v9783 = vpop.f32.mrb[0].mxu0
        %v9784 = vadd.f32 0.0, %v9783
        %v9785 = vpop.f32.mrb[0].mxu0
        %v9786 = vpop.f32.mrb[0].mxu0
        %v9787 = vadd.f32 0.0, %v9786
        %v9788 = vpop.f32.mrb[0].mxu0
        %9789 = vdwg.mxu0
        %v9790 = vadd.f32 %v9707, %v9784
        %v9791 = vadd.f32 %v9708, %v9787
        %v9792 = vld [vmem:[%s6] sm:$0x1]
        %v9794 = vlaneseq
        %v9795 = vshrl.u32 %v9794, 7
        %v9796 = vsub.s32 0, %v9795
        %v9797 = vrot.slane %v9792, %v9796
        %v9799 = vadd.f32 %v9790, %v9797
        %v9800 = vadd.f32 %v9791, %v9797
        %v9801 = vmax.f32 %v9799, 0.0
        %v9802 = vmax.f32 %v9800, 0.0
        %v9805 = vcombine.high %v9801, %v9801
        %v9806 = vcombine.high %v9802, %v9802
      $region68: #{_lambda_.1} parent=63
        #allocation5 [shape = 'u8[12288]{0}', space=vmem, size = 0x3000, scoped, tag = 'scoped memory for _lambda_.1']
        %v9809 = vpack.c.bf16 %v9801, %v9801
        %v9810 = vpack.c.bf16 %v9805, %v9805
        %v9811 = vpack.c.bf16 %v9802, %v9802
        %v9812 = vpack.c.bf16 %v9806, %v9806
        %v9817 = vunpack.c.l.b16 %v9809
        %v9818 = vunpack.c.l.b16 %v9810
        %v9819 = vunpack.c.l.b16 %v9811
        %v9820 = vunpack.c.l.b16 %v9812
        %v9821 = vpack.c.b16 %v9817, %v9817
        %v9822 = vpack.c.b16 %v9818, %v9818
        %v9823 = vpack.c.b16 %v9819, %v9819
        %v9824 = vpack.c.b16 %v9820, %v9820
        %v9826 = vshrl.u32 %v9821, 16
        %v9828 = vrot.slane %v9826, 7
        %v9829 = vshll.u32 %v9821, 16
        %v9831 = vor.u32 %v9828, %v9829
        %v9833 = vshrl.u32 %v9822, 16
        %v9835 = vrot.slane %v9833, 7
        %v9836 = vshll.u32 %v9822, 16
        %v9838 = vor.u32 %v9835, %v9836
        %v9840 = vshrl.u32 %v9823, 16
        %v9842 = vrot.slane %v9840, 7
        %v9843 = vshll.u32 %v9823, 16
        %v9845 = vor.u32 %v9842, %v9843
        %v9847 = vshrl.u32 %v9824, 16
        %v9849 = vrot.slane %v9847, 7
        %v9850 = vshll.u32 %v9824, 16
        %v9852 = vor.u32 %v9849, %v9850
        %s9857 = scalar_lea.vmem [#allocation5], 4
        %vm9858 = vcmask 124928
        %vm9859 = vsmask.f32 2306
        %vm9860 = vmand %vm9858, %vm9859
        %v9861 = vld [vmem:[%s9857] sm:$0x7]
        %v9862 = vsel %vm9860, %v9831, %v9861
        %9863 = vst [vmem:[%s9857] sm:$0x7] %v9862
        %v9864 = vld [vmem:[%s9857 + $0x4] sm:$0x7]
        %v9865 = vsel %vm9860, %v9838, %v9864
        %9866 = vst [vmem:[%s9857 + $0x4] sm:$0x7] %v9865
        %v9867 = vld [vmem:[%s9857 + $0x8] sm:$0x7]
        %v9868 = vsel %vm9860, %v9845, %v9867
        %9869 = vst [vmem:[%s9857 + $0x8] sm:$0x7] %v9868
        %v9870 = vld [vmem:[%s9857 + $0xc] sm:$0x7]
        %v9871 = vsel %vm9860, %v9852, %v9870
        %9872 = vst [vmem:[%s9857 + $0xc] sm:$0x7] %v9871
        %v9873 = vrot.slane %v9826, 4
        %v9874 = vrot.slane %v9873, 4
        %v9875 = vrot.slane %v9833, 4
        %v9876 = vrot.slane %v9875, 4
        %v9877 = vrot.slane %v9840, 4
        %v9878 = vrot.slane %v9877, 4
        %v9879 = vrot.slane %v9847, 4
        %v9880 = vrot.slane %v9879, 4
        %vm9885 = vcmask 122880
        %vm9886 = vsmask.f32 256
        %vm9887 = vmand %vm9885, %vm9886
        %v9888 = vld [vmem:[%s9857] sm:$0x1]
        %v9889 = vsel %vm9887, %v9874, %v9888
        %9890 = vst [vmem:[%s9857] sm:$0x1] %v9889
        %v9891 = vld [vmem:[%s9857 + $0x4] sm:$0x1]
        %v9892 = vsel %vm9887, %v9876, %v9891
        %9893 = vst [vmem:[%s9857 + $0x4] sm:$0x1] %v9892
        %v9894 = vld [vmem:[%s9857 + $0x8] sm:$0x1]
        %v9895 = vsel %vm9887, %v9878, %v9894
        %9896 = vst [vmem:[%s9857 + $0x8] sm:$0x1] %v9895
        %v9897 = vld [vmem:[%s9857 + $0xc] sm:$0x1]
        %v9898 = vsel %vm9887, %v9880, %v9897
        %9899 = vst [vmem:[%s9857 + $0xc] sm:$0x1] %v9898
        %v9900 = vrot.slane %v9829, 7
        %v9901 = vrot.slane %v9836, 7
        %v9902 = vrot.slane %v9843, 7
        %v9903 = vrot.slane %v9850, 7
        %vm9908 = vcmask 124930
        %vm9909 = vsmask.f32 7946
        %vm9910 = vmand %vm9908, %vm9909
        %v9911 = vld [vmem:[%s9857] sm:$0x4]
        %v9912 = vsel %vm9910, %v9900, %v9911
        %9913 = vst [vmem:[%s9857] sm:$0x4] %v9912
        %v9914 = vld [vmem:[%s9857 + $0x4] sm:$0x4]
        %v9915 = vsel %vm9910, %v9901, %v9914
        %9916 = vst [vmem:[%s9857 + $0x4] sm:$0x4] %v9915
        %v9917 = vld [vmem:[%s9857 + $0x8] sm:$0x4]
        %v9918 = vsel %vm9910, %v9902, %v9917
        %9919 = vst [vmem:[%s9857 + $0x8] sm:$0x4] %v9918
        %v9920 = vld [vmem:[%s9857 + $0xc] sm:$0x4]
        %v9921 = vsel %vm9910, %v9903, %v9920
        %9922 = vst [vmem:[%s9857 + $0xc] sm:$0x4] %v9921
        %s9923 = scalar_lea.vmem [#allocation5], 8
        %v9924 = vld [vmem:[%s9923] sm:$0x7]
        %vm9925 = vcmask 124928
        %9926 = vst.msk [vmem:[#allocation5] sm:$0x7] %vm9925, %v9924
        %s9927 = scalar_lea.vmem [#allocation5], 12
        %v9928 = vld [vmem:[%s9927] sm:$0x7]
        %s9929 = scalar_lea.vmem [#allocation5], 20
        %9930 = vst.msk [vmem:[%s9929] sm:$0x7] %vm9925, %v9928
        %v9931 = vld [vmem:[%s7] sm:$0xf]
        %v9932 = vld [vmem:[%s7 + $0x4] sm:$0xf]
        %v9933 = vld [vmem:[%s7 + $0x8] sm:$0xf]
        %v9934 = vld [vmem:[%s7 + $0xc] sm:$0xf]
        %v9935 = vld [vmem:[%s7 + $0x10] sm:$0xf]
        %v9936 = vld [vmem:[%s7 + $0x14] sm:$0xf]
        %v9937 = vld [vmem:[%s7 + $0x18] sm:$0xf]
        %v9938 = vld [vmem:[%s7 + $0x1c] sm:$0xf]
        %v9939 = vld [vmem:[%s7 + $0x20] sm:$0xf]
        %v9940 = vld [vmem:[%s7 + $0x24] sm:$0xf]
        %v9941 = vld [vmem:[%s7 + $0x28] sm:$0xf]
        %v9942 = vld [vmem:[%s7 + $0x2c] sm:$0xf]
        %v9943 = vld [vmem:[%s7 + $0x30] sm:$0xf]
        %v9944 = vld [vmem:[%s7 + $0x34] sm:$0xf]
        %v9945 = vld [vmem:[%s7 + $0x38] sm:$0xf]
        %v9946 = vld [vmem:[%s7 + $0x3c] sm:$0xf]
        %v9947 = vld [vmem:[%s7 + $0x40] sm:$0xf]
        %v9948 = vld [vmem:[%s7 + $0x44] sm:$0xf]
        %v9949 = vld [vmem:[#allocation5] sm:$0x7]
        %v9950 = vld [vmem:[#allocation5 + $0x4] sm:$0x7]
        %v9951 = vld [vmem:[#allocation5 + $0x8] sm:$0x7]
        %v9952 = vld [vmem:[#allocation5 + $0xc] sm:$0x7]
        %v9953 = vld [vmem:[#allocation5 + $0x10] sm:$0x7]
        %v9960 = vunpack.c.l.s4 1966171168
        %v9961 = vunpack.c.0.s8 %v9960
        %v9962 = vlaneseq
        %v9963 = vshrl.u32 %v9962, 7
        %v9964 = vsub.s32 %v9961, %v9963
        %v9965 = vrot.slane %v9949, %v9964
        %v9966 = vcombine.high %v9965, %v9965
        %v9968 = vunpack.c.l.s4 1966171168
        %v9969 = vunpack.c.0.s8 %v9968
        %v9970 = vlaneseq
        %v9971 = vshrl.u32 %v9970, 7
        %v9972 = vsub.s32 %v9969, %v9971
        %v9973 = vrot.slane %v9965, %v9972
        %v9975 = vunpack.c.l.s4 1966171168
        %v9976 = vunpack.c.0.s8 %v9975
        %v9977 = vlaneseq
        %v9978 = vshrl.u32 %v9977, 7
        %v9979 = vsub.s32 %v9976, %v9978
        %v9980 = vrot.slane %v9966, %v9979
        %v9981 = vcombine.high %v9973, %v9973
        %v9983 = vunpack.c.l.s4 1966171168
        %v9984 = vunpack.c.0.s8 %v9983
        %v9985 = vlaneseq
        %v9986 = vshrl.u32 %v9985, 7
        %v9987 = vsub.s32 %v9984, %v9986
        %v9988 = vrot.slane %v9950, %v9987
        %v9989 = vcombine.high %v9988, %v9988
        %v9991 = vunpack.c.l.s4 1966171168
        %v9992 = vunpack.c.0.s8 %v9991
        %v9993 = vlaneseq
        %v9994 = vshrl.u32 %v9993, 7
        %v9995 = vsub.s32 %v9992, %v9994
        %v9996 = vrot.slane %v9988, %v9995
        %v9998 = vunpack.c.l.s4 1966171168
        %v9999 = vunpack.c.0.s8 %v9998
        %v10000 = vlaneseq
        %v10001 = vshrl.u32 %v10000, 7
        %v10002 = vsub.s32 %v9999, %v10001
        %v10003 = vrot.slane %v9989, %v10002
        %v10004 = vcombine.high %v9996, %v9996
        %v10006 = vunpack.c.l.s4 1966171168
        %v10007 = vunpack.c.0.s8 %v10006
        %v10008 = vlaneseq
        %v10009 = vshrl.u32 %v10008, 7
        %v10010 = vsub.s32 %v10007, %v10009
        %v10011 = vrot.slane %v9951, %v10010
        %v10012 = vcombine.high %v10011, %v10011
        %v10014 = vunpack.c.l.s4 1966171168
        %v10015 = vunpack.c.0.s8 %v10014
        %v10016 = vlaneseq
        %v10017 = vshrl.u32 %v10016, 7
        %v10018 = vsub.s32 %v10015, %v10017
        %v10019 = vrot.slane %v10011, %v10018
        %v10021 = vunpack.c.l.s4 1966171168
        %v10022 = vunpack.c.0.s8 %v10021
        %v10023 = vlaneseq
        %v10024 = vshrl.u32 %v10023, 7
        %v10025 = vsub.s32 %v10022, %v10024
        %v10026 = vrot.slane %v10012, %v10025
        %v10027 = vcombine.high %v10019, %v10019
        %v10029 = vunpack.c.l.s4 1966171168
        %v10030 = vunpack.c.0.s8 %v10029
        %v10031 = vlaneseq
        %v10032 = vshrl.u32 %v10031, 7
        %v10033 = vsub.s32 %v10030, %v10032
        %v10034 = vrot.slane %v9952, %v10033
        %v10035 = vcombine.high %v10034, %v10034
        %v10037 = vunpack.c.l.s4 1966171168
        %v10038 = vunpack.c.0.s8 %v10037
        %v10039 = vlaneseq
        %v10040 = vshrl.u32 %v10039, 7
        %v10041 = vsub.s32 %v10038, %v10040
        %v10042 = vrot.slane %v10034, %v10041
        %v10044 = vunpack.c.l.s4 1966171168
        %v10045 = vunpack.c.0.s8 %v10044
        %v10046 = vlaneseq
        %v10047 = vshrl.u32 %v10046, 7
        %v10048 = vsub.s32 %v10045, %v10047
        %v10049 = vrot.slane %v10035, %v10048
        %v10050 = vcombine.high %v10042, %v10042
        %v10052 = vunpack.c.l.s4 1966171168
        %v10053 = vunpack.c.0.s8 %v10052
        %v10054 = vlaneseq
        %v10055 = vshrl.u32 %v10054, 7
        %v10056 = vsub.s32 %v10053, %v10055
        %v10057 = vrot.slane %v9953, %v10056
        %v10058 = vcombine.high %v10057, %v10057
        %v10060 = vunpack.c.l.s4 1966171168
        %v10061 = vunpack.c.0.s8 %v10060
        %v10062 = vlaneseq
        %v10063 = vshrl.u32 %v10062, 7
        %v10064 = vsub.s32 %v10061, %v10063
        %v10065 = vrot.slane %v10057, %v10064
        %v10067 = vunpack.c.l.s4 1966171168
        %v10068 = vunpack.c.0.s8 %v10067
        %v10069 = vlaneseq
        %v10070 = vshrl.u32 %v10069, 7
        %v10071 = vsub.s32 %v10068, %v10070
        %v10072 = vrot.slane %v10058, %v10071
        %v10073 = vcombine.high %v10065, %v10065
        %v10075 = vunpack.c.l.s4 1966171168
        %v10076 = vunpack.c.0.s8 %v10075
        %v10077 = vlaneseq
        %v10078 = vshrl.u32 %v10077, 7
        %v10079 = vsub.s32 %v10076, %v10078
        %v10080 = vrot.slane %v9973, %v10079
        %v10082 = vunpack.c.l.s4 1966171168
        %v10083 = vunpack.c.0.s8 %v10082
        %v10084 = vlaneseq
        %v10085 = vshrl.u32 %v10084, 7
        %v10086 = vsub.s32 %v10083, %v10085
        %v10087 = vrot.slane %v10080, %v10086
        %v10089 = vunpack.c.l.s4 1966171168
        %v10090 = vunpack.c.0.s8 %v10089
        %v10091 = vlaneseq
        %v10092 = vshrl.u32 %v10091, 7
        %v10093 = vsub.s32 %v10090, %v10092
        %v10094 = vrot.slane %v9980, %v10093
        %v10096 = vunpack.c.l.s4 1966171168
        %v10097 = vunpack.c.0.s8 %v10096
        %v10098 = vlaneseq
        %v10099 = vshrl.u32 %v10098, 7
        %v10100 = vsub.s32 %v10097, %v10099
        %v10101 = vrot.slane %v10094, %v10100
        %v10103 = vunpack.c.l.s4 1966171168
        %v10104 = vunpack.c.0.s8 %v10103
        %v10105 = vlaneseq
        %v10106 = vshrl.u32 %v10105, 7
        %v10107 = vsub.s32 %v10104, %v10106
        %v10108 = vrot.slane %v10019, %v10107
        %v10110 = vunpack.c.l.s4 1966171168
        %v10111 = vunpack.c.0.s8 %v10110
        %v10112 = vlaneseq
        %v10113 = vshrl.u32 %v10112, 7
        %v10114 = vsub.s32 %v10111, %v10113
        %v10115 = vrot.slane %v10108, %v10114
        %v10117 = vunpack.c.l.s4 1966171168
        %v10118 = vunpack.c.0.s8 %v10117
        %v10119 = vlaneseq
        %v10120 = vshrl.u32 %v10119, 7
        %v10121 = vsub.s32 %v10118, %v10120
        %v10122 = vrot.slane %v10026, %v10121
        %v10124 = vunpack.c.l.s4 1966171168
        %v10125 = vunpack.c.0.s8 %v10124
        %v10126 = vlaneseq
        %v10127 = vshrl.u32 %v10126, 7
        %v10128 = vsub.s32 %v10125, %v10127
        %v10129 = vrot.slane %v10122, %v10128
        %v10130 = vunpack.c.l.b16 %v10087
        %v10131 = vunpack.c.l.b16 %v10101
        %v10132 = vunpack.c.l.b16 %v10115
        %v10133 = vunpack.c.l.b16 %v10129
        %v10134 = vrot.slane %v10130, 1
        %vm10135 = vcmask 1041409
        %v10136 = vsel %vm10135, %v10131, %v10134
        %v10137 = vrot.slane %v10132, 7
        %vm10138 = vcmask 1042434
        %v10139 = vsel %vm10138, %v10137, %v10136
        %v10140 = vrot.slane %v10133, 6
        %vm10141 = vcmask 1043459
        %v10142 = vsel %vm10141, %v10140, %v10139
        %v10143 = vpack.c.b16 %v10142, %v10142
        %v10146 = vunpack.c.l.b16 %v9933
        %v10147 = vunpack.c.l.b16 %v9934
        %v10148 = vpack.c.b16 %v10147, %v10146
        %vm10150 = vcmask 130048
        %v10152 = vsel %vm10150, %v10143, 0
        %10154 = vmatprep.subr.bf16.mxu0 0
        %10155 = vmatpush1.bf16.msra.mxu0 %v10148
        %10156 = vmatprep.subr.bf16.mxu0 0
        %10157 = vmatpush1.bf16.msra.mxu0 0
        %10158 = vmatprep.subr.bf16.mxu0 0
        %10159 = vmatpush1.bf16.msra.mxu0 0
        %10160 = vmatprep.subr.bf16.mxu0 0
        %10161 = vmatpush1.bf16.msra.mxu0 0
        %10162 = vmatprep.subr.bf16.mxu0 0
        %10163 = vmatpush1.bf16.msra.mxu0 0
        %10164 = vmatprep.subr.bf16.mxu0 0
        %10165 = vmatpush1.bf16.msra.mxu0 0
        %10166 = vmatprep.subr.bf16.mxu0 0
        %10167 = vmatpush1.bf16.msra.mxu0 0
        %10168 = vmatprep.subr.bf16.mxu0 0
        %10169 = vmatpush1.bf16.msra.mxu0 0
        %10170 = vmatprep.subr.bf16.mxu0 0
        %10171 = vmatpush1.bf16.msra.mxu0 0
        %10172 = vmatprep.subr.bf16.mxu0 0
        %10173 = vmatpush1.bf16.msra.mxu0 0
        %10174 = vmatprep.subr.bf16.mxu0 0
        %10175 = vmatpush1.bf16.msra.mxu0 0
        %10176 = vmatprep.subr.bf16.mxu0 0
        %10177 = vmatpush1.bf16.msra.mxu0 0
        %10178 = vmatprep.subr.bf16.mxu0 0
        %10179 = vmatpush1.bf16.msra.mxu0 0
        %10180 = vmatprep.subr.bf16.mxu0 0
        %10181 = vmatpush1.bf16.msra.mxu0 0
        %10182 = vmatprep.subr.bf16.mxu0 0
        %10183 = vmatpush1.bf16.msra.mxu0 0
        %10184 = vmatprep.subr.bf16.mxu0 0
        %10185 = vmatpush1.bf16.msra.mxu0 0
        %10186 = vmatprep.mubr.bf16.mxu0 0
        %10187 = vmatmul.mubr.bf16.gmra.mrb[0].mxu0 %v10152
        %v10188 = vpop.f32.mrb[0].mxu0
        %v10189 = vadd.f32 0.0, %v10188
        %v10190 = vpop.f32.mrb[0].mxu0
        %v10191 = vpop.f32.mrb[0].mxu0
        %v10192 = vpop.f32.mrb[0].mxu0
        %10193 = vdwg.mxu0
        %v10194 = vrot.slane %v10131, 7
        %v10195 = vsel %vm10135, %v10194, %v10130
        %v10196 = vrot.slane %v10132, 6
        %v10197 = vsel %vm10138, %v10196, %v10195
        %v10198 = vrot.slane %v10133, 5
        %v10199 = vsel %vm10141, %v10198, %v10197
        %v10200 = vpack.c.b16 %v10199, %v10199
        %v10203 = vunpack.c.l.b16 %v9931
        %v10204 = vunpack.c.l.b16 %v9932
        %v10205 = vpack.c.b16 %v10204, %v10203
        %v10208 = vsel %vm10150, %v10200, 0
        %10210 = vmatprep.subr.bf16.mxu0 0
        %10211 = vmatpush1.bf16.msra.mxu0 %v10205
        %10212 = vmatprep.subr.bf16.mxu0 0
        %10213 = vmatpush1.bf16.msra.mxu0 0
        %10214 = vmatprep.subr.bf16.mxu0 0
        %10215 = vmatpush1.bf16.msra.mxu0 0
        %10216 = vmatprep.subr.bf16.mxu0 0
        %10217 = vmatpush1.bf16.msra.mxu0 0
        %10218 = vmatprep.subr.bf16.mxu0 0
        %10219 = vmatpush1.bf16.msra.mxu0 0
        %10220 = vmatprep.subr.bf16.mxu0 0
        %10221 = vmatpush1.bf16.msra.mxu0 0
        %10222 = vmatprep.subr.bf16.mxu0 0
        %10223 = vmatpush1.bf16.msra.mxu0 0
        %10224 = vmatprep.subr.bf16.mxu0 0
        %10225 = vmatpush1.bf16.msra.mxu0 0
        %10226 = vmatprep.subr.bf16.mxu0 0
        %10227 = vmatpush1.bf16.msra.mxu0 0
        %10228 = vmatprep.subr.bf16.mxu0 0
        %10229 = vmatpush1.bf16.msra.mxu0 0
        %10230 = vmatprep.subr.bf16.mxu0 0
        %10231 = vmatpush1.bf16.msra.mxu0 0
        %10232 = vmatprep.subr.bf16.mxu0 0
        %10233 = vmatpush1.bf16.msra.mxu0 0
        %10234 = vmatprep.subr.bf16.mxu0 0
        %10235 = vmatpush1.bf16.msra.mxu0 0
        %10236 = vmatprep.subr.bf16.mxu0 0
        %10237 = vmatpush1.bf16.msra.mxu0 0
        %10238 = vmatprep.subr.bf16.mxu0 0
        %10239 = vmatpush1.bf16.msra.mxu0 0
        %10240 = vmatprep.subr.bf16.mxu0 0
        %10241 = vmatpush1.bf16.msra.mxu0 0
        %10242 = vmatprep.mubr.bf16.mxu0 0
        %10243 = vmatmul.mubr.bf16.gmra.mrb[0].mxu0 %v10208
        %v10244 = vpop.f32.mrb[0].mxu0
        %v10245 = vadd.f32 %v10189, %v10244
        %v10246 = vpop.f32.mrb[0].mxu0
        %v10247 = vpop.f32.mrb[0].mxu0
        %v10248 = vpop.f32.mrb[0].mxu0
        %10249 = vdwg.mxu0
        %v10251 = vunpack.c.l.s4 1966171168
        %v10252 = vunpack.c.0.s8 %v10251
        %v10253 = vlaneseq
        %v10254 = vshrl.u32 %v10253, 7
        %v10255 = vsub.s32 %v10252, %v10254
        %v10256 = vrot.slane %v9981, %v10255
        %v10258 = vunpack.c.l.s4 1966171168
        %v10259 = vunpack.c.0.s8 %v10258
        %v10260 = vlaneseq
        %v10261 = vshrl.u32 %v10260, 7
        %v10262 = vsub.s32 %v10259, %v10261
        %v10263 = vrot.slane %v10256, %v10262
        %v10265 = vunpack.c.l.s4 1966171168
        %v10266 = vunpack.c.0.s8 %v10265
        %v10267 = vlaneseq
        %v10268 = vshrl.u32 %v10267, 7
        %v10269 = vsub.s32 %v10266, %v10268
        %v10270 = vrot.slane %v10027, %v10269
        %v10272 = vunpack.c.l.s4 1966171168
        %v10273 = vunpack.c.0.s8 %v10272
        %v10274 = vlaneseq
        %v10275 = vshrl.u32 %v10274, 7
        %v10276 = vsub.s32 %v10273, %v10275
        %v10277 = vrot.slane %v10270, %v10276
        %v10278 = vunpack.c.l.b16 %v10263
        %v10279 = vunpack.c.l.b16 %v10277
        %v10280 = vrot.slane %v10278, 7
        %v10281 = vsel %vm10135, %v10280, %v10131
        %v10282 = vsel %vm10138, %v10140, %v10281
        %v10283 = vrot.slane %v10279, 5
        %v10284 = vsel %vm10141, %v10283, %v10282
        %v10285 = vpack.c.b16 %v10284, %v10284
        %v10288 = vunpack.c.l.b16 %v9935
        %v10289 = vunpack.c.l.b16 %v9936
        %v10290 = vpack.c.b16 %v10289, %v10288
        %v10293 = vsel %vm10150, %v10285, 0
        %10295 = vmatprep.subr.bf16.mxu0 0
        %10296 = vmatpush1.bf16.msra.mxu0 %v10290
        %10297 = vmatprep.subr.bf16.mxu0 0
        %10298 = vmatpush1.bf16.msra.mxu0 0
        %10299 = vmatprep.subr.bf16.mxu0 0
        %10300 = vmatpush1.bf16.msra.mxu0 0
        %10301 = vmatprep.subr.bf16.mxu0 0
        %10302 = vmatpush1.bf16.msra.mxu0 0
        %10303 = vmatprep.subr.bf16.mxu0 0
        %10304 = vmatpush1.bf16.msra.mxu0 0
        %10305 = vmatprep.subr.bf16.mxu0 0
        %10306 = vmatpush1.bf16.msra.mxu0 0
        %10307 = vmatprep.subr.bf16.mxu0 0
        %10308 = vmatpush1.bf16.msra.mxu0 0
        %10309 = vmatprep.subr.bf16.mxu0 0
        %10310 = vmatpush1.bf16.msra.mxu0 0
        %10311 = vmatprep.subr.bf16.mxu0 0
        %10312 = vmatpush1.bf16.msra.mxu0 0
        %10313 = vmatprep.subr.bf16.mxu0 0
        %10314 = vmatpush1.bf16.msra.mxu0 0
        %10315 = vmatprep.subr.bf16.mxu0 0
        %10316 = vmatpush1.bf16.msra.mxu0 0
        %10317 = vmatprep.subr.bf16.mxu0 0
        %10318 = vmatpush1.bf16.msra.mxu0 0
        %10319 = vmatprep.subr.bf16.mxu0 0
        %10320 = vmatpush1.bf16.msra.mxu0 0
        %10321 = vmatprep.subr.bf16.mxu0 0
        %10322 = vmatpush1.bf16.msra.mxu0 0
        %10323 = vmatprep.subr.bf16.mxu0 0
        %10324 = vmatpush1.bf16.msra.mxu0 0
        %10325 = vmatprep.subr.bf16.mxu0 0
        %10326 = vmatpush1.bf16.msra.mxu0 0
        %10327 = vmatprep.mubr.bf16.mxu0 0
        %10328 = vmatmul.mubr.bf16.gmra.mrb[0].mxu0 %v10293
        %v10329 = vpop.f32.mrb[0].mxu0
        %v10330 = vadd.f32 0.0, %v10329
        %v10331 = vpop.f32.mrb[0].mxu0
        %v10332 = vpop.f32.mrb[0].mxu0
        %v10333 = vpop.f32.mrb[0].mxu0
        %10334 = vdwg.mxu0
        %v10335 = vadd.f32 %v10245, %v10330
        %v10337 = vunpack.c.l.s4 1966171168
        %v10338 = vunpack.c.0.s8 %v10337
        %v10339 = vlaneseq
        %v10340 = vshrl.u32 %v10339, 7
        %v10341 = vsub.s32 %v10338, %v10340
        %v10342 = vrot.slane %v9996, %v10341
        %v10344 = vunpack.c.l.s4 1966171168
        %v10345 = vunpack.c.0.s8 %v10344
        %v10346 = vlaneseq
        %v10347 = vshrl.u32 %v10346, 7
        %v10348 = vsub.s32 %v10345, %v10347
        %v10349 = vrot.slane %v10342, %v10348
        %v10351 = vunpack.c.l.s4 1966171168
        %v10352 = vunpack.c.0.s8 %v10351
        %v10353 = vlaneseq
        %v10354 = vshrl.u32 %v10353, 7
        %v10355 = vsub.s32 %v10352, %v10354
        %v10356 = vrot.slane %v10003, %v10355
        %v10358 = vunpack.c.l.s4 1966171168
        %v10359 = vunpack.c.0.s8 %v10358
        %v10360 = vlaneseq
        %v10361 = vshrl.u32 %v10360, 7
        %v10362 = vsub.s32 %v10359, %v10361
        %v10363 = vrot.slane %v10356, %v10362
        %v10365 = vunpack.c.l.s4 1966171168
        %v10366 = vunpack.c.0.s8 %v10365
        %v10367 = vlaneseq
        %v10368 = vshrl.u32 %v10367, 7
        %v10369 = vsub.s32 %v10366, %v10368
        %v10370 = vrot.slane %v10042, %v10369
        %v10372 = vunpack.c.l.s4 1966171168
        %v10373 = vunpack.c.0.s8 %v10372
        %v10374 = vlaneseq
        %v10375 = vshrl.u32 %v10374, 7
        %v10376 = vsub.s32 %v10373, %v10375
        %v10377 = vrot.slane %v10370, %v10376
        %v10379 = vunpack.c.l.s4 1966171168
        %v10380 = vunpack.c.0.s8 %v10379
        %v10381 = vlaneseq
        %v10382 = vshrl.u32 %v10381, 7
        %v10383 = vsub.s32 %v10380, %v10382
        %v10384 = vrot.slane %v10049, %v10383
        %v10386 = vunpack.c.l.s4 1966171168
        %v10387 = vunpack.c.0.s8 %v10386
        %v10388 = vlaneseq
        %v10389 = vshrl.u32 %v10388, 7
        %v10390 = vsub.s32 %v10387, %v10389
        %v10391 = vrot.slane %v10384, %v10390
        %v10392 = vunpack.c.l.b16 %v10349
        %v10393 = vunpack.c.l.b16 %v10363
        %v10394 = vunpack.c.l.b16 %v10377
        %v10395 = vunpack.c.l.b16 %v10391
        %v10396 = vrot.slane %v10393, 7
        %v10397 = vsel %vm10135, %v10396, %v10392
        %v10398 = vrot.slane %v10394, 6
        %v10399 = vsel %vm10138, %v10398, %v10397
        %v10400 = vrot.slane %v10395, 5
        %v10401 = vsel %vm10141, %v10400, %v10399
        %v10402 = vpack.c.b16 %v10401, %v10401
        %v10405 = vunpack.c.l.b16 %v9937
        %v10406 = vunpack.c.l.b16 %v9938
        %v10407 = vpack.c.b16 %v10406, %v10405
        %v10410 = vsel %vm10150, %v10402, 0
        %10412 = vmatprep.subr.bf16.mxu0 0
        %10413 = vmatpush1.bf16.msra.mxu0 %v10407
        %10414 = vmatprep.subr.bf16.mxu0 0
        %10415 = vmatpush1.bf16.msra.mxu0 0
        %10416 = vmatprep.subr.bf16.mxu0 0
        %10417 = vmatpush1.bf16.msra.mxu0 0
        %10418 = vmatprep.subr.bf16.mxu0 0
        %10419 = vmatpush1.bf16.msra.mxu0 0
        %10420 = vmatprep.subr.bf16.mxu0 0
        %10421 = vmatpush1.bf16.msra.mxu0 0
        %10422 = vmatprep.subr.bf16.mxu0 0
        %10423 = vmatpush1.bf16.msra.mxu0 0
        %10424 = vmatprep.subr.bf16.mxu0 0
        %10425 = vmatpush1.bf16.msra.mxu0 0
        %10426 = vmatprep.subr.bf16.mxu0 0
        %10427 = vmatpush1.bf16.msra.mxu0 0
        %10428 = vmatprep.subr.bf16.mxu0 0
        %10429 = vmatpush1.bf16.msra.mxu0 0
        %10430 = vmatprep.subr.bf16.mxu0 0
        %10431 = vmatpush1.bf16.msra.mxu0 0
        %10432 = vmatprep.subr.bf16.mxu0 0
        %10433 = vmatpush1.bf16.msra.mxu0 0
        %10434 = vmatprep.subr.bf16.mxu0 0
        %10435 = vmatpush1.bf16.msra.mxu0 0
        %10436 = vmatprep.subr.bf16.mxu0 0
        %10437 = vmatpush1.bf16.msra.mxu0 0
        %10438 = vmatprep.subr.bf16.mxu0 0
        %10439 = vmatpush1.bf16.msra.mxu0 0
        %10440 = vmatprep.subr.bf16.mxu0 0
        %10441 = vmatpush1.bf16.msra.mxu0 0
        %10442 = vmatprep.subr.bf16.mxu0 0
        %10443 = vmatpush1.bf16.msra.mxu0 0
        %10444 = vmatprep.mubr.bf16.mxu0 0
        %10445 = vmatmul.mubr.bf16.gmra.mrb[0].mxu0 %v10410
        %v10446 = vpop.f32.mrb[0].mxu0
        %v10447 = vadd.f32 0.0, %v10446
        %v10448 = vpop.f32.mrb[0].mxu0
        %v10449 = vpop.f32.mrb[0].mxu0
        %v10450 = vpop.f32.mrb[0].mxu0
        %10451 = vdwg.mxu0
        %v10452 = vadd.f32 %v10335, %v10447
        %v10453 = vrot.slane %v10392, 1
        %v10454 = vsel %vm10135, %v10393, %v10453
        %v10455 = vrot.slane %v10394, 7
        %v10456 = vsel %vm10138, %v10455, %v10454
        %v10457 = vrot.slane %v10395, 6
        %v10458 = vsel %vm10141, %v10457, %v10456
        %v10459 = vpack.c.b16 %v10458, %v10458
        %v10462 = vunpack.c.l.b16 %v9939
        %v10463 = vunpack.c.l.b16 %v9940
        %v10464 = vpack.c.b16 %v10463, %v10462
        %v10467 = vsel %vm10150, %v10459, 0
        %10469 = vmatprep.subr.bf16.mxu0 0
        %10470 = vmatpush1.bf16.msra.mxu0 %v10464
        %10471 = vmatprep.subr.bf16.mxu0 0
        %10472 = vmatpush1.bf16.msra.mxu0 0
        %10473 = vmatprep.subr.bf16.mxu0 0
        %10474 = vmatpush1.bf16.msra.mxu0 0
        %10475 = vmatprep.subr.bf16.mxu0 0
        %10476 = vmatpush1.bf16.msra.mxu0 0
        %10477 = vmatprep.subr.bf16.mxu0 0
        %10478 = vmatpush1.bf16.msra.mxu0 0
        %10479 = vmatprep.subr.bf16.mxu0 0
        %10480 = vmatpush1.bf16.msra.mxu0 0
        %10481 = vmatprep.subr.bf16.mxu0 0
        %10482 = vmatpush1.bf16.msra.mxu0 0
        %10483 = vmatprep.subr.bf16.mxu0 0
        %10484 = vmatpush1.bf16.msra.mxu0 0
        %10485 = vmatprep.subr.bf16.mxu0 0
        %10486 = vmatpush1.bf16.msra.mxu0 0
        %10487 = vmatprep.subr.bf16.mxu0 0
        %10488 = vmatpush1.bf16.msra.mxu0 0
        %10489 = vmatprep.subr.bf16.mxu0 0
        %10490 = vmatpush1.bf16.msra.mxu0 0
        %10491 = vmatprep.subr.bf16.mxu0 0
        %10492 = vmatpush1.bf16.msra.mxu0 0
        %10493 = vmatprep.subr.bf16.mxu0 0
        %10494 = vmatpush1.bf16.msra.mxu0 0
        %10495 = vmatprep.subr.bf16.mxu0 0
        %10496 = vmatpush1.bf16.msra.mxu0 0
        %10497 = vmatprep.subr.bf16.mxu0 0
        %10498 = vmatpush1.bf16.msra.mxu0 0
        %10499 = vmatprep.subr.bf16.mxu0 0
        %10500 = vmatpush1.bf16.msra.mxu0 0
        %10501 = vmatprep.mubr.bf16.mxu0 0
        %10502 = vmatmul.mubr.bf16.gmra.mrb[0].mxu0 %v10467
        %v10503 = vpop.f32.mrb[0].mxu0
        %v10504 = vadd.f32 0.0, %v10503
        %v10505 = vpop.f32.mrb[0].mxu0
        %v10506 = vpop.f32.mrb[0].mxu0
        %v10507 = vpop.f32.mrb[0].mxu0
        %10508 = vdwg.mxu0
        %v10509 = vadd.f32 %v10452, %v10504
        %v10511 = vunpack.c.l.s4 1966171168
        %v10512 = vunpack.c.0.s8 %v10511
        %v10513 = vlaneseq
        %v10514 = vshrl.u32 %v10513, 7
        %v10515 = vsub.s32 %v10512, %v10514
        %v10516 = vrot.slane %v10004, %v10515
        %v10518 = vunpack.c.l.s4 1966171168
        %v10519 = vunpack.c.0.s8 %v10518
        %v10520 = vlaneseq
        %v10521 = vshrl.u32 %v10520, 7
        %v10522 = vsub.s32 %v10519, %v10521
        %v10523 = vrot.slane %v10516, %v10522
        %v10525 = vunpack.c.l.s4 1966171168
        %v10526 = vunpack.c.0.s8 %v10525
        %v10527 = vlaneseq
        %v10528 = vshrl.u32 %v10527, 7
        %v10529 = vsub.s32 %v10526, %v10528
        %v10530 = vrot.slane %v10050, %v10529
        %v10532 = vunpack.c.l.s4 1966171168
        %v10533 = vunpack.c.0.s8 %v10532
        %v10534 = vlaneseq
        %v10535 = vshrl.u32 %v10534, 7
        %v10536 = vsub.s32 %v10533, %v10535
        %v10537 = vrot.slane %v10530, %v10536
        %v10538 = vunpack.c.l.b16 %v10523
        %v10539 = vunpack.c.l.b16 %v10537
        %v10540 = vrot.slane %v10538, 7
        %v10541 = vsel %vm10135, %v10540, %v10393
        %v10542 = vsel %vm10138, %v10457, %v10541
        %v10543 = vrot.slane %v10539, 5
        %v10544 = vsel %vm10141, %v10543, %v10542
        %v10545 = vpack.c.b16 %v10544, %v10544
        %v10548 = vunpack.c.l.b16 %v9941
        %v10549 = vunpack.c.l.b16 %v9942
        %v10550 = vpack.c.b16 %v10549, %v10548
        %v10553 = vsel %vm10150, %v10545, 0
        %10555 = vmatprep.subr.bf16.mxu0 0
        %10556 = vmatpush1.bf16.msra.mxu0 %v10550
        %10557 = vmatprep.subr.bf16.mxu0 0
        %10558 = vmatpush1.bf16.msra.mxu0 0
        %10559 = vmatprep.subr.bf16.mxu0 0
        %10560 = vmatpush1.bf16.msra.mxu0 0
        %10561 = vmatprep.subr.bf16.mxu0 0
        %10562 = vmatpush1.bf16.msra.mxu0 0
        %10563 = vmatprep.subr.bf16.mxu0 0
        %10564 = vmatpush1.bf16.msra.mxu0 0
        %10565 = vmatprep.subr.bf16.mxu0 0
        %10566 = vmatpush1.bf16.msra.mxu0 0
        %10567 = vmatprep.subr.bf16.mxu0 0
        %10568 = vmatpush1.bf16.msra.mxu0 0
        %10569 = vmatprep.subr.bf16.mxu0 0
        %10570 = vmatpush1.bf16.msra.mxu0 0
        %10571 = vmatprep.subr.bf16.mxu0 0
        %10572 = vmatpush1.bf16.msra.mxu0 0
        %10573 = vmatprep.subr.bf16.mxu0 0
        %10574 = vmatpush1.bf16.msra.mxu0 0
        %10575 = vmatprep.subr.bf16.mxu0 0
        %10576 = vmatpush1.bf16.msra.mxu0 0
        %10577 = vmatprep.subr.bf16.mxu0 0
        %10578 = vmatpush1.bf16.msra.mxu0 0
        %10579 = vmatprep.subr.bf16.mxu0 0
        %10580 = vmatpush1.bf16.msra.mxu0 0
        %10581 = vmatprep.subr.bf16.mxu0 0
        %10582 = vmatpush1.bf16.msra.mxu0 0
        %10583 = vmatprep.subr.bf16.mxu0 0
        %10584 = vmatpush1.bf16.msra.mxu0 0
        %10585 = vmatprep.subr.bf16.mxu0 0
        %10586 = vmatpush1.bf16.msra.mxu0 0
        %10587 = vmatprep.mubr.bf16.mxu0 0
        %10588 = vmatmul.mubr.bf16.gmra.mrb[0].mxu0 %v10553
        %v10589 = vpop.f32.mrb[0].mxu0
        %v10590 = vadd.f32 0.0, %v10589
        %v10591 = vpop.f32.mrb[0].mxu0
        %v10592 = vpop.f32.mrb[0].mxu0
        %v10593 = vpop.f32.mrb[0].mxu0
        %10594 = vdwg.mxu0
        %v10595 = vadd.f32 %v10509, %v10590
        %v10597 = vunpack.c.l.s4 1966171168
        %v10598 = vunpack.c.0.s8 %v10597
        %v10599 = vlaneseq
        %v10600 = vshrl.u32 %v10599, 7
        %v10601 = vsub.s32 %v10598, %v10600
        %v10602 = vrot.slane %v10065, %v10601
        %v10604 = vunpack.c.l.s4 1966171168
        %v10605 = vunpack.c.0.s8 %v10604
        %v10606 = vlaneseq
        %v10607 = vshrl.u32 %v10606, 7
        %v10608 = vsub.s32 %v10605, %v10607
        %v10609 = vrot.slane %v10602, %v10608
        %v10611 = vunpack.c.l.s4 1966171168
        %v10612 = vunpack.c.0.s8 %v10611
        %v10613 = vlaneseq
        %v10614 = vshrl.u32 %v10613, 7
        %v10615 = vsub.s32 %v10612, %v10614
        %v10616 = vrot.slane %v10072, %v10615
        %v10618 = vunpack.c.l.s4 1966171168
        %v10619 = vunpack.c.0.s8 %v10618
        %v10620 = vlaneseq
        %v10621 = vshrl.u32 %v10620, 7
        %v10622 = vsub.s32 %v10619, %v10621
        %v10623 = vrot.slane %v10616, %v10622
        %v10624 = vunpack.c.l.b16 %v10609
        %v10625 = vunpack.c.l.b16 %v10623
        %v10626 = vrot.slane %v10133, 7
        %v10627 = vsel %vm10135, %v10626, %v10132
        %v10628 = vrot.slane %v10624, 6
        %v10629 = vsel %vm10138, %v10628, %v10627
        %v10630 = vrot.slane %v10625, 5
        %v10631 = vsel %vm10141, %v10630, %v10629
        %v10632 = vpack.c.b16 %v10631, %v10631
        %v10635 = vunpack.c.l.b16 %v9943
        %v10636 = vunpack.c.l.b16 %v9944
        %v10637 = vpack.c.b16 %v10636, %v10635
        %v10640 = vsel %vm10150, %v10632, 0
        %10642 = vmatprep.subr.bf16.mxu0 0
        %10643 = vmatpush1.bf16.msra.mxu0 %v10637
        %10644 = vmatprep.subr.bf16.mxu0 0
        %10645 = vmatpush1.bf16.msra.mxu0 0
        %10646 = vmatprep.subr.bf16.mxu0 0
        %10647 = vmatpush1.bf16.msra.mxu0 0
        %10648 = vmatprep.subr.bf16.mxu0 0
        %10649 = vmatpush1.bf16.msra.mxu0 0
        %10650 = vmatprep.subr.bf16.mxu0 0
        %10651 = vmatpush1.bf16.msra.mxu0 0
        %10652 = vmatprep.subr.bf16.mxu0 0
        %10653 = vmatpush1.bf16.msra.mxu0 0
        %10654 = vmatprep.subr.bf16.mxu0 0
        %10655 = vmatpush1.bf16.msra.mxu0 0
        %10656 = vmatprep.subr.bf16.mxu0 0
        %10657 = vmatpush1.bf16.msra.mxu0 0
        %10658 = vmatprep.subr.bf16.mxu0 0
        %10659 = vmatpush1.bf16.msra.mxu0 0
        %10660 = vmatprep.subr.bf16.mxu0 0
        %10661 = vmatpush1.bf16.msra.mxu0 0
        %10662 = vmatprep.subr.bf16.mxu0 0
        %10663 = vmatpush1.bf16.msra.mxu0 0
        %10664 = vmatprep.subr.bf16.mxu0 0
        %10665 = vmatpush1.bf16.msra.mxu0 0
        %10666 = vmatprep.subr.bf16.mxu0 0
        %10667 = vmatpush1.bf16.msra.mxu0 0
        %10668 = vmatprep.subr.bf16.mxu0 0
        %10669 = vmatpush1.bf16.msra.mxu0 0
        %10670 = vmatprep.subr.bf16.mxu0 0
        %10671 = vmatpush1.bf16.msra.mxu0 0
        %10672 = vmatprep.subr.bf16.mxu0 0
        %10673 = vmatpush1.bf16.msra.mxu0 0
        %10674 = vmatprep.mubr.bf16.mxu0 0
        %10675 = vmatmul.mubr.bf16.gmra.mrb[0].mxu0 %v10640
        %v10676 = vpop.f32.mrb[0].mxu0
        %v10677 = vadd.f32 0.0, %v10676
        %v10678 = vpop.f32.mrb[0].mxu0
        %v10679 = vpop.f32.mrb[0].mxu0
        %v10680 = vpop.f32.mrb[0].mxu0
        %10681 = vdwg.mxu0
        %v10682 = vadd.f32 %v10595, %v10677
        %v10683 = vrot.slane %v10132, 1
        %v10684 = vsel %vm10135, %v10133, %v10683
        %v10685 = vrot.slane %v10624, 7
        %v10686 = vsel %vm10138, %v10685, %v10684
        %v10687 = vrot.slane %v10625, 6
        %v10688 = vsel %vm10141, %v10687, %v10686
        %v10689 = vpack.c.b16 %v10688, %v10688
        %v10692 = vunpack.c.l.b16 %v9945
        %v10693 = vunpack.c.l.b16 %v9946
        %v10694 = vpack.c.b16 %v10693, %v10692
        %v10697 = vsel %vm10150, %v10689, 0
        %10699 = vmatprep.subr.bf16.mxu0 0
        %10700 = vmatpush1.bf16.msra.mxu0 %v10694
        %10701 = vmatprep.subr.bf16.mxu0 0
        %10702 = vmatpush1.bf16.msra.mxu0 0
        %10703 = vmatprep.subr.bf16.mxu0 0
        %10704 = vmatpush1.bf16.msra.mxu0 0
        %10705 = vmatprep.subr.bf16.mxu0 0
        %10706 = vmatpush1.bf16.msra.mxu0 0
        %10707 = vmatprep.subr.bf16.mxu0 0
        %10708 = vmatpush1.bf16.msra.mxu0 0
        %10709 = vmatprep.subr.bf16.mxu0 0
        %10710 = vmatpush1.bf16.msra.mxu0 0
        %10711 = vmatprep.subr.bf16.mxu0 0
        %10712 = vmatpush1.bf16.msra.mxu0 0
        %10713 = vmatprep.subr.bf16.mxu0 0
        %10714 = vmatpush1.bf16.msra.mxu0 0
        %10715 = vmatprep.subr.bf16.mxu0 0
        %10716 = vmatpush1.bf16.msra.mxu0 0
        %10717 = vmatprep.subr.bf16.mxu0 0
        %10718 = vmatpush1.bf16.msra.mxu0 0
        %10719 = vmatprep.subr.bf16.mxu0 0
        %10720 = vmatpush1.bf16.msra.mxu0 0
        %10721 = vmatprep.subr.bf16.mxu0 0
        %10722 = vmatpush1.bf16.msra.mxu0 0
        %10723 = vmatprep.subr.bf16.mxu0 0
        %10724 = vmatpush1.bf16.msra.mxu0 0
        %10725 = vmatprep.subr.bf16.mxu0 0
        %10726 = vmatpush1.bf16.msra.mxu0 0
        %10727 = vmatprep.subr.bf16.mxu0 0
        %10728 = vmatpush1.bf16.msra.mxu0 0
        %10729 = vmatprep.subr.bf16.mxu0 0
        %10730 = vmatpush1.bf16.msra.mxu0 0
        %10731 = vmatprep.mubr.bf16.mxu0 0
        %10732 = vmatmul.mubr.bf16.gmra.mrb[0].mxu0 %v10697
        %v10733 = vpop.f32.mrb[0].mxu0
        %v10734 = vadd.f32 0.0, %v10733
        %v10735 = vpop.f32.mrb[0].mxu0
        %v10736 = vpop.f32.mrb[0].mxu0
        %v10737 = vpop.f32.mrb[0].mxu0
        %10738 = vdwg.mxu0
        %v10739 = vadd.f32 %v10682, %v10734
        %v10741 = vunpack.c.l.s4 1966171168
        %v10742 = vunpack.c.0.s8 %v10741
        %v10743 = vlaneseq
        %v10744 = vshrl.u32 %v10743, 7
        %v10745 = vsub.s32 %v10742, %v10744
        %v10746 = vrot.slane %v10073, %v10745
        %v10748 = vunpack.c.l.s4 1966171168
        %v10749 = vunpack.c.0.s8 %v10748
        %v10750 = vlaneseq
        %v10751 = vshrl.u32 %v10750, 7
        %v10752 = vsub.s32 %v10749, %v10751
        %v10753 = vrot.slane %v10746, %v10752
        %v10754 = vunpack.c.l.b16 %v10753
        %v10755 = vrot.slane %v10279, 7
        %v10756 = vsel %vm10135, %v10755, %v10133
        %v10757 = vsel %vm10138, %v10687, %v10756
        %v10758 = vrot.slane %v10754, 5
        %v10759 = vsel %vm10141, %v10758, %v10757
        %v10760 = vpack.c.b16 %v10759, %v10759
        %v10763 = vunpack.c.l.b16 %v9947
        %v10764 = vunpack.c.l.b16 %v9948
        %v10765 = vpack.c.b16 %v10764, %v10763
        %v10768 = vsel %vm10150, %v10760, 0
        %10770 = vmatprep.subr.bf16.mxu0 0
        %10771 = vmatpush1.bf16.msra.mxu0 %v10765
        %10772 = vmatprep.subr.bf16.mxu0 0
        %10773 = vmatpush1.bf16.msra.mxu0 0
        %10774 = vmatprep.subr.bf16.mxu0 0
        %10775 = vmatpush1.bf16.msra.mxu0 0
        %10776 = vmatprep.subr.bf16.mxu0 0
        %10777 = vmatpush1.bf16.msra.mxu0 0
        %10778 = vmatprep.subr.bf16.mxu0 0
        %10779 = vmatpush1.bf16.msra.mxu0 0
        %10780 = vmatprep.subr.bf16.mxu0 0
        %10781 = vmatpush1.bf16.msra.mxu0 0
        %10782 = vmatprep.subr.bf16.mxu0 0
        %10783 = vmatpush1.bf16.msra.mxu0 0
        %10784 = vmatprep.subr.bf16.mxu0 0
        %10785 = vmatpush1.bf16.msra.mxu0 0
        %10786 = vmatprep.subr.bf16.mxu0 0
        %10787 = vmatpush1.bf16.msra.mxu0 0
        %10788 = vmatprep.subr.bf16.mxu0 0
        %10789 = vmatpush1.bf16.msra.mxu0 0
        %10790 = vmatprep.subr.bf16.mxu0 0
        %10791 = vmatpush1.bf16.msra.mxu0 0
        %10792 = vmatprep.subr.bf16.mxu0 0
        %10793 = vmatpush1.bf16.msra.mxu0 0
        %10794 = vmatprep.subr.bf16.mxu0 0
        %10795 = vmatpush1.bf16.msra.mxu0 0
        %10796 = vmatprep.subr.bf16.mxu0 0
        %10797 = vmatpush1.bf16.msra.mxu0 0
        %10798 = vmatprep.subr.bf16.mxu0 0
        %10799 = vmatpush1.bf16.msra.mxu0 0
        %10800 = vmatprep.subr.bf16.mxu0 0
        %10801 = vmatpush1.bf16.msra.mxu0 0
        %10802 = vmatprep.mubr.bf16.mxu0 0
        %10803 = vmatmul.mubr.bf16.gmra.mrb[0].mxu0 %v10768
        %v10804 = vpop.f32.mrb[0].mxu0
        %v10805 = vadd.f32 0.0, %v10804
        %v10806 = vpop.f32.mrb[0].mxu0
        %v10807 = vpop.f32.mrb[0].mxu0
        %v10808 = vpop.f32.mrb[0].mxu0
        %10809 = vdwg.mxu0
        %v10810 = vadd.f32 %v10739, %v10805
        %v10811 = vld [vmem:[%s8] sm:$0x1]
        %v10813 = vlaneseq
        %v10814 = vshrl.u32 %v10813, 7
        %v10815 = vsub.s32 0, %v10814
        %v10816 = vrot.slane %v10811, %v10815
        %v10818 = vadd.f32 %v10810, %v10816
        %v10819 = vmax.f32 %v10818, 0.0
        %v10822 = vunpack.c.l.s4 1983009808
        %v10823 = vunpack.c.0.s8 %v10822
        %v10824 = vlaneseq
        %v10825 = vshrl.u32 %v10824, 7
        %v10826 = vsub.s32 %v10823, %v10825
        %v10827 = vrot.slane %v10819, %v10826
        %v10828 = vcombine.high %v10827, %v10827
      %v10833 = vcombine.low %v10827, %v10828
      %v10835 = vunpack.c.l.s4 1983009808
      %v10836 = vunpack.c.0.s8 %v10835
      %v10837 = vlaneseq
      %v10838 = vshrl.u32 %v10837, 7
      %v10839 = vsub.s32 %v10836, %v10838
      %v10840 = vrot.slane %v10833, %v10839
      %vm10842 = vcmask 257024
      %v10843 = vsel %vm10842, %v10840, 0.0
      %v10844 = vrot.slane %v10843, 4
      %v10845 = vadd.f32 %v10843, %v10844
      %v10846 = vrot.slane %v10845, 2
      %v10847 = vadd.f32 %v10845, %v10846
      %v10848 = vrot.slane %v10847, 1
      %v10849 = vadd.f32 %v10847, %v10848
      %v10850 = vrcp.pop 4.0
      %v10851 = vmul.f32 %v10849, %v10850
      %v10852 = vpack.c.bf16 %v10851, %v10851
      %v10853 = vld [vmem:[%s9] sm:$0xf]
      %v10854 = vld [vmem:[%s9 + $0x4] sm:$0xf]
      %v10855 = vld [vmem:[%s9 + $0x8] sm:$0xf]
      %v10856 = vld [vmem:[%s9 + $0xc] sm:$0xf]
      %v10857 = vld [vmem:[%s10] sm:$0x1]
      %v10862 = vunpack.c.l.b16 %v10853
      %v10863 = vunpack.c.l.b16 %v10854
      %v10864 = vunpack.c.l.b16 %v10855
      %v10865 = vunpack.c.l.b16 %v10856
      %v10866 = vpack.c.b16 %v10863, %v10862
      %v10867 = vpack.c.b16 %v10865, %v10864
      %vm10870 = vcmask 261120
      %v10872 = vsel %vm10870, %v10852, 0
      %10874 = vmatprep.subr.bf16.mxu0 0
      %10875 = vmatpush1.bf16.msra.mxu0 %v10866
      %10876 = vmatprep.subr.bf16.mxu0 0
      %10877 = vmatpush1.bf16.msra.mxu0 %v10867
      %10878 = vmatprep.subr.bf16.mxu0 0
      %10879 = vmatpush1.bf16.msra.mxu0 0
      %10880 = vmatprep.subr.bf16.mxu0 0
      %10881 = vmatpush1.bf16.msra.mxu0 0
      %10882 = vmatprep.subr.bf16.mxu0 0
      %10883 = vmatpush1.bf16.msra.mxu0 0
      %10884 = vmatprep.subr.bf16.mxu0 0
      %10885 = vmatpush1.bf16.msra.mxu0 0
      %10886 = vmatprep.subr.bf16.mxu0 0
      %10887 = vmatpush1.bf16.msra.mxu0 0
      %10888 = vmatprep.subr.bf16.mxu0 0
      %10889 = vmatpush1.bf16.msra.mxu0 0
      %10890 = vmatprep.subr.bf16.mxu0 0
      %10891 = vmatpush1.bf16.msra.mxu0 0
      %10892 = vmatprep.subr.bf16.mxu0 0
      %10893 = vmatpush1.bf16.msra.mxu0 0
      %10894 = vmatprep.subr.bf16.mxu0 0
      %10895 = vmatpush1.bf16.msra.mxu0 0
      %10896 = vmatprep.subr.bf16.mxu0 0
      %10897 = vmatpush1.bf16.msra.mxu0 0
      %10898 = vmatprep.subr.bf16.mxu0 0
      %10899 = vmatpush1.bf16.msra.mxu0 0
      %10900 = vmatprep.subr.bf16.mxu0 0
      %10901 = vmatpush1.bf16.msra.mxu0 0
      %10902 = vmatprep.subr.bf16.mxu0 0
      %10903 = vmatpush1.bf16.msra.mxu0 0
      %10904 = vmatprep.subr.bf16.mxu0 0
      %10905 = vmatpush1.bf16.msra.mxu0 0
      %10906 = vmatprep.mubr.bf16.mxu0 0
      %10907 = vmatmul.mubr.bf16.gmra.mrb[0].mxu0 %v10872
      %v10908 = vpop.f32.mrb[0].mxu0
      %v10909 = vadd.f32 %v10857, %v10908
      %v10910 = vpop.f32.mrb[0].mxu0
      %v10911 = vpop.f32.mrb[0].mxu0
      %v10912 = vpop.f32.mrb[0].mxu0
      %10913 = vdwg.mxu0
      %10914 = vst [vmem:[%s382] sm:$0x1] %v10909
      %p10915 = scmp.lt.s32.totalorder %s22, 1
      %s10916 = scalar_select %p10915, %s22, 1
      %s10917 = scalar_lea.vmem %s11, %s10916
      // Predicated region
      $region69: #{_lambda_.1} parent=63 // pred_check
        %p10918 = pneg %p276
      $region70: #{_lambda_.1} parent=63 // pred_check_branch
        %10920 = sbr.rel (%p10918) target = $region72
      $region71: #{_lambda_.1} parent=63 // pred_region
        _
      $region72: #{_lambda_.1} parent=63 // pred_fallthru
        _
    $region64: #{_lambda_.1} parent=5 // pred_fallthru
      _
    %p10921 = scmp.le.s32.totalorder 2, %s17
    // Predicated region
    $region73: #{_lambda_.1} parent=5 // pred_check
      %p10922 = pneg %p10921
    $region74: #{_lambda_.1} parent=5 // pred_check_branch
      %10924 = sbr.rel (%p10922) target = $region76
    $region75: #{_lambda_.1} parent=5 // pred_region
      %s10925 = ssub.s32 %s17, 2
      // Predicated region
      $region77: #{_lambda_.1} parent=75 // pred_check
        %p10926 = pneg %p282
      $region78: #{_lambda_.1} parent=75 // pred_check_branch
        %10928 = sbr.rel (%p10926) target = $region80
      $region79: #{_lambda_.1} parent=75 // pred_region
        %p10929 = scmp.lt.s32.totalorder %s23, 1
        %s10930 = scalar_select %p10929, %s23, 1
        %s10931 = scalar_lea.vmem %s11, %s10930
      $region80: #{_lambda_.1} parent=75 // pred_fallthru
        _
    $region76: #{_lambda_.1} parent=5 // pred_fallthru
      _
  $region6: #{_lambda_.1} parent=0 // loop_footer
    %s21 = sadd.s32 1, %s17
  $region7: #{_lambda_.1} parent=0 // loop_footer_branch
    %16 = sbr.rel target = $region3
  $region8: #{_lambda_.1} parent=0 // loop_exit
    _

</llo_original>
